<compile_context>
chip_gen: v7x
topology: tpu7x:2x2x1
jax: 0.10.0
libtpu: 0.0.40
codegen_flags: <defaults>
</compile_context>

<pallas_src>
import functools

import jax
import jax.numpy as jnp
from jax.experimental import pallas as pl
from jax.experimental.pallas import tpu as pltpu

# ---- small, deterministic config (train_configs stand-in) -------------------
GEN_FILTERS = 8
INPUT_CHN = 3
LATENT_DIM = 16
KSIZE = 4
BN_EPS = 1e-5


def _round_up(x, m):
    return ((x + m - 1) // m) * m


# ----------------------------- Pallas kernel ---------------------------------
def _matmul_act_kernel(a_ref, w_ref, b_ref, t_ref, o_ref, *, act):
    # a_ref: (tm, K) bf16 patches, w_ref: (K, N) bf16 folded weights,
    # b_ref / t_ref: (1, N) f32 bias row / FReLU offset row.
    acc = jnp.dot(a_ref[...], w_ref[...], preferred_element_type=jnp.float32)
    acc = acc + b_ref[...]
    if act == "frelu":                       # FReLU ~= ReLU(x) + per-channel tau
        acc = jnp.maximum(acc, 0.0) + t_ref[...]
    elif act == "tanh":
        acc = jnp.tanh(acc)
    o_ref[...] = acc.astype(o_ref.dtype)


def fused_matmul(a, w, bias, tau, act, out_dtype=jnp.bfloat16):
    """act(a @ w + bias)[+ tau];  a:(M,K), w:(K,N), bias/tau:(N,).

    - K and N are never padded (full-extent blocks) -> no standalone HBM pad
      pass and no padded-column write amplification on the narrow layers.
    - M is tiled into 512/1024-row blocks when large so the BlockSpec pipeline
      overlaps DMA with MXU work (>= 4 steps on the big layers); tiny layers
      use one whole-layer block.
    - bf16 operands, f32 MXU accumulation + f32 epilogue, out_dtype store.
    """
    M, K = a.shape
    K2, N = w.shape
    assert K == K2
    if M >= 4096:
        tm = 1024
    elif M >= 1024:
        tm = 512
    else:
        tm = _round_up(M, 16)
    grid_m = pl.cdiv(M, tm)
    Mp = grid_m * tm

    a = jnp.pad(a.astype(jnp.bfloat16), ((0, Mp - M), (0, 0)))  # no-op on big layers
    w = w.astype(jnp.bfloat16)
    bias = bias.astype(jnp.float32).reshape(1, N)
    tau = tau.astype(jnp.float32).reshape(1, N)

    out_bytes = jnp.dtype(out_dtype).itemsize
    cost = pl.CostEstimate(
        flops=2 * Mp * K * N,
        transcendentals=Mp * N if act == "tanh" else 0,
        bytes_accessed=Mp * K * 2 + K * N * 2 + Mp * N * out_bytes + 8 * N,
    )

    kern = functools.partial(_matmul_act_kernel, act=act)
    out = pl.pallas_call(
        kern,
        out_shape=jax.ShapeDtypeStruct((Mp, N), out_dtype),
        grid_spec=pltpu.PrefetchScalarGridSpec(
            num_scalar_prefetch=0,
            grid=(grid_m,),
            in_specs=[
                pl.BlockSpec((tm, K), lambda i: (i, 0)),   # patch tile (full K)
                pl.BlockSpec((K, N), lambda i: (0, 0)),    # folded weights
                pl.BlockSpec((1, N), lambda i: (0, 0)),    # bias row
                pl.BlockSpec((1, N), lambda i: (0, 0)),    # FReLU tau row
            ],
            out_specs=pl.BlockSpec((tm, N), lambda i: (i, 0)),
        ),
        compiler_params=pltpu.CompilerParams(
            dimension_semantics=("parallel",),
            vmem_limit_bytes=32 * 1024 * 1024,
        ),
        cost_estimate=cost,
    )(a, w, bias, tau)
    return out if Mp == M else out[:M]


# --------------------------- layer folding glue --------------------------------
def _bn_fold(layer):
    """Per-output-channel (scale, shift) folding conv bias + eval-mode BatchNorm."""
    b = layer["b"]
    if "gamma" in layer:
        scale = layer["gamma"] * jax.lax.rsqrt(layer["var"] + BN_EPS)
        return scale, scale * b + layer["beta"] - scale * layer["mean"]
    return jnp.ones_like(b), b


def _subpixel_weight(w):
    """(Cin,Cout,4,4) ConvTranspose2d(s=2,p=1) weight -> (9*Cin, 4*Cout) matrix.

    Output column (a*2+b)*Cout + cout is output phase (a, b); row
    (di*3+dj)*Cin + cin matches a 3x3 im2col of the 1-zero-padded input:
      out[2m+a, 2n+b] = sum_{d,e in {0,1}} xp[m+a+d, n+b+e] * W[..., 3-a-2d, 3-b-2e]
    """
    cin, cout = w.shape[:2]
    wc = jnp.zeros((9 * cin, 4 * cout), w.dtype)
    for a in range(2):
        for b in range(2):
            for d in range(2):
                for e in range(2):
                    di, dj = a + d, b + e
                    kh, kw = 3 - a - 2 * d, 3 - b - 2 * e
                    r, c = (di * 3 + dj) * cin, (a * 2 + b) * cout
                    wc = wc.at[r:r + cin, c:c + cout].set(w[:, :, kh, kw])
    return wc


def _im2col3x3(xp):
    """xp: (N, H+2, W+2, C) -> (N*H*W, 9*C) patches, (di, dj, c) column order."""
    n, hp, wp, c = xp.shape
    h, w = hp - 2, wp - 2
    cols = [xp[:, di:di + h, dj:dj + w, :] for di in range(3) for dj in range(3)]
    return jnp.stack(cols, axis=3).reshape(n * h * w, 9 * c)


def deconv4x4_s2(x, layer, act, out_dtype=jnp.bfloat16):
    """ConvTranspose2d(k=4, s=2, p=1) (+ folded BN) (+ FReLU / Tanh); NHWC in/out."""
    n, h, w_sp, cin = x.shape
    wt = layer["w"]                                   # (Cin, Cout, 4, 4)
    cout = wt.shape[1]
    scale, bias = _bn_fold(layer)
    tau = layer["tau"] if "tau" in layer else jnp.zeros_like(bias)

    wc = _subpixel_weight(wt) * jnp.tile(scale, 4)[None, :]
    # TODO(synk): in-kernel im2col (halo-overlapping BlockSpec over H) for the
    #             two largest layers would cut patch-side HBM traffic ~5-8x more.
    xp = jnp.pad(x.astype(jnp.bfloat16), ((0, 0), (1, 1), (1, 1), (0, 0)))
    a = _im2col3x3(xp)                                # (N*H*W, 9*Cin) bf16
    out = fused_matmul(a, wc, jnp.tile(bias, 4), jnp.tile(tau, 4), act=act,
                       out_dtype=out_dtype)
    out = out.reshape(n, h, w_sp, 2, 2, cout)         # (..., a, b, cout)
    # TODO(synk): the sub-pixel phase scatter stays a JAX transpose (BlockSpec
    #             cannot express the stride-2 scatter); it now runs over the
    #             narrow, unpadded bf16/f32 output instead of a 128-lane f32 slab.
    return out.transpose(0, 1, 3, 2, 4, 5).reshape(n, 2 * h, 2 * w_sp, cout)


def project4x4(z, layer):
    """ConvTranspose2d(LATENT_DIM, C, 4, 1, 0) on a 1x1 map == pure matmul."""
    wt = layer["w"]                                   # (LATENT_DIM, Cout, 4, 4)
    cin, cout = wt.shape[:2]
    scale, bias = _bn_fold(layer)
    tau = layer["tau"]
    wm = jnp.transpose(wt, (0, 2, 3, 1)).reshape(cin, 16 * cout)   # (kh,kw,cout) cols
    wm = wm * jnp.tile(scale, 16)[None, :]
    out = fused_matmul(z, wm, jnp.tile(bias, 16), jnp.tile(tau, 16), act="frelu")
    return out.reshape(z.shape[0], 4, 4, cout)        # NHWC, 4x4, bf16


# ----------------------------- full generator ---------------------------------
def generator_forward(z, params):
    # TODO(synk): the tiny early layers (project + 4->8 + 8->16) could be fused
    #             into one pallas_call keeping intermediates in VMEM to shave
    #             launch/DMA latency; kept separate here for robustness.
    x = project4x4(z, params[0])                      # (N, 4, 4, 16*GF)
    for layer in params[1:-1]:
        x = deconv4x4_s2(x, layer, act="frelu")       # 4 -> 8 -> 16 -> 32 -> 64
    x = deconv4x4_s2(x, params[-1], act="tanh",
                     out_dtype=jnp.float32)           # 64 -> 128, Tanh, f32 out
    return jnp.transpose(x, (0, 3, 1, 2))             # NHWC -> NCHW


def init_params(key):
    chans = [LATENT_DIM, GEN_FILTERS * 16, GEN_FILTERS * 8, GEN_FILTERS * 4,
             GEN_FILTERS * 2, GEN_FILTERS, INPUT_CHN]
    params = []
    for i in range(6):
        cin, cout = chans[i], chans[i + 1]
        key, kw_, kb_ = jax.random.split(key, 3)
        bound = 1.0 / float(cin * KSIZE * KSIZE) ** 0.5
        w = jax.random.uniform(kw_, (cin, cout, KSIZE, KSIZE), jnp.float32, -bound, bound)
        b = jax.random.uniform(kb_, (cout,), jnp.float32, -bound, bound)
        layer = {"w": w, "b": b}
        if i < 5:   # BatchNorm2d + FReLU follow every layer except the last (Tanh)
            layer.update(
                gamma=jnp.ones((cout,), jnp.float32),
                beta=jnp.zeros((cout,), jnp.float32),
                mean=jnp.zeros((cout,), jnp.float32),
                var=jnp.ones((cout,), jnp.float32),
                tau=jnp.zeros((cout,), jnp.float32),  # FReLU per-channel offset
            )
        params.append(layer)
    return params


if __name__ == "__main__":
    key = jax.random.PRNGKey(0)
    pkey, zkey = jax.random.split(key)
    params = init_params(pkey)
    z = jax.random.normal(zkey, (2, LATENT_DIM), jnp.float32)   # latent batch

    fwd = jax.jit(generator_forward)
    out = fwd(z, params)
    jax.block_until_ready(out)
    assert out.shape == (2, INPUT_CHN, 128, 128), out.shape
    assert out.dtype == jnp.float32, out.dtype
    print("KERNEL_OK")
</pallas_src>

<mosaic_0001>
module attributes {stable_mosaic.version = 11 : i64} {
  func.func @_matmul_act_kernel(%arg0: i32, %arg1: memref<16x16xbf16, #tpu.memory_space<vmem>>, %arg2: memref<16x2048xbf16, #tpu.memory_space<vmem>>, %arg3: memref<1x2048xf32, #tpu.memory_space<vmem>>, %arg4: memref<1x2048xf32, #tpu.memory_space<vmem>>, %arg5: memref<16x2048xbf16, #tpu.memory_space<vmem>>) attributes {dimension_semantics = [#tpu.dimension_semantics<parallel>], iteration_bounds = array<i64: 1>, scalar_prefetch = 0 : i64, scratch_operands = 0 : i64, tpu.core_type = #tpu.core_type<tc>, window_params = [{transform_indices = @transform_0, window_bounds = array<i64: 16, 16>}, {pipeline_mode = #tpu.pipeline_mode<synchronous>, transform_indices = @transform_1, window_bounds = array<i64: 16, 2048>}, {pipeline_mode = #tpu.pipeline_mode<synchronous>, transform_indices = @transform_2, window_bounds = array<i64: 1, 2048>}, {pipeline_mode = #tpu.pipeline_mode<synchronous>, transform_indices = @transform_3, window_bounds = array<i64: 1, 2048>}, {transform_indices = @transform_4, window_bounds = array<i64: 16, 2048>}]} {
    %c0 = arith.constant 0 : index
    %c0_0 = arith.constant 0 : index
    %0 = vector.load %arg1[%c0, %c0_0] : memref<16x16xbf16, #tpu.memory_space<vmem>>, vector<16x16xbf16>
    %c0_1 = arith.constant 0 : index
    %c0_2 = arith.constant 0 : index
    %1 = vector.load %arg2[%c0_1, %c0_2] : memref<16x2048xbf16, #tpu.memory_space<vmem>>, vector<16x2048xbf16>
    %cst = arith.constant dense<0.000000e+00> : vector<16x2048xf32>
    %2 = tpu.matmul %0, %1, %cst {dimension_numbers = #tpu.dot_dimension_numbers<[1], [0], [0], [1], [0, 0, 1, 1], [], []>} : vector<16x16xbf16>, vector<16x2048xbf16>, vector<16x2048xf32> -> vector<16x2048xf32>
    %c0_3 = arith.constant 0 : index
    %c0_4 = arith.constant 0 : index
    %3 = vector.load %arg3[%c0_3, %c0_4] : memref<1x2048xf32, #tpu.memory_space<vmem>>, vector<1x2048xf32>
    %4 = vector.broadcast %3 : vector<1x2048xf32> to vector<16x2048xf32>
    %5 = arith.addf %2, %4 : vector<16x2048xf32>
    %cst_5 = arith.constant 0.000000e+00 : f32
    %6 = vector.broadcast %cst_5 : f32 to vector<16x2048xf32>
    %7 = arith.maximumf %5, %6 : vector<16x2048xf32>
    %c0_6 = arith.constant 0 : index
    %c0_7 = arith.constant 0 : index
    %8 = vector.load %arg4[%c0_6, %c0_7] : memref<1x2048xf32, #tpu.memory_space<vmem>>, vector<1x2048xf32>
    %9 = vector.broadcast %8 : vector<1x2048xf32> to vector<16x2048xf32>
    %10 = arith.addf %7, %9 : vector<16x2048xf32>
    %11 = arith.truncf %10 : vector<16x2048xf32> to vector<16x2048xbf16>
    %c0_8 = arith.constant 0 : index
    %c0_9 = arith.constant 0 : index
    %12 = vector.load %arg5[%c0_8, %c0_9] : memref<16x2048xbf16, #tpu.memory_space<vmem>>, vector<16x2048xbf16>
    tpu.vector_store %arg5[%c0_8, %c0_9], %11 {strides = array<i32>} : memref<16x2048xbf16, #tpu.memory_space<vmem>>, vector<16x2048xbf16>,
    return
  }
  func.func @transform_0(%arg0: i32) -> (i32, i32) {
    %c0_i32 = arith.constant 0 : i32
    %c0_i32_0 = arith.constant 0 : i32
    return %arg0, %c0_i32 : i32, i32
  }
  func.func @transform_1(%arg0: i32) -> (i32, i32) {
    %c0_i32 = arith.constant 0 : i32
    %c0_i32_0 = arith.constant 0 : i32
    %c0_i32_1 = arith.constant 0 : i32
    return %c0_i32, %c0_i32_0 : i32, i32
  }
  func.func @transform_2(%arg0: i32) -> (i32, i32) {
    %c0_i32 = arith.constant 0 : i32
    %c0_i32_0 = arith.constant 0 : i32
    %c0_i32_1 = arith.constant 0 : i32
    return %c0_i32, %c0_i32_0 : i32, i32
  }
  func.func @transform_3(%arg0: i32) -> (i32, i32) {
    %c0_i32 = arith.constant 0 : i32
    %c0_i32_0 = arith.constant 0 : i32
    %c0_i32_1 = arith.constant 0 : i32
    return %c0_i32, %c0_i32_0 : i32, i32
  }
  func.func @transform_4(%arg0: i32) -> (i32, i32) {
    %c0_i32 = arith.constant 0 : i32
    %c0_i32_0 = arith.constant 0 : i32
    return %arg0, %c0_i32 : i32, i32
  }
}

module attributes {stable_mosaic.version = 11 : i64} {
  func.func @_matmul_act_kernel(%arg0: i32, %arg1: memref<32x1152xbf16, #tpu.memory_space<vmem>>, %arg2: memref<1152x256xbf16, #tpu.memory_space<vmem>>, %arg3: memref<1x256xf32, #tpu.memory_space<vmem>>, %arg4: memref<1x256xf32, #tpu.memory_space<vmem>>, %arg5: memref<32x256xbf16, #tpu.memory_space<vmem>>) attributes {dimension_semantics = [#tpu.dimension_semantics<parallel>], iteration_bounds = array<i64: 1>, scalar_prefetch = 0 : i64, scratch_operands = 0 : i64, tpu.core_type = #tpu.core_type<tc>, window_params = [{transform_indices = @transform_0, window_bounds = array<i64: 32, 1152>}, {pipeline_mode = #tpu.pipeline_mode<synchronous>, transform_indices = @transform_1, window_bounds = array<i64: 1152, 256>}, {pipeline_mode = #tpu.pipeline_mode<synchronous>, transform_indices = @transform_2, window_bounds = array<i64: 1, 256>}, {pipeline_mode = #tpu.pipeline_mode<synchronous>, transform_indices = @transform_3, window_bounds = array<i64: 1, 256>}, {transform_indices = @transform_4, window_bounds = array<i64: 32, 256>}]} {
    %c0 = arith.constant 0 : index
    %c0_0 = arith.constant 0 : index
    %0 = vector.load %arg1[%c0, %c0_0] : memref<32x1152xbf16, #tpu.memory_space<vmem>>, vector<32x1152xbf16>
    %c0_1 = arith.constant 0 : index
    %c0_2 = arith.constant 0 : index
    %1 = vector.load %arg2[%c0_1, %c0_2] : memref<1152x256xbf16, #tpu.memory_space<vmem>>, vector<1152x256xbf16>
    %cst = arith.constant dense<0.000000e+00> : vector<32x256xf32>
    %2 = tpu.matmul %0, %1, %cst {dimension_numbers = #tpu.dot_dimension_numbers<[1], [0], [0], [1], [0, 0, 1, 1], [], []>} : vector<32x1152xbf16>, vector<1152x256xbf16>, vector<32x256xf32> -> vector<32x256xf32>
    %c0_3 = arith.constant 0 : index
    %c0_4 = arith.constant 0 : index
    %3 = vector.load %arg3[%c0_3, %c0_4] : memref<1x256xf32, #tpu.memory_space<vmem>>, vector<1x256xf32>
    %4 = vector.broadcast %3 : vector<1x256xf32> to vector<32x256xf32>
    %5 = arith.addf %2, %4 : vector<32x256xf32>
    %cst_5 = arith.constant 0.000000e+00 : f32
    %6 = vector.broadcast %cst_5 : f32 to vector<32x256xf32>
    %7 = arith.maximumf %5, %6 : vector<32x256xf32>
    %c0_6 = arith.constant 0 : index
    %c0_7 = arith.constant 0 : index
    %8 = vector.load %arg4[%c0_6, %c0_7] : memref<1x256xf32, #tpu.memory_space<vmem>>, vector<1x256xf32>
    %9 = vector.broadcast %8 : vector<1x256xf32> to vector<32x256xf32>
    %10 = arith.addf %7, %9 : vector<32x256xf32>
    %11 = arith.truncf %10 : vector<32x256xf32> to vector<32x256xbf16>
    %c0_8 = arith.constant 0 : index
    %c0_9 = arith.constant 0 : index
    %12 = vector.load %arg5[%c0_8, %c0_9] : memref<32x256xbf16, #tpu.memory_space<vmem>>, vector<32x256xbf16>
    tpu.vector_store %arg5[%c0_8, %c0_9], %11 {strides = array<i32>} : memref<32x256xbf16, #tpu.memory_space<vmem>>, vector<32x256xbf16>,
    return
  }
  func.func @transform_0(%arg0: i32) -> (i32, i32) {
    %c0_i32 = arith.constant 0 : i32
    %c0_i32_0 = arith.constant 0 : i32
    return %arg0, %c0_i32 : i32, i32
  }
  func.func @transform_1(%arg0: i32) -> (i32, i32) {
    %c0_i32 = arith.constant 0 : i32
    %c0_i32_0 = arith.constant 0 : i32
    %c0_i32_1 = arith.constant 0 : i32
    return %c0_i32, %c0_i32_0 : i32, i32
  }
  func.func @transform_2(%arg0: i32) -> (i32, i32) {
    %c0_i32 = arith.constant 0 : i32
    %c0_i32_0 = arith.constant 0 : i32
    %c0_i32_1 = arith.constant 0 : i32
    return %c0_i32, %c0_i32_0 : i32, i32
  }
  func.func @transform_3(%arg0: i32) -> (i32, i32) {
    %c0_i32 = arith.constant 0 : i32
    %c0_i32_0 = arith.constant 0 : i32
    %c0_i32_1 = arith.constant 0 : i32
    return %c0_i32, %c0_i32_0 : i32, i32
  }
  func.func @transform_4(%arg0: i32) -> (i32, i32) {
    %c0_i32 = arith.constant 0 : i32
    %c0_i32_0 = arith.constant 0 : i32
    return %arg0, %c0_i32 : i32, i32
  }
}

module attributes {stable_mosaic.version = 11 : i64} {
  func.func @_matmul_act_kernel(%arg0: i32, %arg1: memref<128x576xbf16, #tpu.memory_space<vmem>>, %arg2: memref<576x128xbf16, #tpu.memory_space<vmem>>, %arg3: memref<1x128xf32, #tpu.memory_space<vmem>>, %arg4: memref<1x128xf32, #tpu.memory_space<vmem>>, %arg5: memref<128x128xbf16, #tpu.memory_space<vmem>>) attributes {dimension_semantics = [#tpu.dimension_semantics<parallel>], iteration_bounds = array<i64: 1>, scalar_prefetch = 0 : i64, scratch_operands = 0 : i64, tpu.core_type = #tpu.core_type<tc>, window_params = [{transform_indices = @transform_0, window_bounds = array<i64: 128, 576>}, {pipeline_mode = #tpu.pipeline_mode<synchronous>, transform_indices = @transform_1, window_bounds = array<i64: 576, 128>}, {pipeline_mode = #tpu.pipeline_mode<synchronous>, transform_indices = @transform_2, window_bounds = array<i64: 1, 128>}, {pipeline_mode = #tpu.pipeline_mode<synchronous>, transform_indices = @transform_3, window_bounds = array<i64: 1, 128>}, {transform_indices = @transform_4, window_bounds = array<i64: 128, 128>}]} {
    %c0 = arith.constant 0 : index
    %c0_0 = arith.constant 0 : index
    %0 = vector.load %arg1[%c0, %c0_0] : memref<128x576xbf16, #tpu.memory_space<vmem>>, vector<128x576xbf16>
    %c0_1 = arith.constant 0 : index
    %c0_2 = arith.constant 0 : index
    %1 = vector.load %arg2[%c0_1, %c0_2] : memref<576x128xbf16, #tpu.memory_space<vmem>>, vector<576x128xbf16>
    %cst = arith.constant dense<0.000000e+00> : vector<128x128xf32>
    %2 = tpu.matmul %0, %1, %cst {dimension_numbers = #tpu.dot_dimension_numbers<[1], [0], [0], [1], [0, 0, 1, 1], [], []>} : vector<128x576xbf16>, vector<576x128xbf16>, vector<128x128xf32> -> vector<128x128xf32>
    %c0_3 = arith.constant 0 : index
    %c0_4 = arith.constant 0 : index
    %3 = vector.load %arg3[%c0_3, %c0_4] : memref<1x128xf32, #tpu.memory_space<vmem>>, vector<1x128xf32>
    %4 = vector.broadcast %3 : vector<1x128xf32> to vector<128x128xf32>
    %5 = arith.addf %2, %4 : vector<128x128xf32>
    %cst_5 = arith.constant 0.000000e+00 : f32
    %6 = vector.broadcast %cst_5 : f32 to vector<128x128xf32>
    %7 = arith.maximumf %5, %6 : vector<128x128xf32>
    %c0_6 = arith.constant 0 : index
    %c0_7 = arith.constant 0 : index
    %8 = vector.load %arg4[%c0_6, %c0_7] : memref<1x128xf32, #tpu.memory_space<vmem>>, vector<1x128xf32>
    %9 = vector.broadcast %8 : vector<1x128xf32> to vector<128x128xf32>
    %10 = arith.addf %7, %9 : vector<128x128xf32>
    %11 = arith.truncf %10 : vector<128x128xf32> to vector<128x128xbf16>
    %c0_8 = arith.constant 0 : index
    %c0_9 = arith.constant 0 : index
    %12 = vector.load %arg5[%c0_8, %c0_9] : memref<128x128xbf16, #tpu.memory_space<vmem>>, vector<128x128xbf16>
    tpu.vector_store %arg5[%c0_8, %c0_9], %11 {strides = array<i32>} : memref<128x128xbf16, #tpu.memory_space<vmem>>, vector<128x128xbf16>,
    return
  }
  func.func @transform_0(%arg0: i32) -> (i32, i32) {
    %c0_i32 = arith.constant 0 : i32
    %c0_i32_0 = arith.constant 0 : i32
    return %arg0, %c0_i32 : i32, i32
  }
  func.func @transform_1(%arg0: i32) -> (i32, i32) {
    %c0_i32 = arith.constant 0 : i32
    %c0_i32_0 = arith.constant 0 : i32
    %c0_i32_1 = arith.constant 0 : i32
    return %c0_i32, %c0_i32_0 : i32, i32
  }
  func.func @transform_2(%arg0: i32) -> (i32, i32) {
    %c0_i32 = arith.constant 0 : i32
    %c0_i32_0 = arith.constant 0 : i32
    %c0_i32_1 = arith.constant 0 : i32
    return %c0_i32, %c0_i32_0 : i32, i32
  }
  func.func @transform_3(%arg0: i32) -> (i32, i32) {
    %c0_i32 = arith.constant 0 : i32
    %c0_i32_0 = arith.constant 0 : i32
    %c0_i32_1 = arith.constant 0 : i32
    return %c0_i32, %c0_i32_0 : i32, i32
  }
  func.func @transform_4(%arg0: i32) -> (i32, i32) {
    %c0_i32 = arith.constant 0 : i32
    %c0_i32_0 = arith.constant 0 : i32
    return %arg0, %c0_i32 : i32, i32
  }
}

module attributes {stable_mosaic.version = 11 : i64} {
  func.func @_matmul_act_kernel(%arg0: i32, %arg1: memref<512x288xbf16, #tpu.memory_space<vmem>>, %arg2: memref<288x64xbf16, #tpu.memory_space<vmem>>, %arg3: memref<1x64xf32, #tpu.memory_space<vmem>>, %arg4: memref<1x64xf32, #tpu.memory_space<vmem>>, %arg5: memref<512x64xbf16, #tpu.memory_space<vmem>>) attributes {dimension_semantics = [#tpu.dimension_semantics<parallel>], iteration_bounds = array<i64: 1>, scalar_prefetch = 0 : i64, scratch_operands = 0 : i64, tpu.core_type = #tpu.core_type<tc>, window_params = [{transform_indices = @transform_0, window_bounds = array<i64: 512, 288>}, {pipeline_mode = #tpu.pipeline_mode<synchronous>, transform_indices = @transform_1, window_bounds = array<i64: 288, 64>}, {pipeline_mode = #tpu.pipeline_mode<synchronous>, transform_indices = @transform_2, window_bounds = array<i64: 1, 64>}, {pipeline_mode = #tpu.pipeline_mode<synchronous>, transform_indices = @transform_3, window_bounds = array<i64: 1, 64>}, {transform_indices = @transform_4, window_bounds = array<i64: 512, 64>}]} {
    %c0 = arith.constant 0 : index
    %c0_0 = arith.constant 0 : index
    %0 = vector.load %arg1[%c0, %c0_0] : memref<512x288xbf16, #tpu.memory_space<vmem>>, vector<512x288xbf16>
    %c0_1 = arith.constant 0 : index
    %c0_2 = arith.constant 0 : index
    %1 = vector.load %arg2[%c0_1, %c0_2] : memref<288x64xbf16, #tpu.memory_space<vmem>>, vector<288x64xbf16>
    %cst = arith.constant dense<0.000000e+00> : vector<512x64xf32>
    %2 = tpu.matmul %0, %1, %cst {dimension_numbers = #tpu.dot_dimension_numbers<[1], [0], [0], [1], [0, 0, 1, 1], [], []>} : vector<512x288xbf16>, vector<288x64xbf16>, vector<512x64xf32> -> vector<512x64xf32>
    %c0_3 = arith.constant 0 : index
    %c0_4 = arith.constant 0 : index
    %3 = vector.load %arg3[%c0_3, %c0_4] : memref<1x64xf32, #tpu.memory_space<vmem>>, vector<1x64xf32>
    %4 = vector.broadcast %3 : vector<1x64xf32> to vector<512x64xf32>
    %5 = arith.addf %2, %4 : vector<512x64xf32>
    %cst_5 = arith.constant 0.000000e+00 : f32
    %6 = vector.broadcast %cst_5 : f32 to vector<512x64xf32>
    %7 = arith.maximumf %5, %6 : vector<512x64xf32>
    %c0_6 = arith.constant 0 : index
    %c0_7 = arith.constant 0 : index
    %8 = vector.load %arg4[%c0_6, %c0_7] : memref<1x64xf32, #tpu.memory_space<vmem>>, vector<1x64xf32>
    %9 = vector.broadcast %8 : vector<1x64xf32> to vector<512x64xf32>
    %10 = arith.addf %7, %9 : vector<512x64xf32>
    %11 = arith.truncf %10 : vector<512x64xf32> to vector<512x64xbf16>
    %c0_8 = arith.constant 0 : index
    %c0_9 = arith.constant 0 : index
    %12 = vector.load %arg5[%c0_8, %c0_9] : memref<512x64xbf16, #tpu.memory_space<vmem>>, vector<512x64xbf16>
    tpu.vector_store %arg5[%c0_8, %c0_9], %11 {strides = array<i32>} : memref<512x64xbf16, #tpu.memory_space<vmem>>, vector<512x64xbf16>,
    return
  }
  func.func @transform_0(%arg0: i32) -> (i32, i32) {
    %c0_i32 = arith.constant 0 : i32
    %c0_i32_0 = arith.constant 0 : i32
    return %arg0, %c0_i32 : i32, i32
  }
  func.func @transform_1(%arg0: i32) -> (i32, i32) {
    %c0_i32 = arith.constant 0 : i32
    %c0_i32_0 = arith.constant 0 : i32
    %c0_i32_1 = arith.constant 0 : i32
    return %c0_i32, %c0_i32_0 : i32, i32
  }
  func.func @transform_2(%arg0: i32) -> (i32, i32) {
    %c0_i32 = arith.constant 0 : i32
    %c0_i32_0 = arith.constant 0 : i32
    %c0_i32_1 = arith.constant 0 : i32
    return %c0_i32, %c0_i32_0 : i32, i32
  }
  func.func @transform_3(%arg0: i32) -> (i32, i32) {
    %c0_i32 = arith.constant 0 : i32
    %c0_i32_0 = arith.constant 0 : i32
    %c0_i32_1 = arith.constant 0 : i32
    return %c0_i32, %c0_i32_0 : i32, i32
  }
  func.func @transform_4(%arg0: i32) -> (i32, i32) {
    %c0_i32 = arith.constant 0 : i32
    %c0_i32_0 = arith.constant 0 : i32
    return %arg0, %c0_i32 : i32, i32
  }
}

module attributes {stable_mosaic.version = 11 : i64} {
  func.func @_matmul_act_kernel(%arg0: i32, %arg1: memref<512x144xbf16, #tpu.memory_space<vmem>>, %arg2: memref<144x32xbf16, #tpu.memory_space<vmem>>, %arg3: memref<1x32xf32, #tpu.memory_space<vmem>>, %arg4: memref<1x32xf32, #tpu.memory_space<vmem>>, %arg5: memref<512x32xbf16, #tpu.memory_space<vmem>>) attributes {dimension_semantics = [#tpu.dimension_semantics<parallel>], iteration_bounds = array<i64: 4>, scalar_prefetch = 0 : i64, scratch_operands = 0 : i64, tpu.core_type = #tpu.core_type<tc>, window_params = [{transform_indices = @transform_0, window_bounds = array<i64: 512, 144>}, {pipeline_mode = #tpu.pipeline_mode<synchronous>, transform_indices = @transform_1, window_bounds = array<i64: 144, 32>}, {pipeline_mode = #tpu.pipeline_mode<synchronous>, transform_indices = @transform_2, window_bounds = array<i64: 1, 32>}, {pipeline_mode = #tpu.pipeline_mode<synchronous>, transform_indices = @transform_3, window_bounds = array<i64: 1, 32>}, {transform_indices = @transform_4, window_bounds = array<i64: 512, 32>}]} {
    %c0 = arith.constant 0 : index
    %c0_0 = arith.constant 0 : index
    %0 = vector.load %arg1[%c0, %c0_0] : memref<512x144xbf16, #tpu.memory_space<vmem>>, vector<512x144xbf16>
    %c0_1 = arith.constant 0 : index
    %c0_2 = arith.constant 0 : index
    %1 = vector.load %arg2[%c0_1, %c0_2] : memref<144x32xbf16, #tpu.memory_space<vmem>>, vector<144x32xbf16>
    %cst = arith.constant dense<0.000000e+00> : vector<512x32xf32>
    %2 = tpu.matmul %0, %1, %cst {dimension_numbers = #tpu.dot_dimension_numbers<[1], [0], [0], [1], [0, 0, 1, 1], [], []>} : vector<512x144xbf16>, vector<144x32xbf16>, vector<512x32xf32> -> vector<512x32xf32>
    %c0_3 = arith.constant 0 : index
    %c0_4 = arith.constant 0 : index
    %3 = vector.load %arg3[%c0_3, %c0_4] : memref<1x32xf32, #tpu.memory_space<vmem>>, vector<1x32xf32>
    %4 = vector.broadcast %3 : vector<1x32xf32> to vector<512x32xf32>
    %5 = arith.addf %2, %4 : vector<512x32xf32>
    %cst_5 = arith.constant 0.000000e+00 : f32
    %6 = vector.broadcast %cst_5 : f32 to vector<512x32xf32>
    %7 = arith.maximumf %5, %6 : vector<512x32xf32>
    %c0_6 = arith.constant 0 : index
    %c0_7 = arith.constant 0 : index
    %8 = vector.load %arg4[%c0_6, %c0_7] : memref<1x32xf32, #tpu.memory_space<vmem>>, vector<1x32xf32>
    %9 = vector.broadcast %8 : vector<1x32xf32> to vector<512x32xf32>
    %10 = arith.addf %7, %9 : vector<512x32xf32>
    %11 = arith.truncf %10 : vector<512x32xf32> to vector<512x32xbf16>
    %c0_8 = arith.constant 0 : index
    %c0_9 = arith.constant 0 : index
    %12 = vector.load %arg5[%c0_8, %c0_9] : memref<512x32xbf16, #tpu.memory_space<vmem>>, vector<512x32xbf16>
    tpu.vector_store %arg5[%c0_8, %c0_9], %11 {strides = array<i32>} : memref<512x32xbf16, #tpu.memory_space<vmem>>, vector<512x32xbf16>,
    return
  }
  func.func @transform_0(%arg0: i32) -> (i32, i32) {
    %c0_i32 = arith.constant 0 : i32
    %c0_i32_0 = arith.constant 0 : i32
    return %arg0, %c0_i32 : i32, i32
  }
  func.func @transform_1(%arg0: i32) -> (i32, i32) {
    %c0_i32 = arith.constant 0 : i32
    %c0_i32_0 = arith.constant 0 : i32
    %c0_i32_1 = arith.constant 0 : i32
    return %c0_i32, %c0_i32_0 : i32, i32
  }
  func.func @transform_2(%arg0: i32) -> (i32, i32) {
    %c0_i32 = arith.constant 0 : i32
    %c0_i32_0 = arith.constant 0 : i32
    %c0_i32_1 = arith.constant 0 : i32
    return %c0_i32, %c0_i32_0 : i32, i32
  }
  func.func @transform_3(%arg0: i32) -> (i32, i32) {
    %c0_i32 = arith.constant 0 : i32
    %c0_i32_0 = arith.constant 0 : i32
    %c0_i32_1 = arith.constant 0 : i32
    return %c0_i32, %c0_i32_0 : i32, i32
  }
  func.func @transform_4(%arg0: i32) -> (i32, i32) {
    %c0_i32 = arith.constant 0 : i32
    %c0_i32_0 = arith.constant 0 : i32
    return %arg0, %c0_i32 : i32, i32
  }
}

module attributes {stable_mosaic.version = 11 : i64} {
  func.func @_matmul_act_kernel(%arg0: i32, %arg1: memref<1024x72xbf16, #tpu.memory_space<vmem>>, %arg2: memref<72x12xbf16, #tpu.memory_space<vmem>>, %arg3: memref<1x12xf32, #tpu.memory_space<vmem>>, %arg4: memref<1x12xf32, #tpu.memory_space<vmem>>, %arg5: memref<1024x12xf32, #tpu.memory_space<vmem>>) attributes {dimension_semantics = [#tpu.dimension_semantics<parallel>], iteration_bounds = array<i64: 8>, scalar_prefetch = 0 : i64, scratch_operands = 0 : i64, tpu.core_type = #tpu.core_type<tc>, window_params = [{transform_indices = @transform_0, window_bounds = array<i64: 1024, 72>}, {pipeline_mode = #tpu.pipeline_mode<synchronous>, transform_indices = @transform_1, window_bounds = array<i64: 72, 12>}, {pipeline_mode = #tpu.pipeline_mode<synchronous>, transform_indices = @transform_2, window_bounds = array<i64: 1, 12>}, {pipeline_mode = #tpu.pipeline_mode<synchronous>, transform_indices = @transform_3, window_bounds = array<i64: 1, 12>}, {transform_indices = @transform_4, window_bounds = array<i64: 1024, 12>}]} {
    %c0 = arith.constant 0 : index
    %c0_0 = arith.constant 0 : index
    %0 = vector.load %arg1[%c0, %c0_0] : memref<1024x72xbf16, #tpu.memory_space<vmem>>, vector<1024x72xbf16>
    %c0_1 = arith.constant 0 : index
    %c0_2 = arith.constant 0 : index
    %1 = vector.load %arg2[%c0_1, %c0_2] : memref<72x12xbf16, #tpu.memory_space<vmem>>, vector<72x12xbf16>
    %cst = arith.constant dense<0.000000e+00> : vector<1024x12xf32>
    %2 = tpu.matmul %0, %1, %cst {dimension_numbers = #tpu.dot_dimension_numbers<[1], [0], [0], [1], [0, 0, 1, 1], [], []>} : vector<1024x72xbf16>, vector<72x12xbf16>, vector<1024x12xf32> -> vector<1024x12xf32>
    %c0_3 = arith.constant 0 : index
    %c0_4 = arith.constant 0 : index
    %3 = vector.load %arg3[%c0_3, %c0_4] : memref<1x12xf32, #tpu.memory_space<vmem>>, vector<1x12xf32>
    %4 = vector.broadcast %3 : vector<1x12xf32> to vector<1024x12xf32>
    %5 = arith.addf %2, %4 : vector<1024x12xf32>
    %6 = math.tanh %5 : vector<1024x12xf32>
    %c0_5 = arith.constant 0 : index
    %c0_6 = arith.constant 0 : index
    %7 = vector.load %arg5[%c0_5, %c0_6] : memref<1024x12xf32, #tpu.memory_space<vmem>>, vector<1024x12xf32>
    tpu.vector_store %arg5[%c0_5, %c0_6], %6 {strides = array<i32>} : memref<1024x12xf32, #tpu.memory_space<vmem>>, vector<1024x12xf32>,
    return
  }
  func.func @transform_0(%arg0: i32) -> (i32, i32) {
    %c0_i32 = arith.constant 0 : i32
    %c0_i32_0 = arith.constant 0 : i32
    return %arg0, %c0_i32 : i32, i32
  }
  func.func @transform_1(%arg0: i32) -> (i32, i32) {
    %c0_i32 = arith.constant 0 : i32
    %c0_i32_0 = arith.constant 0 : i32
    %c0_i32_1 = arith.constant 0 : i32
    return %c0_i32, %c0_i32_0 : i32, i32
  }
  func.func @transform_2(%arg0: i32) -> (i32, i32) {
    %c0_i32 = arith.constant 0 : i32
    %c0_i32_0 = arith.constant 0 : i32
    %c0_i32_1 = arith.constant 0 : i32
    return %c0_i32, %c0_i32_0 : i32, i32
  }
  func.func @transform_3(%arg0: i32) -> (i32, i32) {
    %c0_i32 = arith.constant 0 : i32
    %c0_i32_0 = arith.constant 0 : i32
    %c0_i32_1 = arith.constant 0 : i32
    return %c0_i32, %c0_i32_0 : i32, i32
  }
  func.func @transform_4(%arg0: i32) -> (i32, i32) {
    %c0_i32 = arith.constant 0 : i32
    %c0_i32_0 = arith.constant 0 : i32
    return %arg0, %c0_i32 : i32, i32
  }
}

</mosaic_0001>

<llo_original>
// kernel: tile.98
$region0: #{tile.98}
  #allocation0 [shape = 's32[1]{0}', space=sflag, size = 0x4, scoped, tag = 'scoped memory for tile.98']
  %s0 = inlined_call_operand.vmem [shape: f32[64], index: 0, kind: input, shape index: {}]
  %s1 = inlined_call_operand.vmem [shape: f32[4,64], index: 1, kind: output, shape index: {}]
  // Predicated region
  $region2: #{tile.98} parent=0 // pred_check
    _
  $region3: #{tile.98} parent=0 // pred_check_branch
    %3 = sbr.rel (0) target = $region5
  $region4: #{tile.98} parent=0 // pred_region
    _
  $region5: #{tile.98} parent=0 // pred_fallthru
    _
  %v4 = vld [vmem:[%s0] ss:$0 sm:$0xff]
  %5 = vst [vmem:[%s1] sm:$0xf] %v4

// kernel: mul.46
$region0: #{mul.46}
  %s0 = inlined_call_operand.vmem [shape: f32[4,64], index: 0, kind: input, shape index: {}]
  %s1 = inlined_call_operand.vmem [shape: f32[256], index: 1, kind: output, shape index: {}]
  $region1: #{mul.46} parent=0
    #allocation0 [shape = 'u8[4096]{0}', space=vmem, size = 0x1000, scoped, tag = 'scoped mem for output reshape']
    #allocation1 [shape = 'u8[4096]{0}', space=vmem, size = 0x1000, scoped, tag = 'scoped mem for input reshape']
    %s3 = sshllo.u32 0, 4
    %v4 = vld [vmem:[%s0] sm:%s3]
    %5 = vst [vmem:[#allocation1] sm:%s3] %v4
    %s6 = smov 3
    %v7 = vld [vmem:[#allocation1] ss:$2 sm:%s6]
    %vm8 = vcmask 523264
    %9 = vst.msk [vmem:[#allocation0] sm:$0x3] %vm8, %v7
    %s10 = scalar_lea.vmem [#allocation1], 1
    %s11 = smov 3
    %v12 = vld [vmem:[%s10] ss:$2 sm:%s11]
    %13 = vrot.lane.b32.xlu0 %v12, 64
    %v14 = vpop.permute.xlu0 %13
    %vm15 = vcmask 1048064
    %16 = vst.msk [vmem:[#allocation0] sm:$0x3] %vm15, %v14
    %s18 = sshllo.u32 0, 2
    %v20 = vld [vmem:[#allocation0] sm:%s18]
    %s21 = sshllo.u32 0, 2
    %22 = vst [vmem:[%s1] sm:%s21] %v20

// kernel: tile.88
$region0: #{tile.88}
  #allocation0 [shape = 's32[1]{0}', space=sflag, size = 0x4, scoped, tag = 'scoped memory for tile.88']
  %s0 = inlined_call_operand.vmem [shape: f32[128], index: 0, kind: input, shape index: {}]
  %s1 = inlined_call_operand.vmem [shape: f32[16,128], index: 1, kind: output, shape index: {}]
  // Predicated region
  $region2: #{tile.88} parent=0 // pred_check
    _
  $region3: #{tile.88} parent=0 // pred_check_branch
    %3 = sbr.rel (0) target = $region5
  $region4: #{tile.88} parent=0 // pred_region
    _
  $region5: #{tile.88} parent=0 // pred_fallthru
    _
  %v4 = vld [vmem:[%s0] ss:$0 sm:$0xff]
  %5 = vst [vmem:[%s1] sm:$0xff] %v4
  %s6 = scalar_lea.vmem %s1, 8
  %7 = vst [vmem:[%s6] sm:$0xff] %v4

// kernel: tile.108
$region0: #{tile.108}
  %s0 = inlined_call_operand.vmem [shape: f32[4,64], index: 0, kind: input, shape index: {}]
  %s1 = inlined_call_operand.vmem [shape: f32[1,256], index: 1, kind: output, shape index: {}]
  $region1: #{tile.108} parent=0
    #allocation0 [shape = 'u8[8192]{0}', space=vmem, size = 0x2000, scoped, tag = 'scoped mem for output reshape']
    #allocation1 [shape = 'u8[4096]{0}', space=vmem, size = 0x1000, scoped, tag = 'scoped mem for input reshape']
    %s3 = sshllo.u32 0, 4
    %v4 = vld [vmem:[%s0] sm:%s3]
    %5 = vst [vmem:[#allocation1] sm:%s3] %v4
    %s6 = smov 3
    %v7 = vld [vmem:[#allocation1] ss:$2 sm:%s6]
    %vm8 = vcmask 523264
    %9 = vst.msk [vmem:[#allocation0] ss:$8 sm:$0x3] %vm8, %v7
    %s10 = scalar_lea.vmem [#allocation1], 1
    %s11 = smov 3
    %v12 = vld [vmem:[%s10] ss:$2 sm:%s11]
    %13 = vrot.lane.b32.xlu0 %v12, 64
    %v14 = vpop.permute.xlu0 %13
    %vm15 = vcmask 1048064
    %16 = vst.msk [vmem:[#allocation0] ss:$8 sm:$0x3] %vm15, %v14
    %s18 = sshllo.u32 0, 1
    %v20 = vld [vmem:[#allocation0] sm:%s18]
    %s21 = sshllo.u32 0, 1
    %22 = vst [vmem:[%s1] sm:%s21] %v20
    %s23 = scalar_lea.vmem [#allocation0], 8
    %v24 = vld [vmem:[%s23] sm:%s18]
    %s25 = sshllo.u32 0, 1
    %s26 = scalar_lea.vmem %s1, 1
    %27 = vst [vmem:[%s26] sm:%s25] %v24

// kernel: generator_forward.6
$region0: #{generator_forward.6}
  #allocation0 [shape = 'u32[]', space=smem, size = 0x4, offset = 0x4, fixed_abs, tag = 'smem constant byte address 0x4 - core index']
  #allocation1 [shape = 'u32[144,128]{1,0:T(1,128)}', space=vmem, size = 0x12000, scoped, tag = 'internal scratch']
  %s0 = inlined_call_operand.vmem [shape: bf16[16,16], index: 0, kind: input, shape index: {}]
  %s1 = inlined_call_operand.vmem [shape: bf16[16,2048], index: 1, kind: input, shape index: {}]
  %s2 = inlined_call_operand.vmem [shape: f32[1,2048], index: 2, kind: input, shape index: {}]
  %s3 = inlined_call_operand.vmem [shape: f32[1,2048], index: 3, kind: input, shape index: {}]
  %s4 = inlined_call_operand.vmem [shape: bf16[16,2048], index: 4, kind: output, shape index: {}]
  %s5 = sld [smem:[#allocation0]]
  $region26: #{generator_forward.6} parent=0
    _
  %s7 = ssub.s32 1, %s5
  %s8 = scalar_select 0, %s7, %s5
  // Predicated region
  $region2: #{generator_forward.6} parent=0 // pred_check
    _
  $region3: #{generator_forward.6} parent=0 // pred_check_branch
    %10 = sbr.rel (0) target = $region5
  $region4: #{generator_forward.6} parent=0 // pred_region
    _
  $region5: #{generator_forward.6} parent=0 // pred_fallthru
    _
  // Predicated region
  $region6: #{generator_forward.6} parent=0 // pred_check
    _
  $region7: #{generator_forward.6} parent=0 // pred_check_branch
    %12 = sbr.rel (0) target = $region9
  $region8: #{generator_forward.6} parent=0 // pred_region
    _
  $region9: #{generator_forward.6} parent=0 // pred_fallthru
    _
  // Predicated region
  $region10: #{generator_forward.6} parent=0 // pred_check
    _
  $region11: #{generator_forward.6} parent=0 // pred_check_branch
    %14 = sbr.rel (0) target = $region13
  $region12: #{generator_forward.6} parent=0 // pred_region
    _
  $region13: #{generator_forward.6} parent=0 // pred_fallthru
    _
  // Predicated region
  $region14: #{generator_forward.6} parent=0 // pred_check
    _
  $region15: #{generator_forward.6} parent=0 // pred_check_branch
    %16 = sbr.rel (0) target = $region17
  $region16: #{generator_forward.6} parent=0 // pred_region
    _
  $region17: #{generator_forward.6} parent=0 // pred_fallthru
    _
  %v18 = vld [vmem:[%s0] sm:$0xf]
  %v19 = vld [vmem:[%s0 + $0x4] sm:$0xf]
  %v20 = vld [vmem:[%s1] sm:$0xff]
  %v21 = vld [vmem:[%s1 + $0x8] sm:$0xff]
  %v22 = vld [vmem:[%s1 + $0x10] sm:$0xff]
  %v23 = vld [vmem:[%s1 + $0x18] sm:$0xff]
  %v24 = vld [vmem:[%s1 + $0x20] sm:$0xff]
  %v25 = vld [vmem:[%s1 + $0x28] sm:$0xff]
  %v26 = vld [vmem:[%s1 + $0x30] sm:$0xff]
  %v27 = vld [vmem:[%s1 + $0x38] sm:$0xff]
  %v28 = vld [vmem:[%s1 + $0x40] sm:$0xff]
  %v29 = vld [vmem:[%s1 + $0x48] sm:$0xff]
  %v30 = vld [vmem:[%s1 + $0x50] sm:$0xff]
  %v31 = vld [vmem:[%s1 + $0x58] sm:$0xff]
  %v32 = vld [vmem:[%s1 + $0x60] sm:$0xff]
  %v33 = vld [vmem:[%s1 + $0x68] sm:$0xff]
  %v34 = vld [vmem:[%s1 + $0x70] sm:$0xff]
  %v35 = vld [vmem:[%s1 + $0x78] sm:$0xff]
  %v36 = vld [vmem:[%s2] sm:$0xff]
  %v37 = vld [vmem:[%s2 + $0x8] sm:$0xff]
  %v40 = vlaneseq
  %v41 = vshrl.u32 %v40, 7
  %v42 = vsub.s32 0, %v41
  %v43 = vrot.slane %v36, %v42
  %v44 = vlaneseq
  %v45 = vshrl.u32 %v44, 7
  %v46 = vsub.s32 1, %v45
  %v47 = vrot.slane %v36, %v46
  %v48 = vlaneseq
  %v49 = vshrl.u32 %v48, 7
  %v50 = vsub.s32 2, %v49
  %v51 = vrot.slane %v36, %v50
  %v52 = vlaneseq
  %v53 = vshrl.u32 %v52, 7
  %v54 = vsub.s32 3, %v53
  %v55 = vrot.slane %v36, %v54
  %v56 = vlaneseq
  %v57 = vshrl.u32 %v56, 7
  %v58 = vsub.s32 4, %v57
  %v59 = vrot.slane %v36, %v58
  %v60 = vlaneseq
  %v61 = vshrl.u32 %v60, 7
  %v62 = vsub.s32 5, %v61
  %v63 = vrot.slane %v36, %v62
  %v64 = vlaneseq
  %v65 = vshrl.u32 %v64, 7
  %v66 = vsub.s32 6, %v65
  %v67 = vrot.slane %v36, %v66
  %v68 = vlaneseq
  %v69 = vshrl.u32 %v68, 7
  %v70 = vsub.s32 7, %v69
  %v71 = vrot.slane %v36, %v70
  %v72 = vlaneseq
  %v73 = vshrl.u32 %v72, 7
  %v74 = vsub.s32 0, %v73
  %v75 = vrot.slane %v37, %v74
  %v76 = vlaneseq
  %v77 = vshrl.u32 %v76, 7
  %v78 = vsub.s32 1, %v77
  %v79 = vrot.slane %v37, %v78
  %v80 = vlaneseq
  %v81 = vshrl.u32 %v80, 7
  %v82 = vsub.s32 2, %v81
  %v83 = vrot.slane %v37, %v82
  %v84 = vlaneseq
  %v85 = vshrl.u32 %v84, 7
  %v86 = vsub.s32 3, %v85
  %v87 = vrot.slane %v37, %v86
  %v88 = vlaneseq
  %v89 = vshrl.u32 %v88, 7
  %v90 = vsub.s32 4, %v89
  %v91 = vrot.slane %v37, %v90
  %v92 = vlaneseq
  %v93 = vshrl.u32 %v92, 7
  %v94 = vsub.s32 5, %v93
  %v95 = vrot.slane %v37, %v94
  %v96 = vlaneseq
  %v97 = vshrl.u32 %v96, 7
  %v98 = vsub.s32 6, %v97
  %v99 = vrot.slane %v37, %v98
  %v100 = vlaneseq
  %v101 = vshrl.u32 %v100, 7
  %v102 = vsub.s32 7, %v101
  %v103 = vrot.slane %v37, %v102
  %v122 = vunpack.c.l.b16 %v18
  %v123 = vunpack.c.l.b16 %v19
  %v124 = vpack.c.b16 %v123, %v122
  %v141 = vunpack.c.l.b16 %v20
  %v142 = vunpack.c.h.b16 %v20
  %v143 = vunpack.c.l.b16 %v21
  %v144 = vunpack.c.h.b16 %v21
  %v145 = vunpack.c.l.b16 %v22
  %v146 = vunpack.c.h.b16 %v22
  %v147 = vunpack.c.l.b16 %v23
  %v148 = vunpack.c.h.b16 %v23
  %v149 = vunpack.c.l.b16 %v24
  %v150 = vunpack.c.h.b16 %v24
  %v151 = vunpack.c.l.b16 %v25
  %v152 = vunpack.c.h.b16 %v25
  %v153 = vunpack.c.l.b16 %v26
  %v154 = vunpack.c.h.b16 %v26
  %v155 = vunpack.c.l.b16 %v27
  %v156 = vunpack.c.h.b16 %v27
  %v157 = vunpack.c.l.b16 %v28
  %v158 = vunpack.c.h.b16 %v28
  %v159 = vunpack.c.l.b16 %v29
  %v160 = vunpack.c.h.b16 %v29
  %v161 = vunpack.c.l.b16 %v30
  %v162 = vunpack.c.h.b16 %v30
  %v163 = vunpack.c.l.b16 %v31
  %v164 = vunpack.c.h.b16 %v31
  %v165 = vunpack.c.l.b16 %v32
  %v166 = vunpack.c.h.b16 %v32
  %v167 = vunpack.c.l.b16 %v33
  %v168 = vunpack.c.h.b16 %v33
  %v169 = vunpack.c.l.b16 %v34
  %v170 = vunpack.c.h.b16 %v34
  %v171 = vunpack.c.l.b16 %v35
  %v172 = vunpack.c.h.b16 %v35
  %v173 = vpack.c.b16 %v157, %v141
  %v174 = vpack.c.b16 %v158, %v142
  %v175 = vpack.c.b16 %v159, %v143
  %v176 = vpack.c.b16 %v160, %v144
  %v177 = vpack.c.b16 %v161, %v145
  %v178 = vpack.c.b16 %v162, %v146
  %v179 = vpack.c.b16 %v163, %v147
  %v180 = vpack.c.b16 %v164, %v148
  %v181 = vpack.c.b16 %v165, %v149
  %v182 = vpack.c.b16 %v166, %v150
  %v183 = vpack.c.b16 %v167, %v151
  %v184 = vpack.c.b16 %v168, %v152
  %v185 = vpack.c.b16 %v169, %v153
  %v186 = vpack.c.b16 %v170, %v154
  %v187 = vpack.c.b16 %v171, %v155
  %v188 = vpack.c.b16 %v172, %v156
  %vm205 = vcmask 130048
  %v207 = vsel %vm205, %v124, 0
  %209 = vmatprep.subr.bf16.mxu0 %v174
  %210 = vmatpush1.bf16.msra.mxu0 %v173
  %211 = vmatprep.subr.bf16.mxu0 0
  %212 = vmatpush1.bf16.msra.mxu0 0
  %213 = vmatprep.subr.bf16.mxu0 0
  %214 = vmatpush1.bf16.msra.mxu0 0
  %215 = vmatprep.subr.bf16.mxu0 0
  %216 = vmatpush1.bf16.msra.mxu0 0
  %217 = vmatprep.subr.bf16.mxu0 0
  %218 = vmatpush1.bf16.msra.mxu0 0
  %219 = vmatprep.subr.bf16.mxu0 0
  %220 = vmatpush1.bf16.msra.mxu0 0
  %221 = vmatprep.subr.bf16.mxu0 0
  %222 = vmatpush1.bf16.msra.mxu0 0
  %223 = vmatprep.subr.bf16.mxu0 0
  %224 = vmatpush1.bf16.msra.mxu0 0
  %225 = vmatprep.subr.bf16.mxu0 0
  %226 = vmatpush1.bf16.msra.mxu0 0
  %227 = vmatprep.subr.bf16.mxu0 0
  %228 = vmatpush1.bf16.msra.mxu0 0
  %229 = vmatprep.subr.bf16.mxu0 0
  %230 = vmatpush1.bf16.msra.mxu0 0
  %231 = vmatprep.subr.bf16.mxu0 0
  %232 = vmatpush1.bf16.msra.mxu0 0
  %233 = vmatprep.subr.bf16.mxu0 0
  %234 = vmatpush1.bf16.msra.mxu0 0
  %235 = vmatprep.subr.bf16.mxu0 0
  %236 = vmatpush1.bf16.msra.mxu0 0
  %237 = vmatprep.subr.bf16.mxu0 0
  %238 = vmatpush1.bf16.msra.mxu0 0
  %239 = vmatprep.subr.bf16.mxu0 0
  %240 = vmatpush1.bf16.msra.mxu0 0
  %241 = vmatprep.mubr.bf16.mxu0 0
  %242 = vmatmul.mubr.bf16.gmra.mrb[0].mxu0 %v207
  %v243 = vpop.f32.mrb[0].mxu0
  %v244 = vadd.f32 %v43, %v243
  %v245 = vpop.f32.mrb[0].mxu0
  %v246 = vadd.f32 %v47, %v245
  %v247 = vpop.f32.mrb[0].mxu0
  %v248 = vadd.f32 %v43, %v247
  %v249 = vpop.f32.mrb[0].mxu0
  %v250 = vadd.f32 %v47, %v249
  %251 = vdwg.mxu0
  %252 = vmatprep.subr.bf16.mxu0 %v176
  %253 = vmatpush1.bf16.msra.mxu0 %v175
  %254 = vmatprep.subr.bf16.mxu0 0
  %255 = vmatpush1.bf16.msra.mxu0 0
  %256 = vmatprep.subr.bf16.mxu0 0
  %257 = vmatpush1.bf16.msra.mxu0 0
  %258 = vmatprep.subr.bf16.mxu0 0
  %259 = vmatpush1.bf16.msra.mxu0 0
  %260 = vmatprep.subr.bf16.mxu0 0
  %261 = vmatpush1.bf16.msra.mxu0 0
  %262 = vmatprep.subr.bf16.mxu0 0
  %263 = vmatpush1.bf16.msra.mxu0 0
  %264 = vmatprep.subr.bf16.mxu0 0
  %265 = vmatpush1.bf16.msra.mxu0 0
  %266 = vmatprep.subr.bf16.mxu0 0
  %267 = vmatpush1.bf16.msra.mxu0 0
  %268 = vmatprep.subr.bf16.mxu0 0
  %269 = vmatpush1.bf16.msra.mxu0 0
  %270 = vmatprep.subr.bf16.mxu0 0
  %271 = vmatpush1.bf16.msra.mxu0 0
  %272 = vmatprep.subr.bf16.mxu0 0
  %273 = vmatpush1.bf16.msra.mxu0 0
  %274 = vmatprep.subr.bf16.mxu0 0
  %275 = vmatpush1.bf16.msra.mxu0 0
  %276 = vmatprep.subr.bf16.mxu0 0
  %277 = vmatpush1.bf16.msra.mxu0 0
  %278 = vmatprep.subr.bf16.mxu0 0
  %279 = vmatpush1.bf16.msra.mxu0 0
  %280 = vmatprep.subr.bf16.mxu0 0
  %281 = vmatpush1.bf16.msra.mxu0 0
  %282 = vmatprep.subr.bf16.mxu0 0
  %283 = vmatpush1.bf16.msra.mxu0 0
  %284 = vmatprep.mubr.bf16.mxu0 0
  %285 = vmatmul.mubr.bf16.gmra.mrb[0].mxu0 %v207
  %v286 = vpop.f32.mrb[0].mxu0
  %v287 = vadd.f32 %v51, %v286
  %v288 = vpop.f32.mrb[0].mxu0
  %v289 = vadd.f32 %v55, %v288
  %v290 = vpop.f32.mrb[0].mxu0
  %v291 = vadd.f32 %v51, %v290
  %v292 = vpop.f32.mrb[0].mxu0
  %v293 = vadd.f32 %v55, %v292
  %294 = vdwg.mxu0
  %295 = vmatprep.subr.bf16.mxu0 %v178
  %296 = vmatpush1.bf16.msra.mxu0 %v177
  %297 = vmatprep.subr.bf16.mxu0 0
  %298 = vmatpush1.bf16.msra.mxu0 0
  %299 = vmatprep.subr.bf16.mxu0 0
  %300 = vmatpush1.bf16.msra.mxu0 0
  %301 = vmatprep.subr.bf16.mxu0 0
  %302 = vmatpush1.bf16.msra.mxu0 0
  %303 = vmatprep.subr.bf16.mxu0 0
  %304 = vmatpush1.bf16.msra.mxu0 0
  %305 = vmatprep.subr.bf16.mxu0 0
  %306 = vmatpush1.bf16.msra.mxu0 0
  %307 = vmatprep.subr.bf16.mxu0 0
  %308 = vmatpush1.bf16.msra.mxu0 0
  %309 = vmatprep.subr.bf16.mxu0 0
  %310 = vmatpush1.bf16.msra.mxu0 0
  %311 = vmatprep.subr.bf16.mxu0 0
  %312 = vmatpush1.bf16.msra.mxu0 0
  %313 = vmatprep.subr.bf16.mxu0 0
  %314 = vmatpush1.bf16.msra.mxu0 0
  %315 = vmatprep.subr.bf16.mxu0 0
  %316 = vmatpush1.bf16.msra.mxu0 0
  %317 = vmatprep.subr.bf16.mxu0 0
  %318 = vmatpush1.bf16.msra.mxu0 0
  %319 = vmatprep.subr.bf16.mxu0 0
  %320 = vmatpush1.bf16.msra.mxu0 0
  %321 = vmatprep.subr.bf16.mxu0 0
  %322 = vmatpush1.bf16.msra.mxu0 0
  %323 = vmatprep.subr.bf16.mxu0 0
  %324 = vmatpush1.bf16.msra.mxu0 0
  %325 = vmatprep.subr.bf16.mxu0 0
  %326 = vmatpush1.bf16.msra.mxu0 0
  %327 = vmatprep.mubr.bf16.mxu0 0
  %328 = vmatmul.mubr.bf16.gmra.mrb[0].mxu0 %v207
  %v329 = vpop.f32.mrb[0].mxu0
  %v330 = vadd.f32 %v59, %v329
  %v331 = vpop.f32.mrb[0].mxu0
  %v332 = vadd.f32 %v63, %v331
  %v333 = vpop.f32.mrb[0].mxu0
  %v334 = vadd.f32 %v59, %v333
  %v335 = vpop.f32.mrb[0].mxu0
  %v336 = vadd.f32 %v63, %v335
  %337 = vdwg.mxu0
  %338 = vmatprep.subr.bf16.mxu0 %v180
  %339 = vmatpush1.bf16.msra.mxu0 %v179
  %340 = vmatprep.subr.bf16.mxu0 0
  %341 = vmatpush1.bf16.msra.mxu0 0
  %342 = vmatprep.subr.bf16.mxu0 0
  %343 = vmatpush1.bf16.msra.mxu0 0
  %344 = vmatprep.subr.bf16.mxu0 0
  %345 = vmatpush1.bf16.msra.mxu0 0
  %346 = vmatprep.subr.bf16.mxu0 0
  %347 = vmatpush1.bf16.msra.mxu0 0
  %348 = vmatprep.subr.bf16.mxu0 0
  %349 = vmatpush1.bf16.msra.mxu0 0
  %350 = vmatprep.subr.bf16.mxu0 0
  %351 = vmatpush1.bf16.msra.mxu0 0
  %352 = vmatprep.subr.bf16.mxu0 0
  %353 = vmatpush1.bf16.msra.mxu0 0
  %354 = vmatprep.subr.bf16.mxu0 0
  %355 = vmatpush1.bf16.msra.mxu0 0
  %356 = vmatprep.subr.bf16.mxu0 0
  %357 = vmatpush1.bf16.msra.mxu0 0
  %358 = vmatprep.subr.bf16.mxu0 0
  %359 = vmatpush1.bf16.msra.mxu0 0
  %360 = vmatprep.subr.bf16.mxu0 0
  %361 = vmatpush1.bf16.msra.mxu0 0
  %362 = vmatprep.subr.bf16.mxu0 0
  %363 = vmatpush1.bf16.msra.mxu0 0
  %364 = vmatprep.subr.bf16.mxu0 0
  %365 = vmatpush1.bf16.msra.mxu0 0
  %366 = vmatprep.subr.bf16.mxu0 0
  %367 = vmatpush1.bf16.msra.mxu0 0
  %368 = vmatprep.subr.bf16.mxu0 0
  %369 = vmatpush1.bf16.msra.mxu0 0
  %370 = vmatprep.mubr.bf16.mxu0 0
  %371 = vmatmul.mubr.bf16.gmra.mrb[0].mxu0 %v207
  %v372 = vpop.f32.mrb[0].mxu0
  %v373 = vadd.f32 %v67, %v372
  %v374 = vpop.f32.mrb[0].mxu0
  %v375 = vadd.f32 %v71, %v374
  %v376 = vpop.f32.mrb[0].mxu0
  %v377 = vadd.f32 %v67, %v376
  %v378 = vpop.f32.mrb[0].mxu0
  %v379 = vadd.f32 %v71, %v378
  %380 = vdwg.mxu0
  %381 = vmatprep.subr.bf16.mxu0 %v182
  %382 = vmatpush1.bf16.msra.mxu0 %v181
  %383 = vmatprep.subr.bf16.mxu0 0
  %384 = vmatpush1.bf16.msra.mxu0 0
  %385 = vmatprep.subr.bf16.mxu0 0
  %386 = vmatpush1.bf16.msra.mxu0 0
  %387 = vmatprep.subr.bf16.mxu0 0
  %388 = vmatpush1.bf16.msra.mxu0 0
  %389 = vmatprep.subr.bf16.mxu0 0
  %390 = vmatpush1.bf16.msra.mxu0 0
  %391 = vmatprep.subr.bf16.mxu0 0
  %392 = vmatpush1.bf16.msra.mxu0 0
  %393 = vmatprep.subr.bf16.mxu0 0
  %394 = vmatpush1.bf16.msra.mxu0 0
  %395 = vmatprep.subr.bf16.mxu0 0
  %396 = vmatpush1.bf16.msra.mxu0 0
  %397 = vmatprep.subr.bf16.mxu0 0
  %398 = vmatpush1.bf16.msra.mxu0 0
  %399 = vmatprep.subr.bf16.mxu0 0
  %400 = vmatpush1.bf16.msra.mxu0 0
  %401 = vmatprep.subr.bf16.mxu0 0
  %402 = vmatpush1.bf16.msra.mxu0 0
  %403 = vmatprep.subr.bf16.mxu0 0
  %404 = vmatpush1.bf16.msra.mxu0 0
  %405 = vmatprep.subr.bf16.mxu0 0
  %406 = vmatpush1.bf16.msra.mxu0 0
  %407 = vmatprep.subr.bf16.mxu0 0
  %408 = vmatpush1.bf16.msra.mxu0 0
  %409 = vmatprep.subr.bf16.mxu0 0
  %410 = vmatpush1.bf16.msra.mxu0 0
  %411 = vmatprep.subr.bf16.mxu0 0
  %412 = vmatpush1.bf16.msra.mxu0 0
  %413 = vmatprep.mubr.bf16.mxu0 0
  %414 = vmatmul.mubr.bf16.gmra.mrb[0].mxu0 %v207
  %v415 = vpop.f32.mrb[0].mxu0
  %v416 = vadd.f32 %v75, %v415
  %v417 = vpop.f32.mrb[0].mxu0
  %v418 = vadd.f32 %v79, %v417
  %v419 = vpop.f32.mrb[0].mxu0
  %v420 = vadd.f32 %v75, %v419
  %v421 = vpop.f32.mrb[0].mxu0
  %v422 = vadd.f32 %v79, %v421
  %423 = vdwg.mxu0
  %424 = vmatprep.subr.bf16.mxu0 %v184
  %425 = vmatpush1.bf16.msra.mxu0 %v183
  %426 = vmatprep.subr.bf16.mxu0 0
  %427 = vmatpush1.bf16.msra.mxu0 0
  %428 = vmatprep.subr.bf16.mxu0 0
  %429 = vmatpush1.bf16.msra.mxu0 0
  %430 = vmatprep.subr.bf16.mxu0 0
  %431 = vmatpush1.bf16.msra.mxu0 0
  %432 = vmatprep.subr.bf16.mxu0 0
  %433 = vmatpush1.bf16.msra.mxu0 0
  %434 = vmatprep.subr.bf16.mxu0 0
  %435 = vmatpush1.bf16.msra.mxu0 0
  %436 = vmatprep.subr.bf16.mxu0 0
  %437 = vmatpush1.bf16.msra.mxu0 0
  %438 = vmatprep.subr.bf16.mxu0 0
  %439 = vmatpush1.bf16.msra.mxu0 0
  %440 = vmatprep.subr.bf16.mxu0 0
  %441 = vmatpush1.bf16.msra.mxu0 0
  %442 = vmatprep.subr.bf16.mxu0 0
  %443 = vmatpush1.bf16.msra.mxu0 0
  %444 = vmatprep.subr.bf16.mxu0 0
  %445 = vmatpush1.bf16.msra.mxu0 0
  %446 = vmatprep.subr.bf16.mxu0 0
  %447 = vmatpush1.bf16.msra.mxu0 0
  %448 = vmatprep.subr.bf16.mxu0 0
  %449 = vmatpush1.bf16.msra.mxu0 0
  %450 = vmatprep.subr.bf16.mxu0 0
  %451 = vmatpush1.bf16.msra.mxu0 0
  %452 = vmatprep.subr.bf16.mxu0 0
  %453 = vmatpush1.bf16.msra.mxu0 0
  %454 = vmatprep.subr.bf16.mxu0 0
  %455 = vmatpush1.bf16.msra.mxu0 0
  %456 = vmatprep.mubr.bf16.mxu0 0
  %457 = vmatmul.mubr.bf16.gmra.mrb[0].mxu0 %v207
  %v458 = vpop.f32.mrb[0].mxu0
  %v459 = vadd.f32 %v83, %v458
  %v460 = vpop.f32.mrb[0].mxu0
  %v461 = vadd.f32 %v87, %v460
  %v462 = vpop.f32.mrb[0].mxu0
  %v463 = vadd.f32 %v83, %v462
  %v464 = vpop.f32.mrb[0].mxu0
  %v465 = vadd.f32 %v87, %v464
  %466 = vdwg.mxu0
  %467 = vmatprep.subr.bf16.mxu0 %v186
  %468 = vmatpush1.bf16.msra.mxu0 %v185
  %469 = vmatprep.subr.bf16.mxu0 0
  %470 = vmatpush1.bf16.msra.mxu0 0
  %471 = vmatprep.subr.bf16.mxu0 0
  %472 = vmatpush1.bf16.msra.mxu0 0
  %473 = vmatprep.subr.bf16.mxu0 0
  %474 = vmatpush1.bf16.msra.mxu0 0
  %475 = vmatprep.subr.bf16.mxu0 0
  %476 = vmatpush1.bf16.msra.mxu0 0
  %477 = vmatprep.subr.bf16.mxu0 0
  %478 = vmatpush1.bf16.msra.mxu0 0
  %479 = vmatprep.subr.bf16.mxu0 0
  %480 = vmatpush1.bf16.msra.mxu0 0
  %481 = vmatprep.subr.bf16.mxu0 0
  %482 = vmatpush1.bf16.msra.mxu0 0
  %483 = vmatprep.subr.bf16.mxu0 0
  %484 = vmatpush1.bf16.msra.mxu0 0
  %485 = vmatprep.subr.bf16.mxu0 0
  %486 = vmatpush1.bf16.msra.mxu0 0
  %487 = vmatprep.subr.bf16.mxu0 0
  %488 = vmatpush1.bf16.msra.mxu0 0
  %489 = vmatprep.subr.bf16.mxu0 0
  %490 = vmatpush1.bf16.msra.mxu0 0
  %491 = vmatprep.subr.bf16.mxu0 0
  %492 = vmatpush1.bf16.msra.mxu0 0
  %493 = vmatprep.subr.bf16.mxu0 0
  %494 = vmatpush1.bf16.msra.mxu0 0
  %495 = vmatprep.subr.bf16.mxu0 0
  %496 = vmatpush1.bf16.msra.mxu0 0
  %497 = vmatprep.subr.bf16.mxu0 0
  %498 = vmatpush1.bf16.msra.mxu0 0
  %499 = vmatprep.mubr.bf16.mxu0 0
  %500 = vmatmul.mubr.bf16.gmra.mrb[0].mxu0 %v207
  %v501 = vpop.f32.mrb[0].mxu0
  %v502 = vadd.f32 %v91, %v501
  %v503 = vpop.f32.mrb[0].mxu0
  %v504 = vadd.f32 %v95, %v503
  %v505 = vpop.f32.mrb[0].mxu0
  %v506 = vadd.f32 %v91, %v505
  %v507 = vpop.f32.mrb[0].mxu0
  %v508 = vadd.f32 %v95, %v507
  %509 = vdwg.mxu0
  %510 = vmatprep.subr.bf16.mxu0 %v188
  %511 = vmatpush1.bf16.msra.mxu0 %v187
  %512 = vmatprep.subr.bf16.mxu0 0
  %513 = vmatpush1.bf16.msra.mxu0 0
  %514 = vmatprep.subr.bf16.mxu0 0
  %515 = vmatpush1.bf16.msra.mxu0 0
  %516 = vmatprep.subr.bf16.mxu0 0
  %517 = vmatpush1.bf16.msra.mxu0 0
  %518 = vmatprep.subr.bf16.mxu0 0
  %519 = vmatpush1.bf16.msra.mxu0 0
  %520 = vmatprep.subr.bf16.mxu0 0
  %521 = vmatpush1.bf16.msra.mxu0 0
  %522 = vmatprep.subr.bf16.mxu0 0
  %523 = vmatpush1.bf16.msra.mxu0 0
  %524 = vmatprep.subr.bf16.mxu0 0
  %525 = vmatpush1.bf16.msra.mxu0 0
  %526 = vmatprep.subr.bf16.mxu0 0
  %527 = vmatpush1.bf16.msra.mxu0 0
  %528 = vmatprep.subr.bf16.mxu0 0
  %529 = vmatpush1.bf16.msra.mxu0 0
  %530 = vmatprep.subr.bf16.mxu0 0
  %531 = vmatpush1.bf16.msra.mxu0 0
  %532 = vmatprep.subr.bf16.mxu0 0
  %533 = vmatpush1.bf16.msra.mxu0 0
  %534 = vmatprep.subr.bf16.mxu0 0
  %535 = vmatpush1.bf16.msra.mxu0 0
  %536 = vmatprep.subr.bf16.mxu0 0
  %537 = vmatpush1.bf16.msra.mxu0 0
  %538 = vmatprep.subr.bf16.mxu0 0
  %539 = vmatpush1.bf16.msra.mxu0 0
  %540 = vmatprep.subr.bf16.mxu0 0
  %541 = vmatpush1.bf16.msra.mxu0 0
  %542 = vmatprep.mubr.bf16.mxu0 0
  %543 = vmatmul.mubr.bf16.gmra.mrb[0].mxu0 %v207
  %v544 = vpop.f32.mrb[0].mxu0
  %v545 = vadd.f32 %v99, %v544
  %v546 = vpop.f32.mrb[0].mxu0
  %v547 = vadd.f32 %v103, %v546
  %v548 = vpop.f32.mrb[0].mxu0
  %v549 = vadd.f32 %v99, %v548
  %v550 = vpop.f32.mrb[0].mxu0
  %v551 = vadd.f32 %v103, %v550
  %552 = vdwg.mxu0
  %v553 = vmax.f32 %v244, 0.0
  %v554 = vmax.f32 %v246, 0.0
  %v555 = vmax.f32 %v287, 0.0
  %v556 = vmax.f32 %v289, 0.0
  %v557 = vmax.f32 %v330, 0.0
  %v558 = vmax.f32 %v332, 0.0
  %v559 = vmax.f32 %v373, 0.0
  %v560 = vmax.f32 %v375, 0.0
  %v561 = vmax.f32 %v416, 0.0
  %v562 = vmax.f32 %v418, 0.0
  %v563 = vmax.f32 %v459, 0.0
  %v564 = vmax.f32 %v461, 0.0
  %v565 = vmax.f32 %v502, 0.0
  %v566 = vmax.f32 %v504, 0.0
  %v567 = vmax.f32 %v545, 0.0
  %v568 = vmax.f32 %v547, 0.0
  %v569 = vmax.f32 %v248, 0.0
  %v570 = vmax.f32 %v250, 0.0
  %v571 = vmax.f32 %v291, 0.0
  %v572 = vmax.f32 %v293, 0.0
  %v573 = vmax.f32 %v334, 0.0
  %v574 = vmax.f32 %v336, 0.0
  %v575 = vmax.f32 %v377, 0.0
  %v576 = vmax.f32 %v379, 0.0
  %v577 = vmax.f32 %v420, 0.0
  %v578 = vmax.f32 %v422, 0.0
  %v579 = vmax.f32 %v463, 0.0
  %v580 = vmax.f32 %v465, 0.0
  %v581 = vmax.f32 %v506, 0.0
  %v582 = vmax.f32 %v508, 0.0
  %v583 = vmax.f32 %v549, 0.0
  %v584 = vmax.f32 %v551, 0.0
  %v585 = vld [vmem:[%s3] sm:$0xff]
  %v586 = vld [vmem:[%s3 + $0x8] sm:$0xff]
  %v589 = vlaneseq
  %v590 = vshrl.u32 %v589, 7
  %v591 = vsub.s32 0, %v590
  %v592 = vrot.slane %v585, %v591
  %v593 = vlaneseq
  %v594 = vshrl.u32 %v593, 7
  %v595 = vsub.s32 1, %v594
  %v596 = vrot.slane %v585, %v595
  %v597 = vlaneseq
  %v598 = vshrl.u32 %v597, 7
  %v599 = vsub.s32 2, %v598
  %v600 = vrot.slane %v585, %v599
  %v601 = vlaneseq
  %v602 = vshrl.u32 %v601, 7
  %v603 = vsub.s32 3, %v602
  %v604 = vrot.slane %v585, %v603
  %v605 = vlaneseq
  %v606 = vshrl.u32 %v605, 7
  %v607 = vsub.s32 4, %v606
  %v608 = vrot.slane %v585, %v607
  %v609 = vlaneseq
  %v610 = vshrl.u32 %v609, 7
  %v611 = vsub.s32 5, %v610
  %v612 = vrot.slane %v585, %v611
  %v613 = vlaneseq
  %v614 = vshrl.u32 %v613, 7
  %v615 = vsub.s32 6, %v614
  %v616 = vrot.slane %v585, %v615
  %v617 = vlaneseq
  %v618 = vshrl.u32 %v617, 7
  %v619 = vsub.s32 7, %v618
  %v620 = vrot.slane %v585, %v619
  %v621 = vlaneseq
  %v622 = vshrl.u32 %v621, 7
  %v623 = vsub.s32 0, %v622
  %v624 = vrot.slane %v586, %v623
  %v625 = vlaneseq
  %v626 = vshrl.u32 %v625, 7
  %v627 = vsub.s32 1, %v626
  %v628 = vrot.slane %v586, %v627
  %v629 = vlaneseq
  %v630 = vshrl.u32 %v629, 7
  %v631 = vsub.s32 2, %v630
  %v632 = vrot.slane %v586, %v631
  %v633 = vlaneseq
  %v634 = vshrl.u32 %v633, 7
  %v635 = vsub.s32 3, %v634
  %v636 = vrot.slane %v586, %v635
  %v637 = vlaneseq
  %v638 = vshrl.u32 %v637, 7
  %v639 = vsub.s32 4, %v638
  %v640 = vrot.slane %v586, %v639
  %v641 = vlaneseq
  %v642 = vshrl.u32 %v641, 7
  %v643 = vsub.s32 5, %v642
  %v644 = vrot.slane %v586, %v643
  %v645 = vlaneseq
  %v646 = vshrl.u32 %v645, 7
  %v647 = vsub.s32 6, %v646
  %v648 = vrot.slane %v586, %v647
  %v649 = vlaneseq
  %v650 = vshrl.u32 %v649, 7
  %v651 = vsub.s32 7, %v650
  %v652 = vrot.slane %v586, %v651
  %v669 = vadd.f32 %v553, %v592
  %v670 = vadd.f32 %v554, %v596
  %v671 = vadd.f32 %v555, %v600
  %v672 = vadd.f32 %v556, %v604
  %v673 = vadd.f32 %v557, %v608
  %v674 = vadd.f32 %v558, %v612
  %v675 = vadd.f32 %v559, %v616
  %v676 = vadd.f32 %v560, %v620
  %v677 = vadd.f32 %v561, %v624
  %v678 = vadd.f32 %v562, %v628
  %v679 = vadd.f32 %v563, %v632
  %v680 = vadd.f32 %v564, %v636
  %v681 = vadd.f32 %v565, %v640
  %v682 = vadd.f32 %v566, %v644
  %v683 = vadd.f32 %v567, %v648
  %v684 = vadd.f32 %v568, %v652
  %v685 = vadd.f32 %v569, %v592
  %v686 = vadd.f32 %v570, %v596
  %v687 = vadd.f32 %v571, %v600
  %v688 = vadd.f32 %v572, %v604
  %v689 = vadd.f32 %v573, %v608
  %v690 = vadd.f32 %v574, %v612
  %v691 = vadd.f32 %v575, %v616
  %v692 = vadd.f32 %v576, %v620
  %v693 = vadd.f32 %v577, %v624
  %v694 = vadd.f32 %v578, %v628
  %v695 = vadd.f32 %v579, %v632
  %v696 = vadd.f32 %v580, %v636
  %v697 = vadd.f32 %v581, %v640
  %v698 = vadd.f32 %v582, %v644
  %v699 = vadd.f32 %v583, %v648
  %v700 = vadd.f32 %v584, %v652
  %v701 = vpack.c.bf16 %v685, %v669
  %v702 = vpack.c.bf16 %v686, %v670
  %v703 = vpack.c.bf16 %v687, %v671
  %v704 = vpack.c.bf16 %v688, %v672
  %v705 = vpack.c.bf16 %v689, %v673
  %v706 = vpack.c.bf16 %v690, %v674
  %v707 = vpack.c.bf16 %v691, %v675
  %v708 = vpack.c.bf16 %v692, %v676
  %v709 = vpack.c.bf16 %v693, %v677
  %v710 = vpack.c.bf16 %v694, %v678
  %v711 = vpack.c.bf16 %v695, %v679
  %v712 = vpack.c.bf16 %v696, %v680
  %v713 = vpack.c.bf16 %v697, %v681
  %v714 = vpack.c.bf16 %v698, %v682
  %v715 = vpack.c.bf16 %v699, %v683
  %v716 = vpack.c.bf16 %v700, %v684
  %v733 = vunpack.c.l.b16 %v701
  %v734 = vunpack.c.l.b16 %v702
  %v735 = vunpack.c.l.b16 %v703
  %v736 = vunpack.c.l.b16 %v704
  %v737 = vunpack.c.l.b16 %v705
  %v738 = vunpack.c.l.b16 %v706
  %v739 = vunpack.c.l.b16 %v707
  %v740 = vunpack.c.l.b16 %v708
  %v741 = vunpack.c.l.b16 %v709
  %v742 = vunpack.c.l.b16 %v710
  %v743 = vunpack.c.l.b16 %v711
  %v744 = vunpack.c.l.b16 %v712
  %v745 = vunpack.c.l.b16 %v713
  %v746 = vunpack.c.l.b16 %v714
  %v747 = vunpack.c.l.b16 %v715
  %v748 = vunpack.c.l.b16 %v716
  %v749 = vunpack.c.h.b16 %v701
  %v750 = vunpack.c.h.b16 %v702
  %v751 = vunpack.c.h.b16 %v703
  %v752 = vunpack.c.h.b16 %v704
  %v753 = vunpack.c.h.b16 %v705
  %v754 = vunpack.c.h.b16 %v706
  %v755 = vunpack.c.h.b16 %v707
  %v756 = vunpack.c.h.b16 %v708
  %v757 = vunpack.c.h.b16 %v709
  %v758 = vunpack.c.h.b16 %v710
  %v759 = vunpack.c.h.b16 %v711
  %v760 = vunpack.c.h.b16 %v712
  %v761 = vunpack.c.h.b16 %v713
  %v762 = vunpack.c.h.b16 %v714
  %v763 = vunpack.c.h.b16 %v715
  %v764 = vunpack.c.h.b16 %v716
  %v765 = vpack.c.b16 %v734, %v733
  %v766 = vpack.c.b16 %v736, %v735
  %v767 = vpack.c.b16 %v738, %v737
  %v768 = vpack.c.b16 %v740, %v739
  %v769 = vpack.c.b16 %v742, %v741
  %v770 = vpack.c.b16 %v744, %v743
  %v771 = vpack.c.b16 %v746, %v745
  %v772 = vpack.c.b16 %v748, %v747
  %v773 = vpack.c.b16 %v750, %v749
  %v774 = vpack.c.b16 %v752, %v751
  %v775 = vpack.c.b16 %v754, %v753
  %v776 = vpack.c.b16 %v756, %v755
  %v777 = vpack.c.b16 %v758, %v757
  %v778 = vpack.c.b16 %v760, %v759
  %v779 = vpack.c.b16 %v762, %v761
  %v780 = vpack.c.b16 %v764, %v763
  %797 = vst [vmem:[%s4] sm:$0xff] %v765
  %798 = vst [vmem:[%s4 + $0x8] sm:$0xff] %v766
  %799 = vst [vmem:[%s4 + $0x10] sm:$0xff] %v767
  %800 = vst [vmem:[%s4 + $0x18] sm:$0xff] %v768
  %801 = vst [vmem:[%s4 + $0x20] sm:$0xff] %v769
  %802 = vst [vmem:[%s4 + $0x28] sm:$0xff] %v770
  %803 = vst [vmem:[%s4 + $0x30] sm:$0xff] %v771
  %804 = vst [vmem:[%s4 + $0x38] sm:$0xff] %v772
  %805 = vst [vmem:[%s4 + $0x40] sm:$0xff] %v773
  %806 = vst [vmem:[%s4 + $0x48] sm:$0xff] %v774
  %807 = vst [vmem:[%s4 + $0x50] sm:$0xff] %v775
  %808 = vst [vmem:[%s4 + $0x58] sm:$0xff] %v776
  %809 = vst [vmem:[%s4 + $0x60] sm:$0xff] %v777
  %810 = vst [vmem:[%s4 + $0x68] sm:$0xff] %v778
  %811 = vst [vmem:[%s4 + $0x70] sm:$0xff] %v779
  %812 = vst [vmem:[%s4 + $0x78] sm:$0xff] %v780
  // Predicated region
  $region18: #{generator_forward.6} parent=0 // pred_check
    _
  $region19: #{generator_forward.6} parent=0 // pred_check_branch
    %814 = sbr.rel (0) target = $region21
  $region20: #{generator_forward.6} parent=0 // pred_region
    _
  $region21: #{generator_forward.6} parent=0 // pred_fallthru
    _
  // Predicated region
  $region22: #{generator_forward.6} parent=0 // pred_check
    _
  $region23: #{generator_forward.6} parent=0 // pred_check_branch
    %816 = sbr.rel (0) target = $region25
  $region24: #{generator_forward.6} parent=0 // pred_region
    _
  $region25: #{generator_forward.6} parent=0 // pred_fallthru
    _

// kernel: generator_forward.7
$region0: #{generator_forward.7}
  #allocation0 [shape = 'u32[]', space=smem, size = 0x4, offset = 0x4, fixed_abs, tag = 'smem constant byte address 0x4 - core index']
  #allocation1 [shape = 'u32[144,128]{1,0:T(1,128)}', space=vmem, size = 0x12000, scoped, tag = 'internal scratch']
  %s0 = inlined_call_operand.vmem [shape: bf16[32,1152], index: 0, kind: input, shape index: {}]
  %s1 = inlined_call_operand.vmem [shape: bf16[1152,256], index: 1, kind: input, shape index: {}]
  %s2 = inlined_call_operand.vmem [shape: f32[1,256], index: 2, kind: input, shape index: {}]
  %s3 = inlined_call_operand.vmem [shape: f32[1,256], index: 3, kind: input, shape index: {}]
  %s4 = inlined_call_operand.vmem [shape: bf16[32,256], index: 4, kind: output, shape index: {}]
  %s5 = sld [smem:[#allocation0]]
  $region26: #{generator_forward.7} parent=0
    _
  %s7 = ssub.s32 1, %s5
  %s8 = scalar_select 0, %s7, %s5
  // Predicated region
  $region2: #{generator_forward.7} parent=0 // pred_check
    _
  $region3: #{generator_forward.7} parent=0 // pred_check_branch
    %10 = sbr.rel (0) target = $region5
  $region4: #{generator_forward.7} parent=0 // pred_region
    _
  $region5: #{generator_forward.7} parent=0 // pred_fallthru
    _
  // Predicated region
  $region6: #{generator_forward.7} parent=0 // pred_check
    _
  $region7: #{generator_forward.7} parent=0 // pred_check_branch
    %12 = sbr.rel (0) target = $region9
  $region8: #{generator_forward.7} parent=0 // pred_region
    _
  $region9: #{generator_forward.7} parent=0 // pred_fallthru
    _
  // Predicated region
  $region10: #{generator_forward.7} parent=0 // pred_check
    _
  $region11: #{generator_forward.7} parent=0 // pred_check_branch
    %14 = sbr.rel (0) target = $region13
  $region12: #{generator_forward.7} parent=0 // pred_region
    _
  $region13: #{generator_forward.7} parent=0 // pred_fallthru
    _
  // Predicated region
  $region14: #{generator_forward.7} parent=0 // pred_check
    _
  $region15: #{generator_forward.7} parent=0 // pred_check_branch
    %16 = sbr.rel (0) target = $region17
  $region16: #{generator_forward.7} parent=0 // pred_region
    _
  $region17: #{generator_forward.7} parent=0 // pred_fallthru
    _
  %v18 = vld [vmem:[%s0] sm:$0xff]
  %v19 = vld [vmem:[%s0 + $0x8] sm:$0xff]
  %v20 = vld [vmem:[%s0 + $0x10] sm:$0xff]
  %v21 = vld [vmem:[%s0 + $0x18] sm:$0xff]
  %v22 = vld [vmem:[%s0 + $0x20] sm:$0xf]
  %v23 = vld [vmem:[%s0 + $0x24] sm:$0xff]
  %v24 = vld [vmem:[%s0 + $0x2c] sm:$0xff]
  %v25 = vld [vmem:[%s0 + $0x34] sm:$0xff]
  %v26 = vld [vmem:[%s0 + $0x3c] sm:$0xff]
  %v27 = vld [vmem:[%s0 + $0x44] sm:$0xf]
  %v28 = vld [vmem:[%s0 + $0x48] sm:$0xff]
  %v29 = vld [vmem:[%s0 + $0x50] sm:$0xff]
  %v30 = vld [vmem:[%s0 + $0x58] sm:$0xff]
  %v31 = vld [vmem:[%s0 + $0x60] sm:$0xff]
  %v32 = vld [vmem:[%s0 + $0x68] sm:$0xf]
  %v33 = vld [vmem:[%s0 + $0x6c] sm:$0xff]
  %v34 = vld [vmem:[%s0 + $0x74] sm:$0xff]
  %v35 = vld [vmem:[%s0 + $0x7c] sm:$0xff]
  %v36 = vld [vmem:[%s0 + $0x84] sm:$0xff]
  %v37 = vld [vmem:[%s0 + $0x8c] sm:$0xf]
  %v38 = vld [vmem:[%s1] sm:$0xff]
  %v39 = vld [vmem:[%s1 + $0x8] sm:$0xff]
  %v40 = vld [vmem:[%s1 + $0x10] sm:$0xff]
  %v41 = vld [vmem:[%s1 + $0x18] sm:$0xff]
  %v42 = vld [vmem:[%s1 + $0x20] sm:$0xff]
  %v43 = vld [vmem:[%s1 + $0x28] sm:$0xff]
  %v44 = vld [vmem:[%s1 + $0x30] sm:$0xff]
  %v45 = vld [vmem:[%s1 + $0x38] sm:$0xff]
  %v46 = vld [vmem:[%s1 + $0x40] sm:$0xff]
  %v47 = vld [vmem:[%s1 + $0x48] sm:$0xff]
  %v48 = vld [vmem:[%s1 + $0x50] sm:$0xff]
  %v49 = vld [vmem:[%s1 + $0x58] sm:$0xff]
  %v50 = vld [vmem:[%s1 + $0x60] sm:$0xff]
  %v51 = vld [vmem:[%s1 + $0x68] sm:$0xff]
  %v52 = vld [vmem:[%s1 + $0x70] sm:$0xff]
  %v53 = vld [vmem:[%s1 + $0x78] sm:$0xff]
  %v54 = vld [vmem:[%s1 + $0x80] sm:$0xff]
  %v55 = vld [vmem:[%s1 + $0x88] sm:$0xff]
  %v56 = vld [vmem:[%s1 + $0x90] sm:$0xff]
  %v57 = vld [vmem:[%s1 + $0x98] sm:$0xff]
  %v58 = vld [vmem:[%s1 + $0xa0] sm:$0xff]
  %v59 = vld [vmem:[%s1 + $0xa8] sm:$0xff]
  %v60 = vld [vmem:[%s1 + $0xb0] sm:$0xff]
  %v61 = vld [vmem:[%s1 + $0xb8] sm:$0xff]
  %v62 = vld [vmem:[%s1 + $0xc0] sm:$0xff]
  %v63 = vld [vmem:[%s1 + $0xc8] sm:$0xff]
  %v64 = vld [vmem:[%s1 + $0xd0] sm:$0xff]
  %v65 = vld [vmem:[%s1 + $0xd8] sm:$0xff]
  %v66 = vld [vmem:[%s1 + $0xe0] sm:$0xff]
  %v67 = vld [vmem:[%s1 + $0xe8] sm:$0xff]
  %v68 = vld [vmem:[%s1 + $0xf0] sm:$0xff]
  %v69 = vld [vmem:[%s1 + $0xf8] sm:$0xff]
  %v70 = vld [vmem:[%s1 + $0x100] sm:$0xff]
  %v71 = vld [vmem:[%s1 + $0x108] sm:$0xff]
  %v72 = vld [vmem:[%s1 + $0x110] sm:$0xff]
  %v73 = vld [vmem:[%s1 + $0x118] sm:$0xff]
  %v74 = vld [vmem:[%s1 + $0x120] sm:$0xff]
  %v75 = vld [vmem:[%s1 + $0x128] sm:$0xff]
  %v76 = vld [vmem:[%s1 + $0x130] sm:$0xff]
  %v77 = vld [vmem:[%s1 + $0x138] sm:$0xff]
  %v78 = vld [vmem:[%s1 + $0x140] sm:$0xff]
  %v79 = vld [vmem:[%s1 + $0x148] sm:$0xff]
  %v80 = vld [vmem:[%s1 + $0x150] sm:$0xff]
  %v81 = vld [vmem:[%s1 + $0x158] sm:$0xff]
  %v82 = vld [vmem:[%s1 + $0x160] sm:$0xff]
  %v83 = vld [vmem:[%s1 + $0x168] sm:$0xff]
  %v84 = vld [vmem:[%s1 + $0x170] sm:$0xff]
  %v85 = vld [vmem:[%s1 + $0x178] sm:$0xff]
  %v86 = vld [vmem:[%s1 + $0x180] sm:$0xff]
  %v87 = vld [vmem:[%s1 + $0x188] sm:$0xff]
  %v88 = vld [vmem:[%s1 + $0x190] sm:$0xff]
  %v89 = vld [vmem:[%s1 + $0x198] sm:$0xff]
  %v90 = vld [vmem:[%s1 + $0x1a0] sm:$0xff]
  %v91 = vld [vmem:[%s1 + $0x1a8] sm:$0xff]
  %v92 = vld [vmem:[%s1 + $0x1b0] sm:$0xff]
  %v93 = vld [vmem:[%s1 + $0x1b8] sm:$0xff]
  %v94 = vld [vmem:[%s1 + $0x1c0] sm:$0xff]
  %v95 = vld [vmem:[%s1 + $0x1c8] sm:$0xff]
  %v96 = vld [vmem:[%s1 + $0x1d0] sm:$0xff]
  %v97 = vld [vmem:[%s1 + $0x1d8] sm:$0xff]
  %v98 = vld [vmem:[%s1 + $0x1e0] sm:$0xff]
  %v99 = vld [vmem:[%s1 + $0x1e8] sm:$0xff]
  %v100 = vld [vmem:[%s1 + $0x1f0] sm:$0xff]
  %v101 = vld [vmem:[%s1 + $0x1f8] sm:$0xff]
  %v102 = vld [vmem:[%s1 + $0x200] sm:$0xff]
  %v103 = vld [vmem:[%s1 + $0x208] sm:$0xff]
  %v104 = vld [vmem:[%s1 + $0x210] sm:$0xff]
  %v105 = vld [vmem:[%s1 + $0x218] sm:$0xff]
  %v106 = vld [vmem:[%s1 + $0x220] sm:$0xff]
  %v107 = vld [vmem:[%s1 + $0x228] sm:$0xff]
  %v108 = vld [vmem:[%s1 + $0x230] sm:$0xff]
  %v109 = vld [vmem:[%s1 + $0x238] sm:$0xff]
  %v110 = vld [vmem:[%s1 + $0x240] sm:$0xff]
  %v111 = vld [vmem:[%s1 + $0x248] sm:$0xff]
  %v112 = vld [vmem:[%s1 + $0x250] sm:$0xff]
  %v113 = vld [vmem:[%s1 + $0x258] sm:$0xff]
  %v114 = vld [vmem:[%s1 + $0x260] sm:$0xff]
  %v115 = vld [vmem:[%s1 + $0x268] sm:$0xff]
  %v116 = vld [vmem:[%s1 + $0x270] sm:$0xff]
  %v117 = vld [vmem:[%s1 + $0x278] sm:$0xff]
  %v118 = vld [vmem:[%s1 + $0x280] sm:$0xff]
  %v119 = vld [vmem:[%s1 + $0x288] sm:$0xff]
  %v120 = vld [vmem:[%s1 + $0x290] sm:$0xff]
  %v121 = vld [vmem:[%s1 + $0x298] sm:$0xff]
  %v122 = vld [vmem:[%s1 + $0x2a0] sm:$0xff]
  %v123 = vld [vmem:[%s1 + $0x2a8] sm:$0xff]
  %v124 = vld [vmem:[%s1 + $0x2b0] sm:$0xff]
  %v125 = vld [vmem:[%s1 + $0x2b8] sm:$0xff]
  %v126 = vld [vmem:[%s1 + $0x2c0] sm:$0xff]
  %v127 = vld [vmem:[%s1 + $0x2c8] sm:$0xff]
  %v128 = vld [vmem:[%s1 + $0x2d0] sm:$0xff]
  %v129 = vld [vmem:[%s1 + $0x2d8] sm:$0xff]
  %v130 = vld [vmem:[%s1 + $0x2e0] sm:$0xff]
  %v131 = vld [vmem:[%s1 + $0x2e8] sm:$0xff]
  %v132 = vld [vmem:[%s1 + $0x2f0] sm:$0xff]
  %v133 = vld [vmem:[%s1 + $0x2f8] sm:$0xff]
  %v134 = vld [vmem:[%s1 + $0x300] sm:$0xff]
  %v135 = vld [vmem:[%s1 + $0x308] sm:$0xff]
  %v136 = vld [vmem:[%s1 + $0x310] sm:$0xff]
  %v137 = vld [vmem:[%s1 + $0x318] sm:$0xff]
  %v138 = vld [vmem:[%s1 + $0x320] sm:$0xff]
  %v139 = vld [vmem:[%s1 + $0x328] sm:$0xff]
  %v140 = vld [vmem:[%s1 + $0x330] sm:$0xff]
  %v141 = vld [vmem:[%s1 + $0x338] sm:$0xff]
  %v142 = vld [vmem:[%s1 + $0x340] sm:$0xff]
  %v143 = vld [vmem:[%s1 + $0x348] sm:$0xff]
  %v144 = vld [vmem:[%s1 + $0x350] sm:$0xff]
  %v145 = vld [vmem:[%s1 + $0x358] sm:$0xff]
  %v146 = vld [vmem:[%s1 + $0x360] sm:$0xff]
  %v147 = vld [vmem:[%s1 + $0x368] sm:$0xff]
  %v148 = vld [vmem:[%s1 + $0x370] sm:$0xff]
  %v149 = vld [vmem:[%s1 + $0x378] sm:$0xff]
  %v150 = vld [vmem:[%s1 + $0x380] sm:$0xff]
  %v151 = vld [vmem:[%s1 + $0x388] sm:$0xff]
  %v152 = vld [vmem:[%s1 + $0x390] sm:$0xff]
  %v153 = vld [vmem:[%s1 + $0x398] sm:$0xff]
  %v154 = vld [vmem:[%s1 + $0x3a0] sm:$0xff]
  %v155 = vld [vmem:[%s1 + $0x3a8] sm:$0xff]
  %v156 = vld [vmem:[%s1 + $0x3b0] sm:$0xff]
  %v157 = vld [vmem:[%s1 + $0x3b8] sm:$0xff]
  %v158 = vld [vmem:[%s1 + $0x3c0] sm:$0xff]
  %v159 = vld [vmem:[%s1 + $0x3c8] sm:$0xff]
  %v160 = vld [vmem:[%s1 + $0x3d0] sm:$0xff]
  %v161 = vld [vmem:[%s1 + $0x3d8] sm:$0xff]
  %v162 = vld [vmem:[%s1 + $0x3e0] sm:$0xff]
  %v163 = vld [vmem:[%s1 + $0x3e8] sm:$0xff]
  %v164 = vld [vmem:[%s1 + $0x3f0] sm:$0xff]
  %v165 = vld [vmem:[%s1 + $0x3f8] sm:$0xff]
  %v166 = vld [vmem:[%s1 + $0x400] sm:$0xff]
  %v167 = vld [vmem:[%s1 + $0x408] sm:$0xff]
  %v168 = vld [vmem:[%s1 + $0x410] sm:$0xff]
  %v169 = vld [vmem:[%s1 + $0x418] sm:$0xff]
  %v170 = vld [vmem:[%s1 + $0x420] sm:$0xff]
  %v171 = vld [vmem:[%s1 + $0x428] sm:$0xff]
  %v172 = vld [vmem:[%s1 + $0x430] sm:$0xff]
  %v173 = vld [vmem:[%s1 + $0x438] sm:$0xff]
  %v174 = vld [vmem:[%s1 + $0x440] sm:$0xff]
  %v175 = vld [vmem:[%s1 + $0x448] sm:$0xff]
  %v176 = vld [vmem:[%s1 + $0x450] sm:$0xff]
  %v177 = vld [vmem:[%s1 + $0x458] sm:$0xff]
  %v178 = vld [vmem:[%s1 + $0x460] sm:$0xff]
  %v179 = vld [vmem:[%s1 + $0x468] sm:$0xff]
  %v180 = vld [vmem:[%s1 + $0x470] sm:$0xff]
  %v181 = vld [vmem:[%s1 + $0x478] sm:$0xff]
  %v182 = vld [vmem:[%s2] sm:$0x3]
  %v184 = vlaneseq
  %v185 = vshrl.u32 %v184, 7
  %v186 = vsub.s32 0, %v185
  %v187 = vrot.slane %v182, %v186
  %v188 = vlaneseq
  %v189 = vshrl.u32 %v188, 7
  %v190 = vsub.s32 1, %v189
  %v191 = vrot.slane %v182, %v190
  %v214 = vunpack.c.l.b16 %v18
  %v215 = vunpack.c.h.b16 %v18
  %v216 = vunpack.c.l.b16 %v19
  %v217 = vunpack.c.h.b16 %v19
  %v218 = vunpack.c.l.b16 %v20
  %v219 = vunpack.c.h.b16 %v20
  %v220 = vunpack.c.l.b16 %v21
  %v221 = vunpack.c.h.b16 %v21
  %v222 = vunpack.c.l.b16 %v22
  %v223 = vunpack.c.l.b16 %v23
  %v224 = vunpack.c.h.b16 %v23
  %v225 = vunpack.c.l.b16 %v24
  %v226 = vunpack.c.h.b16 %v24
  %v227 = vunpack.c.l.b16 %v25
  %v228 = vunpack.c.h.b16 %v25
  %v229 = vunpack.c.l.b16 %v26
  %v230 = vunpack.c.h.b16 %v26
  %v231 = vunpack.c.l.b16 %v27
  %v232 = vunpack.c.l.b16 %v28
  %v233 = vunpack.c.h.b16 %v28
  %v234 = vunpack.c.l.b16 %v29
  %v235 = vunpack.c.h.b16 %v29
  %v236 = vunpack.c.l.b16 %v30
  %v237 = vunpack.c.h.b16 %v30
  %v238 = vunpack.c.l.b16 %v31
  %v239 = vunpack.c.h.b16 %v31
  %v240 = vunpack.c.l.b16 %v32
  %v241 = vunpack.c.l.b16 %v33
  %v242 = vunpack.c.h.b16 %v33
  %v243 = vunpack.c.l.b16 %v34
  %v244 = vunpack.c.h.b16 %v34
  %v245 = vunpack.c.l.b16 %v35
  %v246 = vunpack.c.h.b16 %v35
  %v247 = vunpack.c.l.b16 %v36
  %v248 = vunpack.c.h.b16 %v36
  %v249 = vunpack.c.l.b16 %v37
  %v250 = vpack.c.b16 %v223, %v214
  %v251 = vpack.c.b16 %v224, %v215
  %v252 = vpack.c.b16 %v225, %v216
  %v253 = vpack.c.b16 %v226, %v217
  %v254 = vpack.c.b16 %v227, %v218
  %v255 = vpack.c.b16 %v228, %v219
  %v256 = vpack.c.b16 %v229, %v220
  %v257 = vpack.c.b16 %v230, %v221
  %v258 = vpack.c.b16 %v231, %v222
  %v259 = vpack.c.b16 %v241, %v232
  %v260 = vpack.c.b16 %v242, %v233
  %v261 = vpack.c.b16 %v243, %v234
  %v262 = vpack.c.b16 %v244, %v235
  %v263 = vpack.c.b16 %v245, %v236
  %v264 = vpack.c.b16 %v246, %v237
  %v265 = vpack.c.b16 %v247, %v238
  %v266 = vpack.c.b16 %v248, %v239
  %v267 = vpack.c.b16 %v249, %v240
  %v430 = vunpack.c.l.b16 %v38
  %v431 = vunpack.c.h.b16 %v38
  %v432 = vunpack.c.l.b16 %v39
  %v433 = vunpack.c.h.b16 %v39
  %v434 = vunpack.c.l.b16 %v40
  %v435 = vunpack.c.h.b16 %v40
  %v436 = vunpack.c.l.b16 %v41
  %v437 = vunpack.c.h.b16 %v41
  %v438 = vunpack.c.l.b16 %v42
  %v439 = vunpack.c.h.b16 %v42
  %v440 = vunpack.c.l.b16 %v43
  %v441 = vunpack.c.h.b16 %v43
  %v442 = vunpack.c.l.b16 %v44
  %v443 = vunpack.c.h.b16 %v44
  %v444 = vunpack.c.l.b16 %v45
  %v445 = vunpack.c.h.b16 %v45
  %v446 = vunpack.c.l.b16 %v46
  %v447 = vunpack.c.h.b16 %v46
  %v448 = vunpack.c.l.b16 %v47
  %v449 = vunpack.c.h.b16 %v47
  %v450 = vunpack.c.l.b16 %v48
  %v451 = vunpack.c.h.b16 %v48
  %v452 = vunpack.c.l.b16 %v49
  %v453 = vunpack.c.h.b16 %v49
  %v454 = vunpack.c.l.b16 %v50
  %v455 = vunpack.c.h.b16 %v50
  %v456 = vunpack.c.l.b16 %v51
  %v457 = vunpack.c.h.b16 %v51
  %v458 = vunpack.c.l.b16 %v52
  %v459 = vunpack.c.h.b16 %v52
  %v460 = vunpack.c.l.b16 %v53
  %v461 = vunpack.c.h.b16 %v53
  %v462 = vunpack.c.l.b16 %v54
  %v463 = vunpack.c.h.b16 %v54
  %v464 = vunpack.c.l.b16 %v55
  %v465 = vunpack.c.h.b16 %v55
  %v466 = vunpack.c.l.b16 %v56
  %v467 = vunpack.c.h.b16 %v56
  %v468 = vunpack.c.l.b16 %v57
  %v469 = vunpack.c.h.b16 %v57
  %v470 = vunpack.c.l.b16 %v58
  %v471 = vunpack.c.h.b16 %v58
  %v472 = vunpack.c.l.b16 %v59
  %v473 = vunpack.c.h.b16 %v59
  %v474 = vunpack.c.l.b16 %v60
  %v475 = vunpack.c.h.b16 %v60
  %v476 = vunpack.c.l.b16 %v61
  %v477 = vunpack.c.h.b16 %v61
  %v478 = vunpack.c.l.b16 %v62
  %v479 = vunpack.c.h.b16 %v62
  %v480 = vunpack.c.l.b16 %v63
  %v481 = vunpack.c.h.b16 %v63
  %v482 = vunpack.c.l.b16 %v64
  %v483 = vunpack.c.h.b16 %v64
  %v484 = vunpack.c.l.b16 %v65
  %v485 = vunpack.c.h.b16 %v65
  %v486 = vunpack.c.l.b16 %v66
  %v487 = vunpack.c.h.b16 %v66
  %v488 = vunpack.c.l.b16 %v67
  %v489 = vunpack.c.h.b16 %v67
  %v490 = vunpack.c.l.b16 %v68
  %v491 = vunpack.c.h.b16 %v68
  %v492 = vunpack.c.l.b16 %v69
  %v493 = vunpack.c.h.b16 %v69
  %v494 = vunpack.c.l.b16 %v70
  %v495 = vunpack.c.h.b16 %v70
  %v496 = vunpack.c.l.b16 %v71
  %v497 = vunpack.c.h.b16 %v71
  %v498 = vunpack.c.l.b16 %v72
  %v499 = vunpack.c.h.b16 %v72
  %v500 = vunpack.c.l.b16 %v73
  %v501 = vunpack.c.h.b16 %v73
  %v502 = vunpack.c.l.b16 %v74
  %v503 = vunpack.c.h.b16 %v74
  %v504 = vunpack.c.l.b16 %v75
  %v505 = vunpack.c.h.b16 %v75
  %v506 = vunpack.c.l.b16 %v76
  %v507 = vunpack.c.h.b16 %v76
  %v508 = vunpack.c.l.b16 %v77
  %v509 = vunpack.c.h.b16 %v77
  %v510 = vunpack.c.l.b16 %v78
  %v511 = vunpack.c.h.b16 %v78
  %v512 = vunpack.c.l.b16 %v79
  %v513 = vunpack.c.h.b16 %v79
  %v514 = vunpack.c.l.b16 %v80
  %v515 = vunpack.c.h.b16 %v80
  %v516 = vunpack.c.l.b16 %v81
  %v517 = vunpack.c.h.b16 %v81
  %v518 = vunpack.c.l.b16 %v82
  %v519 = vunpack.c.h.b16 %v82
  %v520 = vunpack.c.l.b16 %v83
  %v521 = vunpack.c.h.b16 %v83
  %v522 = vunpack.c.l.b16 %v84
  %v523 = vunpack.c.h.b16 %v84
  %v524 = vunpack.c.l.b16 %v85
  %v525 = vunpack.c.h.b16 %v85
  %v526 = vunpack.c.l.b16 %v86
  %v527 = vunpack.c.h.b16 %v86
  %v528 = vunpack.c.l.b16 %v87
  %v529 = vunpack.c.h.b16 %v87
  %v530 = vunpack.c.l.b16 %v88
  %v531 = vunpack.c.h.b16 %v88
  %v532 = vunpack.c.l.b16 %v89
  %v533 = vunpack.c.h.b16 %v89
  %v534 = vunpack.c.l.b16 %v90
  %v535 = vunpack.c.h.b16 %v90
  %v536 = vunpack.c.l.b16 %v91
  %v537 = vunpack.c.h.b16 %v91
  %v538 = vunpack.c.l.b16 %v92
  %v539 = vunpack.c.h.b16 %v92
  %v540 = vunpack.c.l.b16 %v93
  %v541 = vunpack.c.h.b16 %v93
  %v542 = vunpack.c.l.b16 %v94
  %v543 = vunpack.c.h.b16 %v94
  %v544 = vunpack.c.l.b16 %v95
  %v545 = vunpack.c.h.b16 %v95
  %v546 = vunpack.c.l.b16 %v96
  %v547 = vunpack.c.h.b16 %v96
  %v548 = vunpack.c.l.b16 %v97
  %v549 = vunpack.c.h.b16 %v97
  %v550 = vunpack.c.l.b16 %v98
  %v551 = vunpack.c.h.b16 %v98
  %v552 = vunpack.c.l.b16 %v99
  %v553 = vunpack.c.h.b16 %v99
  %v554 = vunpack.c.l.b16 %v100
  %v555 = vunpack.c.h.b16 %v100
  %v556 = vunpack.c.l.b16 %v101
  %v557 = vunpack.c.h.b16 %v101
  %v558 = vunpack.c.l.b16 %v102
  %v559 = vunpack.c.h.b16 %v102
  %v560 = vunpack.c.l.b16 %v103
  %v561 = vunpack.c.h.b16 %v103
  %v562 = vunpack.c.l.b16 %v104
  %v563 = vunpack.c.h.b16 %v104
  %v564 = vunpack.c.l.b16 %v105
  %v565 = vunpack.c.h.b16 %v105
  %v566 = vunpack.c.l.b16 %v106
  %v567 = vunpack.c.h.b16 %v106
  %v568 = vunpack.c.l.b16 %v107
  %v569 = vunpack.c.h.b16 %v107
  %v570 = vunpack.c.l.b16 %v108
  %v571 = vunpack.c.h.b16 %v108
  %v572 = vunpack.c.l.b16 %v109
  %v573 = vunpack.c.h.b16 %v109
  %v574 = vunpack.c.l.b16 %v110
  %v575 = vunpack.c.h.b16 %v110
  %v576 = vunpack.c.l.b16 %v111
  %v577 = vunpack.c.h.b16 %v111
  %v578 = vunpack.c.l.b16 %v112
  %v579 = vunpack.c.h.b16 %v112
  %v580 = vunpack.c.l.b16 %v113
  %v581 = vunpack.c.h.b16 %v113
  %v582 = vunpack.c.l.b16 %v114
  %v583 = vunpack.c.h.b16 %v114
  %v584 = vunpack.c.l.b16 %v115
  %v585 = vunpack.c.h.b16 %v115
  %v586 = vunpack.c.l.b16 %v116
  %v587 = vunpack.c.h.b16 %v116
  %v588 = vunpack.c.l.b16 %v117
  %v589 = vunpack.c.h.b16 %v117
  %v590 = vunpack.c.l.b16 %v118
  %v591 = vunpack.c.h.b16 %v118
  %v592 = vunpack.c.l.b16 %v119
  %v593 = vunpack.c.h.b16 %v119
  %v594 = vunpack.c.l.b16 %v120
  %v595 = vunpack.c.h.b16 %v120
  %v596 = vunpack.c.l.b16 %v121
  %v597 = vunpack.c.h.b16 %v121
  %v598 = vunpack.c.l.b16 %v122
  %v599 = vunpack.c.h.b16 %v122
  %v600 = vunpack.c.l.b16 %v123
  %v601 = vunpack.c.h.b16 %v123
  %v602 = vunpack.c.l.b16 %v124
  %v603 = vunpack.c.h.b16 %v124
  %v604 = vunpack.c.l.b16 %v125
  %v605 = vunpack.c.h.b16 %v125
  %v606 = vunpack.c.l.b16 %v126
  %v607 = vunpack.c.h.b16 %v126
  %v608 = vunpack.c.l.b16 %v127
  %v609 = vunpack.c.h.b16 %v127
  %v610 = vunpack.c.l.b16 %v128
  %v611 = vunpack.c.h.b16 %v128
  %v612 = vunpack.c.l.b16 %v129
  %v613 = vunpack.c.h.b16 %v129
  %v614 = vunpack.c.l.b16 %v130
  %v615 = vunpack.c.h.b16 %v130
  %v616 = vunpack.c.l.b16 %v131
  %v617 = vunpack.c.h.b16 %v131
  %v618 = vunpack.c.l.b16 %v132
  %v619 = vunpack.c.h.b16 %v132
  %v620 = vunpack.c.l.b16 %v133
  %v621 = vunpack.c.h.b16 %v133
  %v622 = vunpack.c.l.b16 %v134
  %v623 = vunpack.c.h.b16 %v134
  %v624 = vunpack.c.l.b16 %v135
  %v625 = vunpack.c.h.b16 %v135
  %v626 = vunpack.c.l.b16 %v136
  %v627 = vunpack.c.h.b16 %v136
  %v628 = vunpack.c.l.b16 %v137
  %v629 = vunpack.c.h.b16 %v137
  %v630 = vunpack.c.l.b16 %v138
  %v631 = vunpack.c.h.b16 %v138
  %v632 = vunpack.c.l.b16 %v139
  %v633 = vunpack.c.h.b16 %v139
  %v634 = vunpack.c.l.b16 %v140
  %v635 = vunpack.c.h.b16 %v140
  %v636 = vunpack.c.l.b16 %v141
  %v637 = vunpack.c.h.b16 %v141
  %v638 = vunpack.c.l.b16 %v142
  %v639 = vunpack.c.h.b16 %v142
  %v640 = vunpack.c.l.b16 %v143
  %v641 = vunpack.c.h.b16 %v143
  %v642 = vunpack.c.l.b16 %v144
  %v643 = vunpack.c.h.b16 %v144
  %v644 = vunpack.c.l.b16 %v145
  %v645 = vunpack.c.h.b16 %v145
  %v646 = vunpack.c.l.b16 %v146
  %v647 = vunpack.c.h.b16 %v146
  %v648 = vunpack.c.l.b16 %v147
  %v649 = vunpack.c.h.b16 %v147
  %v650 = vunpack.c.l.b16 %v148
  %v651 = vunpack.c.h.b16 %v148
  %v652 = vunpack.c.l.b16 %v149
  %v653 = vunpack.c.h.b16 %v149
  %v654 = vunpack.c.l.b16 %v150
  %v655 = vunpack.c.h.b16 %v150
  %v656 = vunpack.c.l.b16 %v151
  %v657 = vunpack.c.h.b16 %v151
  %v658 = vunpack.c.l.b16 %v152
  %v659 = vunpack.c.h.b16 %v152
  %v660 = vunpack.c.l.b16 %v153
  %v661 = vunpack.c.h.b16 %v153
  %v662 = vunpack.c.l.b16 %v154
  %v663 = vunpack.c.h.b16 %v154
  %v664 = vunpack.c.l.b16 %v155
  %v665 = vunpack.c.h.b16 %v155
  %v666 = vunpack.c.l.b16 %v156
  %v667 = vunpack.c.h.b16 %v156
  %v668 = vunpack.c.l.b16 %v157
  %v669 = vunpack.c.h.b16 %v157
  %v670 = vunpack.c.l.b16 %v158
  %v671 = vunpack.c.h.b16 %v158
  %v672 = vunpack.c.l.b16 %v159
  %v673 = vunpack.c.h.b16 %v159
  %v674 = vunpack.c.l.b16 %v160
  %v675 = vunpack.c.h.b16 %v160
  %v676 = vunpack.c.l.b16 %v161
  %v677 = vunpack.c.h.b16 %v161
  %v678 = vunpack.c.l.b16 %v162
  %v679 = vunpack.c.h.b16 %v162
  %v680 = vunpack.c.l.b16 %v163
  %v681 = vunpack.c.h.b16 %v163
  %v682 = vunpack.c.l.b16 %v164
  %v683 = vunpack.c.h.b16 %v164
  %v684 = vunpack.c.l.b16 %v165
  %v685 = vunpack.c.h.b16 %v165
  %v686 = vunpack.c.l.b16 %v166
  %v687 = vunpack.c.h.b16 %v166
  %v688 = vunpack.c.l.b16 %v167
  %v689 = vunpack.c.h.b16 %v167
  %v690 = vunpack.c.l.b16 %v168
  %v691 = vunpack.c.h.b16 %v168
  %v692 = vunpack.c.l.b16 %v169
  %v693 = vunpack.c.h.b16 %v169
  %v694 = vunpack.c.l.b16 %v170
  %v695 = vunpack.c.h.b16 %v170
  %v696 = vunpack.c.l.b16 %v171
  %v697 = vunpack.c.h.b16 %v171
  %v698 = vunpack.c.l.b16 %v172
  %v699 = vunpack.c.h.b16 %v172
  %v700 = vunpack.c.l.b16 %v173
  %v701 = vunpack.c.h.b16 %v173
  %v702 = vunpack.c.l.b16 %v174
  %v703 = vunpack.c.h.b16 %v174
  %v704 = vunpack.c.l.b16 %v175
  %v705 = vunpack.c.h.b16 %v175
  %v706 = vunpack.c.l.b16 %v176
  %v707 = vunpack.c.h.b16 %v176
  %v708 = vunpack.c.l.b16 %v177
  %v709 = vunpack.c.h.b16 %v177
  %v710 = vunpack.c.l.b16 %v178
  %v711 = vunpack.c.h.b16 %v178
  %v712 = vunpack.c.l.b16 %v179
  %v713 = vunpack.c.h.b16 %v179
  %v714 = vunpack.c.l.b16 %v180
  %v715 = vunpack.c.h.b16 %v180
  %v716 = vunpack.c.l.b16 %v181
  %v717 = vunpack.c.h.b16 %v181
  %v718 = vpack.c.b16 %v432, %v430
  %v719 = vpack.c.b16 %v433, %v431
  %v720 = vpack.c.b16 %v436, %v434
  %v721 = vpack.c.b16 %v437, %v435
  %v722 = vpack.c.b16 %v440, %v438
  %v723 = vpack.c.b16 %v441, %v439
  %v724 = vpack.c.b16 %v444, %v442
  %v725 = vpack.c.b16 %v445, %v443
  %v726 = vpack.c.b16 %v448, %v446
  %v727 = vpack.c.b16 %v449, %v447
  %v728 = vpack.c.b16 %v452, %v450
  %v729 = vpack.c.b16 %v453, %v451
  %v730 = vpack.c.b16 %v456, %v454
  %v731 = vpack.c.b16 %v457, %v455
  %v732 = vpack.c.b16 %v460, %v458
  %v733 = vpack.c.b16 %v461, %v459
  %v734 = vpack.c.b16 %v464, %v462
  %v735 = vpack.c.b16 %v465, %v463
  %v736 = vpack.c.b16 %v468, %v466
  %v737 = vpack.c.b16 %v469, %v467
  %v738 = vpack.c.b16 %v472, %v470
  %v739 = vpack.c.b16 %v473, %v471
  %v740 = vpack.c.b16 %v476, %v474
  %v741 = vpack.c.b16 %v477, %v475
  %v742 = vpack.c.b16 %v480, %v478
  %v743 = vpack.c.b16 %v481, %v479
  %v744 = vpack.c.b16 %v484, %v482
  %v745 = vpack.c.b16 %v485, %v483
  %v746 = vpack.c.b16 %v488, %v486
  %v747 = vpack.c.b16 %v489, %v487
  %v748 = vpack.c.b16 %v492, %v490
  %v749 = vpack.c.b16 %v493, %v491
  %v750 = vpack.c.b16 %v496, %v494
  %v751 = vpack.c.b16 %v497, %v495
  %v752 = vpack.c.b16 %v500, %v498
  %v753 = vpack.c.b16 %v501, %v499
  %v754 = vpack.c.b16 %v504, %v502
  %v755 = vpack.c.b16 %v505, %v503
  %v756 = vpack.c.b16 %v508, %v506
  %v757 = vpack.c.b16 %v509, %v507
  %v758 = vpack.c.b16 %v512, %v510
  %v759 = vpack.c.b16 %v513, %v511
  %v760 = vpack.c.b16 %v516, %v514
  %v761 = vpack.c.b16 %v517, %v515
  %v762 = vpack.c.b16 %v520, %v518
  %v763 = vpack.c.b16 %v521, %v519
  %v764 = vpack.c.b16 %v524, %v522
  %v765 = vpack.c.b16 %v525, %v523
  %v766 = vpack.c.b16 %v528, %v526
  %v767 = vpack.c.b16 %v529, %v527
  %v768 = vpack.c.b16 %v532, %v530
  %v769 = vpack.c.b16 %v533, %v531
  %v770 = vpack.c.b16 %v536, %v534
  %v771 = vpack.c.b16 %v537, %v535
  %v772 = vpack.c.b16 %v540, %v538
  %v773 = vpack.c.b16 %v541, %v539
  %v774 = vpack.c.b16 %v544, %v542
  %v775 = vpack.c.b16 %v545, %v543
  %v776 = vpack.c.b16 %v548, %v546
  %v777 = vpack.c.b16 %v549, %v547
  %v778 = vpack.c.b16 %v552, %v550
  %v779 = vpack.c.b16 %v553, %v551
  %v780 = vpack.c.b16 %v556, %v554
  %v781 = vpack.c.b16 %v557, %v555
  %v782 = vpack.c.b16 %v560, %v558
  %v783 = vpack.c.b16 %v561, %v559
  %v784 = vpack.c.b16 %v564, %v562
  %v785 = vpack.c.b16 %v565, %v563
  %v786 = vpack.c.b16 %v568, %v566
  %v787 = vpack.c.b16 %v569, %v567
  %v788 = vpack.c.b16 %v572, %v570
  %v789 = vpack.c.b16 %v573, %v571
  %v790 = vpack.c.b16 %v576, %v574
  %v791 = vpack.c.b16 %v577, %v575
  %v792 = vpack.c.b16 %v580, %v578
  %v793 = vpack.c.b16 %v581, %v579
  %v794 = vpack.c.b16 %v584, %v582
  %v795 = vpack.c.b16 %v585, %v583
  %v796 = vpack.c.b16 %v588, %v586
  %v797 = vpack.c.b16 %v589, %v587
  %v798 = vpack.c.b16 %v592, %v590
  %v799 = vpack.c.b16 %v593, %v591
  %v800 = vpack.c.b16 %v596, %v594
  %v801 = vpack.c.b16 %v597, %v595
  %v802 = vpack.c.b16 %v600, %v598
  %v803 = vpack.c.b16 %v601, %v599
  %v804 = vpack.c.b16 %v604, %v602
  %v805 = vpack.c.b16 %v605, %v603
  %v806 = vpack.c.b16 %v608, %v606
  %v807 = vpack.c.b16 %v609, %v607
  %v808 = vpack.c.b16 %v612, %v610
  %v809 = vpack.c.b16 %v613, %v611
  %v810 = vpack.c.b16 %v616, %v614
  %v811 = vpack.c.b16 %v617, %v615
  %v812 = vpack.c.b16 %v620, %v618
  %v813 = vpack.c.b16 %v621, %v619
  %v814 = vpack.c.b16 %v624, %v622
  %v815 = vpack.c.b16 %v625, %v623
  %v816 = vpack.c.b16 %v628, %v626
  %v817 = vpack.c.b16 %v629, %v627
  %v818 = vpack.c.b16 %v632, %v630
  %v819 = vpack.c.b16 %v633, %v631
  %v820 = vpack.c.b16 %v636, %v634
  %v821 = vpack.c.b16 %v637, %v635
  %v822 = vpack.c.b16 %v640, %v638
  %v823 = vpack.c.b16 %v641, %v639
  %v824 = vpack.c.b16 %v644, %v642
  %v825 = vpack.c.b16 %v645, %v643
  %v826 = vpack.c.b16 %v648, %v646
  %v827 = vpack.c.b16 %v649, %v647
  %v828 = vpack.c.b16 %v652, %v650
  %v829 = vpack.c.b16 %v653, %v651
  %v830 = vpack.c.b16 %v656, %v654
  %v831 = vpack.c.b16 %v657, %v655
  %v832 = vpack.c.b16 %v660, %v658
  %v833 = vpack.c.b16 %v661, %v659
  %v834 = vpack.c.b16 %v664, %v662
  %v835 = vpack.c.b16 %v665, %v663
  %v836 = vpack.c.b16 %v668, %v666
  %v837 = vpack.c.b16 %v669, %v667
  %v838 = vpack.c.b16 %v672, %v670
  %v839 = vpack.c.b16 %v673, %v671
  %v840 = vpack.c.b16 %v676, %v674
  %v841 = vpack.c.b16 %v677, %v675
  %v842 = vpack.c.b16 %v680, %v678
  %v843 = vpack.c.b16 %v681, %v679
  %v844 = vpack.c.b16 %v684, %v682
  %v845 = vpack.c.b16 %v685, %v683
  %v846 = vpack.c.b16 %v688, %v686
  %v847 = vpack.c.b16 %v689, %v687
  %v848 = vpack.c.b16 %v692, %v690
  %v849 = vpack.c.b16 %v693, %v691
  %v850 = vpack.c.b16 %v696, %v694
  %v851 = vpack.c.b16 %v697, %v695
  %v852 = vpack.c.b16 %v700, %v698
  %v853 = vpack.c.b16 %v701, %v699
  %v854 = vpack.c.b16 %v704, %v702
  %v855 = vpack.c.b16 %v705, %v703
  %v856 = vpack.c.b16 %v708, %v706
  %v857 = vpack.c.b16 %v709, %v707
  %v858 = vpack.c.b16 %v712, %v710
  %v859 = vpack.c.b16 %v713, %v711
  %v860 = vpack.c.b16 %v716, %v714
  %v861 = vpack.c.b16 %v717, %v715
  %1006 = vmatprep.subr.bf16.mxu0 %v719
  %1007 = vmatpush1.bf16.msra.mxu0 %v718
  %1008 = vmatprep.subr.bf16.mxu0 %v721
  %1009 = vmatpush1.bf16.msra.mxu0 %v720
  %1010 = vmatprep.subr.bf16.mxu0 %v723
  %1011 = vmatpush1.bf16.msra.mxu0 %v722
  %1012 = vmatprep.subr.bf16.mxu0 %v725
  %1013 = vmatpush1.bf16.msra.mxu0 %v724
  %1014 = vmatprep.subr.bf16.mxu0 %v727
  %1015 = vmatpush1.bf16.msra.mxu0 %v726
  %1016 = vmatprep.subr.bf16.mxu0 %v729
  %1017 = vmatpush1.bf16.msra.mxu0 %v728
  %1018 = vmatprep.subr.bf16.mxu0 %v731
  %1019 = vmatpush1.bf16.msra.mxu0 %v730
  %1020 = vmatprep.subr.bf16.mxu0 %v733
  %1021 = vmatpush1.bf16.msra.mxu0 %v732
  %1022 = vmatprep.subr.bf16.mxu0 %v735
  %1023 = vmatpush1.bf16.msra.mxu0 %v734
  %1024 = vmatprep.subr.bf16.mxu0 %v737
  %1025 = vmatpush1.bf16.msra.mxu0 %v736
  %1026 = vmatprep.subr.bf16.mxu0 %v739
  %1027 = vmatpush1.bf16.msra.mxu0 %v738
  %1028 = vmatprep.subr.bf16.mxu0 %v741
  %1029 = vmatpush1.bf16.msra.mxu0 %v740
  %1030 = vmatprep.subr.bf16.mxu0 %v743
  %1031 = vmatpush1.bf16.msra.mxu0 %v742
  %1032 = vmatprep.subr.bf16.mxu0 %v745
  %1033 = vmatpush1.bf16.msra.mxu0 %v744
  %1034 = vmatprep.subr.bf16.mxu0 %v747
  %1035 = vmatpush1.bf16.msra.mxu0 %v746
  %1036 = vmatprep.subr.bf16.mxu0 %v749
  %1037 = vmatpush1.bf16.msra.mxu0 %v748
  %1038 = vmatprep.mubr.bf16.mxu0 %v251
  %1039 = vmatmul.mubr.bf16.gmra.mrb[0].mxu0 %v250
  %v1040 = vpop.f32.mrb[0].mxu0
  %v1041 = vadd.f32 %v187, %v1040
  %v1042 = vpop.f32.mrb[0].mxu0
  %v1043 = vadd.f32 %v191, %v1042
  %v1044 = vpop.f32.mrb[0].mxu0
  %v1045 = vadd.f32 %v187, %v1044
  %v1046 = vpop.f32.mrb[0].mxu0
  %v1047 = vadd.f32 %v191, %v1046
  %1048 = vmatprep.mubr.bf16.mxu0 %v260
  %1049 = vmatmul.mubr.bf16.gmra.mrb[0].mxu0 %v259
  %v1050 = vpop.f32.mrb[0].mxu0
  %v1051 = vadd.f32 %v187, %v1050
  %v1052 = vpop.f32.mrb[0].mxu0
  %v1053 = vadd.f32 %v191, %v1052
  %v1054 = vpop.f32.mrb[0].mxu0
  %v1055 = vadd.f32 %v187, %v1054
  %v1056 = vpop.f32.mrb[0].mxu0
  %v1057 = vadd.f32 %v191, %v1056
  %1058 = vdwg.mxu0
  %1059 = vmatprep.subr.bf16.mxu0 %v751
  %1060 = vmatpush1.bf16.msra.mxu0 %v750
  %1061 = vmatprep.subr.bf16.mxu0 %v753
  %1062 = vmatpush1.bf16.msra.mxu0 %v752
  %1063 = vmatprep.subr.bf16.mxu0 %v755
  %1064 = vmatpush1.bf16.msra.mxu0 %v754
  %1065 = vmatprep.subr.bf16.mxu0 %v757
  %1066 = vmatpush1.bf16.msra.mxu0 %v756
  %1067 = vmatprep.subr.bf16.mxu0 %v759
  %1068 = vmatpush1.bf16.msra.mxu0 %v758
  %1069 = vmatprep.subr.bf16.mxu0 %v761
  %1070 = vmatpush1.bf16.msra.mxu0 %v760
  %1071 = vmatprep.subr.bf16.mxu0 %v763
  %1072 = vmatpush1.bf16.msra.mxu0 %v762
  %1073 = vmatprep.subr.bf16.mxu0 %v765
  %1074 = vmatpush1.bf16.msra.mxu0 %v764
  %1075 = vmatprep.subr.bf16.mxu0 %v767
  %1076 = vmatpush1.bf16.msra.mxu0 %v766
  %1077 = vmatprep.subr.bf16.mxu0 %v769
  %1078 = vmatpush1.bf16.msra.mxu0 %v768
  %1079 = vmatprep.subr.bf16.mxu0 %v771
  %1080 = vmatpush1.bf16.msra.mxu0 %v770
  %1081 = vmatprep.subr.bf16.mxu0 %v773
  %1082 = vmatpush1.bf16.msra.mxu0 %v772
  %1083 = vmatprep.subr.bf16.mxu0 %v775
  %1084 = vmatpush1.bf16.msra.mxu0 %v774
  %1085 = vmatprep.subr.bf16.mxu0 %v777
  %1086 = vmatpush1.bf16.msra.mxu0 %v776
  %1087 = vmatprep.subr.bf16.mxu0 %v779
  %1088 = vmatpush1.bf16.msra.mxu0 %v778
  %1089 = vmatprep.subr.bf16.mxu0 %v781
  %1090 = vmatpush1.bf16.msra.mxu0 %v780
  %1091 = vmatprep.mubr.bf16.mxu0 %v253
  %1092 = vmatmul.mubr.bf16.gmra.mrb[0].mxu0 %v252
  %v1093 = vpop.f32.mrb[0].mxu0
  %v1094 = vadd.f32 %v1041, %v1093
  %v1095 = vpop.f32.mrb[0].mxu0
  %v1096 = vadd.f32 %v1043, %v1095
  %v1097 = vpop.f32.mrb[0].mxu0
  %v1098 = vadd.f32 %v1045, %v1097
  %v1099 = vpop.f32.mrb[0].mxu0
  %v1100 = vadd.f32 %v1047, %v1099
  %1101 = vmatprep.mubr.bf16.mxu0 %v262
  %1102 = vmatmul.mubr.bf16.gmra.mrb[0].mxu0 %v261
  %v1103 = vpop.f32.mrb[0].mxu0
  %v1104 = vadd.f32 %v1051, %v1103
  %v1105 = vpop.f32.mrb[0].mxu0
  %v1106 = vadd.f32 %v1053, %v1105
  %v1107 = vpop.f32.mrb[0].mxu0
  %v1108 = vadd.f32 %v1055, %v1107
  %v1109 = vpop.f32.mrb[0].mxu0
  %v1110 = vadd.f32 %v1057, %v1109
  %1111 = vdwg.mxu0
  %1112 = vmatprep.subr.bf16.mxu0 %v783
  %1113 = vmatpush1.bf16.msra.mxu0 %v782
  %1114 = vmatprep.subr.bf16.mxu0 %v785
  %1115 = vmatpush1.bf16.msra.mxu0 %v784
  %1116 = vmatprep.subr.bf16.mxu0 %v787
  %1117 = vmatpush1.bf16.msra.mxu0 %v786
  %1118 = vmatprep.subr.bf16.mxu0 %v789
  %1119 = vmatpush1.bf16.msra.mxu0 %v788
  %1120 = vmatprep.subr.bf16.mxu0 %v791
  %1121 = vmatpush1.bf16.msra.mxu0 %v790
  %1122 = vmatprep.subr.bf16.mxu0 %v793
  %1123 = vmatpush1.bf16.msra.mxu0 %v792
  %1124 = vmatprep.subr.bf16.mxu0 %v795
  %1125 = vmatpush1.bf16.msra.mxu0 %v794
  %1126 = vmatprep.subr.bf16.mxu0 %v797
  %1127 = vmatpush1.bf16.msra.mxu0 %v796
  %1128 = vmatprep.subr.bf16.mxu0 %v799
  %1129 = vmatpush1.bf16.msra.mxu0 %v798
  %1130 = vmatprep.subr.bf16.mxu0 %v801
  %1131 = vmatpush1.bf16.msra.mxu0 %v800
  %1132 = vmatprep.subr.bf16.mxu0 %v803
  %1133 = vmatpush1.bf16.msra.mxu0 %v802
  %1134 = vmatprep.subr.bf16.mxu0 %v805
  %1135 = vmatpush1.bf16.msra.mxu0 %v804
  %1136 = vmatprep.subr.bf16.mxu0 %v807
  %1137 = vmatpush1.bf16.msra.mxu0 %v806
  %1138 = vmatprep.subr.bf16.mxu0 %v809
  %1139 = vmatpush1.bf16.msra.mxu0 %v808
  %1140 = vmatprep.subr.bf16.mxu0 %v811
  %1141 = vmatpush1.bf16.msra.mxu0 %v810
  %1142 = vmatprep.subr.bf16.mxu0 %v813
  %1143 = vmatpush1.bf16.msra.mxu0 %v812
  %1144 = vmatprep.mubr.bf16.mxu0 %v255
  %1145 = vmatmul.mubr.bf16.gmra.mrb[0].mxu0 %v254
  %v1146 = vpop.f32.mrb[0].mxu0
  %v1147 = vadd.f32 %v1094, %v1146
  %v1148 = vpop.f32.mrb[0].mxu0
  %v1149 = vadd.f32 %v1096, %v1148
  %v1150 = vpop.f32.mrb[0].mxu0
  %v1151 = vadd.f32 %v1098, %v1150
  %v1152 = vpop.f32.mrb[0].mxu0
  %v1153 = vadd.f32 %v1100, %v1152
  %1154 = vmatprep.mubr.bf16.mxu0 %v264
  %1155 = vmatmul.mubr.bf16.gmra.mrb[0].mxu0 %v263
  %v1156 = vpop.f32.mrb[0].mxu0
  %v1157 = vadd.f32 %v1104, %v1156
  %v1158 = vpop.f32.mrb[0].mxu0
  %v1159 = vadd.f32 %v1106, %v1158
  %v1160 = vpop.f32.mrb[0].mxu0
  %v1161 = vadd.f32 %v1108, %v1160
  %v1162 = vpop.f32.mrb[0].mxu0
  %v1163 = vadd.f32 %v1110, %v1162
  %1164 = vdwg.mxu0
  %1165 = vmatprep.subr.bf16.mxu0 %v815
  %1166 = vmatpush1.bf16.msra.mxu0 %v814
  %1167 = vmatprep.subr.bf16.mxu0 %v817
  %1168 = vmatpush1.bf16.msra.mxu0 %v816
  %1169 = vmatprep.subr.bf16.mxu0 %v819
  %1170 = vmatpush1.bf16.msra.mxu0 %v818
  %1171 = vmatprep.subr.bf16.mxu0 %v821
  %1172 = vmatpush1.bf16.msra.mxu0 %v820
  %1173 = vmatprep.subr.bf16.mxu0 %v823
  %1174 = vmatpush1.bf16.msra.mxu0 %v822
  %1175 = vmatprep.subr.bf16.mxu0 %v825
  %1176 = vmatpush1.bf16.msra.mxu0 %v824
  %1177 = vmatprep.subr.bf16.mxu0 %v827
  %1178 = vmatpush1.bf16.msra.mxu0 %v826
  %1179 = vmatprep.subr.bf16.mxu0 %v829
  %1180 = vmatpush1.bf16.msra.mxu0 %v828
  %1181 = vmatprep.subr.bf16.mxu0 %v831
  %1182 = vmatpush1.bf16.msra.mxu0 %v830
  %1183 = vmatprep.subr.bf16.mxu0 %v833
  %1184 = vmatpush1.bf16.msra.mxu0 %v832
  %1185 = vmatprep.subr.bf16.mxu0 %v835
  %1186 = vmatpush1.bf16.msra.mxu0 %v834
  %1187 = vmatprep.subr.bf16.mxu0 %v837
  %1188 = vmatpush1.bf16.msra.mxu0 %v836
  %1189 = vmatprep.subr.bf16.mxu0 %v839
  %1190 = vmatpush1.bf16.msra.mxu0 %v838
  %1191 = vmatprep.subr.bf16.mxu0 %v841
  %1192 = vmatpush1.bf16.msra.mxu0 %v840
  %1193 = vmatprep.subr.bf16.mxu0 %v843
  %1194 = vmatpush1.bf16.msra.mxu0 %v842
  %1195 = vmatprep.subr.bf16.mxu0 %v845
  %1196 = vmatpush1.bf16.msra.mxu0 %v844
  %1197 = vmatprep.mubr.bf16.mxu0 %v257
  %1198 = vmatmul.mubr.bf16.gmra.mrb[0].mxu0 %v256
  %v1199 = vpop.f32.mrb[0].mxu0
  %v1200 = vadd.f32 %v1147, %v1199
  %v1201 = vpop.f32.mrb[0].mxu0
  %v1202 = vadd.f32 %v1149, %v1201
  %v1203 = vpop.f32.mrb[0].mxu0
  %v1204 = vadd.f32 %v1151, %v1203
  %v1205 = vpop.f32.mrb[0].mxu0
  %v1206 = vadd.f32 %v1153, %v1205
  %1207 = vmatprep.mubr.bf16.mxu0 %v266
  %1208 = vmatmul.mubr.bf16.gmra.mrb[0].mxu0 %v265
  %v1209 = vpop.f32.mrb[0].mxu0
  %v1210 = vadd.f32 %v1157, %v1209
  %v1211 = vpop.f32.mrb[0].mxu0
  %v1212 = vadd.f32 %v1159, %v1211
  %v1213 = vpop.f32.mrb[0].mxu0
  %v1214 = vadd.f32 %v1161, %v1213
  %v1215 = vpop.f32.mrb[0].mxu0
  %v1216 = vadd.f32 %v1163, %v1215
  %1217 = vdwg.mxu0
  %1218 = vmatprep.subr.bf16.mxu0 %v847
  %1219 = vmatpush1.bf16.msra.mxu0 %v846
  %1220 = vmatprep.subr.bf16.mxu0 %v849
  %1221 = vmatpush1.bf16.msra.mxu0 %v848
  %1222 = vmatprep.subr.bf16.mxu0 %v851
  %1223 = vmatpush1.bf16.msra.mxu0 %v850
  %1224 = vmatprep.subr.bf16.mxu0 %v853
  %1225 = vmatpush1.bf16.msra.mxu0 %v852
  %1226 = vmatprep.subr.bf16.mxu0 %v855
  %1227 = vmatpush1.bf16.msra.mxu0 %v854
  %1228 = vmatprep.subr.bf16.mxu0 %v857
  %1229 = vmatpush1.bf16.msra.mxu0 %v856
  %1230 = vmatprep.subr.bf16.mxu0 %v859
  %1231 = vmatpush1.bf16.msra.mxu0 %v858
  %1232 = vmatprep.subr.bf16.mxu0 %v861
  %1233 = vmatpush1.bf16.msra.mxu0 %v860
  %1234 = vmatprep.subr.bf16.mxu0 0
  %1235 = vmatpush1.bf16.msra.mxu0 0
  %1236 = vmatprep.subr.bf16.mxu0 0
  %1237 = vmatpush1.bf16.msra.mxu0 0
  %1238 = vmatprep.subr.bf16.mxu0 0
  %1239 = vmatpush1.bf16.msra.mxu0 0
  %1240 = vmatprep.subr.bf16.mxu0 0
  %1241 = vmatpush1.bf16.msra.mxu0 0
  %1242 = vmatprep.subr.bf16.mxu0 0
  %1243 = vmatpush1.bf16.msra.mxu0 0
  %1244 = vmatprep.subr.bf16.mxu0 0
  %1245 = vmatpush1.bf16.msra.mxu0 0
  %1246 = vmatprep.subr.bf16.mxu0 0
  %1247 = vmatpush1.bf16.msra.mxu0 0
  %1248 = vmatprep.subr.bf16.mxu0 0
  %1249 = vmatpush1.bf16.msra.mxu0 0
  %1250 = vmatprep.mubr.bf16.mxu0 0
  %1251 = vmatmul.mubr.bf16.gmra.mrb[0].mxu0 %v258
  %v1252 = vpop.f32.mrb[0].mxu0
  %v1253 = vadd.f32 %v1200, %v1252
  %v1254 = vpop.f32.mrb[0].mxu0
  %v1255 = vadd.f32 %v1202, %v1254
  %v1256 = vpop.f32.mrb[0].mxu0
  %v1257 = vadd.f32 %v1204, %v1256
  %v1258 = vpop.f32.mrb[0].mxu0
  %v1259 = vadd.f32 %v1206, %v1258
  %1260 = vmatprep.mubr.bf16.mxu0 0
  %1261 = vmatmul.mubr.bf16.gmra.mrb[0].mxu0 %v267
  %v1262 = vpop.f32.mrb[0].mxu0
  %v1263 = vadd.f32 %v1210, %v1262
  %v1264 = vpop.f32.mrb[0].mxu0
  %v1265 = vadd.f32 %v1212, %v1264
  %v1266 = vpop.f32.mrb[0].mxu0
  %v1267 = vadd.f32 %v1214, %v1266
  %v1268 = vpop.f32.mrb[0].mxu0
  %v1269 = vadd.f32 %v1216, %v1268
  %1270 = vdwg.mxu0
  %v1271 = vmax.f32 %v1253, 0.0
  %v1272 = vmax.f32 %v1255, 0.0
  %v1273 = vmax.f32 %v1257, 0.0
  %v1274 = vmax.f32 %v1259, 0.0
  %v1275 = vmax.f32 %v1263, 0.0
  %v1276 = vmax.f32 %v1265, 0.0
  %v1277 = vmax.f32 %v1267, 0.0
  %v1278 = vmax.f32 %v1269, 0.0
  %v1279 = vld [vmem:[%s3] sm:$0x3]
  %v1281 = vlaneseq
  %v1282 = vshrl.u32 %v1281, 7
  %v1283 = vsub.s32 0, %v1282
  %v1284 = vrot.slane %v1279, %v1283
  %v1285 = vlaneseq
  %v1286 = vshrl.u32 %v1285, 7
  %v1287 = vsub.s32 1, %v1286
  %v1288 = vrot.slane %v1279, %v1287
  %v1291 = vadd.f32 %v1271, %v1284
  %v1292 = vadd.f32 %v1272, %v1288
  %v1293 = vadd.f32 %v1273, %v1284
  %v1294 = vadd.f32 %v1274, %v1288
  %v1295 = vadd.f32 %v1275, %v1284
  %v1296 = vadd.f32 %v1276, %v1288
  %v1297 = vadd.f32 %v1277, %v1284
  %v1298 = vadd.f32 %v1278, %v1288
  %v1299 = vpack.c.bf16 %v1293, %v1291
  %v1300 = vpack.c.bf16 %v1294, %v1292
  %v1301 = vpack.c.bf16 %v1297, %v1295
  %v1302 = vpack.c.bf16 %v1298, %v1296
  %v1307 = vunpack.c.l.b16 %v1299
  %v1308 = vunpack.c.l.b16 %v1300
  %v1309 = vunpack.c.h.b16 %v1299
  %v1310 = vunpack.c.h.b16 %v1300
  %v1311 = vunpack.c.l.b16 %v1301
  %v1312 = vunpack.c.l.b16 %v1302
  %v1313 = vunpack.c.h.b16 %v1301
  %v1314 = vunpack.c.h.b16 %v1302
  %v1315 = vpack.c.b16 %v1308, %v1307
  %v1316 = vpack.c.b16 %v1310, %v1309
  %v1317 = vpack.c.b16 %v1312, %v1311
  %v1318 = vpack.c.b16 %v1314, %v1313
  %1323 = vst [vmem:[%s4] sm:$0xff] %v1315
  %1324 = vst [vmem:[%s4 + $0x8] sm:$0xff] %v1316
  %1325 = vst [vmem:[%s4 + $0x10] sm:$0xff] %v1317
  %1326 = vst [vmem:[%s4 + $0x18] sm:$0xff] %v1318
  // Predicated region
  $region18: #{generator_forward.7} parent=0 // pred_check
    _
  $region19: #{generator_forward.7} parent=0 // pred_check_branch
    %1328 = sbr.rel (0) target = $region21
  $region20: #{generator_forward.7} parent=0 // pred_region
    _
  $region21: #{generator_forward.7} parent=0 // pred_fallthru
    _
  // Predicated region
  $region22: #{generator_forward.7} parent=0 // pred_check
    _
  $region23: #{generator_forward.7} parent=0 // pred_check_branch
    %1330 = sbr.rel (0) target = $region25
  $region24: #{generator_forward.7} parent=0 // pred_region
    _
  $region25: #{generator_forward.7} parent=0 // pred_fallthru
    _

// kernel: tile.113
$region0: #{tile.113}
  #allocation0 [shape = 's32[1]{0}', space=sflag, size = 0x4, scoped, tag = 'scoped memory for tile.113']
  %s0 = inlined_call_operand.vmem [shape: f32[32], index: 0, kind: input, shape index: {}]
  %s1 = inlined_call_operand.vmem [shape: f32[4,32], index: 1, kind: output, shape index: {}]
  // Predicated region
  $region2: #{tile.113} parent=0 // pred_check
    _
  $region3: #{tile.113} parent=0 // pred_check_branch
    %3 = sbr.rel (0) target = $region5
  $region4: #{tile.113} parent=0 // pred_region
    _
  $region5: #{tile.113} parent=0 // pred_fallthru
    _
  %v4 = vld [vmem:[%s0] ss:$0 sm:$0xff]
  %5 = vst [vmem:[%s1] sm:$0xf] %v4

// kernel: mul.53
$region0: #{mul.53}
  %s0 = inlined_call_operand.vmem [shape: f32[4,32], index: 0, kind: input, shape index: {}]
  %s1 = inlined_call_operand.vmem [shape: f32[128], index: 1, kind: output, shape index: {}]
  $region1: #{mul.53} parent=0
    #allocation0 [shape = 'u8[4096]{0}', space=vmem, size = 0x1000, scoped, tag = 'scoped mem for output reshape']
    #allocation1 [shape = 'u8[4096]{0}', space=vmem, size = 0x1000, scoped, tag = 'scoped mem for input reshape']
    %s3 = sshllo.u32 0, 4
    %v4 = vld [vmem:[%s0] sm:%s3]
    %5 = vst [vmem:[#allocation1] sm:%s3] %v4
    %v6 = vld [vmem:[#allocation1] sm:$0x1]
    %vm7 = vcmask 261120
    %8 = vst.msk [vmem:[#allocation0] sm:$0x1] %vm7, %v6
    %s9 = scalar_lea.vmem [#allocation1], 3
    %v10 = vld [vmem:[%s9] sm:$0x1]
    %11 = vrot.lane.b32.xlu0 %v10, 96
    %v12 = vpop.permute.xlu0 %11
    %vm13 = vcmask 1048320
    %14 = vst.msk [vmem:[#allocation0] sm:$0x1] %vm13, %v12
    %s15 = scalar_lea.vmem [#allocation1], 2
    %v16 = vld [vmem:[%s15] sm:$0x1]
    %17 = vrot.lane.b32.xlu0 %v16, 64
    %v18 = vpop.permute.xlu0 %17
    %vm19 = vcmask 785920
    %20 = vst.msk [vmem:[#allocation0] sm:$0x1] %vm19, %v18
    %s21 = scalar_lea.vmem [#allocation1], 1
    %v22 = vld [vmem:[%s21] sm:$0x1]
    %23 = vrot.lane.b32.xlu0 %v22, 32
    %v24 = vpop.permute.xlu0 %23
    %vm25 = vcmask 523520
    %26 = vst.msk [vmem:[#allocation0] sm:$0x1] %vm25, %v24
    %s28 = sshllo.u32 0, 1
    %v30 = vld [vmem:[#allocation0] sm:%s28]
    %s31 = sshllo.u32 0, 1
    %32 = vst [vmem:[%s1] sm:%s31] %v30

// kernel: tile.123
$region0: #{tile.123}
  %s0 = inlined_call_operand.vmem [shape: f32[4,32], index: 0, kind: input, shape index: {}]
  %s1 = inlined_call_operand.vmem [shape: f32[1,128], index: 1, kind: output, shape index: {}]
  $region1: #{tile.123} parent=0
    #allocation0 [shape = 'u8[4096]{0}', space=vmem, size = 0x1000, scoped, tag = 'scoped mem for output reshape']
    #allocation1 [shape = 'u8[4096]{0}', space=vmem, size = 0x1000, scoped, tag = 'scoped mem for input reshape']
    %s3 = sshllo.u32 0, 4
    %v4 = vld [vmem:[%s0] sm:%s3]
    %5 = vst [vmem:[#allocation1] sm:%s3] %v4
    %v6 = vld [vmem:[#allocation1] sm:$0x1]
    %vm7 = vcmask 261120
    %8 = vst.msk [vmem:[#allocation0] sm:$0x1] %vm7, %v6
    %s9 = scalar_lea.vmem [#allocation1], 3
    %v10 = vld [vmem:[%s9] sm:$0x1]
    %11 = vrot.lane.b32.xlu0 %v10, 96
    %v12 = vpop.permute.xlu0 %11
    %vm13 = vcmask 1048320
    %14 = vst.msk [vmem:[#allocation0] sm:$0x1] %vm13, %v12
    %s15 = scalar_lea.vmem [#allocation1], 2
    %v16 = vld [vmem:[%s15] sm:$0x1]
    %17 = vrot.lane.b32.xlu0 %v16, 64
    %v18 = vpop.permute.xlu0 %17
    %vm19 = vcmask 785920
    %20 = vst.msk [vmem:[#allocation0] sm:$0x1] %vm19, %v18
    %s21 = scalar_lea.vmem [#allocation1], 1
    %v22 = vld [vmem:[%s21] sm:$0x1]
    %23 = vrot.lane.b32.xlu0 %v22, 32
    %v24 = vpop.permute.xlu0 %23
    %vm25 = vcmask 523520
    %26 = vst.msk [vmem:[#allocation0] sm:$0x1] %vm25, %v24
    %s28 = sshllo.u32 0, 1
    %v30 = vld [vmem:[#allocation0] sm:%s28]
    %s31 = sshllo.u32 0, 1
    %32 = vst [vmem:[%s1] sm:%s31] %v30

// kernel: generator_forward.8
$region0: #{generator_forward.8}
  #allocation0 [shape = 'u32[]', space=smem, size = 0x4, offset = 0x4, fixed_abs, tag = 'smem constant byte address 0x4 - core index']
  #allocation1 [shape = 'u32[144,128]{1,0:T(1,128)}', space=vmem, size = 0x12000, scoped, tag = 'internal scratch']
  %s0 = inlined_call_operand.vmem [shape: bf16[128,576], index: 0, kind: input, shape index: {}]
  %s1 = inlined_call_operand.vmem [shape: bf16[576,128], index: 1, kind: input, shape index: {}]
  %s2 = inlined_call_operand.vmem [shape: f32[1,128], index: 2, kind: input, shape index: {}]
  %s3 = inlined_call_operand.vmem [shape: f32[1,128], index: 3, kind: input, shape index: {}]
  %s4 = inlined_call_operand.vmem [shape: bf16[128,128], index: 4, kind: output, shape index: {}]
  %s5 = sld [smem:[#allocation0]]
  $region26: #{generator_forward.8} parent=0
    _
  %s7 = ssub.s32 1, %s5
  %s8 = scalar_select 0, %s7, %s5
  // Predicated region
  $region2: #{generator_forward.8} parent=0 // pred_check
    _
  $region3: #{generator_forward.8} parent=0 // pred_check_branch
    %10 = sbr.rel (0) target = $region5
  $region4: #{generator_forward.8} parent=0 // pred_region
    _
  $region5: #{generator_forward.8} parent=0 // pred_fallthru
    _
  // Predicated region
  $region6: #{generator_forward.8} parent=0 // pred_check
    _
  $region7: #{generator_forward.8} parent=0 // pred_check_branch
    %12 = sbr.rel (0) target = $region9
  $region8: #{generator_forward.8} parent=0 // pred_region
    _
  $region9: #{generator_forward.8} parent=0 // pred_fallthru
    _
  // Predicated region
  $region10: #{generator_forward.8} parent=0 // pred_check
    _
  $region11: #{generator_forward.8} parent=0 // pred_check_branch
    %14 = sbr.rel (0) target = $region13
  $region12: #{generator_forward.8} parent=0 // pred_region
    _
  $region13: #{generator_forward.8} parent=0 // pred_fallthru
    _
  // Predicated region
  $region14: #{generator_forward.8} parent=0 // pred_check
    _
  $region15: #{generator_forward.8} parent=0 // pred_check_branch
    %16 = sbr.rel (0) target = $region17
  $region16: #{generator_forward.8} parent=0 // pred_region
    _
  $region17: #{generator_forward.8} parent=0 // pred_fallthru
    _
  %v18 = vld [vmem:[%s0] sm:$0xff]
  %v19 = vld [vmem:[%s0 + $0x8] sm:$0xff]
  %v20 = vld [vmem:[%s0 + $0x10] sm:$0xf]
  %v21 = vld [vmem:[%s0 + $0x14] sm:$0xff]
  %v22 = vld [vmem:[%s0 + $0x1c] sm:$0xff]
  %v23 = vld [vmem:[%s0 + $0x24] sm:$0xf]
  %v24 = vld [vmem:[%s0 + $0x28] sm:$0xff]
  %v25 = vld [vmem:[%s0 + $0x30] sm:$0xff]
  %v26 = vld [vmem:[%s0 + $0x38] sm:$0xf]
  %v27 = vld [vmem:[%s0 + $0x3c] sm:$0xff]
  %v28 = vld [vmem:[%s0 + $0x44] sm:$0xff]
  %v29 = vld [vmem:[%s0 + $0x4c] sm:$0xf]
  %v30 = vld [vmem:[%s0 + $0x50] sm:$0xff]
  %v31 = vld [vmem:[%s0 + $0x58] sm:$0xff]
  %v32 = vld [vmem:[%s0 + $0x60] sm:$0xf]
  %v33 = vld [vmem:[%s0 + $0x64] sm:$0xff]
  %v34 = vld [vmem:[%s0 + $0x6c] sm:$0xff]
  %v35 = vld [vmem:[%s0 + $0x74] sm:$0xf]
  %v36 = vld [vmem:[%s0 + $0x78] sm:$0xff]
  %v37 = vld [vmem:[%s0 + $0x80] sm:$0xff]
  %v38 = vld [vmem:[%s0 + $0x88] sm:$0xf]
  %v39 = vld [vmem:[%s0 + $0x8c] sm:$0xff]
  %v40 = vld [vmem:[%s0 + $0x94] sm:$0xff]
  %v41 = vld [vmem:[%s0 + $0x9c] sm:$0xf]
  %v42 = vld [vmem:[%s0 + $0xa0] sm:$0xff]
  %v43 = vld [vmem:[%s0 + $0xa8] sm:$0xff]
  %v44 = vld [vmem:[%s0 + $0xb0] sm:$0xf]
  %v45 = vld [vmem:[%s0 + $0xb4] sm:$0xff]
  %v46 = vld [vmem:[%s0 + $0xbc] sm:$0xff]
  %v47 = vld [vmem:[%s0 + $0xc4] sm:$0xf]
  %v48 = vld [vmem:[%s0 + $0xc8] sm:$0xff]
  %v49 = vld [vmem:[%s0 + $0xd0] sm:$0xff]
  %v50 = vld [vmem:[%s0 + $0xd8] sm:$0xf]
  %v51 = vld [vmem:[%s0 + $0xdc] sm:$0xff]
  %v52 = vld [vmem:[%s0 + $0xe4] sm:$0xff]
  %v53 = vld [vmem:[%s0 + $0xec] sm:$0xf]
  %v54 = vld [vmem:[%s0 + $0xf0] sm:$0xff]
  %v55 = vld [vmem:[%s0 + $0xf8] sm:$0xff]
  %v56 = vld [vmem:[%s0 + $0x100] sm:$0xf]
  %v57 = vld [vmem:[%s0 + $0x104] sm:$0xff]
  %v58 = vld [vmem:[%s0 + $0x10c] sm:$0xff]
  %v59 = vld [vmem:[%s0 + $0x114] sm:$0xf]
  %v60 = vld [vmem:[%s0 + $0x118] sm:$0xff]
  %v61 = vld [vmem:[%s0 + $0x120] sm:$0xff]
  %v62 = vld [vmem:[%s0 + $0x128] sm:$0xf]
  %v63 = vld [vmem:[%s0 + $0x12c] sm:$0xff]
  %v64 = vld [vmem:[%s0 + $0x134] sm:$0xff]
  %v65 = vld [vmem:[%s0 + $0x13c] sm:$0xf]
  %v66 = vld [vmem:[%s1] sm:$0xf]
  %v67 = vld [vmem:[%s1 + $0x4] sm:$0xf]
  %v68 = vld [vmem:[%s1 + $0x8] sm:$0xf]
  %v69 = vld [vmem:[%s1 + $0xc] sm:$0xf]
  %v70 = vld [vmem:[%s1 + $0x10] sm:$0xf]
  %v71 = vld [vmem:[%s1 + $0x14] sm:$0xf]
  %v72 = vld [vmem:[%s1 + $0x18] sm:$0xf]
  %v73 = vld [vmem:[%s1 + $0x1c] sm:$0xf]
  %v74 = vld [vmem:[%s1 + $0x20] sm:$0xf]
  %v75 = vld [vmem:[%s1 + $0x24] sm:$0xf]
  %v76 = vld [vmem:[%s1 + $0x28] sm:$0xf]
  %v77 = vld [vmem:[%s1 + $0x2c] sm:$0xf]
  %v78 = vld [vmem:[%s1 + $0x30] sm:$0xf]
  %v79 = vld [vmem:[%s1 + $0x34] sm:$0xf]
  %v80 = vld [vmem:[%s1 + $0x38] sm:$0xf]
  %v81 = vld [vmem:[%s1 + $0x3c] sm:$0xf]
  %v82 = vld [vmem:[%s1 + $0x40] sm:$0xf]
  %v83 = vld [vmem:[%s1 + $0x44] sm:$0xf]
  %v84 = vld [vmem:[%s1 + $0x48] sm:$0xf]
  %v85 = vld [vmem:[%s1 + $0x4c] sm:$0xf]
  %v86 = vld [vmem:[%s1 + $0x50] sm:$0xf]
  %v87 = vld [vmem:[%s1 + $0x54] sm:$0xf]
  %v88 = vld [vmem:[%s1 + $0x58] sm:$0xf]
  %v89 = vld [vmem:[%s1 + $0x5c] sm:$0xf]
  %v90 = vld [vmem:[%s1 + $0x60] sm:$0xf]
  %v91 = vld [vmem:[%s1 + $0x64] sm:$0xf]
  %v92 = vld [vmem:[%s1 + $0x68] sm:$0xf]
  %v93 = vld [vmem:[%s1 + $0x6c] sm:$0xf]
  %v94 = vld [vmem:[%s1 + $0x70] sm:$0xf]
  %v95 = vld [vmem:[%s1 + $0x74] sm:$0xf]
  %v96 = vld [vmem:[%s1 + $0x78] sm:$0xf]
  %v97 = vld [vmem:[%s1 + $0x7c] sm:$0xf]
  %v98 = vld [vmem:[%s1 + $0x80] sm:$0xf]
  %v99 = vld [vmem:[%s1 + $0x84] sm:$0xf]
  %v100 = vld [vmem:[%s1 + $0x88] sm:$0xf]
  %v101 = vld [vmem:[%s1 + $0x8c] sm:$0xf]
  %v102 = vld [vmem:[%s1 + $0x90] sm:$0xf]
  %v103 = vld [vmem:[%s1 + $0x94] sm:$0xf]
  %v104 = vld [vmem:[%s1 + $0x98] sm:$0xf]
  %v105 = vld [vmem:[%s1 + $0x9c] sm:$0xf]
  %v106 = vld [vmem:[%s1 + $0xa0] sm:$0xf]
  %v107 = vld [vmem:[%s1 + $0xa4] sm:$0xf]
  %v108 = vld [vmem:[%s1 + $0xa8] sm:$0xf]
  %v109 = vld [vmem:[%s1 + $0xac] sm:$0xf]
  %v110 = vld [vmem:[%s1 + $0xb0] sm:$0xf]
  %v111 = vld [vmem:[%s1 + $0xb4] sm:$0xf]
  %v112 = vld [vmem:[%s1 + $0xb8] sm:$0xf]
  %v113 = vld [vmem:[%s1 + $0xbc] sm:$0xf]
  %v114 = vld [vmem:[%s1 + $0xc0] sm:$0xf]
  %v115 = vld [vmem:[%s1 + $0xc4] sm:$0xf]
  %v116 = vld [vmem:[%s1 + $0xc8] sm:$0xf]
  %v117 = vld [vmem:[%s1 + $0xcc] sm:$0xf]
  %v118 = vld [vmem:[%s1 + $0xd0] sm:$0xf]
  %v119 = vld [vmem:[%s1 + $0xd4] sm:$0xf]
  %v120 = vld [vmem:[%s1 + $0xd8] sm:$0xf]
  %v121 = vld [vmem:[%s1 + $0xdc] sm:$0xf]
  %v122 = vld [vmem:[%s1 + $0xe0] sm:$0xf]
  %v123 = vld [vmem:[%s1 + $0xe4] sm:$0xf]
  %v124 = vld [vmem:[%s1 + $0xe8] sm:$0xf]
  %v125 = vld [vmem:[%s1 + $0xec] sm:$0xf]
  %v126 = vld [vmem:[%s1 + $0xf0] sm:$0xf]
  %v127 = vld [vmem:[%s1 + $0xf4] sm:$0xf]
  %v128 = vld [vmem:[%s1 + $0xf8] sm:$0xf]
  %v129 = vld [vmem:[%s1 + $0xfc] sm:$0xf]
  %v130 = vld [vmem:[%s1 + $0x100] sm:$0xf]
  %v131 = vld [vmem:[%s1 + $0x104] sm:$0xf]
  %v132 = vld [vmem:[%s1 + $0x108] sm:$0xf]
  %v133 = vld [vmem:[%s1 + $0x10c] sm:$0xf]
  %v134 = vld [vmem:[%s1 + $0x110] sm:$0xf]
  %v135 = vld [vmem:[%s1 + $0x114] sm:$0xf]
  %v136 = vld [vmem:[%s1 + $0x118] sm:$0xf]
  %v137 = vld [vmem:[%s1 + $0x11c] sm:$0xf]
  %v138 = vld [vmem:[%s2] sm:$0x1]
  %v140 = vlaneseq
  %v141 = vshrl.u32 %v140, 7
  %v142 = vsub.s32 0, %v141
  %v143 = vrot.slane %v138, %v142
  %v193 = vunpack.c.l.b16 %v18
  %v194 = vunpack.c.h.b16 %v18
  %v195 = vunpack.c.l.b16 %v19
  %v196 = vunpack.c.h.b16 %v19
  %v197 = vunpack.c.l.b16 %v20
  %v198 = vunpack.c.l.b16 %v21
  %v199 = vunpack.c.h.b16 %v21
  %v200 = vunpack.c.l.b16 %v22
  %v201 = vunpack.c.h.b16 %v22
  %v202 = vunpack.c.l.b16 %v23
  %v203 = vunpack.c.l.b16 %v24
  %v204 = vunpack.c.h.b16 %v24
  %v205 = vunpack.c.l.b16 %v25
  %v206 = vunpack.c.h.b16 %v25
  %v207 = vunpack.c.l.b16 %v26
  %v208 = vunpack.c.l.b16 %v27
  %v209 = vunpack.c.h.b16 %v27
  %v210 = vunpack.c.l.b16 %v28
  %v211 = vunpack.c.h.b16 %v28
  %v212 = vunpack.c.l.b16 %v29
  %v213 = vunpack.c.l.b16 %v30
  %v214 = vunpack.c.h.b16 %v30
  %v215 = vunpack.c.l.b16 %v31
  %v216 = vunpack.c.h.b16 %v31
  %v217 = vunpack.c.l.b16 %v32
  %v218 = vunpack.c.l.b16 %v33
  %v219 = vunpack.c.h.b16 %v33
  %v220 = vunpack.c.l.b16 %v34
  %v221 = vunpack.c.h.b16 %v34
  %v222 = vunpack.c.l.b16 %v35
  %v223 = vunpack.c.l.b16 %v36
  %v224 = vunpack.c.h.b16 %v36
  %v225 = vunpack.c.l.b16 %v37
  %v226 = vunpack.c.h.b16 %v37
  %v227 = vunpack.c.l.b16 %v38
  %v228 = vunpack.c.l.b16 %v39
  %v229 = vunpack.c.h.b16 %v39
  %v230 = vunpack.c.l.b16 %v40
  %v231 = vunpack.c.h.b16 %v40
  %v232 = vunpack.c.l.b16 %v41
  %v233 = vunpack.c.l.b16 %v42
  %v234 = vunpack.c.h.b16 %v42
  %v235 = vunpack.c.l.b16 %v43
  %v236 = vunpack.c.h.b16 %v43
  %v237 = vunpack.c.l.b16 %v44
  %v238 = vunpack.c.l.b16 %v45
  %v239 = vunpack.c.h.b16 %v45
  %v240 = vunpack.c.l.b16 %v46
  %v241 = vunpack.c.h.b16 %v46
  %v242 = vunpack.c.l.b16 %v47
  %v243 = vunpack.c.l.b16 %v48
  %v244 = vunpack.c.h.b16 %v48
  %v245 = vunpack.c.l.b16 %v49
  %v246 = vunpack.c.h.b16 %v49
  %v247 = vunpack.c.l.b16 %v50
  %v248 = vunpack.c.l.b16 %v51
  %v249 = vunpack.c.h.b16 %v51
  %v250 = vunpack.c.l.b16 %v52
  %v251 = vunpack.c.h.b16 %v52
  %v252 = vunpack.c.l.b16 %v53
  %v253 = vunpack.c.l.b16 %v54
  %v254 = vunpack.c.h.b16 %v54
  %v255 = vunpack.c.l.b16 %v55
  %v256 = vunpack.c.h.b16 %v55
  %v257 = vunpack.c.l.b16 %v56
  %v258 = vunpack.c.l.b16 %v57
  %v259 = vunpack.c.h.b16 %v57
  %v260 = vunpack.c.l.b16 %v58
  %v261 = vunpack.c.h.b16 %v58
  %v262 = vunpack.c.l.b16 %v59
  %v263 = vunpack.c.l.b16 %v60
  %v264 = vunpack.c.h.b16 %v60
  %v265 = vunpack.c.l.b16 %v61
  %v266 = vunpack.c.h.b16 %v61
  %v267 = vunpack.c.l.b16 %v62
  %v268 = vunpack.c.l.b16 %v63
  %v269 = vunpack.c.h.b16 %v63
  %v270 = vunpack.c.l.b16 %v64
  %v271 = vunpack.c.h.b16 %v64
  %v272 = vunpack.c.l.b16 %v65
  %v273 = vpack.c.b16 %v198, %v193
  %v274 = vpack.c.b16 %v199, %v194
  %v275 = vpack.c.b16 %v200, %v195
  %v276 = vpack.c.b16 %v201, %v196
  %v277 = vpack.c.b16 %v202, %v197
  %v278 = vpack.c.b16 %v208, %v203
  %v279 = vpack.c.b16 %v209, %v204
  %v280 = vpack.c.b16 %v210, %v205
  %v281 = vpack.c.b16 %v211, %v206
  %v282 = vpack.c.b16 %v212, %v207
  %v283 = vpack.c.b16 %v218, %v213
  %v284 = vpack.c.b16 %v219, %v214
  %v285 = vpack.c.b16 %v220, %v215
  %v286 = vpack.c.b16 %v221, %v216
  %v287 = vpack.c.b16 %v222, %v217
  %v288 = vpack.c.b16 %v228, %v223
  %v289 = vpack.c.b16 %v229, %v224
  %v290 = vpack.c.b16 %v230, %v225
  %v291 = vpack.c.b16 %v231, %v226
  %v292 = vpack.c.b16 %v232, %v227
  %v293 = vpack.c.b16 %v238, %v233
  %v294 = vpack.c.b16 %v239, %v234
  %v295 = vpack.c.b16 %v240, %v235
  %v296 = vpack.c.b16 %v241, %v236
  %v297 = vpack.c.b16 %v242, %v237
  %v298 = vpack.c.b16 %v248, %v243
  %v299 = vpack.c.b16 %v249, %v244
  %v300 = vpack.c.b16 %v250, %v245
  %v301 = vpack.c.b16 %v251, %v246
  %v302 = vpack.c.b16 %v252, %v247
  %v303 = vpack.c.b16 %v258, %v253
  %v304 = vpack.c.b16 %v259, %v254
  %v305 = vpack.c.b16 %v260, %v255
  %v306 = vpack.c.b16 %v261, %v256
  %v307 = vpack.c.b16 %v262, %v257
  %v308 = vpack.c.b16 %v268, %v263
  %v309 = vpack.c.b16 %v269, %v264
  %v310 = vpack.c.b16 %v270, %v265
  %v311 = vpack.c.b16 %v271, %v266
  %v312 = vpack.c.b16 %v272, %v267
  %v417 = vunpack.c.l.b16 %v66
  %v418 = vunpack.c.l.b16 %v67
  %v419 = vunpack.c.l.b16 %v68
  %v420 = vunpack.c.l.b16 %v69
  %v421 = vunpack.c.l.b16 %v70
  %v422 = vunpack.c.l.b16 %v71
  %v423 = vunpack.c.l.b16 %v72
  %v424 = vunpack.c.l.b16 %v73
  %v425 = vunpack.c.l.b16 %v74
  %v426 = vunpack.c.l.b16 %v75
  %v427 = vunpack.c.l.b16 %v76
  %v428 = vunpack.c.l.b16 %v77
  %v429 = vunpack.c.l.b16 %v78
  %v430 = vunpack.c.l.b16 %v79
  %v431 = vunpack.c.l.b16 %v80
  %v432 = vunpack.c.l.b16 %v81
  %v433 = vunpack.c.l.b16 %v82
  %v434 = vunpack.c.l.b16 %v83
  %v435 = vunpack.c.l.b16 %v84
  %v436 = vunpack.c.l.b16 %v85
  %v437 = vunpack.c.l.b16 %v86
  %v438 = vunpack.c.l.b16 %v87
  %v439 = vunpack.c.l.b16 %v88
  %v440 = vunpack.c.l.b16 %v89
  %v441 = vunpack.c.l.b16 %v90
  %v442 = vunpack.c.l.b16 %v91
  %v443 = vunpack.c.l.b16 %v92
  %v444 = vunpack.c.l.b16 %v93
  %v445 = vunpack.c.l.b16 %v94
  %v446 = vunpack.c.l.b16 %v95
  %v447 = vunpack.c.l.b16 %v96
  %v448 = vunpack.c.l.b16 %v97
  %v449 = vunpack.c.l.b16 %v98
  %v450 = vunpack.c.l.b16 %v99
  %v451 = vunpack.c.l.b16 %v100
  %v452 = vunpack.c.l.b16 %v101
  %v453 = vunpack.c.l.b16 %v102
  %v454 = vunpack.c.l.b16 %v103
  %v455 = vunpack.c.l.b16 %v104
  %v456 = vunpack.c.l.b16 %v105
  %v457 = vunpack.c.l.b16 %v106
  %v458 = vunpack.c.l.b16 %v107
  %v459 = vunpack.c.l.b16 %v108
  %v460 = vunpack.c.l.b16 %v109
  %v461 = vunpack.c.l.b16 %v110
  %v462 = vunpack.c.l.b16 %v111
  %v463 = vunpack.c.l.b16 %v112
  %v464 = vunpack.c.l.b16 %v113
  %v465 = vunpack.c.l.b16 %v114
  %v466 = vunpack.c.l.b16 %v115
  %v467 = vunpack.c.l.b16 %v116
  %v468 = vunpack.c.l.b16 %v117
  %v469 = vunpack.c.l.b16 %v118
  %v470 = vunpack.c.l.b16 %v119
  %v471 = vunpack.c.l.b16 %v120
  %v472 = vunpack.c.l.b16 %v121
  %v473 = vunpack.c.l.b16 %v122
  %v474 = vunpack.c.l.b16 %v123
  %v475 = vunpack.c.l.b16 %v124
  %v476 = vunpack.c.l.b16 %v125
  %v477 = vunpack.c.l.b16 %v126
  %v478 = vunpack.c.l.b16 %v127
  %v479 = vunpack.c.l.b16 %v128
  %v480 = vunpack.c.l.b16 %v129
  %v481 = vunpack.c.l.b16 %v130
  %v482 = vunpack.c.l.b16 %v131
  %v483 = vunpack.c.l.b16 %v132
  %v484 = vunpack.c.l.b16 %v133
  %v485 = vunpack.c.l.b16 %v134
  %v486 = vunpack.c.l.b16 %v135
  %v487 = vunpack.c.l.b16 %v136
  %v488 = vunpack.c.l.b16 %v137
  %v489 = vpack.c.b16 %v418, %v417
  %v490 = vpack.c.b16 %v420, %v419
  %v491 = vpack.c.b16 %v422, %v421
  %v492 = vpack.c.b16 %v424, %v423
  %v493 = vpack.c.b16 %v426, %v425
  %v494 = vpack.c.b16 %v428, %v427
  %v495 = vpack.c.b16 %v430, %v429
  %v496 = vpack.c.b16 %v432, %v431
  %v497 = vpack.c.b16 %v434, %v433
  %v498 = vpack.c.b16 %v436, %v435
  %v499 = vpack.c.b16 %v438, %v437
  %v500 = vpack.c.b16 %v440, %v439
  %v501 = vpack.c.b16 %v442, %v441
  %v502 = vpack.c.b16 %v444, %v443
  %v503 = vpack.c.b16 %v446, %v445
  %v504 = vpack.c.b16 %v448, %v447
  %v505 = vpack.c.b16 %v450, %v449
  %v506 = vpack.c.b16 %v452, %v451
  %v507 = vpack.c.b16 %v454, %v453
  %v508 = vpack.c.b16 %v456, %v455
  %v509 = vpack.c.b16 %v458, %v457
  %v510 = vpack.c.b16 %v460, %v459
  %v511 = vpack.c.b16 %v462, %v461
  %v512 = vpack.c.b16 %v464, %v463
  %v513 = vpack.c.b16 %v466, %v465
  %v514 = vpack.c.b16 %v468, %v467
  %v515 = vpack.c.b16 %v470, %v469
  %v516 = vpack.c.b16 %v472, %v471
  %v517 = vpack.c.b16 %v474, %v473
  %v518 = vpack.c.b16 %v476, %v475
  %v519 = vpack.c.b16 %v478, %v477
  %v520 = vpack.c.b16 %v480, %v479
  %v521 = vpack.c.b16 %v482, %v481
  %v522 = vpack.c.b16 %v484, %v483
  %v523 = vpack.c.b16 %v486, %v485
  %v524 = vpack.c.b16 %v488, %v487
  %vm561 = vcmask 523264
  %v563 = vsel %vm561, %v277, 0
  %v566 = vsel %vm561, %v282, 0
  %v569 = vsel %vm561, %v287, 0
  %v572 = vsel %vm561, %v292, 0
  %v575 = vsel %vm561, %v297, 0
  %v578 = vsel %vm561, %v302, 0
  %v581 = vsel %vm561, %v307, 0
  %v584 = vsel %vm561, %v312, 0
  %586 = vmatprep.subr.bf16.mxu0 0
  %587 = vmatpush1.bf16.msra.mxu0 %v489
  %588 = vmatprep.subr.bf16.mxu0 0
  %589 = vmatpush1.bf16.msra.mxu0 %v490
  %590 = vmatprep.subr.bf16.mxu0 0
  %591 = vmatpush1.bf16.msra.mxu0 %v491
  %592 = vmatprep.subr.bf16.mxu0 0
  %593 = vmatpush1.bf16.msra.mxu0 %v492
  %594 = vmatprep.subr.bf16.mxu0 0
  %595 = vmatpush1.bf16.msra.mxu0 %v493
  %596 = vmatprep.subr.bf16.mxu0 0
  %597 = vmatpush1.bf16.msra.mxu0 %v494
  %598 = vmatprep.subr.bf16.mxu0 0
  %599 = vmatpush1.bf16.msra.mxu0 %v495
  %600 = vmatprep.subr.bf16.mxu0 0
  %601 = vmatpush1.bf16.msra.mxu0 %v496
  %602 = vmatprep.subr.bf16.mxu0 0
  %603 = vmatpush1.bf16.msra.mxu0 %v497
  %604 = vmatprep.subr.bf16.mxu0 0
  %605 = vmatpush1.bf16.msra.mxu0 %v498
  %606 = vmatprep.subr.bf16.mxu0 0
  %607 = vmatpush1.bf16.msra.mxu0 %v499
  %608 = vmatprep.subr.bf16.mxu0 0
  %609 = vmatpush1.bf16.msra.mxu0 %v500
  %610 = vmatprep.subr.bf16.mxu0 0
  %611 = vmatpush1.bf16.msra.mxu0 %v501
  %612 = vmatprep.subr.bf16.mxu0 0
  %613 = vmatpush1.bf16.msra.mxu0 %v502
  %614 = vmatprep.subr.bf16.mxu0 0
  %615 = vmatpush1.bf16.msra.mxu0 %v503
  %616 = vmatprep.subr.bf16.mxu0 0
  %617 = vmatpush1.bf16.msra.mxu0 %v504
  %618 = vmatprep.mubr.bf16.mxu0 %v274
  %619 = vmatmul.mubr.bf16.gmra.mrb[0].mxu0 %v273
  %v620 = vpop.f32.mrb[0].mxu0
  %v621 = vadd.f32 %v143, %v620
  %v622 = vpop.f32.mrb[0].mxu0
  %v623 = vpop.f32.mrb[0].mxu0
  %v624 = vadd.f32 %v143, %v623
  %v625 = vpop.f32.mrb[0].mxu0
  %626 = vmatprep.mubr.bf16.mxu0 %v279
  %627 = vmatmul.mubr.bf16.gmra.mrb[0].mxu0 %v278
  %v628 = vpop.f32.mrb[0].mxu0
  %v629 = vadd.f32 %v143, %v628
  %v630 = vpop.f32.mrb[0].mxu0
  %v631 = vpop.f32.mrb[0].mxu0
  %v632 = vadd.f32 %v143, %v631
  %v633 = vpop.f32.mrb[0].mxu0
  %634 = vmatprep.mubr.bf16.mxu0 %v284
  %635 = vmatmul.mubr.bf16.gmra.mrb[0].mxu0 %v283
  %v636 = vpop.f32.mrb[0].mxu0
  %v637 = vadd.f32 %v143, %v636
  %v638 = vpop.f32.mrb[0].mxu0
  %v639 = vpop.f32.mrb[0].mxu0
  %v640 = vadd.f32 %v143, %v639
  %v641 = vpop.f32.mrb[0].mxu0
  %642 = vmatprep.mubr.bf16.mxu0 %v289
  %643 = vmatmul.mubr.bf16.gmra.mrb[0].mxu0 %v288
  %v644 = vpop.f32.mrb[0].mxu0
  %v645 = vadd.f32 %v143, %v644
  %v646 = vpop.f32.mrb[0].mxu0
  %v647 = vpop.f32.mrb[0].mxu0
  %v648 = vadd.f32 %v143, %v647
  %v649 = vpop.f32.mrb[0].mxu0
  %650 = vmatprep.mubr.bf16.mxu0 %v294
  %651 = vmatmul.mubr.bf16.gmra.mrb[0].mxu0 %v293
  %v652 = vpop.f32.mrb[0].mxu0
  %v653 = vadd.f32 %v143, %v652
  %v654 = vpop.f32.mrb[0].mxu0
  %v655 = vpop.f32.mrb[0].mxu0
  %v656 = vadd.f32 %v143, %v655
  %v657 = vpop.f32.mrb[0].mxu0
  %658 = vmatprep.mubr.bf16.mxu0 %v299
  %659 = vmatmul.mubr.bf16.gmra.mrb[0].mxu0 %v298
  %v660 = vpop.f32.mrb[0].mxu0
  %v661 = vadd.f32 %v143, %v660
  %v662 = vpop.f32.mrb[0].mxu0
  %v663 = vpop.f32.mrb[0].mxu0
  %v664 = vadd.f32 %v143, %v663
  %v665 = vpop.f32.mrb[0].mxu0
  %666 = vmatprep.mubr.bf16.mxu0 %v304
  %667 = vmatmul.mubr.bf16.gmra.mrb[0].mxu0 %v303
  %v668 = vpop.f32.mrb[0].mxu0
  %v669 = vadd.f32 %v143, %v668
  %v670 = vpop.f32.mrb[0].mxu0
  %v671 = vpop.f32.mrb[0].mxu0
  %v672 = vadd.f32 %v143, %v671
  %v673 = vpop.f32.mrb[0].mxu0
  %674 = vmatprep.mubr.bf16.mxu0 %v309
  %675 = vmatmul.mubr.bf16.gmra.mrb[0].mxu0 %v308
  %v676 = vpop.f32.mrb[0].mxu0
  %v677 = vadd.f32 %v143, %v676
  %v678 = vpop.f32.mrb[0].mxu0
  %v679 = vpop.f32.mrb[0].mxu0
  %v680 = vadd.f32 %v143, %v679
  %v681 = vpop.f32.mrb[0].mxu0
  %682 = vdwg.mxu0
  %683 = vmatprep.subr.bf16.mxu0 0
  %684 = vmatpush1.bf16.msra.mxu0 %v505
  %685 = vmatprep.subr.bf16.mxu0 0
  %686 = vmatpush1.bf16.msra.mxu0 %v506
  %687 = vmatprep.subr.bf16.mxu0 0
  %688 = vmatpush1.bf16.msra.mxu0 %v507
  %689 = vmatprep.subr.bf16.mxu0 0
  %690 = vmatpush1.bf16.msra.mxu0 %v508
  %691 = vmatprep.subr.bf16.mxu0 0
  %692 = vmatpush1.bf16.msra.mxu0 %v509
  %693 = vmatprep.subr.bf16.mxu0 0
  %694 = vmatpush1.bf16.msra.mxu0 %v510
  %695 = vmatprep.subr.bf16.mxu0 0
  %696 = vmatpush1.bf16.msra.mxu0 %v511
  %697 = vmatprep.subr.bf16.mxu0 0
  %698 = vmatpush1.bf16.msra.mxu0 %v512
  %699 = vmatprep.subr.bf16.mxu0 0
  %700 = vmatpush1.bf16.msra.mxu0 %v513
  %701 = vmatprep.subr.bf16.mxu0 0
  %702 = vmatpush1.bf16.msra.mxu0 %v514
  %703 = vmatprep.subr.bf16.mxu0 0
  %704 = vmatpush1.bf16.msra.mxu0 %v515
  %705 = vmatprep.subr.bf16.mxu0 0
  %706 = vmatpush1.bf16.msra.mxu0 %v516
  %707 = vmatprep.subr.bf16.mxu0 0
  %708 = vmatpush1.bf16.msra.mxu0 %v517
  %709 = vmatprep.subr.bf16.mxu0 0
  %710 = vmatpush1.bf16.msra.mxu0 %v518
  %711 = vmatprep.subr.bf16.mxu0 0
  %712 = vmatpush1.bf16.msra.mxu0 %v519
  %713 = vmatprep.subr.bf16.mxu0 0
  %714 = vmatpush1.bf16.msra.mxu0 %v520
  %715 = vmatprep.mubr.bf16.mxu0 %v276
  %716 = vmatmul.mubr.bf16.gmra.mrb[0].mxu0 %v275
  %v717 = vpop.f32.mrb[0].mxu0
  %v718 = vadd.f32 %v621, %v717
  %v719 = vpop.f32.mrb[0].mxu0
  %v720 = vpop.f32.mrb[0].mxu0
  %v721 = vadd.f32 %v624, %v720
  %v722 = vpop.f32.mrb[0].mxu0
  %723 = vmatprep.mubr.bf16.mxu0 %v281
  %724 = vmatmul.mubr.bf16.gmra.mrb[0].mxu0 %v280
  %v725 = vpop.f32.mrb[0].mxu0
  %v726 = vadd.f32 %v629, %v725
  %v727 = vpop.f32.mrb[0].mxu0
  %v728 = vpop.f32.mrb[0].mxu0
  %v729 = vadd.f32 %v632, %v728
  %v730 = vpop.f32.mrb[0].mxu0
  %731 = vmatprep.mubr.bf16.mxu0 %v286
  %732 = vmatmul.mubr.bf16.gmra.mrb[0].mxu0 %v285
  %v733 = vpop.f32.mrb[0].mxu0
  %v734 = vadd.f32 %v637, %v733
  %v735 = vpop.f32.mrb[0].mxu0
  %v736 = vpop.f32.mrb[0].mxu0
  %v737 = vadd.f32 %v640, %v736
  %v738 = vpop.f32.mrb[0].mxu0
  %739 = vmatprep.mubr.bf16.mxu0 %v291
  %740 = vmatmul.mubr.bf16.gmra.mrb[0].mxu0 %v290
  %v741 = vpop.f32.mrb[0].mxu0
  %v742 = vadd.f32 %v645, %v741
  %v743 = vpop.f32.mrb[0].mxu0
  %v744 = vpop.f32.mrb[0].mxu0
  %v745 = vadd.f32 %v648, %v744
  %v746 = vpop.f32.mrb[0].mxu0
  %747 = vmatprep.mubr.bf16.mxu0 %v296
  %748 = vmatmul.mubr.bf16.gmra.mrb[0].mxu0 %v295
  %v749 = vpop.f32.mrb[0].mxu0
  %v750 = vadd.f32 %v653, %v749
  %v751 = vpop.f32.mrb[0].mxu0
  %v752 = vpop.f32.mrb[0].mxu0
  %v753 = vadd.f32 %v656, %v752
  %v754 = vpop.f32.mrb[0].mxu0
  %755 = vmatprep.mubr.bf16.mxu0 %v301
  %756 = vmatmul.mubr.bf16.gmra.mrb[0].mxu0 %v300
  %v757 = vpop.f32.mrb[0].mxu0
  %v758 = vadd.f32 %v661, %v757
  %v759 = vpop.f32.mrb[0].mxu0
  %v760 = vpop.f32.mrb[0].mxu0
  %v761 = vadd.f32 %v664, %v760
  %v762 = vpop.f32.mrb[0].mxu0
  %763 = vmatprep.mubr.bf16.mxu0 %v306
  %764 = vmatmul.mubr.bf16.gmra.mrb[0].mxu0 %v305
  %v765 = vpop.f32.mrb[0].mxu0
  %v766 = vadd.f32 %v669, %v765
  %v767 = vpop.f32.mrb[0].mxu0
  %v768 = vpop.f32.mrb[0].mxu0
  %v769 = vadd.f32 %v672, %v768
  %v770 = vpop.f32.mrb[0].mxu0
  %771 = vmatprep.mubr.bf16.mxu0 %v311
  %772 = vmatmul.mubr.bf16.gmra.mrb[0].mxu0 %v310
  %v773 = vpop.f32.mrb[0].mxu0
  %v774 = vadd.f32 %v677, %v773
  %v775 = vpop.f32.mrb[0].mxu0
  %v776 = vpop.f32.mrb[0].mxu0
  %v777 = vadd.f32 %v680, %v776
  %v778 = vpop.f32.mrb[0].mxu0
  %779 = vdwg.mxu0
  %780 = vmatprep.subr.bf16.mxu0 0
  %781 = vmatpush1.bf16.msra.mxu0 %v521
  %782 = vmatprep.subr.bf16.mxu0 0
  %783 = vmatpush1.bf16.msra.mxu0 %v522
  %784 = vmatprep.subr.bf16.mxu0 0
  %785 = vmatpush1.bf16.msra.mxu0 %v523
  %786 = vmatprep.subr.bf16.mxu0 0
  %787 = vmatpush1.bf16.msra.mxu0 %v524
  %788 = vmatprep.subr.bf16.mxu0 0
  %789 = vmatpush1.bf16.msra.mxu0 0
  %790 = vmatprep.subr.bf16.mxu0 0
  %791 = vmatpush1.bf16.msra.mxu0 0
  %792 = vmatprep.subr.bf16.mxu0 0
  %793 = vmatpush1.bf16.msra.mxu0 0
  %794 = vmatprep.subr.bf16.mxu0 0
  %795 = vmatpush1.bf16.msra.mxu0 0
  %796 = vmatprep.subr.bf16.mxu0 0
  %797 = vmatpush1.bf16.msra.mxu0 0
  %798 = vmatprep.subr.bf16.mxu0 0
  %799 = vmatpush1.bf16.msra.mxu0 0
  %800 = vmatprep.subr.bf16.mxu0 0
  %801 = vmatpush1.bf16.msra.mxu0 0
  %802 = vmatprep.subr.bf16.mxu0 0
  %803 = vmatpush1.bf16.msra.mxu0 0
  %804 = vmatprep.subr.bf16.mxu0 0
  %805 = vmatpush1.bf16.msra.mxu0 0
  %806 = vmatprep.subr.bf16.mxu0 0
  %807 = vmatpush1.bf16.msra.mxu0 0
  %808 = vmatprep.subr.bf16.mxu0 0
  %809 = vmatpush1.bf16.msra.mxu0 0
  %810 = vmatprep.subr.bf16.mxu0 0
  %811 = vmatpush1.bf16.msra.mxu0 0
  %812 = vmatprep.mubr.bf16.mxu0 0
  %813 = vmatmul.mubr.bf16.gmra.mrb[0].mxu0 %v563
  %v814 = vpop.f32.mrb[0].mxu0
  %v815 = vadd.f32 %v718, %v814
  %v816 = vpop.f32.mrb[0].mxu0
  %v817 = vpop.f32.mrb[0].mxu0
  %v818 = vadd.f32 %v721, %v817
  %v819 = vpop.f32.mrb[0].mxu0
  %820 = vmatprep.mubr.bf16.mxu0 0
  %821 = vmatmul.mubr.bf16.gmra.mrb[0].mxu0 %v566
  %v822 = vpop.f32.mrb[0].mxu0
  %v823 = vadd.f32 %v726, %v822
  %v824 = vpop.f32.mrb[0].mxu0
  %v825 = vpop.f32.mrb[0].mxu0
  %v826 = vadd.f32 %v729, %v825
  %v827 = vpop.f32.mrb[0].mxu0
  %828 = vmatprep.mubr.bf16.mxu0 0
  %829 = vmatmul.mubr.bf16.gmra.mrb[0].mxu0 %v569
  %v830 = vpop.f32.mrb[0].mxu0
  %v831 = vadd.f32 %v734, %v830
  %v832 = vpop.f32.mrb[0].mxu0
  %v833 = vpop.f32.mrb[0].mxu0
  %v834 = vadd.f32 %v737, %v833
  %v835 = vpop.f32.mrb[0].mxu0
  %836 = vmatprep.mubr.bf16.mxu0 0
  %837 = vmatmul.mubr.bf16.gmra.mrb[0].mxu0 %v572
  %v838 = vpop.f32.mrb[0].mxu0
  %v839 = vadd.f32 %v742, %v838
  %v840 = vpop.f32.mrb[0].mxu0
  %v841 = vpop.f32.mrb[0].mxu0
  %v842 = vadd.f32 %v745, %v841
  %v843 = vpop.f32.mrb[0].mxu0
  %844 = vmatprep.mubr.bf16.mxu0 0
  %845 = vmatmul.mubr.bf16.gmra.mrb[0].mxu0 %v575
  %v846 = vpop.f32.mrb[0].mxu0
  %v847 = vadd.f32 %v750, %v846
  %v848 = vpop.f32.mrb[0].mxu0
  %v849 = vpop.f32.mrb[0].mxu0
  %v850 = vadd.f32 %v753, %v849
  %v851 = vpop.f32.mrb[0].mxu0
  %852 = vmatprep.mubr.bf16.mxu0 0
  %853 = vmatmul.mubr.bf16.gmra.mrb[0].mxu0 %v578
  %v854 = vpop.f32.mrb[0].mxu0
  %v855 = vadd.f32 %v758, %v854
  %v856 = vpop.f32.mrb[0].mxu0
  %v857 = vpop.f32.mrb[0].mxu0
  %v858 = vadd.f32 %v761, %v857
  %v859 = vpop.f32.mrb[0].mxu0
  %860 = vmatprep.mubr.bf16.mxu0 0
  %861 = vmatmul.mubr.bf16.gmra.mrb[0].mxu0 %v581
  %v862 = vpop.f32.mrb[0].mxu0
  %v863 = vadd.f32 %v766, %v862
  %v864 = vpop.f32.mrb[0].mxu0
  %v865 = vpop.f32.mrb[0].mxu0
  %v866 = vadd.f32 %v769, %v865
  %v867 = vpop.f32.mrb[0].mxu0
  %868 = vmatprep.mubr.bf16.mxu0 0
  %869 = vmatmul.mubr.bf16.gmra.mrb[0].mxu0 %v584
  %v870 = vpop.f32.mrb[0].mxu0
  %v871 = vadd.f32 %v774, %v870
  %v872 = vpop.f32.mrb[0].mxu0
  %v873 = vpop.f32.mrb[0].mxu0
  %v874 = vadd.f32 %v777, %v873
  %v875 = vpop.f32.mrb[0].mxu0
  %876 = vdwg.mxu0
  %v877 = vmax.f32 %v815, 0.0
  %v878 = vmax.f32 %v818, 0.0
  %v879 = vmax.f32 %v823, 0.0
  %v880 = vmax.f32 %v826, 0.0
  %v881 = vmax.f32 %v831, 0.0
  %v882 = vmax.f32 %v834, 0.0
  %v883 = vmax.f32 %v839, 0.0
  %v884 = vmax.f32 %v842, 0.0
  %v885 = vmax.f32 %v847, 0.0
  %v886 = vmax.f32 %v850, 0.0
  %v887 = vmax.f32 %v855, 0.0
  %v888 = vmax.f32 %v858, 0.0
  %v889 = vmax.f32 %v863, 0.0
  %v890 = vmax.f32 %v866, 0.0
  %v891 = vmax.f32 %v871, 0.0
  %v892 = vmax.f32 %v874, 0.0
  %v893 = vld [vmem:[%s3] sm:$0x1]
  %v895 = vlaneseq
  %v896 = vshrl.u32 %v895, 7
  %v897 = vsub.s32 0, %v896
  %v898 = vrot.slane %v893, %v897
  %v900 = vadd.f32 %v877, %v898
  %v901 = vadd.f32 %v878, %v898
  %v902 = vadd.f32 %v879, %v898
  %v903 = vadd.f32 %v880, %v898
  %v904 = vadd.f32 %v881, %v898
  %v905 = vadd.f32 %v882, %v898
  %v906 = vadd.f32 %v883, %v898
  %v907 = vadd.f32 %v884, %v898
  %v908 = vadd.f32 %v885, %v898
  %v909 = vadd.f32 %v886, %v898
  %v910 = vadd.f32 %v887, %v898
  %v911 = vadd.f32 %v888, %v898
  %v912 = vadd.f32 %v889, %v898
  %v913 = vadd.f32 %v890, %v898
  %v914 = vadd.f32 %v891, %v898
  %v915 = vadd.f32 %v892, %v898
  %v916 = vpack.c.bf16 %v901, %v900
  %v917 = vpack.c.bf16 %v903, %v902
  %v918 = vpack.c.bf16 %v905, %v904
  %v919 = vpack.c.bf16 %v907, %v906
  %v920 = vpack.c.bf16 %v909, %v908
  %v921 = vpack.c.bf16 %v911, %v910
  %v922 = vpack.c.bf16 %v913, %v912
  %v923 = vpack.c.bf16 %v915, %v914
  %v932 = vunpack.c.l.b16 %v916
  %v933 = vunpack.c.h.b16 %v916
  %v934 = vunpack.c.l.b16 %v917
  %v935 = vunpack.c.h.b16 %v917
  %v936 = vunpack.c.l.b16 %v918
  %v937 = vunpack.c.h.b16 %v918
  %v938 = vunpack.c.l.b16 %v919
  %v939 = vunpack.c.h.b16 %v919
  %v940 = vunpack.c.l.b16 %v920
  %v941 = vunpack.c.h.b16 %v920
  %v942 = vunpack.c.l.b16 %v921
  %v943 = vunpack.c.h.b16 %v921
  %v944 = vunpack.c.l.b16 %v922
  %v945 = vunpack.c.h.b16 %v922
  %v946 = vunpack.c.l.b16 %v923
  %v947 = vunpack.c.h.b16 %v923
  %v948 = vpack.c.b16 %v932, %v932
  %v949 = vpack.c.b16 %v933, %v933
  %v950 = vpack.c.b16 %v934, %v934
  %v951 = vpack.c.b16 %v935, %v935
  %v952 = vpack.c.b16 %v936, %v936
  %v953 = vpack.c.b16 %v937, %v937
  %v954 = vpack.c.b16 %v938, %v938
  %v955 = vpack.c.b16 %v939, %v939
  %v956 = vpack.c.b16 %v940, %v940
  %v957 = vpack.c.b16 %v941, %v941
  %v958 = vpack.c.b16 %v942, %v942
  %v959 = vpack.c.b16 %v943, %v943
  %v960 = vpack.c.b16 %v944, %v944
  %v961 = vpack.c.b16 %v945, %v945
  %v962 = vpack.c.b16 %v946, %v946
  %v963 = vpack.c.b16 %v947, %v947
  %980 = vst [vmem:[%s4] sm:$0xf] %v948
  %981 = vst [vmem:[%s4 + $0x4] sm:$0xf] %v949
  %982 = vst [vmem:[%s4 + $0x8] sm:$0xf] %v950
  %983 = vst [vmem:[%s4 + $0xc] sm:$0xf] %v951
  %984 = vst [vmem:[%s4 + $0x10] sm:$0xf] %v952
  %985 = vst [vmem:[%s4 + $0x14] sm:$0xf] %v953
  %986 = vst [vmem:[%s4 + $0x18] sm:$0xf] %v954
  %987 = vst [vmem:[%s4 + $0x1c] sm:$0xf] %v955
  %988 = vst [vmem:[%s4 + $0x20] sm:$0xf] %v956
  %989 = vst [vmem:[%s4 + $0x24] sm:$0xf] %v957
  %990 = vst [vmem:[%s4 + $0x28] sm:$0xf] %v958
  %991 = vst [vmem:[%s4 + $0x2c] sm:$0xf] %v959
  %992 = vst [vmem:[%s4 + $0x30] sm:$0xf] %v960
  %993 = vst [vmem:[%s4 + $0x34] sm:$0xf] %v961
  %994 = vst [vmem:[%s4 + $0x38] sm:$0xf] %v962
  %995 = vst [vmem:[%s4 + $0x3c] sm:$0xf] %v963
  // Predicated region
  $region18: #{generator_forward.8} parent=0 // pred_check
    _
  $region19: #{generator_forward.8} parent=0 // pred_check_branch
    %997 = sbr.rel (0) target = $region21
  $region20: #{generator_forward.8} parent=0 // pred_region
    _
  $region21: #{generator_forward.8} parent=0 // pred_fallthru
    _
  // Predicated region
  $region22: #{generator_forward.8} parent=0 // pred_check
    _
  $region23: #{generator_forward.8} parent=0 // pred_check_branch
    %999 = sbr.rel (0) target = $region25
  $region24: #{generator_forward.8} parent=0 // pred_region
    _
  $region25: #{generator_forward.8} parent=0 // pred_fallthru
    _

// kernel: tile.128
$region0: #{tile.128}
  #allocation0 [shape = 's32[1]{0}', space=sflag, size = 0x4, scoped, tag = 'scoped memory for tile.128']
  %s0 = inlined_call_operand.vmem [shape: f32[16], index: 0, kind: input, shape index: {}]
  %s1 = inlined_call_operand.vmem [shape: f32[4,16], index: 1, kind: output, shape index: {}]
  // Predicated region
  $region2: #{tile.128} parent=0 // pred_check
    _
  $region3: #{tile.128} parent=0 // pred_check_branch
    %3 = sbr.rel (0) target = $region5
  $region4: #{tile.128} parent=0 // pred_region
    _
  $region5: #{tile.128} parent=0 // pred_fallthru
    _
  %v4 = vld [vmem:[%s0] ss:$0 sm:$0xff]
  %5 = vst [vmem:[%s1] sm:$0xf] %v4

// kernel: mul.60
$region0: #{mul.60}
  %s0 = inlined_call_operand.vmem [shape: f32[4,16], index: 0, kind: input, shape index: {}]
  %s1 = inlined_call_operand.vmem [shape: f32[64], index: 1, kind: output, shape index: {}]
  $region1: #{mul.60} parent=0
    #allocation0 [shape = 'u8[4096]{0}', space=vmem, size = 0x1000, scoped, tag = 'scoped mem for output reshape']
    #allocation1 [shape = 'u8[4096]{0}', space=vmem, size = 0x1000, scoped, tag = 'scoped mem for input reshape']
    %s3 = sshllo.u32 0, 4
    %v4 = vld [vmem:[%s0] sm:%s3]
    %5 = vst [vmem:[#allocation1] sm:%s3] %v4
    %v6 = vld [vmem:[#allocation1] sm:$0x1]
    %vm7 = vcmask 130048
    %8 = vst.msk [vmem:[#allocation0] sm:$0x1] %vm7, %v6
    %s9 = scalar_lea.vmem [#allocation1], 3
    %v10 = vld [vmem:[%s9] sm:$0x1]
    %11 = vrot.lane.b32.xlu0 %v10, 48
    %v12 = vpop.permute.xlu0 %11
    %vm13 = vcmask 523648
    %14 = vst.msk [vmem:[#allocation0] sm:$0x1] %vm13, %v12
    %s15 = scalar_lea.vmem [#allocation1], 2
    %v16 = vld [vmem:[%s15] sm:$0x1]
    %17 = vrot.lane.b32.xlu0 %v16, 32
    %v18 = vpop.permute.xlu0 %17
    %vm19 = vcmask 392448
    %20 = vst.msk [vmem:[#allocation0] sm:$0x1] %vm19, %v18
    %s21 = scalar_lea.vmem [#allocation1], 1
    %v22 = vld [vmem:[%s21] sm:$0x1]
    %23 = vrot.lane.b32.xlu0 %v22, 16
    %v24 = vpop.permute.xlu0 %23
    %vm25 = vcmask 261248
    %26 = vst.msk [vmem:[#allocation0] sm:$0x1] %vm25, %v24
    %s28 = sshllo.u32 0, 1
    %v30 = vld [vmem:[#allocation0] sm:%s28]
    %s31 = sshllo.u32 0, 1
    %32 = vst [vmem:[%s1] sm:%s31] %v30

// kernel: tile.138
$region0: #{tile.138}
  %s0 = inlined_call_operand.vmem [shape: f32[4,16], index: 0, kind: input, shape index: {}]
  %s1 = inlined_call_operand.vmem [shape: f32[1,64], index: 1, kind: output, shape index: {}]
  $region1: #{tile.138} parent=0
    #allocation0 [shape = 'u8[4096]{0}', space=vmem, size = 0x1000, scoped, tag = 'scoped mem for output reshape']
    #allocation1 [shape = 'u8[4096]{0}', space=vmem, size = 0x1000, scoped, tag = 'scoped mem for input reshape']
    %s3 = sshllo.u32 0, 4
    %v4 = vld [vmem:[%s0] sm:%s3]
    %5 = vst [vmem:[#allocation1] sm:%s3] %v4
    %v6 = vld [vmem:[#allocation1] sm:$0x1]
    %vm7 = vcmask 130048
    %8 = vst.msk [vmem:[#allocation0] sm:$0x1] %vm7, %v6
    %s9 = scalar_lea.vmem [#allocation1], 3
    %v10 = vld [vmem:[%s9] sm:$0x1]
    %11 = vrot.lane.b32.xlu0 %v10, 48
    %v12 = vpop.permute.xlu0 %11
    %vm13 = vcmask 523648
    %14 = vst.msk [vmem:[#allocation0] sm:$0x1] %vm13, %v12
    %s15 = scalar_lea.vmem [#allocation1], 2
    %v16 = vld [vmem:[%s15] sm:$0x1]
    %17 = vrot.lane.b32.xlu0 %v16, 32
    %v18 = vpop.permute.xlu0 %17
    %vm19 = vcmask 392448
    %20 = vst.msk [vmem:[#allocation0] sm:$0x1] %vm19, %v18
    %s21 = scalar_lea.vmem [#allocation1], 1
    %v22 = vld [vmem:[%s21] sm:$0x1]
    %23 = vrot.lane.b32.xlu0 %v22, 16
    %v24 = vpop.permute.xlu0 %23
    %vm25 = vcmask 261248
    %26 = vst.msk [vmem:[#allocation0] sm:$0x1] %vm25, %v24
    %s28 = sshllo.u32 0, 1
    %v30 = vld [vmem:[#allocation0] sm:%s28]
    %s31 = sshllo.u32 0, 1
    %32 = vst [vmem:[%s1] sm:%s31] %v30

// kernel: generator_forward.9
$region0: #{generator_forward.9}
  #allocation0 [shape = 'u32[]', space=smem, size = 0x4, offset = 0x4, fixed_abs, tag = 'smem constant byte address 0x4 - core index']
  #allocation1 [shape = 'u32[144,128]{1,0:T(1,128)}', space=vmem, size = 0x12000, scoped, tag = 'internal scratch']
  %s0 = inlined_call_operand.vmem [shape: bf16[512,288], index: 0, kind: input, shape index: {}]
  %s1 = inlined_call_operand.vmem [shape: bf16[288,64], index: 1, kind: input, shape index: {}]
  %s2 = inlined_call_operand.vmem [shape: f32[1,64], index: 2, kind: input, shape index: {}]
  %s3 = inlined_call_operand.vmem [shape: f32[1,64], index: 3, kind: input, shape index: {}]
  %s4 = inlined_call_operand.vmem [shape: bf16[512,64], index: 4, kind: output, shape index: {}]
  %s5 = sld [smem:[#allocation0]]
  $region26: #{generator_forward.9} parent=0
    _
  %s7 = ssub.s32 1, %s5
  %s8 = scalar_select 0, %s7, %s5
  // Predicated region
  $region2: #{generator_forward.9} parent=0 // pred_check
    _
  $region3: #{generator_forward.9} parent=0 // pred_check_branch
    %10 = sbr.rel (0) target = $region5
  $region4: #{generator_forward.9} parent=0 // pred_region
    _
  $region5: #{generator_forward.9} parent=0 // pred_fallthru
    _
  // Predicated region
  $region6: #{generator_forward.9} parent=0 // pred_check
    _
  $region7: #{generator_forward.9} parent=0 // pred_check_branch
    %12 = sbr.rel (0) target = $region9
  $region8: #{generator_forward.9} parent=0 // pred_region
    _
  $region9: #{generator_forward.9} parent=0 // pred_fallthru
    _
  // Predicated region
  $region10: #{generator_forward.9} parent=0 // pred_check
    _
  $region11: #{generator_forward.9} parent=0 // pred_check_branch
    %14 = sbr.rel (0) target = $region13
  $region12: #{generator_forward.9} parent=0 // pred_region
    _
  $region13: #{generator_forward.9} parent=0 // pred_fallthru
    _
  // Predicated region
  $region14: #{generator_forward.9} parent=0 // pred_check
    _
  $region15: #{generator_forward.9} parent=0 // pred_check_branch
    %16 = sbr.rel (0) target = $region17
  $region16: #{generator_forward.9} parent=0 // pred_region
    _
  $region17: #{generator_forward.9} parent=0 // pred_fallthru
    _
  %v18 = vld [vmem:[%s0] sm:$0xff]
  %v19 = vld [vmem:[%s0 + $0x8] sm:$0xf]
  %v20 = vld [vmem:[%s0 + $0xc] sm:$0xff]
  %v21 = vld [vmem:[%s0 + $0x14] sm:$0xf]
  %v22 = vld [vmem:[%s0 + $0x18] sm:$0xff]
  %v23 = vld [vmem:[%s0 + $0x20] sm:$0xf]
  %v24 = vld [vmem:[%s0 + $0x24] sm:$0xff]
  %v25 = vld [vmem:[%s0 + $0x2c] sm:$0xf]
  %v26 = vld [vmem:[%s0 + $0x30] sm:$0xff]
  %v27 = vld [vmem:[%s0 + $0x38] sm:$0xf]
  %v28 = vld [vmem:[%s0 + $0x3c] sm:$0xff]
  %v29 = vld [vmem:[%s0 + $0x44] sm:$0xf]
  %v30 = vld [vmem:[%s0 + $0x48] sm:$0xff]
  %v31 = vld [vmem:[%s0 + $0x50] sm:$0xf]
  %v32 = vld [vmem:[%s0 + $0x54] sm:$0xff]
  %v33 = vld [vmem:[%s0 + $0x5c] sm:$0xf]
  %v34 = vld [vmem:[%s0 + $0x60] sm:$0xff]
  %v35 = vld [vmem:[%s0 + $0x68] sm:$0xf]
  %v36 = vld [vmem:[%s0 + $0x6c] sm:$0xff]
  %v37 = vld [vmem:[%s0 + $0x74] sm:$0xf]
  %v38 = vld [vmem:[%s0 + $0x78] sm:$0xff]
  %v39 = vld [vmem:[%s0 + $0x80] sm:$0xf]
  %v40 = vld [vmem:[%s0 + $0x84] sm:$0xff]
  %v41 = vld [vmem:[%s0 + $0x8c] sm:$0xf]
  %v42 = vld [vmem:[%s0 + $0x90] sm:$0xff]
  %v43 = vld [vmem:[%s0 + $0x98] sm:$0xf]
  %v44 = vld [vmem:[%s0 + $0x9c] sm:$0xff]
  %v45 = vld [vmem:[%s0 + $0xa4] sm:$0xf]
  %v46 = vld [vmem:[%s0 + $0xa8] sm:$0xff]
  %v47 = vld [vmem:[%s0 + $0xb0] sm:$0xf]
  %v48 = vld [vmem:[%s0 + $0xb4] sm:$0xff]
  %v49 = vld [vmem:[%s0 + $0xbc] sm:$0xf]
  %v50 = vld [vmem:[%s0 + $0xc0] sm:$0xff]
  %v51 = vld [vmem:[%s0 + $0xc8] sm:$0xf]
  %v52 = vld [vmem:[%s0 + $0xcc] sm:$0xff]
  %v53 = vld [vmem:[%s0 + $0xd4] sm:$0xf]
  %v54 = vld [vmem:[%s0 + $0xd8] sm:$0xff]
  %v55 = vld [vmem:[%s0 + $0xe0] sm:$0xf]
  %v56 = vld [vmem:[%s0 + $0xe4] sm:$0xff]
  %v57 = vld [vmem:[%s0 + $0xec] sm:$0xf]
  %v58 = vld [vmem:[%s0 + $0xf0] sm:$0xff]
  %v59 = vld [vmem:[%s0 + $0xf8] sm:$0xf]
  %v60 = vld [vmem:[%s0 + $0xfc] sm:$0xff]
  %v61 = vld [vmem:[%s0 + $0x104] sm:$0xf]
  %v62 = vld [vmem:[%s0 + $0x108] sm:$0xff]
  %v63 = vld [vmem:[%s0 + $0x110] sm:$0xf]
  %v64 = vld [vmem:[%s0 + $0x114] sm:$0xff]
  %v65 = vld [vmem:[%s0 + $0x11c] sm:$0xf]
  %v66 = vld [vmem:[%s0 + $0x120] sm:$0xff]
  %v67 = vld [vmem:[%s0 + $0x128] sm:$0xf]
  %v68 = vld [vmem:[%s0 + $0x12c] sm:$0xff]
  %v69 = vld [vmem:[%s0 + $0x134] sm:$0xf]
  %v70 = vld [vmem:[%s0 + $0x138] sm:$0xff]
  %v71 = vld [vmem:[%s0 + $0x140] sm:$0xf]
  %v72 = vld [vmem:[%s0 + $0x144] sm:$0xff]
  %v73 = vld [vmem:[%s0 + $0x14c] sm:$0xf]
  %v74 = vld [vmem:[%s0 + $0x150] sm:$0xff]
  %v75 = vld [vmem:[%s0 + $0x158] sm:$0xf]
  %v76 = vld [vmem:[%s0 + $0x15c] sm:$0xff]
  %v77 = vld [vmem:[%s0 + $0x164] sm:$0xf]
  %v78 = vld [vmem:[%s0 + $0x168] sm:$0xff]
  %v79 = vld [vmem:[%s0 + $0x170] sm:$0xf]
  %v80 = vld [vmem:[%s0 + $0x174] sm:$0xff]
  %v81 = vld [vmem:[%s0 + $0x17c] sm:$0xf]
  %v82 = vld [vmem:[%s0 + $0x180] sm:$0xff]
  %v83 = vld [vmem:[%s0 + $0x188] sm:$0xf]
  %v84 = vld [vmem:[%s0 + $0x18c] sm:$0xff]
  %v85 = vld [vmem:[%s0 + $0x194] sm:$0xf]
  %v86 = vld [vmem:[%s0 + $0x198] sm:$0xff]
  %v87 = vld [vmem:[%s0 + $0x1a0] sm:$0xf]
  %v88 = vld [vmem:[%s0 + $0x1a4] sm:$0xff]
  %v89 = vld [vmem:[%s0 + $0x1ac] sm:$0xf]
  %v90 = vld [vmem:[%s0 + $0x1b0] sm:$0xff]
  %v91 = vld [vmem:[%s0 + $0x1b8] sm:$0xf]
  %v92 = vld [vmem:[%s0 + $0x1bc] sm:$0xff]
  %v93 = vld [vmem:[%s0 + $0x1c4] sm:$0xf]
  %v94 = vld [vmem:[%s0 + $0x1c8] sm:$0xff]
  %v95 = vld [vmem:[%s0 + $0x1d0] sm:$0xf]
  %v96 = vld [vmem:[%s0 + $0x1d4] sm:$0xff]
  %v97 = vld [vmem:[%s0 + $0x1dc] sm:$0xf]
  %v98 = vld [vmem:[%s0 + $0x1e0] sm:$0xff]
  %v99 = vld [vmem:[%s0 + $0x1e8] sm:$0xf]
  %v100 = vld [vmem:[%s0 + $0x1ec] sm:$0xff]
  %v101 = vld [vmem:[%s0 + $0x1f4] sm:$0xf]
  %v102 = vld [vmem:[%s0 + $0x1f8] sm:$0xff]
  %v103 = vld [vmem:[%s0 + $0x200] sm:$0xf]
  %v104 = vld [vmem:[%s0 + $0x204] sm:$0xff]
  %v105 = vld [vmem:[%s0 + $0x20c] sm:$0xf]
  %v106 = vld [vmem:[%s0 + $0x210] sm:$0xff]
  %v107 = vld [vmem:[%s0 + $0x218] sm:$0xf]
  %v108 = vld [vmem:[%s0 + $0x21c] sm:$0xff]
  %v109 = vld [vmem:[%s0 + $0x224] sm:$0xf]
  %v110 = vld [vmem:[%s0 + $0x228] sm:$0xff]
  %v111 = vld [vmem:[%s0 + $0x230] sm:$0xf]
  %v112 = vld [vmem:[%s0 + $0x234] sm:$0xff]
  %v113 = vld [vmem:[%s0 + $0x23c] sm:$0xf]
  %v114 = vld [vmem:[%s0 + $0x240] sm:$0xff]
  %v115 = vld [vmem:[%s0 + $0x248] sm:$0xf]
  %v116 = vld [vmem:[%s0 + $0x24c] sm:$0xff]
  %v117 = vld [vmem:[%s0 + $0x254] sm:$0xf]
  %v118 = vld [vmem:[%s0 + $0x258] sm:$0xff]
  %v119 = vld [vmem:[%s0 + $0x260] sm:$0xf]
  %v120 = vld [vmem:[%s0 + $0x264] sm:$0xff]
  %v121 = vld [vmem:[%s0 + $0x26c] sm:$0xf]
  %v122 = vld [vmem:[%s0 + $0x270] sm:$0xff]
  %v123 = vld [vmem:[%s0 + $0x278] sm:$0xf]
  %v124 = vld [vmem:[%s0 + $0x27c] sm:$0xff]
  %v125 = vld [vmem:[%s0 + $0x284] sm:$0xf]
  %v126 = vld [vmem:[%s0 + $0x288] sm:$0xff]
  %v127 = vld [vmem:[%s0 + $0x290] sm:$0xf]
  %v128 = vld [vmem:[%s0 + $0x294] sm:$0xff]
  %v129 = vld [vmem:[%s0 + $0x29c] sm:$0xf]
  %v130 = vld [vmem:[%s0 + $0x2a0] sm:$0xff]
  %v131 = vld [vmem:[%s0 + $0x2a8] sm:$0xf]
  %v132 = vld [vmem:[%s0 + $0x2ac] sm:$0xff]
  %v133 = vld [vmem:[%s0 + $0x2b4] sm:$0xf]
  %v134 = vld [vmem:[%s0 + $0x2b8] sm:$0xff]
  %v135 = vld [vmem:[%s0 + $0x2c0] sm:$0xf]
  %v136 = vld [vmem:[%s0 + $0x2c4] sm:$0xff]
  %v137 = vld [vmem:[%s0 + $0x2cc] sm:$0xf]
  %v138 = vld [vmem:[%s0 + $0x2d0] sm:$0xff]
  %v139 = vld [vmem:[%s0 + $0x2d8] sm:$0xf]
  %v140 = vld [vmem:[%s0 + $0x2dc] sm:$0xff]
  %v141 = vld [vmem:[%s0 + $0x2e4] sm:$0xf]
  %v142 = vld [vmem:[%s0 + $0x2e8] sm:$0xff]
  %v143 = vld [vmem:[%s0 + $0x2f0] sm:$0xf]
  %v144 = vld [vmem:[%s0 + $0x2f4] sm:$0xff]
  %v145 = vld [vmem:[%s0 + $0x2fc] sm:$0xf]
  %v146 = vld [vmem:[%s1] sm:$0xf]
  %v147 = vld [vmem:[%s1 + $0x4] sm:$0xf]
  %v148 = vld [vmem:[%s1 + $0x8] sm:$0xf]
  %v149 = vld [vmem:[%s1 + $0xc] sm:$0xf]
  %v150 = vld [vmem:[%s1 + $0x10] sm:$0xf]
  %v151 = vld [vmem:[%s1 + $0x14] sm:$0xf]
  %v152 = vld [vmem:[%s1 + $0x18] sm:$0xf]
  %v153 = vld [vmem:[%s1 + $0x1c] sm:$0xf]
  %v154 = vld [vmem:[%s1 + $0x20] sm:$0xf]
  %v155 = vld [vmem:[%s1 + $0x24] sm:$0xf]
  %v156 = vld [vmem:[%s1 + $0x28] sm:$0xf]
  %v157 = vld [vmem:[%s1 + $0x2c] sm:$0xf]
  %v158 = vld [vmem:[%s1 + $0x30] sm:$0xf]
  %v159 = vld [vmem:[%s1 + $0x34] sm:$0xf]
  %v160 = vld [vmem:[%s1 + $0x38] sm:$0xf]
  %v161 = vld [vmem:[%s1 + $0x3c] sm:$0xf]
  %v162 = vld [vmem:[%s1 + $0x40] sm:$0xf]
  %v163 = vld [vmem:[%s1 + $0x44] sm:$0xf]
  %v164 = vld [vmem:[%s1 + $0x48] sm:$0xf]
  %v165 = vld [vmem:[%s1 + $0x4c] sm:$0xf]
  %v166 = vld [vmem:[%s1 + $0x50] sm:$0xf]
  %v167 = vld [vmem:[%s1 + $0x54] sm:$0xf]
  %v168 = vld [vmem:[%s1 + $0x58] sm:$0xf]
  %v169 = vld [vmem:[%s1 + $0x5c] sm:$0xf]
  %v170 = vld [vmem:[%s1 + $0x60] sm:$0xf]
  %v171 = vld [vmem:[%s1 + $0x64] sm:$0xf]
  %v172 = vld [vmem:[%s1 + $0x68] sm:$0xf]
  %v173 = vld [vmem:[%s1 + $0x6c] sm:$0xf]
  %v174 = vld [vmem:[%s1 + $0x70] sm:$0xf]
  %v175 = vld [vmem:[%s1 + $0x74] sm:$0xf]
  %v176 = vld [vmem:[%s1 + $0x78] sm:$0xf]
  %v177 = vld [vmem:[%s1 + $0x7c] sm:$0xf]
  %v178 = vld [vmem:[%s1 + $0x80] sm:$0xf]
  %v179 = vld [vmem:[%s1 + $0x84] sm:$0xf]
  %v180 = vld [vmem:[%s1 + $0x88] sm:$0xf]
  %v181 = vld [vmem:[%s1 + $0x8c] sm:$0xf]
  %v182 = vld [vmem:[%s2] sm:$0x1]
  %v184 = vlaneseq
  %v185 = vshrl.u32 %v184, 7
  %v186 = vsub.s32 0, %v185
  %v187 = vrot.slane %v182, %v186
  %v317 = vunpack.c.l.b16 %v18
  %v318 = vunpack.c.h.b16 %v18
  %v319 = vunpack.c.l.b16 %v19
  %v320 = vunpack.c.l.b16 %v20
  %v321 = vunpack.c.h.b16 %v20
  %v322 = vunpack.c.l.b16 %v21
  %v323 = vunpack.c.l.b16 %v22
  %v324 = vunpack.c.h.b16 %v22
  %v325 = vunpack.c.l.b16 %v23
  %v326 = vunpack.c.l.b16 %v24
  %v327 = vunpack.c.h.b16 %v24
  %v328 = vunpack.c.l.b16 %v25
  %v329 = vunpack.c.l.b16 %v26
  %v330 = vunpack.c.h.b16 %v26
  %v331 = vunpack.c.l.b16 %v27
  %v332 = vunpack.c.l.b16 %v28
  %v333 = vunpack.c.h.b16 %v28
  %v334 = vunpack.c.l.b16 %v29
  %v335 = vunpack.c.l.b16 %v30
  %v336 = vunpack.c.h.b16 %v30
  %v337 = vunpack.c.l.b16 %v31
  %v338 = vunpack.c.l.b16 %v32
  %v339 = vunpack.c.h.b16 %v32
  %v340 = vunpack.c.l.b16 %v33
  %v341 = vunpack.c.l.b16 %v34
  %v342 = vunpack.c.h.b16 %v34
  %v343 = vunpack.c.l.b16 %v35
  %v344 = vunpack.c.l.b16 %v36
  %v345 = vunpack.c.h.b16 %v36
  %v346 = vunpack.c.l.b16 %v37
  %v347 = vunpack.c.l.b16 %v38
  %v348 = vunpack.c.h.b16 %v38
  %v349 = vunpack.c.l.b16 %v39
  %v350 = vunpack.c.l.b16 %v40
  %v351 = vunpack.c.h.b16 %v40
  %v352 = vunpack.c.l.b16 %v41
  %v353 = vunpack.c.l.b16 %v42
  %v354 = vunpack.c.h.b16 %v42
  %v355 = vunpack.c.l.b16 %v43
  %v356 = vunpack.c.l.b16 %v44
  %v357 = vunpack.c.h.b16 %v44
  %v358 = vunpack.c.l.b16 %v45
  %v359 = vunpack.c.l.b16 %v46
  %v360 = vunpack.c.h.b16 %v46
  %v361 = vunpack.c.l.b16 %v47
  %v362 = vunpack.c.l.b16 %v48
  %v363 = vunpack.c.h.b16 %v48
  %v364 = vunpack.c.l.b16 %v49
  %v365 = vunpack.c.l.b16 %v50
  %v366 = vunpack.c.h.b16 %v50
  %v367 = vunpack.c.l.b16 %v51
  %v368 = vunpack.c.l.b16 %v52
  %v369 = vunpack.c.h.b16 %v52
  %v370 = vunpack.c.l.b16 %v53
  %v371 = vunpack.c.l.b16 %v54
  %v372 = vunpack.c.h.b16 %v54
  %v373 = vunpack.c.l.b16 %v55
  %v374 = vunpack.c.l.b16 %v56
  %v375 = vunpack.c.h.b16 %v56
  %v376 = vunpack.c.l.b16 %v57
  %v377 = vunpack.c.l.b16 %v58
  %v378 = vunpack.c.h.b16 %v58
  %v379 = vunpack.c.l.b16 %v59
  %v380 = vunpack.c.l.b16 %v60
  %v381 = vunpack.c.h.b16 %v60
  %v382 = vunpack.c.l.b16 %v61
  %v383 = vunpack.c.l.b16 %v62
  %v384 = vunpack.c.h.b16 %v62
  %v385 = vunpack.c.l.b16 %v63
  %v386 = vunpack.c.l.b16 %v64
  %v387 = vunpack.c.h.b16 %v64
  %v388 = vunpack.c.l.b16 %v65
  %v389 = vunpack.c.l.b16 %v66
  %v390 = vunpack.c.h.b16 %v66
  %v391 = vunpack.c.l.b16 %v67
  %v392 = vunpack.c.l.b16 %v68
  %v393 = vunpack.c.h.b16 %v68
  %v394 = vunpack.c.l.b16 %v69
  %v395 = vunpack.c.l.b16 %v70
  %v396 = vunpack.c.h.b16 %v70
  %v397 = vunpack.c.l.b16 %v71
  %v398 = vunpack.c.l.b16 %v72
  %v399 = vunpack.c.h.b16 %v72
  %v400 = vunpack.c.l.b16 %v73
  %v401 = vunpack.c.l.b16 %v74
  %v402 = vunpack.c.h.b16 %v74
  %v403 = vunpack.c.l.b16 %v75
  %v404 = vunpack.c.l.b16 %v76
  %v405 = vunpack.c.h.b16 %v76
  %v406 = vunpack.c.l.b16 %v77
  %v407 = vunpack.c.l.b16 %v78
  %v408 = vunpack.c.h.b16 %v78
  %v409 = vunpack.c.l.b16 %v79
  %v410 = vunpack.c.l.b16 %v80
  %v411 = vunpack.c.h.b16 %v80
  %v412 = vunpack.c.l.b16 %v81
  %v413 = vunpack.c.l.b16 %v82
  %v414 = vunpack.c.h.b16 %v82
  %v415 = vunpack.c.l.b16 %v83
  %v416 = vunpack.c.l.b16 %v84
  %v417 = vunpack.c.h.b16 %v84
  %v418 = vunpack.c.l.b16 %v85
  %v419 = vunpack.c.l.b16 %v86
  %v420 = vunpack.c.h.b16 %v86
  %v421 = vunpack.c.l.b16 %v87
  %v422 = vunpack.c.l.b16 %v88
  %v423 = vunpack.c.h.b16 %v88
  %v424 = vunpack.c.l.b16 %v89
  %v425 = vunpack.c.l.b16 %v90
  %v426 = vunpack.c.h.b16 %v90
  %v427 = vunpack.c.l.b16 %v91
  %v428 = vunpack.c.l.b16 %v92
  %v429 = vunpack.c.h.b16 %v92
  %v430 = vunpack.c.l.b16 %v93
  %v431 = vunpack.c.l.b16 %v94
  %v432 = vunpack.c.h.b16 %v94
  %v433 = vunpack.c.l.b16 %v95
  %v434 = vunpack.c.l.b16 %v96
  %v435 = vunpack.c.h.b16 %v96
  %v436 = vunpack.c.l.b16 %v97
  %v437 = vunpack.c.l.b16 %v98
  %v438 = vunpack.c.h.b16 %v98
  %v439 = vunpack.c.l.b16 %v99
  %v440 = vunpack.c.l.b16 %v100
  %v441 = vunpack.c.h.b16 %v100
  %v442 = vunpack.c.l.b16 %v101
  %v443 = vunpack.c.l.b16 %v102
  %v444 = vunpack.c.h.b16 %v102
  %v445 = vunpack.c.l.b16 %v103
  %v446 = vunpack.c.l.b16 %v104
  %v447 = vunpack.c.h.b16 %v104
  %v448 = vunpack.c.l.b16 %v105
  %v449 = vunpack.c.l.b16 %v106
  %v450 = vunpack.c.h.b16 %v106
  %v451 = vunpack.c.l.b16 %v107
  %v452 = vunpack.c.l.b16 %v108
  %v453 = vunpack.c.h.b16 %v108
  %v454 = vunpack.c.l.b16 %v109
  %v455 = vunpack.c.l.b16 %v110
  %v456 = vunpack.c.h.b16 %v110
  %v457 = vunpack.c.l.b16 %v111
  %v458 = vunpack.c.l.b16 %v112
  %v459 = vunpack.c.h.b16 %v112
  %v460 = vunpack.c.l.b16 %v113
  %v461 = vunpack.c.l.b16 %v114
  %v462 = vunpack.c.h.b16 %v114
  %v463 = vunpack.c.l.b16 %v115
  %v464 = vunpack.c.l.b16 %v116
  %v465 = vunpack.c.h.b16 %v116
  %v466 = vunpack.c.l.b16 %v117
  %v467 = vunpack.c.l.b16 %v118
  %v468 = vunpack.c.h.b16 %v118
  %v469 = vunpack.c.l.b16 %v119
  %v470 = vunpack.c.l.b16 %v120
  %v471 = vunpack.c.h.b16 %v120
  %v472 = vunpack.c.l.b16 %v121
  %v473 = vunpack.c.l.b16 %v122
  %v474 = vunpack.c.h.b16 %v122
  %v475 = vunpack.c.l.b16 %v123
  %v476 = vunpack.c.l.b16 %v124
  %v477 = vunpack.c.h.b16 %v124
  %v478 = vunpack.c.l.b16 %v125
  %v479 = vunpack.c.l.b16 %v126
  %v480 = vunpack.c.h.b16 %v126
  %v481 = vunpack.c.l.b16 %v127
  %v482 = vunpack.c.l.b16 %v128
  %v483 = vunpack.c.h.b16 %v128
  %v484 = vunpack.c.l.b16 %v129
  %v485 = vunpack.c.l.b16 %v130
  %v486 = vunpack.c.h.b16 %v130
  %v487 = vunpack.c.l.b16 %v131
  %v488 = vunpack.c.l.b16 %v132
  %v489 = vunpack.c.h.b16 %v132
  %v490 = vunpack.c.l.b16 %v133
  %v491 = vunpack.c.l.b16 %v134
  %v492 = vunpack.c.h.b16 %v134
  %v493 = vunpack.c.l.b16 %v135
  %v494 = vunpack.c.l.b16 %v136
  %v495 = vunpack.c.h.b16 %v136
  %v496 = vunpack.c.l.b16 %v137
  %v497 = vunpack.c.l.b16 %v138
  %v498 = vunpack.c.h.b16 %v138
  %v499 = vunpack.c.l.b16 %v139
  %v500 = vunpack.c.l.b16 %v140
  %v501 = vunpack.c.h.b16 %v140
  %v502 = vunpack.c.l.b16 %v141
  %v503 = vunpack.c.l.b16 %v142
  %v504 = vunpack.c.h.b16 %v142
  %v505 = vunpack.c.l.b16 %v143
  %v506 = vunpack.c.l.b16 %v144
  %v507 = vunpack.c.h.b16 %v144
  %v508 = vunpack.c.l.b16 %v145
  %v509 = vpack.c.b16 %v320, %v317
  %v510 = vpack.c.b16 %v321, %v318
  %v511 = vpack.c.b16 %v322, %v319
  %v512 = vpack.c.b16 %v326, %v323
  %v513 = vpack.c.b16 %v327, %v324
  %v514 = vpack.c.b16 %v328, %v325
  %v515 = vpack.c.b16 %v332, %v329
  %v516 = vpack.c.b16 %v333, %v330
  %v517 = vpack.c.b16 %v334, %v331
  %v518 = vpack.c.b16 %v338, %v335
  %v519 = vpack.c.b16 %v339, %v336
  %v520 = vpack.c.b16 %v340, %v337
  %v521 = vpack.c.b16 %v344, %v341
  %v522 = vpack.c.b16 %v345, %v342
  %v523 = vpack.c.b16 %v346, %v343
  %v524 = vpack.c.b16 %v350, %v347
  %v525 = vpack.c.b16 %v351, %v348
  %v526 = vpack.c.b16 %v352, %v349
  %v527 = vpack.c.b16 %v356, %v353
  %v528 = vpack.c.b16 %v357, %v354
  %v529 = vpack.c.b16 %v358, %v355
  %v530 = vpack.c.b16 %v362, %v359
  %v531 = vpack.c.b16 %v363, %v360
  %v532 = vpack.c.b16 %v364, %v361
  %v533 = vpack.c.b16 %v368, %v365
  %v534 = vpack.c.b16 %v369, %v366
  %v535 = vpack.c.b16 %v370, %v367
  %v536 = vpack.c.b16 %v374, %v371
  %v537 = vpack.c.b16 %v375, %v372
  %v538 = vpack.c.b16 %v376, %v373
  %v539 = vpack.c.b16 %v380, %v377
  %v540 = vpack.c.b16 %v381, %v378
  %v541 = vpack.c.b16 %v382, %v379
  %v542 = vpack.c.b16 %v386, %v383
  %v543 = vpack.c.b16 %v387, %v384
  %v544 = vpack.c.b16 %v388, %v385
  %v545 = vpack.c.b16 %v392, %v389
  %v546 = vpack.c.b16 %v393, %v390
  %v547 = vpack.c.b16 %v394, %v391
  %v548 = vpack.c.b16 %v398, %v395
  %v549 = vpack.c.b16 %v399, %v396
  %v550 = vpack.c.b16 %v400, %v397
  %v551 = vpack.c.b16 %v404, %v401
  %v552 = vpack.c.b16 %v405, %v402
  %v553 = vpack.c.b16 %v406, %v403
  %v554 = vpack.c.b16 %v410, %v407
  %v555 = vpack.c.b16 %v411, %v408
  %v556 = vpack.c.b16 %v412, %v409
  %v557 = vpack.c.b16 %v416, %v413
  %v558 = vpack.c.b16 %v417, %v414
  %v559 = vpack.c.b16 %v418, %v415
  %v560 = vpack.c.b16 %v422, %v419
  %v561 = vpack.c.b16 %v423, %v420
  %v562 = vpack.c.b16 %v424, %v421
  %v563 = vpack.c.b16 %v428, %v425
  %v564 = vpack.c.b16 %v429, %v426
  %v565 = vpack.c.b16 %v430, %v427
  %v566 = vpack.c.b16 %v434, %v431
  %v567 = vpack.c.b16 %v435, %v432
  %v568 = vpack.c.b16 %v436, %v433
  %v569 = vpack.c.b16 %v440, %v437
  %v570 = vpack.c.b16 %v441, %v438
  %v571 = vpack.c.b16 %v442, %v439
  %v572 = vpack.c.b16 %v446, %v443
  %v573 = vpack.c.b16 %v447, %v444
  %v574 = vpack.c.b16 %v448, %v445
  %v575 = vpack.c.b16 %v452, %v449
  %v576 = vpack.c.b16 %v453, %v450
  %v577 = vpack.c.b16 %v454, %v451
  %v578 = vpack.c.b16 %v458, %v455
  %v579 = vpack.c.b16 %v459, %v456
  %v580 = vpack.c.b16 %v460, %v457
  %v581 = vpack.c.b16 %v464, %v461
  %v582 = vpack.c.b16 %v465, %v462
  %v583 = vpack.c.b16 %v466, %v463
  %v584 = vpack.c.b16 %v470, %v467
  %v585 = vpack.c.b16 %v471, %v468
  %v586 = vpack.c.b16 %v472, %v469
  %v587 = vpack.c.b16 %v476, %v473
  %v588 = vpack.c.b16 %v477, %v474
  %v589 = vpack.c.b16 %v478, %v475
  %v590 = vpack.c.b16 %v482, %v479
  %v591 = vpack.c.b16 %v483, %v480
  %v592 = vpack.c.b16 %v484, %v481
  %v593 = vpack.c.b16 %v488, %v485
  %v594 = vpack.c.b16 %v489, %v486
  %v595 = vpack.c.b16 %v490, %v487
  %v596 = vpack.c.b16 %v494, %v491
  %v597 = vpack.c.b16 %v495, %v492
  %v598 = vpack.c.b16 %v496, %v493
  %v599 = vpack.c.b16 %v500, %v497
  %v600 = vpack.c.b16 %v501, %v498
  %v601 = vpack.c.b16 %v502, %v499
  %v602 = vpack.c.b16 %v506, %v503
  %v603 = vpack.c.b16 %v507, %v504
  %v604 = vpack.c.b16 %v508, %v505
  %v705 = vunpack.c.l.b16 %v146
  %v706 = vunpack.c.l.b16 %v147
  %v707 = vunpack.c.l.b16 %v148
  %v708 = vunpack.c.l.b16 %v149
  %v709 = vunpack.c.l.b16 %v150
  %v710 = vunpack.c.l.b16 %v151
  %v711 = vunpack.c.l.b16 %v152
  %v712 = vunpack.c.l.b16 %v153
  %v713 = vunpack.c.l.b16 %v154
  %v714 = vunpack.c.l.b16 %v155
  %v715 = vunpack.c.l.b16 %v156
  %v716 = vunpack.c.l.b16 %v157
  %v717 = vunpack.c.l.b16 %v158
  %v718 = vunpack.c.l.b16 %v159
  %v719 = vunpack.c.l.b16 %v160
  %v720 = vunpack.c.l.b16 %v161
  %v721 = vunpack.c.l.b16 %v162
  %v722 = vunpack.c.l.b16 %v163
  %v723 = vunpack.c.l.b16 %v164
  %v724 = vunpack.c.l.b16 %v165
  %v725 = vunpack.c.l.b16 %v166
  %v726 = vunpack.c.l.b16 %v167
  %v727 = vunpack.c.l.b16 %v168
  %v728 = vunpack.c.l.b16 %v169
  %v729 = vunpack.c.l.b16 %v170
  %v730 = vunpack.c.l.b16 %v171
  %v731 = vunpack.c.l.b16 %v172
  %v732 = vunpack.c.l.b16 %v173
  %v733 = vunpack.c.l.b16 %v174
  %v734 = vunpack.c.l.b16 %v175
  %v735 = vunpack.c.l.b16 %v176
  %v736 = vunpack.c.l.b16 %v177
  %v737 = vunpack.c.l.b16 %v178
  %v738 = vunpack.c.l.b16 %v179
  %v739 = vunpack.c.l.b16 %v180
  %v740 = vunpack.c.l.b16 %v181
  %v741 = vpack.c.b16 %v706, %v705
  %v742 = vpack.c.b16 %v708, %v707
  %v743 = vpack.c.b16 %v710, %v709
  %v744 = vpack.c.b16 %v712, %v711
  %v745 = vpack.c.b16 %v714, %v713
  %v746 = vpack.c.b16 %v716, %v715
  %v747 = vpack.c.b16 %v718, %v717
  %v748 = vpack.c.b16 %v720, %v719
  %v749 = vpack.c.b16 %v722, %v721
  %v750 = vpack.c.b16 %v724, %v723
  %v751 = vpack.c.b16 %v726, %v725
  %v752 = vpack.c.b16 %v728, %v727
  %v753 = vpack.c.b16 %v730, %v729
  %v754 = vpack.c.b16 %v732, %v731
  %v755 = vpack.c.b16 %v734, %v733
  %v756 = vpack.c.b16 %v736, %v735
  %v757 = vpack.c.b16 %v738, %v737
  %v758 = vpack.c.b16 %v740, %v739
  %vm777 = vcmask 261120
  %v779 = vsel %vm777, %v511, 0
  %v782 = vsel %vm777, %v514, 0
  %v785 = vsel %vm777, %v517, 0
  %v788 = vsel %vm777, %v520, 0
  %v791 = vsel %vm777, %v523, 0
  %v794 = vsel %vm777, %v526, 0
  %v797 = vsel %vm777, %v529, 0
  %v800 = vsel %vm777, %v532, 0
  %v803 = vsel %vm777, %v535, 0
  %v806 = vsel %vm777, %v538, 0
  %v809 = vsel %vm777, %v541, 0
  %v812 = vsel %vm777, %v544, 0
  %v815 = vsel %vm777, %v547, 0
  %v818 = vsel %vm777, %v550, 0
  %v821 = vsel %vm777, %v553, 0
  %v824 = vsel %vm777, %v556, 0
  %v827 = vsel %vm777, %v559, 0
  %v830 = vsel %vm777, %v562, 0
  %v833 = vsel %vm777, %v565, 0
  %v836 = vsel %vm777, %v568, 0
  %v839 = vsel %vm777, %v571, 0
  %v842 = vsel %vm777, %v574, 0
  %v845 = vsel %vm777, %v577, 0
  %v848 = vsel %vm777, %v580, 0
  %v851 = vsel %vm777, %v583, 0
  %v854 = vsel %vm777, %v586, 0
  %v857 = vsel %vm777, %v589, 0
  %v860 = vsel %vm777, %v592, 0
  %v863 = vsel %vm777, %v595, 0
  %v866 = vsel %vm777, %v598, 0
  %v869 = vsel %vm777, %v601, 0
  %v872 = vsel %vm777, %v604, 0
  %874 = vmatprep.subr.bf16.mxu0 0
  %875 = vmatpush1.bf16.msra.mxu0 %v741
  %876 = vmatprep.subr.bf16.mxu0 0
  %877 = vmatpush1.bf16.msra.mxu0 %v742
  %878 = vmatprep.subr.bf16.mxu0 0
  %879 = vmatpush1.bf16.msra.mxu0 %v743
  %880 = vmatprep.subr.bf16.mxu0 0
  %881 = vmatpush1.bf16.msra.mxu0 %v744
  %882 = vmatprep.subr.bf16.mxu0 0
  %883 = vmatpush1.bf16.msra.mxu0 %v745
  %884 = vmatprep.subr.bf16.mxu0 0
  %885 = vmatpush1.bf16.msra.mxu0 %v746
  %886 = vmatprep.subr.bf16.mxu0 0
  %887 = vmatpush1.bf16.msra.mxu0 %v747
  %888 = vmatprep.subr.bf16.mxu0 0
  %889 = vmatpush1.bf16.msra.mxu0 %v748
  %890 = vmatprep.subr.bf16.mxu0 0
  %891 = vmatpush1.bf16.msra.mxu0 %v749
  %892 = vmatprep.subr.bf16.mxu0 0
  %893 = vmatpush1.bf16.msra.mxu0 %v750
  %894 = vmatprep.subr.bf16.mxu0 0
  %895 = vmatpush1.bf16.msra.mxu0 %v751
  %896 = vmatprep.subr.bf16.mxu0 0
  %897 = vmatpush1.bf16.msra.mxu0 %v752
  %898 = vmatprep.subr.bf16.mxu0 0
  %899 = vmatpush1.bf16.msra.mxu0 %v753
  %900 = vmatprep.subr.bf16.mxu0 0
  %901 = vmatpush1.bf16.msra.mxu0 %v754
  %902 = vmatprep.subr.bf16.mxu0 0
  %903 = vmatpush1.bf16.msra.mxu0 %v755
  %904 = vmatprep.subr.bf16.mxu0 0
  %905 = vmatpush1.bf16.msra.mxu0 %v756
  %906 = vmatprep.mubr.bf16.mxu0 %v510
  %907 = vmatmul.mubr.bf16.gmra.mrb[0].mxu0 %v509
  %v908 = vpop.f32.mrb[0].mxu0
  %v909 = vadd.f32 %v187, %v908
  %v910 = vpop.f32.mrb[0].mxu0
  %v911 = vpop.f32.mrb[0].mxu0
  %v912 = vadd.f32 %v187, %v911
  %v913 = vpop.f32.mrb[0].mxu0
  %914 = vmatprep.mubr.bf16.mxu0 %v513
  %915 = vmatmul.mubr.bf16.gmra.mrb[0].mxu0 %v512
  %v916 = vpop.f32.mrb[0].mxu0
  %v917 = vadd.f32 %v187, %v916
  %v918 = vpop.f32.mrb[0].mxu0
  %v919 = vpop.f32.mrb[0].mxu0
  %v920 = vadd.f32 %v187, %v919
  %v921 = vpop.f32.mrb[0].mxu0
  %922 = vmatprep.mubr.bf16.mxu0 %v516
  %923 = vmatmul.mubr.bf16.gmra.mrb[0].mxu0 %v515
  %v924 = vpop.f32.mrb[0].mxu0
  %v925 = vadd.f32 %v187, %v924
  %v926 = vpop.f32.mrb[0].mxu0
  %v927 = vpop.f32.mrb[0].mxu0
  %v928 = vadd.f32 %v187, %v927
  %v929 = vpop.f32.mrb[0].mxu0
  %930 = vmatprep.mubr.bf16.mxu0 %v519
  %931 = vmatmul.mubr.bf16.gmra.mrb[0].mxu0 %v518
  %v932 = vpop.f32.mrb[0].mxu0
  %v933 = vadd.f32 %v187, %v932
  %v934 = vpop.f32.mrb[0].mxu0
  %v935 = vpop.f32.mrb[0].mxu0
  %v936 = vadd.f32 %v187, %v935
  %v937 = vpop.f32.mrb[0].mxu0
  %938 = vmatprep.mubr.bf16.mxu0 %v522
  %939 = vmatmul.mubr.bf16.gmra.mrb[0].mxu0 %v521
  %v940 = vpop.f32.mrb[0].mxu0
  %v941 = vadd.f32 %v187, %v940
  %v942 = vpop.f32.mrb[0].mxu0
  %v943 = vpop.f32.mrb[0].mxu0
  %v944 = vadd.f32 %v187, %v943
  %v945 = vpop.f32.mrb[0].mxu0
  %946 = vmatprep.mubr.bf16.mxu0 %v525
  %947 = vmatmul.mubr.bf16.gmra.mrb[0].mxu0 %v524
  %v948 = vpop.f32.mrb[0].mxu0
  %v949 = vadd.f32 %v187, %v948
  %v950 = vpop.f32.mrb[0].mxu0
  %v951 = vpop.f32.mrb[0].mxu0
  %v952 = vadd.f32 %v187, %v951
  %v953 = vpop.f32.mrb[0].mxu0
  %954 = vmatprep.mubr.bf16.mxu0 %v528
  %955 = vmatmul.mubr.bf16.gmra.mrb[0].mxu0 %v527
  %v956 = vpop.f32.mrb[0].mxu0
  %v957 = vadd.f32 %v187, %v956
  %v958 = vpop.f32.mrb[0].mxu0
  %v959 = vpop.f32.mrb[0].mxu0
  %v960 = vadd.f32 %v187, %v959
  %v961 = vpop.f32.mrb[0].mxu0
  %962 = vmatprep.mubr.bf16.mxu0 %v531
  %963 = vmatmul.mubr.bf16.gmra.mrb[0].mxu0 %v530
  %v964 = vpop.f32.mrb[0].mxu0
  %v965 = vadd.f32 %v187, %v964
  %v966 = vpop.f32.mrb[0].mxu0
  %v967 = vpop.f32.mrb[0].mxu0
  %v968 = vadd.f32 %v187, %v967
  %v969 = vpop.f32.mrb[0].mxu0
  %970 = vmatprep.mubr.bf16.mxu0 %v534
  %971 = vmatmul.mubr.bf16.gmra.mrb[0].mxu0 %v533
  %v972 = vpop.f32.mrb[0].mxu0
  %v973 = vadd.f32 %v187, %v972
  %v974 = vpop.f32.mrb[0].mxu0
  %v975 = vpop.f32.mrb[0].mxu0
  %v976 = vadd.f32 %v187, %v975
  %v977 = vpop.f32.mrb[0].mxu0
  %978 = vmatprep.mubr.bf16.mxu0 %v537
  %979 = vmatmul.mubr.bf16.gmra.mrb[0].mxu0 %v536
  %v980 = vpop.f32.mrb[0].mxu0
  %v981 = vadd.f32 %v187, %v980
  %v982 = vpop.f32.mrb[0].mxu0
  %v983 = vpop.f32.mrb[0].mxu0
  %v984 = vadd.f32 %v187, %v983
  %v985 = vpop.f32.mrb[0].mxu0
  %986 = vmatprep.mubr.bf16.mxu0 %v540
  %987 = vmatmul.mubr.bf16.gmra.mrb[0].mxu0 %v539
  %v988 = vpop.f32.mrb[0].mxu0
  %v989 = vadd.f32 %v187, %v988
  %v990 = vpop.f32.mrb[0].mxu0
  %v991 = vpop.f32.mrb[0].mxu0
  %v992 = vadd.f32 %v187, %v991
  %v993 = vpop.f32.mrb[0].mxu0
  %994 = vmatprep.mubr.bf16.mxu0 %v543
  %995 = vmatmul.mubr.bf16.gmra.mrb[0].mxu0 %v542
  %v996 = vpop.f32.mrb[0].mxu0
  %v997 = vadd.f32 %v187, %v996
  %v998 = vpop.f32.mrb[0].mxu0
  %v999 = vpop.f32.mrb[0].mxu0
  %v1000 = vadd.f32 %v187, %v999
  %v1001 = vpop.f32.mrb[0].mxu0
  %1002 = vmatprep.mubr.bf16.mxu0 %v546
  %1003 = vmatmul.mubr.bf16.gmra.mrb[0].mxu0 %v545
  %v1004 = vpop.f32.mrb[0].mxu0
  %v1005 = vadd.f32 %v187, %v1004
  %v1006 = vpop.f32.mrb[0].mxu0
  %v1007 = vpop.f32.mrb[0].mxu0
  %v1008 = vadd.f32 %v187, %v1007
  %v1009 = vpop.f32.mrb[0].mxu0
  %1010 = vmatprep.mubr.bf16.mxu0 %v549
  %1011 = vmatmul.mubr.bf16.gmra.mrb[0].mxu0 %v548
  %v1012 = vpop.f32.mrb[0].mxu0
  %v1013 = vadd.f32 %v187, %v1012
  %v1014 = vpop.f32.mrb[0].mxu0
  %v1015 = vpop.f32.mrb[0].mxu0
  %v1016 = vadd.f32 %v187, %v1015
  %v1017 = vpop.f32.mrb[0].mxu0
  %1018 = vmatprep.mubr.bf16.mxu0 %v552
  %1019 = vmatmul.mubr.bf16.gmra.mrb[0].mxu0 %v551
  %v1020 = vpop.f32.mrb[0].mxu0
  %v1021 = vadd.f32 %v187, %v1020
  %v1022 = vpop.f32.mrb[0].mxu0
  %v1023 = vpop.f32.mrb[0].mxu0
  %v1024 = vadd.f32 %v187, %v1023
  %v1025 = vpop.f32.mrb[0].mxu0
  %1026 = vmatprep.mubr.bf16.mxu0 %v555
  %1027 = vmatmul.mubr.bf16.gmra.mrb[0].mxu0 %v554
  %v1028 = vpop.f32.mrb[0].mxu0
  %v1029 = vadd.f32 %v187, %v1028
  %v1030 = vpop.f32.mrb[0].mxu0
  %v1031 = vpop.f32.mrb[0].mxu0
  %v1032 = vadd.f32 %v187, %v1031
  %v1033 = vpop.f32.mrb[0].mxu0
  %1034 = vmatprep.mubr.bf16.mxu0 %v558
  %1035 = vmatmul.mubr.bf16.gmra.mrb[0].mxu0 %v557
  %v1036 = vpop.f32.mrb[0].mxu0
  %v1037 = vadd.f32 %v187, %v1036
  %v1038 = vpop.f32.mrb[0].mxu0
  %v1039 = vpop.f32.mrb[0].mxu0
  %v1040 = vadd.f32 %v187, %v1039
  %v1041 = vpop.f32.mrb[0].mxu0
  %1042 = vmatprep.mubr.bf16.mxu0 %v561
  %1043 = vmatmul.mubr.bf16.gmra.mrb[0].mxu0 %v560
  %v1044 = vpop.f32.mrb[0].mxu0
  %v1045 = vadd.f32 %v187, %v1044
  %v1046 = vpop.f32.mrb[0].mxu0
  %v1047 = vpop.f32.mrb[0].mxu0
  %v1048 = vadd.f32 %v187, %v1047
  %v1049 = vpop.f32.mrb[0].mxu0
  %1050 = vmatprep.mubr.bf16.mxu0 %v564
  %1051 = vmatmul.mubr.bf16.gmra.mrb[0].mxu0 %v563
  %v1052 = vpop.f32.mrb[0].mxu0
  %v1053 = vadd.f32 %v187, %v1052
  %v1054 = vpop.f32.mrb[0].mxu0
  %v1055 = vpop.f32.mrb[0].mxu0
  %v1056 = vadd.f32 %v187, %v1055
  %v1057 = vpop.f32.mrb[0].mxu0
  %1058 = vmatprep.mubr.bf16.mxu0 %v567
  %1059 = vmatmul.mubr.bf16.gmra.mrb[0].mxu0 %v566
  %v1060 = vpop.f32.mrb[0].mxu0
  %v1061 = vadd.f32 %v187, %v1060
  %v1062 = vpop.f32.mrb[0].mxu0
  %v1063 = vpop.f32.mrb[0].mxu0
  %v1064 = vadd.f32 %v187, %v1063
  %v1065 = vpop.f32.mrb[0].mxu0
  %1066 = vmatprep.mubr.bf16.mxu0 %v570
  %1067 = vmatmul.mubr.bf16.gmra.mrb[0].mxu0 %v569
  %v1068 = vpop.f32.mrb[0].mxu0
  %v1069 = vadd.f32 %v187, %v1068
  %v1070 = vpop.f32.mrb[0].mxu0
  %v1071 = vpop.f32.mrb[0].mxu0
  %v1072 = vadd.f32 %v187, %v1071
  %v1073 = vpop.f32.mrb[0].mxu0
  %1074 = vmatprep.mubr.bf16.mxu0 %v573
  %1075 = vmatmul.mubr.bf16.gmra.mrb[0].mxu0 %v572
  %v1076 = vpop.f32.mrb[0].mxu0
  %v1077 = vadd.f32 %v187, %v1076
  %v1078 = vpop.f32.mrb[0].mxu0
  %v1079 = vpop.f32.mrb[0].mxu0
  %v1080 = vadd.f32 %v187, %v1079
  %v1081 = vpop.f32.mrb[0].mxu0
  %1082 = vmatprep.mubr.bf16.mxu0 %v576
  %1083 = vmatmul.mubr.bf16.gmra.mrb[0].mxu0 %v575
  %v1084 = vpop.f32.mrb[0].mxu0
  %v1085 = vadd.f32 %v187, %v1084
  %v1086 = vpop.f32.mrb[0].mxu0
  %v1087 = vpop.f32.mrb[0].mxu0
  %v1088 = vadd.f32 %v187, %v1087
  %v1089 = vpop.f32.mrb[0].mxu0
  %1090 = vmatprep.mubr.bf16.mxu0 %v579
  %1091 = vmatmul.mubr.bf16.gmra.mrb[0].mxu0 %v578
  %v1092 = vpop.f32.mrb[0].mxu0
  %v1093 = vadd.f32 %v187, %v1092
  %v1094 = vpop.f32.mrb[0].mxu0
  %v1095 = vpop.f32.mrb[0].mxu0
  %v1096 = vadd.f32 %v187, %v1095
  %v1097 = vpop.f32.mrb[0].mxu0
  %1098 = vmatprep.mubr.bf16.mxu0 %v582
  %1099 = vmatmul.mubr.bf16.gmra.mrb[0].mxu0 %v581
  %v1100 = vpop.f32.mrb[0].mxu0
  %v1101 = vadd.f32 %v187, %v1100
  %v1102 = vpop.f32.mrb[0].mxu0
  %v1103 = vpop.f32.mrb[0].mxu0
  %v1104 = vadd.f32 %v187, %v1103
  %v1105 = vpop.f32.mrb[0].mxu0
  %1106 = vmatprep.mubr.bf16.mxu0 %v585
  %1107 = vmatmul.mubr.bf16.gmra.mrb[0].mxu0 %v584
  %v1108 = vpop.f32.mrb[0].mxu0
  %v1109 = vadd.f32 %v187, %v1108
  %v1110 = vpop.f32.mrb[0].mxu0
  %v1111 = vpop.f32.mrb[0].mxu0
  %v1112 = vadd.f32 %v187, %v1111
  %v1113 = vpop.f32.mrb[0].mxu0
  %1114 = vmatprep.mubr.bf16.mxu0 %v588
  %1115 = vmatmul.mubr.bf16.gmra.mrb[0].mxu0 %v587
  %v1116 = vpop.f32.mrb[0].mxu0
  %v1117 = vadd.f32 %v187, %v1116
  %v1118 = vpop.f32.mrb[0].mxu0
  %v1119 = vpop.f32.mrb[0].mxu0
  %v1120 = vadd.f32 %v187, %v1119
  %v1121 = vpop.f32.mrb[0].mxu0
  %1122 = vmatprep.mubr.bf16.mxu0 %v591
  %1123 = vmatmul.mubr.bf16.gmra.mrb[0].mxu0 %v590
  %v1124 = vpop.f32.mrb[0].mxu0
  %v1125 = vadd.f32 %v187, %v1124
  %v1126 = vpop.f32.mrb[0].mxu0
  %v1127 = vpop.f32.mrb[0].mxu0
  %v1128 = vadd.f32 %v187, %v1127
  %v1129 = vpop.f32.mrb[0].mxu0
  %1130 = vmatprep.mubr.bf16.mxu0 %v594
  %1131 = vmatmul.mubr.bf16.gmra.mrb[0].mxu0 %v593
  %v1132 = vpop.f32.mrb[0].mxu0
  %v1133 = vadd.f32 %v187, %v1132
  %v1134 = vpop.f32.mrb[0].mxu0
  %v1135 = vpop.f32.mrb[0].mxu0
  %v1136 = vadd.f32 %v187, %v1135
  %v1137 = vpop.f32.mrb[0].mxu0
  %1138 = vmatprep.mubr.bf16.mxu0 %v597
  %1139 = vmatmul.mubr.bf16.gmra.mrb[0].mxu0 %v596
  %v1140 = vpop.f32.mrb[0].mxu0
  %v1141 = vadd.f32 %v187, %v1140
  %v1142 = vpop.f32.mrb[0].mxu0
  %v1143 = vpop.f32.mrb[0].mxu0
  %v1144 = vadd.f32 %v187, %v1143
  %v1145 = vpop.f32.mrb[0].mxu0
  %1146 = vmatprep.mubr.bf16.mxu0 %v600
  %1147 = vmatmul.mubr.bf16.gmra.mrb[0].mxu0 %v599
  %v1148 = vpop.f32.mrb[0].mxu0
  %v1149 = vadd.f32 %v187, %v1148
  %v1150 = vpop.f32.mrb[0].mxu0
  %v1151 = vpop.f32.mrb[0].mxu0
  %v1152 = vadd.f32 %v187, %v1151
  %v1153 = vpop.f32.mrb[0].mxu0
  %1154 = vmatprep.mubr.bf16.mxu0 %v603
  %1155 = vmatmul.mubr.bf16.gmra.mrb[0].mxu0 %v602
  %v1156 = vpop.f32.mrb[0].mxu0
  %v1157 = vadd.f32 %v187, %v1156
  %v1158 = vpop.f32.mrb[0].mxu0
  %v1159 = vpop.f32.mrb[0].mxu0
  %v1160 = vadd.f32 %v187, %v1159
  %v1161 = vpop.f32.mrb[0].mxu0
  %1162 = vdwg.mxu0
  %1163 = vmatprep.subr.bf16.mxu0 0
  %1164 = vmatpush1.bf16.msra.mxu0 %v757
  %1165 = vmatprep.subr.bf16.mxu0 0
  %1166 = vmatpush1.bf16.msra.mxu0 %v758
  %1167 = vmatprep.subr.bf16.mxu0 0
  %1168 = vmatpush1.bf16.msra.mxu0 0
  %1169 = vmatprep.subr.bf16.mxu0 0
  %1170 = vmatpush1.bf16.msra.mxu0 0
  %1171 = vmatprep.subr.bf16.mxu0 0
  %1172 = vmatpush1.bf16.msra.mxu0 0
  %1173 = vmatprep.subr.bf16.mxu0 0
  %1174 = vmatpush1.bf16.msra.mxu0 0
  %1175 = vmatprep.subr.bf16.mxu0 0
  %1176 = vmatpush1.bf16.msra.mxu0 0
  %1177 = vmatprep.subr.bf16.mxu0 0
  %1178 = vmatpush1.bf16.msra.mxu0 0
  %1179 = vmatprep.subr.bf16.mxu0 0
  %1180 = vmatpush1.bf16.msra.mxu0 0
  %1181 = vmatprep.subr.bf16.mxu0 0
  %1182 = vmatpush1.bf16.msra.mxu0 0
  %1183 = vmatprep.subr.bf16.mxu0 0
  %1184 = vmatpush1.bf16.msra.mxu0 0
  %1185 = vmatprep.subr.bf16.mxu0 0
  %1186 = vmatpush1.bf16.msra.mxu0 0
  %1187 = vmatprep.subr.bf16.mxu0 0
  %1188 = vmatpush1.bf16.msra.mxu0 0
  %1189 = vmatprep.subr.bf16.mxu0 0
  %1190 = vmatpush1.bf16.msra.mxu0 0
  %1191 = vmatprep.subr.bf16.mxu0 0
  %1192 = vmatpush1.bf16.msra.mxu0 0
  %1193 = vmatprep.subr.bf16.mxu0 0
  %1194 = vmatpush1.bf16.msra.mxu0 0
  %1195 = vmatprep.mubr.bf16.mxu0 0
  %1196 = vmatmul.mubr.bf16.gmra.mrb[0].mxu0 %v779
  %v1197 = vpop.f32.mrb[0].mxu0
  %v1198 = vadd.f32 %v909, %v1197
  %v1199 = vpop.f32.mrb[0].mxu0
  %v1200 = vpop.f32.mrb[0].mxu0
  %v1201 = vadd.f32 %v912, %v1200
  %v1202 = vpop.f32.mrb[0].mxu0
  %1203 = vmatprep.mubr.bf16.mxu0 0
  %1204 = vmatmul.mubr.bf16.gmra.mrb[0].mxu0 %v782
  %v1205 = vpop.f32.mrb[0].mxu0
  %v1206 = vadd.f32 %v917, %v1205
  %v1207 = vpop.f32.mrb[0].mxu0
  %v1208 = vpop.f32.mrb[0].mxu0
  %v1209 = vadd.f32 %v920, %v1208
  %v1210 = vpop.f32.mrb[0].mxu0
  %1211 = vmatprep.mubr.bf16.mxu0 0
  %1212 = vmatmul.mubr.bf16.gmra.mrb[0].mxu0 %v785
  %v1213 = vpop.f32.mrb[0].mxu0
  %v1214 = vadd.f32 %v925, %v1213
  %v1215 = vpop.f32.mrb[0].mxu0
  %v1216 = vpop.f32.mrb[0].mxu0
  %v1217 = vadd.f32 %v928, %v1216
  %v1218 = vpop.f32.mrb[0].mxu0
  %1219 = vmatprep.mubr.bf16.mxu0 0
  %1220 = vmatmul.mubr.bf16.gmra.mrb[0].mxu0 %v788
  %v1221 = vpop.f32.mrb[0].mxu0
  %v1222 = vadd.f32 %v933, %v1221
  %v1223 = vpop.f32.mrb[0].mxu0
  %v1224 = vpop.f32.mrb[0].mxu0
  %v1225 = vadd.f32 %v936, %v1224
  %v1226 = vpop.f32.mrb[0].mxu0
  %1227 = vmatprep.mubr.bf16.mxu0 0
  %1228 = vmatmul.mubr.bf16.gmra.mrb[0].mxu0 %v791
  %v1229 = vpop.f32.mrb[0].mxu0
  %v1230 = vadd.f32 %v941, %v1229
  %v1231 = vpop.f32.mrb[0].mxu0
  %v1232 = vpop.f32.mrb[0].mxu0
  %v1233 = vadd.f32 %v944, %v1232
  %v1234 = vpop.f32.mrb[0].mxu0
  %1235 = vmatprep.mubr.bf16.mxu0 0
  %1236 = vmatmul.mubr.bf16.gmra.mrb[0].mxu0 %v794
  %v1237 = vpop.f32.mrb[0].mxu0
  %v1238 = vadd.f32 %v949, %v1237
  %v1239 = vpop.f32.mrb[0].mxu0
  %v1240 = vpop.f32.mrb[0].mxu0
  %v1241 = vadd.f32 %v952, %v1240
  %v1242 = vpop.f32.mrb[0].mxu0
  %1243 = vmatprep.mubr.bf16.mxu0 0
  %1244 = vmatmul.mubr.bf16.gmra.mrb[0].mxu0 %v797
  %v1245 = vpop.f32.mrb[0].mxu0
  %v1246 = vadd.f32 %v957, %v1245
  %v1247 = vpop.f32.mrb[0].mxu0
  %v1248 = vpop.f32.mrb[0].mxu0
  %v1249 = vadd.f32 %v960, %v1248
  %v1250 = vpop.f32.mrb[0].mxu0
  %1251 = vmatprep.mubr.bf16.mxu0 0
  %1252 = vmatmul.mubr.bf16.gmra.mrb[0].mxu0 %v800
  %v1253 = vpop.f32.mrb[0].mxu0
  %v1254 = vadd.f32 %v965, %v1253
  %v1255 = vpop.f32.mrb[0].mxu0
  %v1256 = vpop.f32.mrb[0].mxu0
  %v1257 = vadd.f32 %v968, %v1256
  %v1258 = vpop.f32.mrb[0].mxu0
  %1259 = vmatprep.mubr.bf16.mxu0 0
  %1260 = vmatmul.mubr.bf16.gmra.mrb[0].mxu0 %v803
  %v1261 = vpop.f32.mrb[0].mxu0
  %v1262 = vadd.f32 %v973, %v1261
  %v1263 = vpop.f32.mrb[0].mxu0
  %v1264 = vpop.f32.mrb[0].mxu0
  %v1265 = vadd.f32 %v976, %v1264
  %v1266 = vpop.f32.mrb[0].mxu0
  %1267 = vmatprep.mubr.bf16.mxu0 0
  %1268 = vmatmul.mubr.bf16.gmra.mrb[0].mxu0 %v806
  %v1269 = vpop.f32.mrb[0].mxu0
  %v1270 = vadd.f32 %v981, %v1269
  %v1271 = vpop.f32.mrb[0].mxu0
  %v1272 = vpop.f32.mrb[0].mxu0
  %v1273 = vadd.f32 %v984, %v1272
  %v1274 = vpop.f32.mrb[0].mxu0
  %1275 = vmatprep.mubr.bf16.mxu0 0
  %1276 = vmatmul.mubr.bf16.gmra.mrb[0].mxu0 %v809
  %v1277 = vpop.f32.mrb[0].mxu0
  %v1278 = vadd.f32 %v989, %v1277
  %v1279 = vpop.f32.mrb[0].mxu0
  %v1280 = vpop.f32.mrb[0].mxu0
  %v1281 = vadd.f32 %v992, %v1280
  %v1282 = vpop.f32.mrb[0].mxu0
  %1283 = vmatprep.mubr.bf16.mxu0 0
  %1284 = vmatmul.mubr.bf16.gmra.mrb[0].mxu0 %v812
  %v1285 = vpop.f32.mrb[0].mxu0
  %v1286 = vadd.f32 %v997, %v1285
  %v1287 = vpop.f32.mrb[0].mxu0
  %v1288 = vpop.f32.mrb[0].mxu0
  %v1289 = vadd.f32 %v1000, %v1288
  %v1290 = vpop.f32.mrb[0].mxu0
  %1291 = vmatprep.mubr.bf16.mxu0 0
  %1292 = vmatmul.mubr.bf16.gmra.mrb[0].mxu0 %v815
  %v1293 = vpop.f32.mrb[0].mxu0
  %v1294 = vadd.f32 %v1005, %v1293
  %v1295 = vpop.f32.mrb[0].mxu0
  %v1296 = vpop.f32.mrb[0].mxu0
  %v1297 = vadd.f32 %v1008, %v1296
  %v1298 = vpop.f32.mrb[0].mxu0
  %1299 = vmatprep.mubr.bf16.mxu0 0
  %1300 = vmatmul.mubr.bf16.gmra.mrb[0].mxu0 %v818
  %v1301 = vpop.f32.mrb[0].mxu0
  %v1302 = vadd.f32 %v1013, %v1301
  %v1303 = vpop.f32.mrb[0].mxu0
  %v1304 = vpop.f32.mrb[0].mxu0
  %v1305 = vadd.f32 %v1016, %v1304
  %v1306 = vpop.f32.mrb[0].mxu0
  %1307 = vmatprep.mubr.bf16.mxu0 0
  %1308 = vmatmul.mubr.bf16.gmra.mrb[0].mxu0 %v821
  %v1309 = vpop.f32.mrb[0].mxu0
  %v1310 = vadd.f32 %v1021, %v1309
  %v1311 = vpop.f32.mrb[0].mxu0
  %v1312 = vpop.f32.mrb[0].mxu0
  %v1313 = vadd.f32 %v1024, %v1312
  %v1314 = vpop.f32.mrb[0].mxu0
  %1315 = vmatprep.mubr.bf16.mxu0 0
  %1316 = vmatmul.mubr.bf16.gmra.mrb[0].mxu0 %v824
  %v1317 = vpop.f32.mrb[0].mxu0
  %v1318 = vadd.f32 %v1029, %v1317
  %v1319 = vpop.f32.mrb[0].mxu0
  %v1320 = vpop.f32.mrb[0].mxu0
  %v1321 = vadd.f32 %v1032, %v1320
  %v1322 = vpop.f32.mrb[0].mxu0
  %1323 = vmatprep.mubr.bf16.mxu0 0
  %1324 = vmatmul.mubr.bf16.gmra.mrb[0].mxu0 %v827
  %v1325 = vpop.f32.mrb[0].mxu0
  %v1326 = vadd.f32 %v1037, %v1325
  %v1327 = vpop.f32.mrb[0].mxu0
  %v1328 = vpop.f32.mrb[0].mxu0
  %v1329 = vadd.f32 %v1040, %v1328
  %v1330 = vpop.f32.mrb[0].mxu0
  %1331 = vmatprep.mubr.bf16.mxu0 0
  %1332 = vmatmul.mubr.bf16.gmra.mrb[0].mxu0 %v830
  %v1333 = vpop.f32.mrb[0].mxu0
  %v1334 = vadd.f32 %v1045, %v1333
  %v1335 = vpop.f32.mrb[0].mxu0
  %v1336 = vpop.f32.mrb[0].mxu0
  %v1337 = vadd.f32 %v1048, %v1336
  %v1338 = vpop.f32.mrb[0].mxu0
  %1339 = vmatprep.mubr.bf16.mxu0 0
  %1340 = vmatmul.mubr.bf16.gmra.mrb[0].mxu0 %v833
  %v1341 = vpop.f32.mrb[0].mxu0
  %v1342 = vadd.f32 %v1053, %v1341
  %v1343 = vpop.f32.mrb[0].mxu0
  %v1344 = vpop.f32.mrb[0].mxu0
  %v1345 = vadd.f32 %v1056, %v1344
  %v1346 = vpop.f32.mrb[0].mxu0
  %1347 = vmatprep.mubr.bf16.mxu0 0
  %1348 = vmatmul.mubr.bf16.gmra.mrb[0].mxu0 %v836
  %v1349 = vpop.f32.mrb[0].mxu0
  %v1350 = vadd.f32 %v1061, %v1349
  %v1351 = vpop.f32.mrb[0].mxu0
  %v1352 = vpop.f32.mrb[0].mxu0
  %v1353 = vadd.f32 %v1064, %v1352
  %v1354 = vpop.f32.mrb[0].mxu0
  %1355 = vmatprep.mubr.bf16.mxu0 0
  %1356 = vmatmul.mubr.bf16.gmra.mrb[0].mxu0 %v839
  %v1357 = vpop.f32.mrb[0].mxu0
  %v1358 = vadd.f32 %v1069, %v1357
  %v1359 = vpop.f32.mrb[0].mxu0
  %v1360 = vpop.f32.mrb[0].mxu0
  %v1361 = vadd.f32 %v1072, %v1360
  %v1362 = vpop.f32.mrb[0].mxu0
  %1363 = vmatprep.mubr.bf16.mxu0 0
  %1364 = vmatmul.mubr.bf16.gmra.mrb[0].mxu0 %v842
  %v1365 = vpop.f32.mrb[0].mxu0
  %v1366 = vadd.f32 %v1077, %v1365
  %v1367 = vpop.f32.mrb[0].mxu0
  %v1368 = vpop.f32.mrb[0].mxu0
  %v1369 = vadd.f32 %v1080, %v1368
  %v1370 = vpop.f32.mrb[0].mxu0
  %1371 = vmatprep.mubr.bf16.mxu0 0
  %1372 = vmatmul.mubr.bf16.gmra.mrb[0].mxu0 %v845
  %v1373 = vpop.f32.mrb[0].mxu0
  %v1374 = vadd.f32 %v1085, %v1373
  %v1375 = vpop.f32.mrb[0].mxu0
  %v1376 = vpop.f32.mrb[0].mxu0
  %v1377 = vadd.f32 %v1088, %v1376
  %v1378 = vpop.f32.mrb[0].mxu0
  %1379 = vmatprep.mubr.bf16.mxu0 0
  %1380 = vmatmul.mubr.bf16.gmra.mrb[0].mxu0 %v848
  %v1381 = vpop.f32.mrb[0].mxu0
  %v1382 = vadd.f32 %v1093, %v1381
  %v1383 = vpop.f32.mrb[0].mxu0
  %v1384 = vpop.f32.mrb[0].mxu0
  %v1385 = vadd.f32 %v1096, %v1384
  %v1386 = vpop.f32.mrb[0].mxu0
  %1387 = vmatprep.mubr.bf16.mxu0 0
  %1388 = vmatmul.mubr.bf16.gmra.mrb[0].mxu0 %v851
  %v1389 = vpop.f32.mrb[0].mxu0
  %v1390 = vadd.f32 %v1101, %v1389
  %v1391 = vpop.f32.mrb[0].mxu0
  %v1392 = vpop.f32.mrb[0].mxu0
  %v1393 = vadd.f32 %v1104, %v1392
  %v1394 = vpop.f32.mrb[0].mxu0
  %1395 = vmatprep.mubr.bf16.mxu0 0
  %1396 = vmatmul.mubr.bf16.gmra.mrb[0].mxu0 %v854
  %v1397 = vpop.f32.mrb[0].mxu0
  %v1398 = vadd.f32 %v1109, %v1397
  %v1399 = vpop.f32.mrb[0].mxu0
  %v1400 = vpop.f32.mrb[0].mxu0
  %v1401 = vadd.f32 %v1112, %v1400
  %v1402 = vpop.f32.mrb[0].mxu0
  %1403 = vmatprep.mubr.bf16.mxu0 0
  %1404 = vmatmul.mubr.bf16.gmra.mrb[0].mxu0 %v857
  %v1405 = vpop.f32.mrb[0].mxu0
  %v1406 = vadd.f32 %v1117, %v1405
  %v1407 = vpop.f32.mrb[0].mxu0
  %v1408 = vpop.f32.mrb[0].mxu0
  %v1409 = vadd.f32 %v1120, %v1408
  %v1410 = vpop.f32.mrb[0].mxu0
  %1411 = vmatprep.mubr.bf16.mxu0 0
  %1412 = vmatmul.mubr.bf16.gmra.mrb[0].mxu0 %v860
  %v1413 = vpop.f32.mrb[0].mxu0
  %v1414 = vadd.f32 %v1125, %v1413
  %v1415 = vpop.f32.mrb[0].mxu0
  %v1416 = vpop.f32.mrb[0].mxu0
  %v1417 = vadd.f32 %v1128, %v1416
  %v1418 = vpop.f32.mrb[0].mxu0
  %1419 = vmatprep.mubr.bf16.mxu0 0
  %1420 = vmatmul.mubr.bf16.gmra.mrb[0].mxu0 %v863
  %v1421 = vpop.f32.mrb[0].mxu0
  %v1422 = vadd.f32 %v1133, %v1421
  %v1423 = vpop.f32.mrb[0].mxu0
  %v1424 = vpop.f32.mrb[0].mxu0
  %v1425 = vadd.f32 %v1136, %v1424
  %v1426 = vpop.f32.mrb[0].mxu0
  %1427 = vmatprep.mubr.bf16.mxu0 0
  %1428 = vmatmul.mubr.bf16.gmra.mrb[0].mxu0 %v866
  %v1429 = vpop.f32.mrb[0].mxu0
  %v1430 = vadd.f32 %v1141, %v1429
  %v1431 = vpop.f32.mrb[0].mxu0
  %v1432 = vpop.f32.mrb[0].mxu0
  %v1433 = vadd.f32 %v1144, %v1432
  %v1434 = vpop.f32.mrb[0].mxu0
  %1435 = vmatprep.mubr.bf16.mxu0 0
  %1436 = vmatmul.mubr.bf16.gmra.mrb[0].mxu0 %v869
  %v1437 = vpop.f32.mrb[0].mxu0
  %v1438 = vadd.f32 %v1149, %v1437
  %v1439 = vpop.f32.mrb[0].mxu0
  %v1440 = vpop.f32.mrb[0].mxu0
  %v1441 = vadd.f32 %v1152, %v1440
  %v1442 = vpop.f32.mrb[0].mxu0
  %1443 = vmatprep.mubr.bf16.mxu0 0
  %1444 = vmatmul.mubr.bf16.gmra.mrb[0].mxu0 %v872
  %v1445 = vpop.f32.mrb[0].mxu0
  %v1446 = vadd.f32 %v1157, %v1445
  %v1447 = vpop.f32.mrb[0].mxu0
  %v1448 = vpop.f32.mrb[0].mxu0
  %v1449 = vadd.f32 %v1160, %v1448
  %v1450 = vpop.f32.mrb[0].mxu0
  %1451 = vdwg.mxu0
  %v1452 = vmax.f32 %v1198, 0.0
  %v1453 = vmax.f32 %v1201, 0.0
  %v1454 = vmax.f32 %v1206, 0.0
  %v1455 = vmax.f32 %v1209, 0.0
  %v1456 = vmax.f32 %v1214, 0.0
  %v1457 = vmax.f32 %v1217, 0.0
  %v1458 = vmax.f32 %v1222, 0.0
  %v1459 = vmax.f32 %v1225, 0.0
  %v1460 = vmax.f32 %v1230, 0.0
  %v1461 = vmax.f32 %v1233, 0.0
  %v1462 = vmax.f32 %v1238, 0.0
  %v1463 = vmax.f32 %v1241, 0.0
  %v1464 = vmax.f32 %v1246, 0.0
  %v1465 = vmax.f32 %v1249, 0.0
  %v1466 = vmax.f32 %v1254, 0.0
  %v1467 = vmax.f32 %v1257, 0.0
  %v1468 = vmax.f32 %v1262, 0.0
  %v1469 = vmax.f32 %v1265, 0.0
  %v1470 = vmax.f32 %v1270, 0.0
  %v1471 = vmax.f32 %v1273, 0.0
  %v1472 = vmax.f32 %v1278, 0.0
  %v1473 = vmax.f32 %v1281, 0.0
  %v1474 = vmax.f32 %v1286, 0.0
  %v1475 = vmax.f32 %v1289, 0.0
  %v1476 = vmax.f32 %v1294, 0.0
  %v1477 = vmax.f32 %v1297, 0.0
  %v1478 = vmax.f32 %v1302, 0.0
  %v1479 = vmax.f32 %v1305, 0.0
  %v1480 = vmax.f32 %v1310, 0.0
  %v1481 = vmax.f32 %v1313, 0.0
  %v1482 = vmax.f32 %v1318, 0.0
  %v1483 = vmax.f32 %v1321, 0.0
  %v1484 = vmax.f32 %v1326, 0.0
  %v1485 = vmax.f32 %v1329, 0.0
  %v1486 = vmax.f32 %v1334, 0.0
  %v1487 = vmax.f32 %v1337, 0.0
  %v1488 = vmax.f32 %v1342, 0.0
  %v1489 = vmax.f32 %v1345, 0.0
  %v1490 = vmax.f32 %v1350, 0.0
  %v1491 = vmax.f32 %v1353, 0.0
  %v1492 = vmax.f32 %v1358, 0.0
  %v1493 = vmax.f32 %v1361, 0.0
  %v1494 = vmax.f32 %v1366, 0.0
  %v1495 = vmax.f32 %v1369, 0.0
  %v1496 = vmax.f32 %v1374, 0.0
  %v1497 = vmax.f32 %v1377, 0.0
  %v1498 = vmax.f32 %v1382, 0.0
  %v1499 = vmax.f32 %v1385, 0.0
  %v1500 = vmax.f32 %v1390, 0.0
  %v1501 = vmax.f32 %v1393, 0.0
  %v1502 = vmax.f32 %v1398, 0.0
  %v1503 = vmax.f32 %v1401, 0.0
  %v1504 = vmax.f32 %v1406, 0.0
  %v1505 = vmax.f32 %v1409, 0.0
  %v1506 = vmax.f32 %v1414, 0.0
  %v1507 = vmax.f32 %v1417, 0.0
  %v1508 = vmax.f32 %v1422, 0.0
  %v1509 = vmax.f32 %v1425, 0.0
  %v1510 = vmax.f32 %v1430, 0.0
  %v1511 = vmax.f32 %v1433, 0.0
  %v1512 = vmax.f32 %v1438, 0.0
  %v1513 = vmax.f32 %v1441, 0.0
  %v1514 = vmax.f32 %v1446, 0.0
  %v1515 = vmax.f32 %v1449, 0.0
  %v1516 = vld [vmem:[%s3] sm:$0x1]
  %v1518 = vlaneseq
  %v1519 = vshrl.u32 %v1518, 7
  %v1520 = vsub.s32 0, %v1519
  %v1521 = vrot.slane %v1516, %v1520
  %v1523 = vadd.f32 %v1452, %v1521
  %v1524 = vadd.f32 %v1453, %v1521
  %v1525 = vadd.f32 %v1454, %v1521
  %v1526 = vadd.f32 %v1455, %v1521
  %v1527 = vadd.f32 %v1456, %v1521
  %v1528 = vadd.f32 %v1457, %v1521
  %v1529 = vadd.f32 %v1458, %v1521
  %v1530 = vadd.f32 %v1459, %v1521
  %v1531 = vadd.f32 %v1460, %v1521
  %v1532 = vadd.f32 %v1461, %v1521
  %v1533 = vadd.f32 %v1462, %v1521
  %v1534 = vadd.f32 %v1463, %v1521
  %v1535 = vadd.f32 %v1464, %v1521
  %v1536 = vadd.f32 %v1465, %v1521
  %v1537 = vadd.f32 %v1466, %v1521
  %v1538 = vadd.f32 %v1467, %v1521
  %v1539 = vadd.f32 %v1468, %v1521
  %v1540 = vadd.f32 %v1469, %v1521
  %v1541 = vadd.f32 %v1470, %v1521
  %v1542 = vadd.f32 %v1471, %v1521
  %v1543 = vadd.f32 %v1472, %v1521
  %v1544 = vadd.f32 %v1473, %v1521
  %v1545 = vadd.f32 %v1474, %v1521
  %v1546 = vadd.f32 %v1475, %v1521
  %v1547 = vadd.f32 %v1476, %v1521
  %v1548 = vadd.f32 %v1477, %v1521
  %v1549 = vadd.f32 %v1478, %v1521
  %v1550 = vadd.f32 %v1479, %v1521
  %v1551 = vadd.f32 %v1480, %v1521
  %v1552 = vadd.f32 %v1481, %v1521
  %v1553 = vadd.f32 %v1482, %v1521
  %v1554 = vadd.f32 %v1483, %v1521
  %v1555 = vadd.f32 %v1484, %v1521
  %v1556 = vadd.f32 %v1485, %v1521
  %v1557 = vadd.f32 %v1486, %v1521
  %v1558 = vadd.f32 %v1487, %v1521
  %v1559 = vadd.f32 %v1488, %v1521
  %v1560 = vadd.f32 %v1489, %v1521
  %v1561 = vadd.f32 %v1490, %v1521
  %v1562 = vadd.f32 %v1491, %v1521
  %v1563 = vadd.f32 %v1492, %v1521
  %v1564 = vadd.f32 %v1493, %v1521
  %v1565 = vadd.f32 %v1494, %v1521
  %v1566 = vadd.f32 %v1495, %v1521
  %v1567 = vadd.f32 %v1496, %v1521
  %v1568 = vadd.f32 %v1497, %v1521
  %v1569 = vadd.f32 %v1498, %v1521
  %v1570 = vadd.f32 %v1499, %v1521
  %v1571 = vadd.f32 %v1500, %v1521
  %v1572 = vadd.f32 %v1501, %v1521
  %v1573 = vadd.f32 %v1502, %v1521
  %v1574 = vadd.f32 %v1503, %v1521
  %v1575 = vadd.f32 %v1504, %v1521
  %v1576 = vadd.f32 %v1505, %v1521
  %v1577 = vadd.f32 %v1506, %v1521
  %v1578 = vadd.f32 %v1507, %v1521
  %v1579 = vadd.f32 %v1508, %v1521
  %v1580 = vadd.f32 %v1509, %v1521
  %v1581 = vadd.f32 %v1510, %v1521
  %v1582 = vadd.f32 %v1511, %v1521
  %v1583 = vadd.f32 %v1512, %v1521
  %v1584 = vadd.f32 %v1513, %v1521
  %v1585 = vadd.f32 %v1514, %v1521
  %v1586 = vadd.f32 %v1515, %v1521
  %v1587 = vpack.c.bf16 %v1524, %v1523
  %v1588 = vpack.c.bf16 %v1526, %v1525
  %v1589 = vpack.c.bf16 %v1528, %v1527
  %v1590 = vpack.c.bf16 %v1530, %v1529
  %v1591 = vpack.c.bf16 %v1532, %v1531
  %v1592 = vpack.c.bf16 %v1534, %v1533
  %v1593 = vpack.c.bf16 %v1536, %v1535
  %v1594 = vpack.c.bf16 %v1538, %v1537
  %v1595 = vpack.c.bf16 %v1540, %v1539
  %v1596 = vpack.c.bf16 %v1542, %v1541
  %v1597 = vpack.c.bf16 %v1544, %v1543
  %v1598 = vpack.c.bf16 %v1546, %v1545
  %v1599 = vpack.c.bf16 %v1548, %v1547
  %v1600 = vpack.c.bf16 %v1550, %v1549
  %v1601 = vpack.c.bf16 %v1552, %v1551
  %v1602 = vpack.c.bf16 %v1554, %v1553
  %v1603 = vpack.c.bf16 %v1556, %v1555
  %v1604 = vpack.c.bf16 %v1558, %v1557
  %v1605 = vpack.c.bf16 %v1560, %v1559
  %v1606 = vpack.c.bf16 %v1562, %v1561
  %v1607 = vpack.c.bf16 %v1564, %v1563
  %v1608 = vpack.c.bf16 %v1566, %v1565
  %v1609 = vpack.c.bf16 %v1568, %v1567
  %v1610 = vpack.c.bf16 %v1570, %v1569
  %v1611 = vpack.c.bf16 %v1572, %v1571
  %v1612 = vpack.c.bf16 %v1574, %v1573
  %v1613 = vpack.c.bf16 %v1576, %v1575
  %v1614 = vpack.c.bf16 %v1578, %v1577
  %v1615 = vpack.c.bf16 %v1580, %v1579
  %v1616 = vpack.c.bf16 %v1582, %v1581
  %v1617 = vpack.c.bf16 %v1584, %v1583
  %v1618 = vpack.c.bf16 %v1586, %v1585
  %v1651 = vunpack.c.l.b16 %v1587
  %v1652 = vunpack.c.h.b16 %v1587
  %v1653 = vunpack.c.l.b16 %v1588
  %v1654 = vunpack.c.h.b16 %v1588
  %v1655 = vunpack.c.l.b16 %v1589
  %v1656 = vunpack.c.h.b16 %v1589
  %v1657 = vunpack.c.l.b16 %v1590
  %v1658 = vunpack.c.h.b16 %v1590
  %v1659 = vunpack.c.l.b16 %v1591
  %v1660 = vunpack.c.h.b16 %v1591
  %v1661 = vunpack.c.l.b16 %v1592
  %v1662 = vunpack.c.h.b16 %v1592
  %v1663 = vunpack.c.l.b16 %v1593
  %v1664 = vunpack.c.h.b16 %v1593
  %v1665 = vunpack.c.l.b16 %v1594
  %v1666 = vunpack.c.h.b16 %v1594
  %v1667 = vunpack.c.l.b16 %v1595
  %v1668 = vunpack.c.h.b16 %v1595
  %v1669 = vunpack.c.l.b16 %v1596
  %v1670 = vunpack.c.h.b16 %v1596
  %v1671 = vunpack.c.l.b16 %v1597
  %v1672 = vunpack.c.h.b16 %v1597
  %v1673 = vunpack.c.l.b16 %v1598
  %v1674 = vunpack.c.h.b16 %v1598
  %v1675 = vunpack.c.l.b16 %v1599
  %v1676 = vunpack.c.h.b16 %v1599
  %v1677 = vunpack.c.l.b16 %v1600
  %v1678 = vunpack.c.h.b16 %v1600
  %v1679 = vunpack.c.l.b16 %v1601
  %v1680 = vunpack.c.h.b16 %v1601
  %v1681 = vunpack.c.l.b16 %v1602
  %v1682 = vunpack.c.h.b16 %v1602
  %v1683 = vunpack.c.l.b16 %v1603
  %v1684 = vunpack.c.h.b16 %v1603
  %v1685 = vunpack.c.l.b16 %v1604
  %v1686 = vunpack.c.h.b16 %v1604
  %v1687 = vunpack.c.l.b16 %v1605
  %v1688 = vunpack.c.h.b16 %v1605
  %v1689 = vunpack.c.l.b16 %v1606
  %v1690 = vunpack.c.h.b16 %v1606
  %v1691 = vunpack.c.l.b16 %v1607
  %v1692 = vunpack.c.h.b16 %v1607
  %v1693 = vunpack.c.l.b16 %v1608
  %v1694 = vunpack.c.h.b16 %v1608
  %v1695 = vunpack.c.l.b16 %v1609
  %v1696 = vunpack.c.h.b16 %v1609
  %v1697 = vunpack.c.l.b16 %v1610
  %v1698 = vunpack.c.h.b16 %v1610
  %v1699 = vunpack.c.l.b16 %v1611
  %v1700 = vunpack.c.h.b16 %v1611
  %v1701 = vunpack.c.l.b16 %v1612
  %v1702 = vunpack.c.h.b16 %v1612
  %v1703 = vunpack.c.l.b16 %v1613
  %v1704 = vunpack.c.h.b16 %v1613
  %v1705 = vunpack.c.l.b16 %v1614
  %v1706 = vunpack.c.h.b16 %v1614
  %v1707 = vunpack.c.l.b16 %v1615
  %v1708 = vunpack.c.h.b16 %v1615
  %v1709 = vunpack.c.l.b16 %v1616
  %v1710 = vunpack.c.h.b16 %v1616
  %v1711 = vunpack.c.l.b16 %v1617
  %v1712 = vunpack.c.h.b16 %v1617
  %v1713 = vunpack.c.l.b16 %v1618
  %v1714 = vunpack.c.h.b16 %v1618
  %v1715 = vpack.c.b16 %v1651, %v1651
  %v1716 = vpack.c.b16 %v1652, %v1652
  %v1717 = vpack.c.b16 %v1653, %v1653
  %v1718 = vpack.c.b16 %v1654, %v1654
  %v1719 = vpack.c.b16 %v1655, %v1655
  %v1720 = vpack.c.b16 %v1656, %v1656
  %v1721 = vpack.c.b16 %v1657, %v1657
  %v1722 = vpack.c.b16 %v1658, %v1658
  %v1723 = vpack.c.b16 %v1659, %v1659
  %v1724 = vpack.c.b16 %v1660, %v1660
  %v1725 = vpack.c.b16 %v1661, %v1661
  %v1726 = vpack.c.b16 %v1662, %v1662
  %v1727 = vpack.c.b16 %v1663, %v1663
  %v1728 = vpack.c.b16 %v1664, %v1664
  %v1729 = vpack.c.b16 %v1665, %v1665
  %v1730 = vpack.c.b16 %v1666, %v1666
  %v1731 = vpack.c.b16 %v1667, %v1667
  %v1732 = vpack.c.b16 %v1668, %v1668
  %v1733 = vpack.c.b16 %v1669, %v1669
  %v1734 = vpack.c.b16 %v1670, %v1670
  %v1735 = vpack.c.b16 %v1671, %v1671
  %v1736 = vpack.c.b16 %v1672, %v1672
  %v1737 = vpack.c.b16 %v1673, %v1673
  %v1738 = vpack.c.b16 %v1674, %v1674
  %v1739 = vpack.c.b16 %v1675, %v1675
  %v1740 = vpack.c.b16 %v1676, %v1676
  %v1741 = vpack.c.b16 %v1677, %v1677
  %v1742 = vpack.c.b16 %v1678, %v1678
  %v1743 = vpack.c.b16 %v1679, %v1679
  %v1744 = vpack.c.b16 %v1680, %v1680
  %v1745 = vpack.c.b16 %v1681, %v1681
  %v1746 = vpack.c.b16 %v1682, %v1682
  %v1747 = vpack.c.b16 %v1683, %v1683
  %v1748 = vpack.c.b16 %v1684, %v1684
  %v1749 = vpack.c.b16 %v1685, %v1685
  %v1750 = vpack.c.b16 %v1686, %v1686
  %v1751 = vpack.c.b16 %v1687, %v1687
  %v1752 = vpack.c.b16 %v1688, %v1688
  %v1753 = vpack.c.b16 %v1689, %v1689
  %v1754 = vpack.c.b16 %v1690, %v1690
  %v1755 = vpack.c.b16 %v1691, %v1691
  %v1756 = vpack.c.b16 %v1692, %v1692
  %v1757 = vpack.c.b16 %v1693, %v1693
  %v1758 = vpack.c.b16 %v1694, %v1694
  %v1759 = vpack.c.b16 %v1695, %v1695
  %v1760 = vpack.c.b16 %v1696, %v1696
  %v1761 = vpack.c.b16 %v1697, %v1697
  %v1762 = vpack.c.b16 %v1698, %v1698
  %v1763 = vpack.c.b16 %v1699, %v1699
  %v1764 = vpack.c.b16 %v1700, %v1700
  %v1765 = vpack.c.b16 %v1701, %v1701
  %v1766 = vpack.c.b16 %v1702, %v1702
  %v1767 = vpack.c.b16 %v1703, %v1703
  %v1768 = vpack.c.b16 %v1704, %v1704
  %v1769 = vpack.c.b16 %v1705, %v1705
  %v1770 = vpack.c.b16 %v1706, %v1706
  %v1771 = vpack.c.b16 %v1707, %v1707
  %v1772 = vpack.c.b16 %v1708, %v1708
  %v1773 = vpack.c.b16 %v1709, %v1709
  %v1774 = vpack.c.b16 %v1710, %v1710
  %v1775 = vpack.c.b16 %v1711, %v1711
  %v1776 = vpack.c.b16 %v1712, %v1712
  %v1777 = vpack.c.b16 %v1713, %v1713
  %v1778 = vpack.c.b16 %v1714, %v1714
  %vm1843 = vcmask 519168
  %1844 = vst.msk [vmem:[%s4] sm:$0xf] %vm1843, %v1715
  %1845 = vst.msk [vmem:[%s4 + $0x4] sm:$0xf] %vm1843, %v1716
  %1846 = vst.msk [vmem:[%s4 + $0x8] sm:$0xf] %vm1843, %v1717
  %1847 = vst.msk [vmem:[%s4 + $0xc] sm:$0xf] %vm1843, %v1718
  %1848 = vst.msk [vmem:[%s4 + $0x10] sm:$0xf] %vm1843, %v1719
  %1849 = vst.msk [vmem:[%s4 + $0x14] sm:$0xf] %vm1843, %v1720
  %1850 = vst.msk [vmem:[%s4 + $0x18] sm:$0xf] %vm1843, %v1721
  %1851 = vst.msk [vmem:[%s4 + $0x1c] sm:$0xf] %vm1843, %v1722
  %1852 = vst.msk [vmem:[%s4 + $0x20] sm:$0xf] %vm1843, %v1723
  %1853 = vst.msk [vmem:[%s4 + $0x24] sm:$0xf] %vm1843, %v1724
  %1854 = vst.msk [vmem:[%s4 + $0x28] sm:$0xf] %vm1843, %v1725
  %1855 = vst.msk [vmem:[%s4 + $0x2c] sm:$0xf] %vm1843, %v1726
  %1856 = vst.msk [vmem:[%s4 + $0x30] sm:$0xf] %vm1843, %v1727
  %1857 = vst.msk [vmem:[%s4 + $0x34] sm:$0xf] %vm1843, %v1728
  %1858 = vst.msk [vmem:[%s4 + $0x38] sm:$0xf] %vm1843, %v1729
  %1859 = vst.msk [vmem:[%s4 + $0x3c] sm:$0xf] %vm1843, %v1730
  %1860 = vst.msk [vmem:[%s4 + $0x40] sm:$0xf] %vm1843, %v1731
  %1861 = vst.msk [vmem:[%s4 + $0x44] sm:$0xf] %vm1843, %v1732
  %1862 = vst.msk [vmem:[%s4 + $0x48] sm:$0xf] %vm1843, %v1733
  %1863 = vst.msk [vmem:[%s4 + $0x4c] sm:$0xf] %vm1843, %v1734
  %1864 = vst.msk [vmem:[%s4 + $0x50] sm:$0xf] %vm1843, %v1735
  %1865 = vst.msk [vmem:[%s4 + $0x54] sm:$0xf] %vm1843, %v1736
  %1866 = vst.msk [vmem:[%s4 + $0x58] sm:$0xf] %vm1843, %v1737
  %1867 = vst.msk [vmem:[%s4 + $0x5c] sm:$0xf] %vm1843, %v1738
  %1868 = vst.msk [vmem:[%s4 + $0x60] sm:$0xf] %vm1843, %v1739
  %1869 = vst.msk [vmem:[%s4 + $0x64] sm:$0xf] %vm1843, %v1740
  %1870 = vst.msk [vmem:[%s4 + $0x68] sm:$0xf] %vm1843, %v1741
  %1871 = vst.msk [vmem:[%s4 + $0x6c] sm:$0xf] %vm1843, %v1742
  %1872 = vst.msk [vmem:[%s4 + $0x70] sm:$0xf] %vm1843, %v1743
  %1873 = vst.msk [vmem:[%s4 + $0x74] sm:$0xf] %vm1843, %v1744
  %1874 = vst.msk [vmem:[%s4 + $0x78] sm:$0xf] %vm1843, %v1745
  %1875 = vst.msk [vmem:[%s4 + $0x7c] sm:$0xf] %vm1843, %v1746
  %1876 = vst.msk [vmem:[%s4 + $0x80] sm:$0xf] %vm1843, %v1747
  %1877 = vst.msk [vmem:[%s4 + $0x84] sm:$0xf] %vm1843, %v1748
  %1878 = vst.msk [vmem:[%s4 + $0x88] sm:$0xf] %vm1843, %v1749
  %1879 = vst.msk [vmem:[%s4 + $0x8c] sm:$0xf] %vm1843, %v1750
  %1880 = vst.msk [vmem:[%s4 + $0x90] sm:$0xf] %vm1843, %v1751
  %1881 = vst.msk [vmem:[%s4 + $0x94] sm:$0xf] %vm1843, %v1752
  %1882 = vst.msk [vmem:[%s4 + $0x98] sm:$0xf] %vm1843, %v1753
  %1883 = vst.msk [vmem:[%s4 + $0x9c] sm:$0xf] %vm1843, %v1754
  %1884 = vst.msk [vmem:[%s4 + $0xa0] sm:$0xf] %vm1843, %v1755
  %1885 = vst.msk [vmem:[%s4 + $0xa4] sm:$0xf] %vm1843, %v1756
  %1886 = vst.msk [vmem:[%s4 + $0xa8] sm:$0xf] %vm1843, %v1757
  %1887 = vst.msk [vmem:[%s4 + $0xac] sm:$0xf] %vm1843, %v1758
  %1888 = vst.msk [vmem:[%s4 + $0xb0] sm:$0xf] %vm1843, %v1759
  %1889 = vst.msk [vmem:[%s4 + $0xb4] sm:$0xf] %vm1843, %v1760
  %1890 = vst.msk [vmem:[%s4 + $0xb8] sm:$0xf] %vm1843, %v1761
  %1891 = vst.msk [vmem:[%s4 + $0xbc] sm:$0xf] %vm1843, %v1762
  %1892 = vst.msk [vmem:[%s4 + $0xc0] sm:$0xf] %vm1843, %v1763
  %1893 = vst.msk [vmem:[%s4 + $0xc4] sm:$0xf] %vm1843, %v1764
  %1894 = vst.msk [vmem:[%s4 + $0xc8] sm:$0xf] %vm1843, %v1765
  %1895 = vst.msk [vmem:[%s4 + $0xcc] sm:$0xf] %vm1843, %v1766
  %1896 = vst.msk [vmem:[%s4 + $0xd0] sm:$0xf] %vm1843, %v1767
  %1897 = vst.msk [vmem:[%s4 + $0xd4] sm:$0xf] %vm1843, %v1768
  %1898 = vst.msk [vmem:[%s4 + $0xd8] sm:$0xf] %vm1843, %v1769
  %1899 = vst.msk [vmem:[%s4 + $0xdc] sm:$0xf] %vm1843, %v1770
  %1900 = vst.msk [vmem:[%s4 + $0xe0] sm:$0xf] %vm1843, %v1771
  %1901 = vst.msk [vmem:[%s4 + $0xe4] sm:$0xf] %vm1843, %v1772
  %1902 = vst.msk [vmem:[%s4 + $0xe8] sm:$0xf] %vm1843, %v1773
  %1903 = vst.msk [vmem:[%s4 + $0xec] sm:$0xf] %vm1843, %v1774
  %1904 = vst.msk [vmem:[%s4 + $0xf0] sm:$0xf] %vm1843, %v1775
  %1905 = vst.msk [vmem:[%s4 + $0xf4] sm:$0xf] %vm1843, %v1776
  %1906 = vst.msk [vmem:[%s4 + $0xf8] sm:$0xf] %vm1843, %v1777
  %1907 = vst.msk [vmem:[%s4 + $0xfc] sm:$0xf] %vm1843, %v1778
  // Predicated region
  $region18: #{generator_forward.9} parent=0 // pred_check
    _
  $region19: #{generator_forward.9} parent=0 // pred_check_branch
    %1909 = sbr.rel (0) target = $region21
  $region20: #{generator_forward.9} parent=0 // pred_region
    _
  $region21: #{generator_forward.9} parent=0 // pred_fallthru
    _
  // Predicated region
  $region22: #{generator_forward.9} parent=0 // pred_check
    _
  $region23: #{generator_forward.9} parent=0 // pred_check_branch
    %1911 = sbr.rel (0) target = $region25
  $region24: #{generator_forward.9} parent=0 // pred_region
    _
  $region25: #{generator_forward.9} parent=0 // pred_fallthru
    _

// kernel: tile.143
$region0: #{tile.143}
  #allocation0 [shape = 's32[1]{0}', space=sflag, size = 0x4, scoped, tag = 'scoped memory for tile.143']
  %s0 = inlined_call_operand.vmem [shape: f32[8], index: 0, kind: input, shape index: {}]
  %s1 = inlined_call_operand.vmem [shape: f32[4,8], index: 1, kind: output, shape index: {}]
  // Predicated region
  $region2: #{tile.143} parent=0 // pred_check
    _
  $region3: #{tile.143} parent=0 // pred_check_branch
    %3 = sbr.rel (0) target = $region5
  $region4: #{tile.143} parent=0 // pred_region
    _
  $region5: #{tile.143} parent=0 // pred_fallthru
    _
  %v4 = vld [vmem:[%s0] ss:$0 sm:$0xff]
  %5 = vst [vmem:[%s1] sm:$0xf] %v4

// kernel: mul.67
$region0: #{mul.67}
  %s0 = inlined_call_operand.vmem [shape: f32[4,8], index: 0, kind: input, shape index: {}]
  %s1 = inlined_call_operand.vmem [shape: f32[32], index: 1, kind: output, shape index: {}]
  $region1: #{mul.67} parent=0
    #allocation0 [shape = 'u8[4096]{0}', space=vmem, size = 0x1000, scoped, tag = 'scoped mem for output reshape']
    #allocation1 [shape = 'u8[4096]{0}', space=vmem, size = 0x1000, scoped, tag = 'scoped mem for input reshape']
    %s3 = sshllo.u32 0, 4
    %v4 = vld [vmem:[%s0] sm:%s3]
    %5 = vst [vmem:[#allocation1] sm:%s3] %v4
    %v6 = vld [vmem:[#allocation1] sm:$0x1]
    %vm7 = vcmask 64512
    %8 = vst.msk [vmem:[#allocation0] sm:$0x1] %vm7, %v6
    %s9 = scalar_lea.vmem [#allocation1], 3
    %v10 = vld [vmem:[%s9] sm:$0x1]
    %11 = vrot.lane.b32.xlu0 %v10, 24
    %v12 = vpop.permute.xlu0 %11
    %vm13 = vcmask 261312
    %14 = vst.msk [vmem:[#allocation0] sm:$0x1] %vm13, %v12
    %s15 = scalar_lea.vmem [#allocation1], 2
    %v16 = vld [vmem:[%s15] sm:$0x1]
    %17 = vrot.lane.b32.xlu0 %v16, 16
    %v18 = vpop.permute.xlu0 %17
    %vm19 = vcmask 195712
    %20 = vst.msk [vmem:[#allocation0] sm:$0x1] %vm19, %v18
    %s21 = scalar_lea.vmem [#allocation1], 1
    %v22 = vld [vmem:[%s21] sm:$0x1]
    %23 = vrot.lane.b32.xlu0 %v22, 8
    %v24 = vpop.permute.xlu0 %23
    %vm25 = vcmask 130112
    %26 = vst.msk [vmem:[#allocation0] sm:$0x1] %vm25, %v24
    %s28 = sshllo.u32 0, 1
    %v30 = vld [vmem:[#allocation0] sm:%s28]
    %s31 = sshllo.u32 0, 1
    %32 = vst [vmem:[%s1] sm:%s31] %v30

// kernel: tile.153
$region0: #{tile.153}
  %s0 = inlined_call_operand.vmem [shape: f32[4,8], index: 0, kind: input, shape index: {}]
  %s1 = inlined_call_operand.vmem [shape: f32[1,32], index: 1, kind: output, shape index: {}]
  $region1: #{tile.153} parent=0
    #allocation0 [shape = 'u8[4096]{0}', space=vmem, size = 0x1000, scoped, tag = 'scoped mem for output reshape']
    #allocation1 [shape = 'u8[4096]{0}', space=vmem, size = 0x1000, scoped, tag = 'scoped mem for input reshape']
    %s3 = sshllo.u32 0, 4
    %v4 = vld [vmem:[%s0] sm:%s3]
    %5 = vst [vmem:[#allocation1] sm:%s3] %v4
    %v6 = vld [vmem:[#allocation1] sm:$0x1]
    %vm7 = vcmask 64512
    %8 = vst.msk [vmem:[#allocation0] sm:$0x1] %vm7, %v6
    %s9 = scalar_lea.vmem [#allocation1], 3
    %v10 = vld [vmem:[%s9] sm:$0x1]
    %11 = vrot.lane.b32.xlu0 %v10, 24
    %v12 = vpop.permute.xlu0 %11
    %vm13 = vcmask 261312
    %14 = vst.msk [vmem:[#allocation0] sm:$0x1] %vm13, %v12
    %s15 = scalar_lea.vmem [#allocation1], 2
    %v16 = vld [vmem:[%s15] sm:$0x1]
    %17 = vrot.lane.b32.xlu0 %v16, 16
    %v18 = vpop.permute.xlu0 %17
    %vm19 = vcmask 195712
    %20 = vst.msk [vmem:[#allocation0] sm:$0x1] %vm19, %v18
    %s21 = scalar_lea.vmem [#allocation1], 1
    %v22 = vld [vmem:[%s21] sm:$0x1]
    %23 = vrot.lane.b32.xlu0 %v22, 8
    %v24 = vpop.permute.xlu0 %23
    %vm25 = vcmask 130112
    %26 = vst.msk [vmem:[#allocation0] sm:$0x1] %vm25, %v24
    %s28 = sshllo.u32 0, 1
    %v30 = vld [vmem:[#allocation0] sm:%s28]
    %s31 = sshllo.u32 0, 1
    %32 = vst [vmem:[%s1] sm:%s31] %v30

// kernel: generator_forward.10
$region0: #{generator_forward.10}
  #allocation0 [shape = 'u32[]', space=smem, size = 0x4, offset = 0x4, fixed_abs, tag = 'smem constant byte address 0x4 - core index']
  #allocation1 [shape = 'u32[144,128]{1,0:T(1,128)}', space=vmem, size = 0x12000, scoped, tag = 'internal scratch']
  %s0 = inlined_call_operand.vmem [shape: bf16[2048,144], index: 0, kind: input, shape index: {}]
  %s1 = inlined_call_operand.vmem [shape: bf16[144,32], index: 1, kind: input, shape index: {}]
  %s2 = inlined_call_operand.vmem [shape: f32[1,32], index: 2, kind: input, shape index: {}]
  %s3 = inlined_call_operand.vmem [shape: f32[1,32], index: 3, kind: input, shape index: {}]
  %s4 = inlined_call_operand.vmem [shape: bf16[2048,32], index: 4, kind: output, shape index: {}]
  %s5 = sld [smem:[#allocation0]]
  $region49: #{generator_forward.10} parent=0
    _
  %s7 = ssub.s32 1, %s5
  %s8 = scalar_select 0, %s7, %s5
  loop: start=0, step=1, limit=6
  $region2: #{generator_forward.10} parent=0 // loop_pre_header
    _
  $region3: #{generator_forward.10} parent=0 // loop_header
    %s10 = sphi 0, %s14
    %p11 = scmp.ge.s32.totalorder %s10, 6
    %s20 = sphi 0, %s22
    %s23 = sphi 0, %s20
    %s24 = sphi 0, %s23
    %s40 = sphi 0, %s24
    %s44 = sphi 0, %s44
    %s46 = sphi 0, %s44
    %s47 = sphi 0, %s46
    %s61 = sphi 0, %s47
    %s65 = sphi 0, %s65
    %s67 = sphi 0, %s65
    %s68 = sphi 0, %s67
    %s82 = sphi 0, %s68
    %s86 = sphi 0, %s86
    %s88 = sphi 0, %s86
    %s89 = sphi 0, %s88
    %s103 = sphi 0, %s89
    %s109 = sphi 0, %s111
    %s112 = sphi 0, %s109
    %s113 = sphi 0, %s112
    %s129 = sphi 0, %s113
  $region4: #{generator_forward.10} parent=0 // loop_header_branch
    %13 = sbr.rel (%p11) target = $region8
  $region5: #{generator_forward.10} parent=0 // loop_body
    %s15 = ssub.s32 %s10, 1
    %s16 = ssub.s32 %s10, 2
    %s17 = sadd.s32 %s10, 1
    %s18 = ssub.s32 %s10, %s17
    %p19 = scmp.eq.s32.totalorder %s18, 0
    %s21 = sadd.s32 %s20, 1
    %s22 = scalar_select %p19, %s20, %s21
    %p25 = pneg %p19
    %p26 = scmp.eq.s32.totalorder %s10, 3
    %p27 = por %p25, %p26
    %p28 = scmp.ne.s32.totalorder %s20, %s23
    %p29 = scmp.eq.s32.totalorder %s10, 0
    %p30 = por %p28, %p29
    %p31 = scmp.ne.s32.totalorder %s20, %s23
    %p32 = scmp.eq.s32.totalorder %s15, 3
    %p33 = por %p31, %p32
    %p34 = scmp.ne.s32.totalorder %s23, %s24
    %p35 = scmp.eq.s32.totalorder %s15, 0
    %p36 = por %p34, %p35
    %p37 = scmp.ne.s32.totalorder %s23, %s24
    %p38 = scmp.eq.s32.totalorder %s16, 3
    %p39 = por %p37, %p38
    %p41 = scmp.ne.s32.totalorder %s24, %s40
    %p42 = scmp.eq.s32.totalorder %s16, 0
    %p43 = por %p41, %p42
    %s45 = sadd.s32 %s44, 1
    %p48 = scmp.eq.s32.totalorder %s10, 3
    %p49 = scmp.ne.s32.totalorder %s44, %s46
    %p50 = scmp.eq.s32.totalorder %s10, 0
    %p51 = por %p49, %p50
    %p52 = scmp.ne.s32.totalorder %s44, %s46
    %p53 = scmp.eq.s32.totalorder %s15, 3
    %p54 = por %p52, %p53
    %p55 = scmp.ne.s32.totalorder %s46, %s47
    %p56 = scmp.eq.s32.totalorder %s15, 0
    %p57 = por %p55, %p56
    %p58 = scmp.ne.s32.totalorder %s46, %s47
    %p59 = scmp.eq.s32.totalorder %s16, 3
    %p60 = por %p58, %p59
    %p62 = scmp.ne.s32.totalorder %s47, %s61
    %p63 = scmp.eq.s32.totalorder %s16, 0
    %p64 = por %p62, %p63
    %s66 = sadd.s32 %s65, 1
    %p69 = scmp.eq.s32.totalorder %s10, 3
    %p70 = scmp.ne.s32.totalorder %s65, %s67
    %p71 = scmp.eq.s32.totalorder %s10, 0
    %p72 = por %p70, %p71
    %p73 = scmp.ne.s32.totalorder %s65, %s67
    %p74 = scmp.eq.s32.totalorder %s15, 3
    %p75 = por %p73, %p74
    %p76 = scmp.ne.s32.totalorder %s67, %s68
    %p77 = scmp.eq.s32.totalorder %s15, 0
    %p78 = por %p76, %p77
    %p79 = scmp.ne.s32.totalorder %s67, %s68
    %p80 = scmp.eq.s32.totalorder %s16, 3
    %p81 = por %p79, %p80
    %p83 = scmp.ne.s32.totalorder %s68, %s82
    %p84 = scmp.eq.s32.totalorder %s16, 0
    %p85 = por %p83, %p84
    %s87 = sadd.s32 %s86, 1
    %p90 = scmp.eq.s32.totalorder %s10, 3
    %p91 = scmp.ne.s32.totalorder %s86, %s88
    %p92 = scmp.eq.s32.totalorder %s10, 0
    %p93 = por %p91, %p92
    %p94 = scmp.ne.s32.totalorder %s86, %s88
    %p95 = scmp.eq.s32.totalorder %s15, 3
    %p96 = por %p94, %p95
    %p97 = scmp.ne.s32.totalorder %s88, %s89
    %p98 = scmp.eq.s32.totalorder %s15, 0
    %p99 = por %p97, %p98
    %p100 = scmp.ne.s32.totalorder %s88, %s89
    %p101 = scmp.eq.s32.totalorder %s16, 3
    %p102 = por %p100, %p101
    %p104 = scmp.ne.s32.totalorder %s89, %s103
    %p105 = scmp.eq.s32.totalorder %s16, 0
    %p106 = por %p104, %p105
    %s107 = ssub.s32 %s10, %s17
    %p108 = scmp.eq.s32.totalorder %s107, 0
    %s110 = sadd.s32 %s109, 1
    %s111 = scalar_select %p108, %s109, %s110
    %p114 = pneg %p108
    %p115 = scmp.eq.s32.totalorder %s10, 3
    %p116 = por %p114, %p115
    %p117 = scmp.ne.s32.totalorder %s109, %s112
    %p118 = scmp.eq.s32.totalorder %s10, 0
    %p119 = por %p117, %p118
    %p120 = scmp.ne.s32.totalorder %s109, %s112
    %p121 = scmp.eq.s32.totalorder %s15, 3
    %p122 = por %p120, %p121
    %p123 = scmp.ne.s32.totalorder %s112, %s113
    %p124 = scmp.eq.s32.totalorder %s15, 0
    %p125 = por %p123, %p124
    %p126 = scmp.ne.s32.totalorder %s112, %s113
    %p127 = scmp.eq.s32.totalorder %s16, 3
    %p128 = por %p126, %p127
    %p130 = scmp.ne.s32.totalorder %s113, %s129
    %p131 = scmp.eq.s32.totalorder %s16, 0
    %p132 = por %p130, %p131
    %p133 = scmp.le.s32.totalorder 1, %s10
    %p134 = scmp.lt.s32.totalorder %s10, 5
    %p135 = pnand %p133, %p134
    %p136 = pneg %p135
    // Predicated region
    $region9: #{generator_forward.10} parent=5 // pred_check
      _
    $region10: #{generator_forward.10} parent=5 // pred_check_branch
      %138 = sbr.rel (%p135) target = $region12
    $region11: #{generator_forward.10} parent=5 // pred_region
      %s139 = ssub.s32 %s10, 1
      // Predicated region
      $region13: #{generator_forward.10} parent=11 // pred_check
        %p140 = pneg %p57
      $region14: #{generator_forward.10} parent=11 // pred_check_branch
        %142 = sbr.rel (%p140) target = $region16
      $region15: #{generator_forward.10} parent=11 // pred_region
        _
      $region16: #{generator_forward.10} parent=11 // pred_fallthru
        _
      // Predicated region
      $region17: #{generator_forward.10} parent=11 // pred_check
        %p143 = pneg %p78
      $region18: #{generator_forward.10} parent=11 // pred_check_branch
        %145 = sbr.rel (%p143) target = $region20
      $region19: #{generator_forward.10} parent=11 // pred_region
        _
      $region20: #{generator_forward.10} parent=11 // pred_fallthru
        _
      // Predicated region
      $region21: #{generator_forward.10} parent=11 // pred_check
        %p146 = pneg %p99
      $region22: #{generator_forward.10} parent=11 // pred_check_branch
        %148 = sbr.rel (%p146) target = $region24
      $region23: #{generator_forward.10} parent=11 // pred_region
        _
      $region24: #{generator_forward.10} parent=11 // pred_fallthru
        _
    $region12: #{generator_forward.10} parent=5 // pred_fallthru
      _
    %p149 = scmp.lt.s32.totalorder %s10, 4
    // Predicated region
    $region25: #{generator_forward.10} parent=5 // pred_check
      %p150 = pneg %p149
    $region26: #{generator_forward.10} parent=5 // pred_check_branch
      %152 = sbr.rel (%p150) target = $region28
    $region27: #{generator_forward.10} parent=5 // pred_region
      // Predicated region
      $region29: #{generator_forward.10} parent=27 // pred_check
        %p153 = pneg %p30
      $region30: #{generator_forward.10} parent=27 // pred_check_branch
        %155 = sbr.rel (%p153) target = $region32
      $region31: #{generator_forward.10} parent=27 // pred_region
        %s156 = smul.u32 64, %s10
        %p157 = scmp.lt.s32.totalorder %s156, 255
        %s158 = scalar_select %p157, %s156, 255
        %s159 = smul.addr %s158, 2
        %s160 = smul.addr %s159, 4
        %s161 = scalar_lea.vmem %s0, %s160
        %s162 = smul.u32 64, %s10
      $region32: #{generator_forward.10} parent=27 // pred_fallthru
        _
    $region28: #{generator_forward.10} parent=5 // pred_fallthru
      _
    %p163 = scmp.le.s32.totalorder 1, %s10
    %p164 = scmp.lt.s32.totalorder %s10, 5
    %p165 = pnand %p163, %p164
    %p166 = pneg %p165
    // Predicated region
    $region33: #{generator_forward.10} parent=5 // pred_check
      _
    $region34: #{generator_forward.10} parent=5 // pred_check_branch
      %168 = sbr.rel (%p165) target = $region36
    $region35: #{generator_forward.10} parent=5 // pred_region
      %s169 = ssub.s32 %s10, 1
      %s170 = smul.u32 64, %s15
      %p171 = scmp.lt.s32.totalorder %s170, 255
      %s172 = scalar_select %p171, %s170, 255
      %s173 = smul.addr %s172, 2
      %s174 = smul.addr %s173, 4
      %s175 = scalar_lea.vmem %s0, %s174
      %p176 = pneg %p36
      %p177 = pneg %p33
      %p178 = pneg %p57
      %p179 = pneg %p54
      %p180 = pneg %p78
      %p181 = pneg %p75
      %p182 = pneg %p99
      %p183 = pneg %p96
      %p184 = pneg %p125
      %p185 = pneg %p122
      %s186 = smul.u32 64, %s15
      %p187 = scmp.lt.s32.totalorder %s186, 255
      %s188 = scalar_select %p187, %s186, 255
      %s189 = smul.addr %s188, 4
      %s190 = scalar_lea.vmem %s4, %s189
      %s191 = smul.u32 64, %s15
      %p192 = scmp.lt.s32.totalorder %s191, 255
      %s193 = scalar_select %p192, %s191, 255
      %s194 = smul.addr %s193, 2
      %s195 = smul.addr %s194, 4
      %s196 = scalar_lea.vmem %s0, %s195
      %s197 = smul.u32 64, %s15
      %s198 = smul.u32 64, %s15
      %p199 = scmp.lt.s32.totalorder %s198, 255
      %s200 = scalar_select %p199, %s198, 255
      %s201 = smul.addr %s200, 4
      %s202 = scalar_lea.vmem %s4, %s201
      %s203 = smul.u32 64, %s15
      %v205 = vld [vmem:[%s196] sm:$0xff]
      %v206 = vld [vmem:[%s196 + $0x8] sm:$0xff]
      %v207 = vld [vmem:[%s196 + $0x10] sm:$0xff]
      %v208 = vld [vmem:[%s196 + $0x18] sm:$0xff]
      %v209 = vld [vmem:[%s196 + $0x20] sm:$0xff]
      %v210 = vld [vmem:[%s196 + $0x28] sm:$0xff]
      %v211 = vld [vmem:[%s196 + $0x30] sm:$0xff]
      %v212 = vld [vmem:[%s196 + $0x38] sm:$0xff]
      %v213 = vld [vmem:[%s196 + $0x40] sm:$0xff]
      %v214 = vld [vmem:[%s196 + $0x48] sm:$0xff]
      %v215 = vld [vmem:[%s196 + $0x50] sm:$0xff]
      %v216 = vld [vmem:[%s196 + $0x58] sm:$0xff]
      %v217 = vld [vmem:[%s196 + $0x60] sm:$0xff]
      %v218 = vld [vmem:[%s196 + $0x68] sm:$0xff]
      %v219 = vld [vmem:[%s196 + $0x70] sm:$0xff]
      %v220 = vld [vmem:[%s196 + $0x78] sm:$0xff]
      %v221 = vld [vmem:[%s196 + $0x80] sm:$0xff]
      %v222 = vld [vmem:[%s196 + $0x88] sm:$0xff]
      %v223 = vld [vmem:[%s196 + $0x90] sm:$0xff]
      %v224 = vld [vmem:[%s196 + $0x98] sm:$0xff]
      %v225 = vld [vmem:[%s196 + $0xa0] sm:$0xff]
      %v226 = vld [vmem:[%s196 + $0xa8] sm:$0xff]
      %v227 = vld [vmem:[%s196 + $0xb0] sm:$0xff]
      %v228 = vld [vmem:[%s196 + $0xb8] sm:$0xff]
      %v229 = vld [vmem:[%s196 + $0xc0] sm:$0xff]
      %v230 = vld [vmem:[%s196 + $0xc8] sm:$0xff]
      %v231 = vld [vmem:[%s196 + $0xd0] sm:$0xff]
      %v232 = vld [vmem:[%s196 + $0xd8] sm:$0xff]
      %v233 = vld [vmem:[%s196 + $0xe0] sm:$0xff]
      %v234 = vld [vmem:[%s196 + $0xe8] sm:$0xff]
      %v235 = vld [vmem:[%s196 + $0xf0] sm:$0xff]
      %v236 = vld [vmem:[%s196 + $0xf8] sm:$0xff]
      %v237 = vld [vmem:[%s196 + $0x100] sm:$0xff]
      %v238 = vld [vmem:[%s196 + $0x108] sm:$0xff]
      %v239 = vld [vmem:[%s196 + $0x110] sm:$0xff]
      %v240 = vld [vmem:[%s196 + $0x118] sm:$0xff]
      %v241 = vld [vmem:[%s196 + $0x120] sm:$0xff]
      %v242 = vld [vmem:[%s196 + $0x128] sm:$0xff]
      %v243 = vld [vmem:[%s196 + $0x130] sm:$0xff]
      %v244 = vld [vmem:[%s196 + $0x138] sm:$0xff]
      %v245 = vld [vmem:[%s196 + $0x140] sm:$0xff]
      %v246 = vld [vmem:[%s196 + $0x148] sm:$0xff]
      %v247 = vld [vmem:[%s196 + $0x150] sm:$0xff]
      %v248 = vld [vmem:[%s196 + $0x158] sm:$0xff]
      %v249 = vld [vmem:[%s196 + $0x160] sm:$0xff]
      %v250 = vld [vmem:[%s196 + $0x168] sm:$0xff]
      %v251 = vld [vmem:[%s196 + $0x170] sm:$0xff]
      %v252 = vld [vmem:[%s196 + $0x178] sm:$0xff]
      %v253 = vld [vmem:[%s196 + $0x180] sm:$0xff]
      %v254 = vld [vmem:[%s196 + $0x188] sm:$0xff]
      %v255 = vld [vmem:[%s196 + $0x190] sm:$0xff]
      %v256 = vld [vmem:[%s196 + $0x198] sm:$0xff]
      %v257 = vld [vmem:[%s196 + $0x1a0] sm:$0xff]
      %v258 = vld [vmem:[%s196 + $0x1a8] sm:$0xff]
      %v259 = vld [vmem:[%s196 + $0x1b0] sm:$0xff]
      %v260 = vld [vmem:[%s196 + $0x1b8] sm:$0xff]
      %v261 = vld [vmem:[%s196 + $0x1c0] sm:$0xff]
      %v262 = vld [vmem:[%s196 + $0x1c8] sm:$0xff]
      %v263 = vld [vmem:[%s196 + $0x1d0] sm:$0xff]
      %v264 = vld [vmem:[%s196 + $0x1d8] sm:$0xff]
      %v265 = vld [vmem:[%s196 + $0x1e0] sm:$0xff]
      %v266 = vld [vmem:[%s196 + $0x1e8] sm:$0xff]
      %v267 = vld [vmem:[%s196 + $0x1f0] sm:$0xff]
      %v268 = vld [vmem:[%s196 + $0x1f8] sm:$0xff]
      %v269 = vld [vmem:[%s1] sm:$0xf]
      %v270 = vld [vmem:[%s1 + $0x4] sm:$0xf]
      %v271 = vld [vmem:[%s1 + $0x8] sm:$0xf]
      %v272 = vld [vmem:[%s1 + $0xc] sm:$0xf]
      %v273 = vld [vmem:[%s1 + $0x10] sm:$0xf]
      %v274 = vld [vmem:[%s1 + $0x14] sm:$0xf]
      %v275 = vld [vmem:[%s1 + $0x18] sm:$0xf]
      %v276 = vld [vmem:[%s1 + $0x1c] sm:$0xf]
      %v277 = vld [vmem:[%s1 + $0x20] sm:$0xf]
      %v278 = vld [vmem:[%s1 + $0x24] sm:$0xf]
      %v279 = vld [vmem:[%s1 + $0x28] sm:$0xf]
      %v280 = vld [vmem:[%s1 + $0x2c] sm:$0xf]
      %v281 = vld [vmem:[%s1 + $0x30] sm:$0xf]
      %v282 = vld [vmem:[%s1 + $0x34] sm:$0xf]
      %v283 = vld [vmem:[%s1 + $0x38] sm:$0xf]
      %v284 = vld [vmem:[%s1 + $0x3c] sm:$0xf]
      %v285 = vld [vmem:[%s1 + $0x40] sm:$0xf]
      %v286 = vld [vmem:[%s1 + $0x44] sm:$0xf]
      %v287 = vld [vmem:[%s2] sm:$0x1]
      %v289 = vlaneseq
      %v290 = vshrl.u32 %v289, 7
      %v291 = vsub.s32 0, %v290
      %v292 = vrot.slane %v287, %v291
      %v358 = vunpack.c.l.b16 %v205
      %v359 = vunpack.c.h.b16 %v205
      %v360 = vunpack.c.l.b16 %v206
      %v361 = vunpack.c.h.b16 %v206
      %v362 = vunpack.c.l.b16 %v207
      %v363 = vunpack.c.h.b16 %v207
      %v364 = vunpack.c.l.b16 %v208
      %v365 = vunpack.c.h.b16 %v208
      %v366 = vunpack.c.l.b16 %v209
      %v367 = vunpack.c.h.b16 %v209
      %v368 = vunpack.c.l.b16 %v210
      %v369 = vunpack.c.h.b16 %v210
      %v370 = vunpack.c.l.b16 %v211
      %v371 = vunpack.c.h.b16 %v211
      %v372 = vunpack.c.l.b16 %v212
      %v373 = vunpack.c.h.b16 %v212
      %v374 = vunpack.c.l.b16 %v213
      %v375 = vunpack.c.h.b16 %v213
      %v376 = vunpack.c.l.b16 %v214
      %v377 = vunpack.c.h.b16 %v214
      %v378 = vunpack.c.l.b16 %v215
      %v379 = vunpack.c.h.b16 %v215
      %v380 = vunpack.c.l.b16 %v216
      %v381 = vunpack.c.h.b16 %v216
      %v382 = vunpack.c.l.b16 %v217
      %v383 = vunpack.c.h.b16 %v217
      %v384 = vunpack.c.l.b16 %v218
      %v385 = vunpack.c.h.b16 %v218
      %v386 = vunpack.c.l.b16 %v219
      %v387 = vunpack.c.h.b16 %v219
      %v388 = vunpack.c.l.b16 %v220
      %v389 = vunpack.c.h.b16 %v220
      %v390 = vunpack.c.l.b16 %v221
      %v391 = vunpack.c.h.b16 %v221
      %v392 = vunpack.c.l.b16 %v222
      %v393 = vunpack.c.h.b16 %v222
      %v394 = vunpack.c.l.b16 %v223
      %v395 = vunpack.c.h.b16 %v223
      %v396 = vunpack.c.l.b16 %v224
      %v397 = vunpack.c.h.b16 %v224
      %v398 = vunpack.c.l.b16 %v225
      %v399 = vunpack.c.h.b16 %v225
      %v400 = vunpack.c.l.b16 %v226
      %v401 = vunpack.c.h.b16 %v226
      %v402 = vunpack.c.l.b16 %v227
      %v403 = vunpack.c.h.b16 %v227
      %v404 = vunpack.c.l.b16 %v228
      %v405 = vunpack.c.h.b16 %v228
      %v406 = vunpack.c.l.b16 %v229
      %v407 = vunpack.c.h.b16 %v229
      %v408 = vunpack.c.l.b16 %v230
      %v409 = vunpack.c.h.b16 %v230
      %v410 = vunpack.c.l.b16 %v231
      %v411 = vunpack.c.h.b16 %v231
      %v412 = vunpack.c.l.b16 %v232
      %v413 = vunpack.c.h.b16 %v232
      %v414 = vunpack.c.l.b16 %v233
      %v415 = vunpack.c.h.b16 %v233
      %v416 = vunpack.c.l.b16 %v234
      %v417 = vunpack.c.h.b16 %v234
      %v418 = vunpack.c.l.b16 %v235
      %v419 = vunpack.c.h.b16 %v235
      %v420 = vunpack.c.l.b16 %v236
      %v421 = vunpack.c.h.b16 %v236
      %v422 = vunpack.c.l.b16 %v237
      %v423 = vunpack.c.h.b16 %v237
      %v424 = vunpack.c.l.b16 %v238
      %v425 = vunpack.c.h.b16 %v238
      %v426 = vunpack.c.l.b16 %v239
      %v427 = vunpack.c.h.b16 %v239
      %v428 = vunpack.c.l.b16 %v240
      %v429 = vunpack.c.h.b16 %v240
      %v430 = vunpack.c.l.b16 %v241
      %v431 = vunpack.c.h.b16 %v241
      %v432 = vunpack.c.l.b16 %v242
      %v433 = vunpack.c.h.b16 %v242
      %v434 = vunpack.c.l.b16 %v243
      %v435 = vunpack.c.h.b16 %v243
      %v436 = vunpack.c.l.b16 %v244
      %v437 = vunpack.c.h.b16 %v244
      %v438 = vunpack.c.l.b16 %v245
      %v439 = vunpack.c.h.b16 %v245
      %v440 = vunpack.c.l.b16 %v246
      %v441 = vunpack.c.h.b16 %v246
      %v442 = vunpack.c.l.b16 %v247
      %v443 = vunpack.c.h.b16 %v247
      %v444 = vunpack.c.l.b16 %v248
      %v445 = vunpack.c.h.b16 %v248
      %v446 = vunpack.c.l.b16 %v249
      %v447 = vunpack.c.h.b16 %v249
      %v448 = vunpack.c.l.b16 %v250
      %v449 = vunpack.c.h.b16 %v250
      %v450 = vunpack.c.l.b16 %v251
      %v451 = vunpack.c.h.b16 %v251
      %v452 = vunpack.c.l.b16 %v252
      %v453 = vunpack.c.h.b16 %v252
      %v454 = vunpack.c.l.b16 %v253
      %v455 = vunpack.c.h.b16 %v253
      %v456 = vunpack.c.l.b16 %v254
      %v457 = vunpack.c.h.b16 %v254
      %v458 = vunpack.c.l.b16 %v255
      %v459 = vunpack.c.h.b16 %v255
      %v460 = vunpack.c.l.b16 %v256
      %v461 = vunpack.c.h.b16 %v256
      %v462 = vunpack.c.l.b16 %v257
      %v463 = vunpack.c.h.b16 %v257
      %v464 = vunpack.c.l.b16 %v258
      %v465 = vunpack.c.h.b16 %v258
      %v466 = vunpack.c.l.b16 %v259
      %v467 = vunpack.c.h.b16 %v259
      %v468 = vunpack.c.l.b16 %v260
      %v469 = vunpack.c.h.b16 %v260
      %v470 = vunpack.c.l.b16 %v261
      %v471 = vunpack.c.h.b16 %v261
      %v472 = vunpack.c.l.b16 %v262
      %v473 = vunpack.c.h.b16 %v262
      %v474 = vunpack.c.l.b16 %v263
      %v475 = vunpack.c.h.b16 %v263
      %v476 = vunpack.c.l.b16 %v264
      %v477 = vunpack.c.h.b16 %v264
      %v478 = vunpack.c.l.b16 %v265
      %v479 = vunpack.c.h.b16 %v265
      %v480 = vunpack.c.l.b16 %v266
      %v481 = vunpack.c.h.b16 %v266
      %v482 = vunpack.c.l.b16 %v267
      %v483 = vunpack.c.h.b16 %v267
      %v484 = vunpack.c.l.b16 %v268
      %v485 = vunpack.c.h.b16 %v268
      %v486 = vpack.c.b16 %v360, %v358
      %v487 = vpack.c.b16 %v361, %v359
      %v488 = vpack.c.b16 %v364, %v362
      %v489 = vpack.c.b16 %v365, %v363
      %v490 = vpack.c.b16 %v368, %v366
      %v491 = vpack.c.b16 %v369, %v367
      %v492 = vpack.c.b16 %v372, %v370
      %v493 = vpack.c.b16 %v373, %v371
      %v494 = vpack.c.b16 %v376, %v374
      %v495 = vpack.c.b16 %v377, %v375
      %v496 = vpack.c.b16 %v380, %v378
      %v497 = vpack.c.b16 %v381, %v379
      %v498 = vpack.c.b16 %v384, %v382
      %v499 = vpack.c.b16 %v385, %v383
      %v500 = vpack.c.b16 %v388, %v386
      %v501 = vpack.c.b16 %v389, %v387
      %v502 = vpack.c.b16 %v392, %v390
      %v503 = vpack.c.b16 %v393, %v391
      %v504 = vpack.c.b16 %v396, %v394
      %v505 = vpack.c.b16 %v397, %v395
      %v506 = vpack.c.b16 %v400, %v398
      %v507 = vpack.c.b16 %v401, %v399
      %v508 = vpack.c.b16 %v404, %v402
      %v509 = vpack.c.b16 %v405, %v403
      %v510 = vpack.c.b16 %v408, %v406
      %v511 = vpack.c.b16 %v409, %v407
      %v512 = vpack.c.b16 %v412, %v410
      %v513 = vpack.c.b16 %v413, %v411
      %v514 = vpack.c.b16 %v416, %v414
      %v515 = vpack.c.b16 %v417, %v415
      %v516 = vpack.c.b16 %v420, %v418
      %v517 = vpack.c.b16 %v421, %v419
      %v518 = vpack.c.b16 %v424, %v422
      %v519 = vpack.c.b16 %v425, %v423
      %v520 = vpack.c.b16 %v428, %v426
      %v521 = vpack.c.b16 %v429, %v427
      %v522 = vpack.c.b16 %v432, %v430
      %v523 = vpack.c.b16 %v433, %v431
      %v524 = vpack.c.b16 %v436, %v434
      %v525 = vpack.c.b16 %v437, %v435
      %v526 = vpack.c.b16 %v440, %v438
      %v527 = vpack.c.b16 %v441, %v439
      %v528 = vpack.c.b16 %v444, %v442
      %v529 = vpack.c.b16 %v445, %v443
      %v530 = vpack.c.b16 %v448, %v446
      %v531 = vpack.c.b16 %v449, %v447
      %v532 = vpack.c.b16 %v452, %v450
      %v533 = vpack.c.b16 %v453, %v451
      %v534 = vpack.c.b16 %v456, %v454
      %v535 = vpack.c.b16 %v457, %v455
      %v536 = vpack.c.b16 %v460, %v458
      %v537 = vpack.c.b16 %v461, %v459
      %v538 = vpack.c.b16 %v464, %v462
      %v539 = vpack.c.b16 %v465, %v463
      %v540 = vpack.c.b16 %v468, %v466
      %v541 = vpack.c.b16 %v469, %v467
      %v542 = vpack.c.b16 %v472, %v470
      %v543 = vpack.c.b16 %v473, %v471
      %v544 = vpack.c.b16 %v476, %v474
      %v545 = vpack.c.b16 %v477, %v475
      %v546 = vpack.c.b16 %v480, %v478
      %v547 = vpack.c.b16 %v481, %v479
      %v548 = vpack.c.b16 %v484, %v482
      %v549 = vpack.c.b16 %v485, %v483
      %v600 = vunpack.c.l.b16 %v269
      %v601 = vunpack.c.l.b16 %v270
      %v602 = vunpack.c.l.b16 %v271
      %v603 = vunpack.c.l.b16 %v272
      %v604 = vunpack.c.l.b16 %v273
      %v605 = vunpack.c.l.b16 %v274
      %v606 = vunpack.c.l.b16 %v275
      %v607 = vunpack.c.l.b16 %v276
      %v608 = vunpack.c.l.b16 %v277
      %v609 = vunpack.c.l.b16 %v278
      %v610 = vunpack.c.l.b16 %v279
      %v611 = vunpack.c.l.b16 %v280
      %v612 = vunpack.c.l.b16 %v281
      %v613 = vunpack.c.l.b16 %v282
      %v614 = vunpack.c.l.b16 %v283
      %v615 = vunpack.c.l.b16 %v284
      %v616 = vunpack.c.l.b16 %v285
      %v617 = vunpack.c.l.b16 %v286
      %v618 = vpack.c.b16 %v601, %v600
      %v619 = vpack.c.b16 %v603, %v602
      %v620 = vpack.c.b16 %v605, %v604
      %v621 = vpack.c.b16 %v607, %v606
      %v622 = vpack.c.b16 %v609, %v608
      %v623 = vpack.c.b16 %v611, %v610
      %v624 = vpack.c.b16 %v613, %v612
      %v625 = vpack.c.b16 %v615, %v614
      %v626 = vpack.c.b16 %v617, %v616
      %vm636 = vcmask 130048
      %v638 = vsel %vm636, %v487, 0
      %v641 = vsel %vm636, %v489, 0
      %v644 = vsel %vm636, %v491, 0
      %v647 = vsel %vm636, %v493, 0
      %v650 = vsel %vm636, %v495, 0
      %v653 = vsel %vm636, %v497, 0
      %v656 = vsel %vm636, %v499, 0
      %v659 = vsel %vm636, %v501, 0
      %v662 = vsel %vm636, %v503, 0
      %v665 = vsel %vm636, %v505, 0
      %v668 = vsel %vm636, %v507, 0
      %v671 = vsel %vm636, %v509, 0
      %v674 = vsel %vm636, %v511, 0
      %v677 = vsel %vm636, %v513, 0
      %v680 = vsel %vm636, %v515, 0
      %v683 = vsel %vm636, %v517, 0
      %v686 = vsel %vm636, %v519, 0
      %v689 = vsel %vm636, %v521, 0
      %v692 = vsel %vm636, %v523, 0
      %v695 = vsel %vm636, %v525, 0
      %v698 = vsel %vm636, %v527, 0
      %v701 = vsel %vm636, %v529, 0
      %v704 = vsel %vm636, %v531, 0
      %v707 = vsel %vm636, %v533, 0
      %v710 = vsel %vm636, %v535, 0
      %v713 = vsel %vm636, %v537, 0
      %v716 = vsel %vm636, %v539, 0
      %v719 = vsel %vm636, %v541, 0
      %v722 = vsel %vm636, %v543, 0
      %v725 = vsel %vm636, %v545, 0
      %v728 = vsel %vm636, %v547, 0
      %v731 = vsel %vm636, %v549, 0
      %733 = vmatprep.subr.bf16.mxu0 0
      %734 = vmatpush1.bf16.msra.mxu0 %v618
      %735 = vmatprep.subr.bf16.mxu0 0
      %736 = vmatpush1.bf16.msra.mxu0 %v619
      %737 = vmatprep.subr.bf16.mxu0 0
      %738 = vmatpush1.bf16.msra.mxu0 %v620
      %739 = vmatprep.subr.bf16.mxu0 0
      %740 = vmatpush1.bf16.msra.mxu0 %v621
      %741 = vmatprep.subr.bf16.mxu0 0
      %742 = vmatpush1.bf16.msra.mxu0 %v622
      %743 = vmatprep.subr.bf16.mxu0 0
      %744 = vmatpush1.bf16.msra.mxu0 %v623
      %745 = vmatprep.subr.bf16.mxu0 0
      %746 = vmatpush1.bf16.msra.mxu0 %v624
      %747 = vmatprep.subr.bf16.mxu0 0
      %748 = vmatpush1.bf16.msra.mxu0 %v625
      %749 = vmatprep.subr.bf16.mxu0 0
      %750 = vmatpush1.bf16.msra.mxu0 %v626
      %751 = vmatprep.subr.bf16.mxu0 0
      %752 = vmatpush1.bf16.msra.mxu0 0
      %753 = vmatprep.subr.bf16.mxu0 0
      %754 = vmatpush1.bf16.msra.mxu0 0
      %755 = vmatprep.subr.bf16.mxu0 0
      %756 = vmatpush1.bf16.msra.mxu0 0
      %757 = vmatprep.subr.bf16.mxu0 0
      %758 = vmatpush1.bf16.msra.mxu0 0
      %759 = vmatprep.subr.bf16.mxu0 0
      %760 = vmatpush1.bf16.msra.mxu0 0
      %761 = vmatprep.subr.bf16.mxu0 0
      %762 = vmatpush1.bf16.msra.mxu0 0
      %763 = vmatprep.subr.bf16.mxu0 0
      %764 = vmatpush1.bf16.msra.mxu0 0
      %765 = vmatprep.mubr.bf16.mxu0 %v638
      %766 = vmatmul.mubr.bf16.gmra.mrb[0].mxu0 %v486
      %v767 = vpop.f32.mrb[0].mxu0
      %v768 = vadd.f32 %v292, %v767
      %v769 = vpop.f32.mrb[0].mxu0
      %v770 = vpop.f32.mrb[0].mxu0
      %v771 = vadd.f32 %v292, %v770
      %v772 = vpop.f32.mrb[0].mxu0
      %773 = vmatprep.mubr.bf16.mxu0 %v641
      %774 = vmatmul.mubr.bf16.gmra.mrb[0].mxu0 %v488
      %v775 = vpop.f32.mrb[0].mxu0
      %v776 = vadd.f32 %v292, %v775
      %v777 = vpop.f32.mrb[0].mxu0
      %v778 = vpop.f32.mrb[0].mxu0
      %v779 = vadd.f32 %v292, %v778
      %v780 = vpop.f32.mrb[0].mxu0
      %781 = vmatprep.mubr.bf16.mxu0 %v644
      %782 = vmatmul.mubr.bf16.gmra.mrb[0].mxu0 %v490
      %v783 = vpop.f32.mrb[0].mxu0
      %v784 = vadd.f32 %v292, %v783
      %v785 = vpop.f32.mrb[0].mxu0
      %v786 = vpop.f32.mrb[0].mxu0
      %v787 = vadd.f32 %v292, %v786
      %v788 = vpop.f32.mrb[0].mxu0
      %789 = vmatprep.mubr.bf16.mxu0 %v647
      %790 = vmatmul.mubr.bf16.gmra.mrb[0].mxu0 %v492
      %v791 = vpop.f32.mrb[0].mxu0
      %v792 = vadd.f32 %v292, %v791
      %v793 = vpop.f32.mrb[0].mxu0
      %v794 = vpop.f32.mrb[0].mxu0
      %v795 = vadd.f32 %v292, %v794
      %v796 = vpop.f32.mrb[0].mxu0
      %797 = vmatprep.mubr.bf16.mxu0 %v650
      %798 = vmatmul.mubr.bf16.gmra.mrb[0].mxu0 %v494
      %v799 = vpop.f32.mrb[0].mxu0
      %v800 = vadd.f32 %v292, %v799
      %v801 = vpop.f32.mrb[0].mxu0
      %v802 = vpop.f32.mrb[0].mxu0
      %v803 = vadd.f32 %v292, %v802
      %v804 = vpop.f32.mrb[0].mxu0
      %805 = vmatprep.mubr.bf16.mxu0 %v653
      %806 = vmatmul.mubr.bf16.gmra.mrb[0].mxu0 %v496
      %v807 = vpop.f32.mrb[0].mxu0
      %v808 = vadd.f32 %v292, %v807
      %v809 = vpop.f32.mrb[0].mxu0
      %v810 = vpop.f32.mrb[0].mxu0
      %v811 = vadd.f32 %v292, %v810
      %v812 = vpop.f32.mrb[0].mxu0
      %813 = vmatprep.mubr.bf16.mxu0 %v656
      %814 = vmatmul.mubr.bf16.gmra.mrb[0].mxu0 %v498
      %v815 = vpop.f32.mrb[0].mxu0
      %v816 = vadd.f32 %v292, %v815
      %v817 = vpop.f32.mrb[0].mxu0
      %v818 = vpop.f32.mrb[0].mxu0
      %v819 = vadd.f32 %v292, %v818
      %v820 = vpop.f32.mrb[0].mxu0
      %821 = vmatprep.mubr.bf16.mxu0 %v659
      %822 = vmatmul.mubr.bf16.gmra.mrb[0].mxu0 %v500
      %v823 = vpop.f32.mrb[0].mxu0
      %v824 = vadd.f32 %v292, %v823
      %v825 = vpop.f32.mrb[0].mxu0
      %v826 = vpop.f32.mrb[0].mxu0
      %v827 = vadd.f32 %v292, %v826
      %v828 = vpop.f32.mrb[0].mxu0
      %829 = vmatprep.mubr.bf16.mxu0 %v662
      %830 = vmatmul.mubr.bf16.gmra.mrb[0].mxu0 %v502
      %v831 = vpop.f32.mrb[0].mxu0
      %v832 = vadd.f32 %v292, %v831
      %v833 = vpop.f32.mrb[0].mxu0
      %v834 = vpop.f32.mrb[0].mxu0
      %v835 = vadd.f32 %v292, %v834
      %v836 = vpop.f32.mrb[0].mxu0
      %837 = vmatprep.mubr.bf16.mxu0 %v665
      %838 = vmatmul.mubr.bf16.gmra.mrb[0].mxu0 %v504
      %v839 = vpop.f32.mrb[0].mxu0
      %v840 = vadd.f32 %v292, %v839
      %v841 = vpop.f32.mrb[0].mxu0
      %v842 = vpop.f32.mrb[0].mxu0
      %v843 = vadd.f32 %v292, %v842
      %v844 = vpop.f32.mrb[0].mxu0
      %845 = vmatprep.mubr.bf16.mxu0 %v668
      %846 = vmatmul.mubr.bf16.gmra.mrb[0].mxu0 %v506
      %v847 = vpop.f32.mrb[0].mxu0
      %v848 = vadd.f32 %v292, %v847
      %v849 = vpop.f32.mrb[0].mxu0
      %v850 = vpop.f32.mrb[0].mxu0
      %v851 = vadd.f32 %v292, %v850
      %v852 = vpop.f32.mrb[0].mxu0
      %853 = vmatprep.mubr.bf16.mxu0 %v671
      %854 = vmatmul.mubr.bf16.gmra.mrb[0].mxu0 %v508
      %v855 = vpop.f32.mrb[0].mxu0
      %v856 = vadd.f32 %v292, %v855
      %v857 = vpop.f32.mrb[0].mxu0
      %v858 = vpop.f32.mrb[0].mxu0
      %v859 = vadd.f32 %v292, %v858
      %v860 = vpop.f32.mrb[0].mxu0
      %861 = vmatprep.mubr.bf16.mxu0 %v674
      %862 = vmatmul.mubr.bf16.gmra.mrb[0].mxu0 %v510
      %v863 = vpop.f32.mrb[0].mxu0
      %v864 = vadd.f32 %v292, %v863
      %v865 = vpop.f32.mrb[0].mxu0
      %v866 = vpop.f32.mrb[0].mxu0
      %v867 = vadd.f32 %v292, %v866
      %v868 = vpop.f32.mrb[0].mxu0
      %869 = vmatprep.mubr.bf16.mxu0 %v677
      %870 = vmatmul.mubr.bf16.gmra.mrb[0].mxu0 %v512
      %v871 = vpop.f32.mrb[0].mxu0
      %v872 = vadd.f32 %v292, %v871
      %v873 = vpop.f32.mrb[0].mxu0
      %v874 = vpop.f32.mrb[0].mxu0
      %v875 = vadd.f32 %v292, %v874
      %v876 = vpop.f32.mrb[0].mxu0
      %877 = vmatprep.mubr.bf16.mxu0 %v680
      %878 = vmatmul.mubr.bf16.gmra.mrb[0].mxu0 %v514
      %v879 = vpop.f32.mrb[0].mxu0
      %v880 = vadd.f32 %v292, %v879
      %v881 = vpop.f32.mrb[0].mxu0
      %v882 = vpop.f32.mrb[0].mxu0
      %v883 = vadd.f32 %v292, %v882
      %v884 = vpop.f32.mrb[0].mxu0
      %885 = vmatprep.mubr.bf16.mxu0 %v683
      %886 = vmatmul.mubr.bf16.gmra.mrb[0].mxu0 %v516
      %v887 = vpop.f32.mrb[0].mxu0
      %v888 = vadd.f32 %v292, %v887
      %v889 = vpop.f32.mrb[0].mxu0
      %v890 = vpop.f32.mrb[0].mxu0
      %v891 = vadd.f32 %v292, %v890
      %v892 = vpop.f32.mrb[0].mxu0
      %893 = vmatprep.mubr.bf16.mxu0 %v686
      %894 = vmatmul.mubr.bf16.gmra.mrb[0].mxu0 %v518
      %v895 = vpop.f32.mrb[0].mxu0
      %v896 = vadd.f32 %v292, %v895
      %v897 = vpop.f32.mrb[0].mxu0
      %v898 = vpop.f32.mrb[0].mxu0
      %v899 = vadd.f32 %v292, %v898
      %v900 = vpop.f32.mrb[0].mxu0
      %901 = vmatprep.mubr.bf16.mxu0 %v689
      %902 = vmatmul.mubr.bf16.gmra.mrb[0].mxu0 %v520
      %v903 = vpop.f32.mrb[0].mxu0
      %v904 = vadd.f32 %v292, %v903
      %v905 = vpop.f32.mrb[0].mxu0
      %v906 = vpop.f32.mrb[0].mxu0
      %v907 = vadd.f32 %v292, %v906
      %v908 = vpop.f32.mrb[0].mxu0
      %909 = vmatprep.mubr.bf16.mxu0 %v692
      %910 = vmatmul.mubr.bf16.gmra.mrb[0].mxu0 %v522
      %v911 = vpop.f32.mrb[0].mxu0
      %v912 = vadd.f32 %v292, %v911
      %v913 = vpop.f32.mrb[0].mxu0
      %v914 = vpop.f32.mrb[0].mxu0
      %v915 = vadd.f32 %v292, %v914
      %v916 = vpop.f32.mrb[0].mxu0
      %917 = vmatprep.mubr.bf16.mxu0 %v695
      %918 = vmatmul.mubr.bf16.gmra.mrb[0].mxu0 %v524
      %v919 = vpop.f32.mrb[0].mxu0
      %v920 = vadd.f32 %v292, %v919
      %v921 = vpop.f32.mrb[0].mxu0
      %v922 = vpop.f32.mrb[0].mxu0
      %v923 = vadd.f32 %v292, %v922
      %v924 = vpop.f32.mrb[0].mxu0
      %925 = vmatprep.mubr.bf16.mxu0 %v698
      %926 = vmatmul.mubr.bf16.gmra.mrb[0].mxu0 %v526
      %v927 = vpop.f32.mrb[0].mxu0
      %v928 = vadd.f32 %v292, %v927
      %v929 = vpop.f32.mrb[0].mxu0
      %v930 = vpop.f32.mrb[0].mxu0
      %v931 = vadd.f32 %v292, %v930
      %v932 = vpop.f32.mrb[0].mxu0
      %933 = vmatprep.mubr.bf16.mxu0 %v701
      %934 = vmatmul.mubr.bf16.gmra.mrb[0].mxu0 %v528
      %v935 = vpop.f32.mrb[0].mxu0
      %v936 = vadd.f32 %v292, %v935
      %v937 = vpop.f32.mrb[0].mxu0
      %v938 = vpop.f32.mrb[0].mxu0
      %v939 = vadd.f32 %v292, %v938
      %v940 = vpop.f32.mrb[0].mxu0
      %941 = vmatprep.mubr.bf16.mxu0 %v704
      %942 = vmatmul.mubr.bf16.gmra.mrb[0].mxu0 %v530
      %v943 = vpop.f32.mrb[0].mxu0
      %v944 = vadd.f32 %v292, %v943
      %v945 = vpop.f32.mrb[0].mxu0
      %v946 = vpop.f32.mrb[0].mxu0
      %v947 = vadd.f32 %v292, %v946
      %v948 = vpop.f32.mrb[0].mxu0
      %949 = vmatprep.mubr.bf16.mxu0 %v707
      %950 = vmatmul.mubr.bf16.gmra.mrb[0].mxu0 %v532
      %v951 = vpop.f32.mrb[0].mxu0
      %v952 = vadd.f32 %v292, %v951
      %v953 = vpop.f32.mrb[0].mxu0
      %v954 = vpop.f32.mrb[0].mxu0
      %v955 = vadd.f32 %v292, %v954
      %v956 = vpop.f32.mrb[0].mxu0
      %957 = vmatprep.mubr.bf16.mxu0 %v710
      %958 = vmatmul.mubr.bf16.gmra.mrb[0].mxu0 %v534
      %v959 = vpop.f32.mrb[0].mxu0
      %v960 = vadd.f32 %v292, %v959
      %v961 = vpop.f32.mrb[0].mxu0
      %v962 = vpop.f32.mrb[0].mxu0
      %v963 = vadd.f32 %v292, %v962
      %v964 = vpop.f32.mrb[0].mxu0
      %965 = vmatprep.mubr.bf16.mxu0 %v713
      %966 = vmatmul.mubr.bf16.gmra.mrb[0].mxu0 %v536
      %v967 = vpop.f32.mrb[0].mxu0
      %v968 = vadd.f32 %v292, %v967
      %v969 = vpop.f32.mrb[0].mxu0
      %v970 = vpop.f32.mrb[0].mxu0
      %v971 = vadd.f32 %v292, %v970
      %v972 = vpop.f32.mrb[0].mxu0
      %973 = vmatprep.mubr.bf16.mxu0 %v716
      %974 = vmatmul.mubr.bf16.gmra.mrb[0].mxu0 %v538
      %v975 = vpop.f32.mrb[0].mxu0
      %v976 = vadd.f32 %v292, %v975
      %v977 = vpop.f32.mrb[0].mxu0
      %v978 = vpop.f32.mrb[0].mxu0
      %v979 = vadd.f32 %v292, %v978
      %v980 = vpop.f32.mrb[0].mxu0
      %981 = vmatprep.mubr.bf16.mxu0 %v719
      %982 = vmatmul.mubr.bf16.gmra.mrb[0].mxu0 %v540
      %v983 = vpop.f32.mrb[0].mxu0
      %v984 = vadd.f32 %v292, %v983
      %v985 = vpop.f32.mrb[0].mxu0
      %v986 = vpop.f32.mrb[0].mxu0
      %v987 = vadd.f32 %v292, %v986
      %v988 = vpop.f32.mrb[0].mxu0
      %989 = vmatprep.mubr.bf16.mxu0 %v722
      %990 = vmatmul.mubr.bf16.gmra.mrb[0].mxu0 %v542
      %v991 = vpop.f32.mrb[0].mxu0
      %v992 = vadd.f32 %v292, %v991
      %v993 = vpop.f32.mrb[0].mxu0
      %v994 = vpop.f32.mrb[0].mxu0
      %v995 = vadd.f32 %v292, %v994
      %v996 = vpop.f32.mrb[0].mxu0
      %997 = vmatprep.mubr.bf16.mxu0 %v725
      %998 = vmatmul.mubr.bf16.gmra.mrb[0].mxu0 %v544
      %v999 = vpop.f32.mrb[0].mxu0
      %v1000 = vadd.f32 %v292, %v999
      %v1001 = vpop.f32.mrb[0].mxu0
      %v1002 = vpop.f32.mrb[0].mxu0
      %v1003 = vadd.f32 %v292, %v1002
      %v1004 = vpop.f32.mrb[0].mxu0
      %1005 = vmatprep.mubr.bf16.mxu0 %v728
      %1006 = vmatmul.mubr.bf16.gmra.mrb[0].mxu0 %v546
      %v1007 = vpop.f32.mrb[0].mxu0
      %v1008 = vadd.f32 %v292, %v1007
      %v1009 = vpop.f32.mrb[0].mxu0
      %v1010 = vpop.f32.mrb[0].mxu0
      %v1011 = vadd.f32 %v292, %v1010
      %v1012 = vpop.f32.mrb[0].mxu0
      %1013 = vmatprep.mubr.bf16.mxu0 %v731
      %1014 = vmatmul.mubr.bf16.gmra.mrb[0].mxu0 %v548
      %v1015 = vpop.f32.mrb[0].mxu0
      %v1016 = vadd.f32 %v292, %v1015
      %v1017 = vpop.f32.mrb[0].mxu0
      %v1018 = vpop.f32.mrb[0].mxu0
      %v1019 = vadd.f32 %v292, %v1018
      %v1020 = vpop.f32.mrb[0].mxu0
      %1021 = vdwg.mxu0
      %v1022 = vmax.f32 %v768, 0.0
      %v1023 = vmax.f32 %v771, 0.0
      %v1024 = vmax.f32 %v776, 0.0
      %v1025 = vmax.f32 %v779, 0.0
      %v1026 = vmax.f32 %v784, 0.0
      %v1027 = vmax.f32 %v787, 0.0
      %v1028 = vmax.f32 %v792, 0.0
      %v1029 = vmax.f32 %v795, 0.0
      %v1030 = vmax.f32 %v800, 0.0
      %v1031 = vmax.f32 %v803, 0.0
      %v1032 = vmax.f32 %v808, 0.0
      %v1033 = vmax.f32 %v811, 0.0
      %v1034 = vmax.f32 %v816, 0.0
      %v1035 = vmax.f32 %v819, 0.0
      %v1036 = vmax.f32 %v824, 0.0
      %v1037 = vmax.f32 %v827, 0.0
      %v1038 = vmax.f32 %v832, 0.0
      %v1039 = vmax.f32 %v835, 0.0
      %v1040 = vmax.f32 %v840, 0.0
      %v1041 = vmax.f32 %v843, 0.0
      %v1042 = vmax.f32 %v848, 0.0
      %v1043 = vmax.f32 %v851, 0.0
      %v1044 = vmax.f32 %v856, 0.0
      %v1045 = vmax.f32 %v859, 0.0
      %v1046 = vmax.f32 %v864, 0.0
      %v1047 = vmax.f32 %v867, 0.0
      %v1048 = vmax.f32 %v872, 0.0
      %v1049 = vmax.f32 %v875, 0.0
      %v1050 = vmax.f32 %v880, 0.0
      %v1051 = vmax.f32 %v883, 0.0
      %v1052 = vmax.f32 %v888, 0.0
      %v1053 = vmax.f32 %v891, 0.0
      %v1054 = vmax.f32 %v896, 0.0
      %v1055 = vmax.f32 %v899, 0.0
      %v1056 = vmax.f32 %v904, 0.0
      %v1057 = vmax.f32 %v907, 0.0
      %v1058 = vmax.f32 %v912, 0.0
      %v1059 = vmax.f32 %v915, 0.0
      %v1060 = vmax.f32 %v920, 0.0
      %v1061 = vmax.f32 %v923, 0.0
      %v1062 = vmax.f32 %v928, 0.0
      %v1063 = vmax.f32 %v931, 0.0
      %v1064 = vmax.f32 %v936, 0.0
      %v1065 = vmax.f32 %v939, 0.0
      %v1066 = vmax.f32 %v944, 0.0
      %v1067 = vmax.f32 %v947, 0.0
      %v1068 = vmax.f32 %v952, 0.0
      %v1069 = vmax.f32 %v955, 0.0
      %v1070 = vmax.f32 %v960, 0.0
      %v1071 = vmax.f32 %v963, 0.0
      %v1072 = vmax.f32 %v968, 0.0
      %v1073 = vmax.f32 %v971, 0.0
      %v1074 = vmax.f32 %v976, 0.0
      %v1075 = vmax.f32 %v979, 0.0
      %v1076 = vmax.f32 %v984, 0.0
      %v1077 = vmax.f32 %v987, 0.0
      %v1078 = vmax.f32 %v992, 0.0
      %v1079 = vmax.f32 %v995, 0.0
      %v1080 = vmax.f32 %v1000, 0.0
      %v1081 = vmax.f32 %v1003, 0.0
      %v1082 = vmax.f32 %v1008, 0.0
      %v1083 = vmax.f32 %v1011, 0.0
      %v1084 = vmax.f32 %v1016, 0.0
      %v1085 = vmax.f32 %v1019, 0.0
      %v1086 = vld [vmem:[%s3] sm:$0x1]
      %v1088 = vlaneseq
      %v1089 = vshrl.u32 %v1088, 7
      %v1090 = vsub.s32 0, %v1089
      %v1091 = vrot.slane %v1086, %v1090
      %v1093 = vadd.f32 %v1022, %v1091
      %v1094 = vadd.f32 %v1023, %v1091
      %v1095 = vadd.f32 %v1024, %v1091
      %v1096 = vadd.f32 %v1025, %v1091
      %v1097 = vadd.f32 %v1026, %v1091
      %v1098 = vadd.f32 %v1027, %v1091
      %v1099 = vadd.f32 %v1028, %v1091
      %v1100 = vadd.f32 %v1029, %v1091
      %v1101 = vadd.f32 %v1030, %v1091
      %v1102 = vadd.f32 %v1031, %v1091
      %v1103 = vadd.f32 %v1032, %v1091
      %v1104 = vadd.f32 %v1033, %v1091
      %v1105 = vadd.f32 %v1034, %v1091
      %v1106 = vadd.f32 %v1035, %v1091
      %v1107 = vadd.f32 %v1036, %v1091
      %v1108 = vadd.f32 %v1037, %v1091
      %v1109 = vadd.f32 %v1038, %v1091
      %v1110 = vadd.f32 %v1039, %v1091
      %v1111 = vadd.f32 %v1040, %v1091
      %v1112 = vadd.f32 %v1041, %v1091
      %v1113 = vadd.f32 %v1042, %v1091
      %v1114 = vadd.f32 %v1043, %v1091
      %v1115 = vadd.f32 %v1044, %v1091
      %v1116 = vadd.f32 %v1045, %v1091
      %v1117 = vadd.f32 %v1046, %v1091
      %v1118 = vadd.f32 %v1047, %v1091
      %v1119 = vadd.f32 %v1048, %v1091
      %v1120 = vadd.f32 %v1049, %v1091
      %v1121 = vadd.f32 %v1050, %v1091
      %v1122 = vadd.f32 %v1051, %v1091
      %v1123 = vadd.f32 %v1052, %v1091
      %v1124 = vadd.f32 %v1053, %v1091
      %v1125 = vadd.f32 %v1054, %v1091
      %v1126 = vadd.f32 %v1055, %v1091
      %v1127 = vadd.f32 %v1056, %v1091
      %v1128 = vadd.f32 %v1057, %v1091
      %v1129 = vadd.f32 %v1058, %v1091
      %v1130 = vadd.f32 %v1059, %v1091
      %v1131 = vadd.f32 %v1060, %v1091
      %v1132 = vadd.f32 %v1061, %v1091
      %v1133 = vadd.f32 %v1062, %v1091
      %v1134 = vadd.f32 %v1063, %v1091
      %v1135 = vadd.f32 %v1064, %v1091
      %v1136 = vadd.f32 %v1065, %v1091
      %v1137 = vadd.f32 %v1066, %v1091
      %v1138 = vadd.f32 %v1067, %v1091
      %v1139 = vadd.f32 %v1068, %v1091
      %v1140 = vadd.f32 %v1069, %v1091
      %v1141 = vadd.f32 %v1070, %v1091
      %v1142 = vadd.f32 %v1071, %v1091
      %v1143 = vadd.f32 %v1072, %v1091
      %v1144 = vadd.f32 %v1073, %v1091
      %v1145 = vadd.f32 %v1074, %v1091
      %v1146 = vadd.f32 %v1075, %v1091
      %v1147 = vadd.f32 %v1076, %v1091
      %v1148 = vadd.f32 %v1077, %v1091
      %v1149 = vadd.f32 %v1078, %v1091
      %v1150 = vadd.f32 %v1079, %v1091
      %v1151 = vadd.f32 %v1080, %v1091
      %v1152 = vadd.f32 %v1081, %v1091
      %v1153 = vadd.f32 %v1082, %v1091
      %v1154 = vadd.f32 %v1083, %v1091
      %v1155 = vadd.f32 %v1084, %v1091
      %v1156 = vadd.f32 %v1085, %v1091
      %v1157 = vpack.c.bf16 %v1094, %v1093
      %v1158 = vpack.c.bf16 %v1096, %v1095
      %v1159 = vpack.c.bf16 %v1098, %v1097
      %v1160 = vpack.c.bf16 %v1100, %v1099
      %v1161 = vpack.c.bf16 %v1102, %v1101
      %v1162 = vpack.c.bf16 %v1104, %v1103
      %v1163 = vpack.c.bf16 %v1106, %v1105
      %v1164 = vpack.c.bf16 %v1108, %v1107
      %v1165 = vpack.c.bf16 %v1110, %v1109
      %v1166 = vpack.c.bf16 %v1112, %v1111
      %v1167 = vpack.c.bf16 %v1114, %v1113
      %v1168 = vpack.c.bf16 %v1116, %v1115
      %v1169 = vpack.c.bf16 %v1118, %v1117
      %v1170 = vpack.c.bf16 %v1120, %v1119
      %v1171 = vpack.c.bf16 %v1122, %v1121
      %v1172 = vpack.c.bf16 %v1124, %v1123
      %v1173 = vpack.c.bf16 %v1126, %v1125
      %v1174 = vpack.c.bf16 %v1128, %v1127
      %v1175 = vpack.c.bf16 %v1130, %v1129
      %v1176 = vpack.c.bf16 %v1132, %v1131
      %v1177 = vpack.c.bf16 %v1134, %v1133
      %v1178 = vpack.c.bf16 %v1136, %v1135
      %v1179 = vpack.c.bf16 %v1138, %v1137
      %v1180 = vpack.c.bf16 %v1140, %v1139
      %v1181 = vpack.c.bf16 %v1142, %v1141
      %v1182 = vpack.c.bf16 %v1144, %v1143
      %v1183 = vpack.c.bf16 %v1146, %v1145
      %v1184 = vpack.c.bf16 %v1148, %v1147
      %v1185 = vpack.c.bf16 %v1150, %v1149
      %v1186 = vpack.c.bf16 %v1152, %v1151
      %v1187 = vpack.c.bf16 %v1154, %v1153
      %v1188 = vpack.c.bf16 %v1156, %v1155
      %v1221 = vunpack.c.l.b16 %v1157
      %v1222 = vunpack.c.h.b16 %v1157
      %v1223 = vunpack.c.l.b16 %v1158
      %v1224 = vunpack.c.h.b16 %v1158
      %v1225 = vunpack.c.l.b16 %v1159
      %v1226 = vunpack.c.h.b16 %v1159
      %v1227 = vunpack.c.l.b16 %v1160
      %v1228 = vunpack.c.h.b16 %v1160
      %v1229 = vunpack.c.l.b16 %v1161
      %v1230 = vunpack.c.h.b16 %v1161
      %v1231 = vunpack.c.l.b16 %v1162
      %v1232 = vunpack.c.h.b16 %v1162
      %v1233 = vunpack.c.l.b16 %v1163
      %v1234 = vunpack.c.h.b16 %v1163
      %v1235 = vunpack.c.l.b16 %v1164
      %v1236 = vunpack.c.h.b16 %v1164
      %v1237 = vunpack.c.l.b16 %v1165
      %v1238 = vunpack.c.h.b16 %v1165
      %v1239 = vunpack.c.l.b16 %v1166
      %v1240 = vunpack.c.h.b16 %v1166
      %v1241 = vunpack.c.l.b16 %v1167
      %v1242 = vunpack.c.h.b16 %v1167
      %v1243 = vunpack.c.l.b16 %v1168
      %v1244 = vunpack.c.h.b16 %v1168
      %v1245 = vunpack.c.l.b16 %v1169
      %v1246 = vunpack.c.h.b16 %v1169
      %v1247 = vunpack.c.l.b16 %v1170
      %v1248 = vunpack.c.h.b16 %v1170
      %v1249 = vunpack.c.l.b16 %v1171
      %v1250 = vunpack.c.h.b16 %v1171
      %v1251 = vunpack.c.l.b16 %v1172
      %v1252 = vunpack.c.h.b16 %v1172
      %v1253 = vunpack.c.l.b16 %v1173
      %v1254 = vunpack.c.h.b16 %v1173
      %v1255 = vunpack.c.l.b16 %v1174
      %v1256 = vunpack.c.h.b16 %v1174
      %v1257 = vunpack.c.l.b16 %v1175
      %v1258 = vunpack.c.h.b16 %v1175
      %v1259 = vunpack.c.l.b16 %v1176
      %v1260 = vunpack.c.h.b16 %v1176
      %v1261 = vunpack.c.l.b16 %v1177
      %v1262 = vunpack.c.h.b16 %v1177
      %v1263 = vunpack.c.l.b16 %v1178
      %v1264 = vunpack.c.h.b16 %v1178
      %v1265 = vunpack.c.l.b16 %v1179
      %v1266 = vunpack.c.h.b16 %v1179
      %v1267 = vunpack.c.l.b16 %v1180
      %v1268 = vunpack.c.h.b16 %v1180
      %v1269 = vunpack.c.l.b16 %v1181
      %v1270 = vunpack.c.h.b16 %v1181
      %v1271 = vunpack.c.l.b16 %v1182
      %v1272 = vunpack.c.h.b16 %v1182
      %v1273 = vunpack.c.l.b16 %v1183
      %v1274 = vunpack.c.h.b16 %v1183
      %v1275 = vunpack.c.l.b16 %v1184
      %v1276 = vunpack.c.h.b16 %v1184
      %v1277 = vunpack.c.l.b16 %v1185
      %v1278 = vunpack.c.h.b16 %v1185
      %v1279 = vunpack.c.l.b16 %v1186
      %v1280 = vunpack.c.h.b16 %v1186
      %v1281 = vunpack.c.l.b16 %v1187
      %v1282 = vunpack.c.h.b16 %v1187
      %v1283 = vunpack.c.l.b16 %v1188
      %v1284 = vunpack.c.h.b16 %v1188
      %v1285 = vpack.c.b16 %v1221, %v1221
      %v1286 = vpack.c.b16 %v1222, %v1222
      %v1287 = vpack.c.b16 %v1223, %v1223
      %v1288 = vpack.c.b16 %v1224, %v1224
      %v1289 = vpack.c.b16 %v1225, %v1225
      %v1290 = vpack.c.b16 %v1226, %v1226
      %v1291 = vpack.c.b16 %v1227, %v1227
      %v1292 = vpack.c.b16 %v1228, %v1228
      %v1293 = vpack.c.b16 %v1229, %v1229
      %v1294 = vpack.c.b16 %v1230, %v1230
      %v1295 = vpack.c.b16 %v1231, %v1231
      %v1296 = vpack.c.b16 %v1232, %v1232
      %v1297 = vpack.c.b16 %v1233, %v1233
      %v1298 = vpack.c.b16 %v1234, %v1234
      %v1299 = vpack.c.b16 %v1235, %v1235
      %v1300 = vpack.c.b16 %v1236, %v1236
      %v1301 = vpack.c.b16 %v1237, %v1237
      %v1302 = vpack.c.b16 %v1238, %v1238
      %v1303 = vpack.c.b16 %v1239, %v1239
      %v1304 = vpack.c.b16 %v1240, %v1240
      %v1305 = vpack.c.b16 %v1241, %v1241
      %v1306 = vpack.c.b16 %v1242, %v1242
      %v1307 = vpack.c.b16 %v1243, %v1243
      %v1308 = vpack.c.b16 %v1244, %v1244
      %v1309 = vpack.c.b16 %v1245, %v1245
      %v1310 = vpack.c.b16 %v1246, %v1246
      %v1311 = vpack.c.b16 %v1247, %v1247
      %v1312 = vpack.c.b16 %v1248, %v1248
      %v1313 = vpack.c.b16 %v1249, %v1249
      %v1314 = vpack.c.b16 %v1250, %v1250
      %v1315 = vpack.c.b16 %v1251, %v1251
      %v1316 = vpack.c.b16 %v1252, %v1252
      %v1317 = vpack.c.b16 %v1253, %v1253
      %v1318 = vpack.c.b16 %v1254, %v1254
      %v1319 = vpack.c.b16 %v1255, %v1255
      %v1320 = vpack.c.b16 %v1256, %v1256
      %v1321 = vpack.c.b16 %v1257, %v1257
      %v1322 = vpack.c.b16 %v1258, %v1258
      %v1323 = vpack.c.b16 %v1259, %v1259
      %v1324 = vpack.c.b16 %v1260, %v1260
      %v1325 = vpack.c.b16 %v1261, %v1261
      %v1326 = vpack.c.b16 %v1262, %v1262
      %v1327 = vpack.c.b16 %v1263, %v1263
      %v1328 = vpack.c.b16 %v1264, %v1264
      %v1329 = vpack.c.b16 %v1265, %v1265
      %v1330 = vpack.c.b16 %v1266, %v1266
      %v1331 = vpack.c.b16 %v1267, %v1267
      %v1332 = vpack.c.b16 %v1268, %v1268
      %v1333 = vpack.c.b16 %v1269, %v1269
      %v1334 = vpack.c.b16 %v1270, %v1270
      %v1335 = vpack.c.b16 %v1271, %v1271
      %v1336 = vpack.c.b16 %v1272, %v1272
      %v1337 = vpack.c.b16 %v1273, %v1273
      %v1338 = vpack.c.b16 %v1274, %v1274
      %v1339 = vpack.c.b16 %v1275, %v1275
      %v1340 = vpack.c.b16 %v1276, %v1276
      %v1341 = vpack.c.b16 %v1277, %v1277
      %v1342 = vpack.c.b16 %v1278, %v1278
      %v1343 = vpack.c.b16 %v1279, %v1279
      %v1344 = vpack.c.b16 %v1280, %v1280
      %v1345 = vpack.c.b16 %v1281, %v1281
      %v1346 = vpack.c.b16 %v1282, %v1282
      %v1347 = vpack.c.b16 %v1283, %v1283
      %v1348 = vpack.c.b16 %v1284, %v1284
      %vm1413 = vcmask 257024
      %1414 = vst.msk [vmem:[%s202] sm:$0xf] %vm1413, %v1285
      %1415 = vst.msk [vmem:[%s202 + $0x4] sm:$0xf] %vm1413, %v1286
      %1416 = vst.msk [vmem:[%s202 + $0x8] sm:$0xf] %vm1413, %v1287
      %1417 = vst.msk [vmem:[%s202 + $0xc] sm:$0xf] %vm1413, %v1288
      %1418 = vst.msk [vmem:[%s202 + $0x10] sm:$0xf] %vm1413, %v1289
      %1419 = vst.msk [vmem:[%s202 + $0x14] sm:$0xf] %vm1413, %v1290
      %1420 = vst.msk [vmem:[%s202 + $0x18] sm:$0xf] %vm1413, %v1291
      %1421 = vst.msk [vmem:[%s202 + $0x1c] sm:$0xf] %vm1413, %v1292
      %1422 = vst.msk [vmem:[%s202 + $0x20] sm:$0xf] %vm1413, %v1293
      %1423 = vst.msk [vmem:[%s202 + $0x24] sm:$0xf] %vm1413, %v1294
      %1424 = vst.msk [vmem:[%s202 + $0x28] sm:$0xf] %vm1413, %v1295
      %1425 = vst.msk [vmem:[%s202 + $0x2c] sm:$0xf] %vm1413, %v1296
      %1426 = vst.msk [vmem:[%s202 + $0x30] sm:$0xf] %vm1413, %v1297
      %1427 = vst.msk [vmem:[%s202 + $0x34] sm:$0xf] %vm1413, %v1298
      %1428 = vst.msk [vmem:[%s202 + $0x38] sm:$0xf] %vm1413, %v1299
      %1429 = vst.msk [vmem:[%s202 + $0x3c] sm:$0xf] %vm1413, %v1300
      %1430 = vst.msk [vmem:[%s202 + $0x40] sm:$0xf] %vm1413, %v1301
      %1431 = vst.msk [vmem:[%s202 + $0x44] sm:$0xf] %vm1413, %v1302
      %1432 = vst.msk [vmem:[%s202 + $0x48] sm:$0xf] %vm1413, %v1303
      %1433 = vst.msk [vmem:[%s202 + $0x4c] sm:$0xf] %vm1413, %v1304
      %1434 = vst.msk [vmem:[%s202 + $0x50] sm:$0xf] %vm1413, %v1305
      %1435 = vst.msk [vmem:[%s202 + $0x54] sm:$0xf] %vm1413, %v1306
      %1436 = vst.msk [vmem:[%s202 + $0x58] sm:$0xf] %vm1413, %v1307
      %1437 = vst.msk [vmem:[%s202 + $0x5c] sm:$0xf] %vm1413, %v1308
      %1438 = vst.msk [vmem:[%s202 + $0x60] sm:$0xf] %vm1413, %v1309
      %1439 = vst.msk [vmem:[%s202 + $0x64] sm:$0xf] %vm1413, %v1310
      %1440 = vst.msk [vmem:[%s202 + $0x68] sm:$0xf] %vm1413, %v1311
      %1441 = vst.msk [vmem:[%s202 + $0x6c] sm:$0xf] %vm1413, %v1312
      %1442 = vst.msk [vmem:[%s202 + $0x70] sm:$0xf] %vm1413, %v1313
      %1443 = vst.msk [vmem:[%s202 + $0x74] sm:$0xf] %vm1413, %v1314
      %1444 = vst.msk [vmem:[%s202 + $0x78] sm:$0xf] %vm1413, %v1315
      %1445 = vst.msk [vmem:[%s202 + $0x7c] sm:$0xf] %vm1413, %v1316
      %1446 = vst.msk [vmem:[%s202 + $0x80] sm:$0xf] %vm1413, %v1317
      %1447 = vst.msk [vmem:[%s202 + $0x84] sm:$0xf] %vm1413, %v1318
      %1448 = vst.msk [vmem:[%s202 + $0x88] sm:$0xf] %vm1413, %v1319
      %1449 = vst.msk [vmem:[%s202 + $0x8c] sm:$0xf] %vm1413, %v1320
      %1450 = vst.msk [vmem:[%s202 + $0x90] sm:$0xf] %vm1413, %v1321
      %1451 = vst.msk [vmem:[%s202 + $0x94] sm:$0xf] %vm1413, %v1322
      %1452 = vst.msk [vmem:[%s202 + $0x98] sm:$0xf] %vm1413, %v1323
      %1453 = vst.msk [vmem:[%s202 + $0x9c] sm:$0xf] %vm1413, %v1324
      %1454 = vst.msk [vmem:[%s202 + $0xa0] sm:$0xf] %vm1413, %v1325
      %1455 = vst.msk [vmem:[%s202 + $0xa4] sm:$0xf] %vm1413, %v1326
      %1456 = vst.msk [vmem:[%s202 + $0xa8] sm:$0xf] %vm1413, %v1327
      %1457 = vst.msk [vmem:[%s202 + $0xac] sm:$0xf] %vm1413, %v1328
      %1458 = vst.msk [vmem:[%s202 + $0xb0] sm:$0xf] %vm1413, %v1329
      %1459 = vst.msk [vmem:[%s202 + $0xb4] sm:$0xf] %vm1413, %v1330
      %1460 = vst.msk [vmem:[%s202 + $0xb8] sm:$0xf] %vm1413, %v1331
      %1461 = vst.msk [vmem:[%s202 + $0xbc] sm:$0xf] %vm1413, %v1332
      %1462 = vst.msk [vmem:[%s202 + $0xc0] sm:$0xf] %vm1413, %v1333
      %1463 = vst.msk [vmem:[%s202 + $0xc4] sm:$0xf] %vm1413, %v1334
      %1464 = vst.msk [vmem:[%s202 + $0xc8] sm:$0xf] %vm1413, %v1335
      %1465 = vst.msk [vmem:[%s202 + $0xcc] sm:$0xf] %vm1413, %v1336
      %1466 = vst.msk [vmem:[%s202 + $0xd0] sm:$0xf] %vm1413, %v1337
      %1467 = vst.msk [vmem:[%s202 + $0xd4] sm:$0xf] %vm1413, %v1338
      %1468 = vst.msk [vmem:[%s202 + $0xd8] sm:$0xf] %vm1413, %v1339
      %1469 = vst.msk [vmem:[%s202 + $0xdc] sm:$0xf] %vm1413, %v1340
      %1470 = vst.msk [vmem:[%s202 + $0xe0] sm:$0xf] %vm1413, %v1341
      %1471 = vst.msk [vmem:[%s202 + $0xe4] sm:$0xf] %vm1413, %v1342
      %1472 = vst.msk [vmem:[%s202 + $0xe8] sm:$0xf] %vm1413, %v1343
      %1473 = vst.msk [vmem:[%s202 + $0xec] sm:$0xf] %vm1413, %v1344
      %1474 = vst.msk [vmem:[%s202 + $0xf0] sm:$0xf] %vm1413, %v1345
      %1475 = vst.msk [vmem:[%s202 + $0xf4] sm:$0xf] %vm1413, %v1346
      %1476 = vst.msk [vmem:[%s202 + $0xf8] sm:$0xf] %vm1413, %v1347
      %1477 = vst.msk [vmem:[%s202 + $0xfc] sm:$0xf] %vm1413, %v1348
      %s1478 = smul.u32 64, %s15
      %p1479 = scmp.lt.s32.totalorder %s1478, 255
      %s1480 = scalar_select %p1479, %s1478, 255
      %s1481 = smul.addr %s1480, 4
      %s1482 = scalar_lea.vmem %s4, %s1481
      // Predicated region
      $region37: #{generator_forward.10} parent=35 // pred_check
        %p1483 = pneg %p122
      $region38: #{generator_forward.10} parent=35 // pred_check_branch
        %1485 = sbr.rel (%p1483) target = $region40
      $region39: #{generator_forward.10} parent=35 // pred_region
        %s1486 = smul.u32 64, %s15
      $region40: #{generator_forward.10} parent=35 // pred_fallthru
        _
    $region36: #{generator_forward.10} parent=5 // pred_fallthru
      _
    %p1487 = scmp.le.s32.totalorder 2, %s10
    // Predicated region
    $region41: #{generator_forward.10} parent=5 // pred_check
      %p1488 = pneg %p1487
    $region42: #{generator_forward.10} parent=5 // pred_check_branch
      %1490 = sbr.rel (%p1488) target = $region44
    $region43: #{generator_forward.10} parent=5 // pred_region
      %s1491 = ssub.s32 %s10, 2
      // Predicated region
      $region45: #{generator_forward.10} parent=43 // pred_check
        %p1492 = pneg %p128
      $region46: #{generator_forward.10} parent=43 // pred_check_branch
        %1494 = sbr.rel (%p1492) target = $region48
      $region47: #{generator_forward.10} parent=43 // pred_region
        %s1495 = smul.u32 64, %s16
        %p1496 = scmp.lt.s32.totalorder %s1495, 255
        %s1497 = scalar_select %p1496, %s1495, 255
        %s1498 = smul.addr %s1497, 4
        %s1499 = scalar_lea.vmem %s4, %s1498
      $region48: #{generator_forward.10} parent=43 // pred_fallthru
        _
    $region44: #{generator_forward.10} parent=5 // pred_fallthru
      _
  $region6: #{generator_forward.10} parent=0 // loop_footer
    %s14 = sadd.s32 1, %s10
  $region7: #{generator_forward.10} parent=0 // loop_footer_branch
    %9 = sbr.rel target = $region3
  $region8: #{generator_forward.10} parent=0 // loop_exit
    _

// kernel: tile.158
$region0: #{tile.158}
  #allocation0 [shape = 's32[1]{0}', space=sflag, size = 0x4, scoped, tag = 'scoped memory for tile.158']
  %s0 = inlined_call_operand.vmem [shape: f32[3], index: 0, kind: input, shape index: {}]
  %s1 = inlined_call_operand.vmem [shape: f32[4,3], index: 1, kind: output, shape index: {}]
  // Predicated region
  $region2: #{tile.158} parent=0 // pred_check
    _
  $region3: #{tile.158} parent=0 // pred_check_branch
    %3 = sbr.rel (0) target = $region5
  $region4: #{tile.158} parent=0 // pred_region
    _
  $region5: #{tile.158} parent=0 // pred_fallthru
    _
  %v4 = vld [vmem:[%s0] ss:$0 sm:$0xff]
  %5 = vst [vmem:[%s1] sm:$0xf] %v4

// kernel: tile.159
$region0: #{tile.159}
  %s0 = inlined_call_operand.vmem [shape: f32[4,3], index: 0, kind: input, shape index: {}]
  %s1 = inlined_call_operand.vmem [shape: f32[1,12], index: 1, kind: output, shape index: {}]
  $region1: #{tile.159} parent=0
    #allocation0 [shape = 'u8[4096]{0}', space=vmem, size = 0x1000, scoped, tag = 'scoped mem for output reshape']
    #allocation1 [shape = 'u8[4096]{0}', space=vmem, size = 0x1000, scoped, tag = 'scoped mem for input reshape']
    %s3 = sshllo.u32 0, 4
    %v4 = vld [vmem:[%s0] sm:%s3]
    %5 = vst [vmem:[#allocation1] sm:%s3] %v4
    %v6 = vld [vmem:[#allocation1] sm:$0x1]
    %vm7 = vcmask 23552
    %8 = vst.msk [vmem:[#allocation0] sm:$0x1] %vm7, %v6
    %s9 = scalar_lea.vmem [#allocation1], 3
    %v10 = vld [vmem:[%s9] sm:$0x1]
    %11 = vrot.lane.b32.xlu0 %v10, 9
    %v12 = vpop.permute.xlu0 %11
    %vm13 = vcmask 97352
    %14 = vst.msk [vmem:[#allocation0] sm:$0x1] %vm13, %v12
    %s15 = scalar_lea.vmem [#allocation1], 2
    %v16 = vld [vmem:[%s15] sm:$0x1]
    %17 = vrot.lane.b32.xlu0 %v16, 6
    %v18 = vpop.permute.xlu0 %17
    %vm19 = vcmask 72752
    %20 = vst.msk [vmem:[#allocation0] sm:$0x1] %vm19, %v18
    %s21 = scalar_lea.vmem [#allocation1], 1
    %v22 = vld [vmem:[%s21] sm:$0x1]
    %23 = vrot.lane.b32.xlu0 %v22, 3
    %v24 = vpop.permute.xlu0 %23
    %vm25 = vcmask 48152
    %26 = vst.msk [vmem:[#allocation0] sm:$0x1] %vm25, %v24
    %s28 = sshllo.u32 0, 1
    %v30 = vld [vmem:[#allocation0] sm:%s28]
    %s31 = sshllo.u32 0, 1
    %32 = vst [vmem:[%s1] sm:%s31] %v30

// kernel: generator_forward.11
$region0: #{generator_forward.11}
  #allocation0 [shape = 'u32[]', space=smem, size = 0x4, offset = 0x4, fixed_abs, tag = 'smem constant byte address 0x4 - core index']
  #allocation1 [shape = 'u32[144,128]{1,0:T(1,128)}', space=vmem, size = 0x12000, scoped, tag = 'internal scratch']
  %s0 = inlined_call_operand.vmem [shape: bf16[8192,72], index: 0, kind: input, shape index: {}]
  %s1 = inlined_call_operand.vmem [shape: bf16[72,12], index: 1, kind: input, shape index: {}]
  %s2 = inlined_call_operand.vmem [shape: f32[1,12], index: 2, kind: input, shape index: {}]
  %s3 = inlined_call_operand.vmem [shape: f32[1,12], index: 3, kind: input, shape index: {}]
  %s4 = inlined_call_operand.vmem [shape: f32[8192,12], index: 4, kind: output, shape index: {}]
  %s5 = sld [smem:[#allocation0]]
  $region49: #{generator_forward.11} parent=0
    _
  %s7 = ssub.s32 1, %s5
  %s8 = scalar_select 0, %s7, %s5
  loop: start=0, step=1, limit=10
  $region2: #{generator_forward.11} parent=0 // loop_pre_header
    _
  $region3: #{generator_forward.11} parent=0 // loop_header
    %s10 = sphi 0, %s14
    %p11 = scmp.ge.s32.totalorder %s10, 10
    %s20 = sphi 0, %s22
    %s23 = sphi 0, %s20
    %s24 = sphi 0, %s23
    %s40 = sphi 0, %s24
    %s44 = sphi 0, %s44
    %s46 = sphi 0, %s44
    %s47 = sphi 0, %s46
    %s61 = sphi 0, %s47
    %s65 = sphi 0, %s65
    %s67 = sphi 0, %s65
    %s68 = sphi 0, %s67
    %s82 = sphi 0, %s68
    %s86 = sphi 0, %s86
    %s88 = sphi 0, %s86
    %s89 = sphi 0, %s88
    %s103 = sphi 0, %s89
    %s109 = sphi 0, %s111
    %s112 = sphi 0, %s109
    %s113 = sphi 0, %s112
    %s129 = sphi 0, %s113
  $region4: #{generator_forward.11} parent=0 // loop_header_branch
    %13 = sbr.rel (%p11) target = $region8
  $region5: #{generator_forward.11} parent=0 // loop_body
    %s15 = ssub.s32 %s10, 1
    %s16 = ssub.s32 %s10, 2
    %s17 = sadd.s32 %s10, 1
    %s18 = ssub.s32 %s10, %s17
    %p19 = scmp.eq.s32.totalorder %s18, 0
    %s21 = sadd.s32 %s20, 1
    %s22 = scalar_select %p19, %s20, %s21
    %p25 = pneg %p19
    %p26 = scmp.eq.s32.totalorder %s10, 7
    %p27 = por %p25, %p26
    %p28 = scmp.ne.s32.totalorder %s20, %s23
    %p29 = scmp.eq.s32.totalorder %s10, 0
    %p30 = por %p28, %p29
    %p31 = scmp.ne.s32.totalorder %s20, %s23
    %p32 = scmp.eq.s32.totalorder %s15, 7
    %p33 = por %p31, %p32
    %p34 = scmp.ne.s32.totalorder %s23, %s24
    %p35 = scmp.eq.s32.totalorder %s15, 0
    %p36 = por %p34, %p35
    %p37 = scmp.ne.s32.totalorder %s23, %s24
    %p38 = scmp.eq.s32.totalorder %s16, 7
    %p39 = por %p37, %p38
    %p41 = scmp.ne.s32.totalorder %s24, %s40
    %p42 = scmp.eq.s32.totalorder %s16, 0
    %p43 = por %p41, %p42
    %s45 = sadd.s32 %s44, 1
    %p48 = scmp.eq.s32.totalorder %s10, 7
    %p49 = scmp.ne.s32.totalorder %s44, %s46
    %p50 = scmp.eq.s32.totalorder %s10, 0
    %p51 = por %p49, %p50
    %p52 = scmp.ne.s32.totalorder %s44, %s46
    %p53 = scmp.eq.s32.totalorder %s15, 7
    %p54 = por %p52, %p53
    %p55 = scmp.ne.s32.totalorder %s46, %s47
    %p56 = scmp.eq.s32.totalorder %s15, 0
    %p57 = por %p55, %p56
    %p58 = scmp.ne.s32.totalorder %s46, %s47
    %p59 = scmp.eq.s32.totalorder %s16, 7
    %p60 = por %p58, %p59
    %p62 = scmp.ne.s32.totalorder %s47, %s61
    %p63 = scmp.eq.s32.totalorder %s16, 0
    %p64 = por %p62, %p63
    %s66 = sadd.s32 %s65, 1
    %p69 = scmp.eq.s32.totalorder %s10, 7
    %p70 = scmp.ne.s32.totalorder %s65, %s67
    %p71 = scmp.eq.s32.totalorder %s10, 0
    %p72 = por %p70, %p71
    %p73 = scmp.ne.s32.totalorder %s65, %s67
    %p74 = scmp.eq.s32.totalorder %s15, 7
    %p75 = por %p73, %p74
    %p76 = scmp.ne.s32.totalorder %s67, %s68
    %p77 = scmp.eq.s32.totalorder %s15, 0
    %p78 = por %p76, %p77
    %p79 = scmp.ne.s32.totalorder %s67, %s68
    %p80 = scmp.eq.s32.totalorder %s16, 7
    %p81 = por %p79, %p80
    %p83 = scmp.ne.s32.totalorder %s68, %s82
    %p84 = scmp.eq.s32.totalorder %s16, 0
    %p85 = por %p83, %p84
    %s87 = sadd.s32 %s86, 1
    %p90 = scmp.eq.s32.totalorder %s10, 7
    %p91 = scmp.ne.s32.totalorder %s86, %s88
    %p92 = scmp.eq.s32.totalorder %s10, 0
    %p93 = por %p91, %p92
    %p94 = scmp.ne.s32.totalorder %s86, %s88
    %p95 = scmp.eq.s32.totalorder %s15, 7
    %p96 = por %p94, %p95
    %p97 = scmp.ne.s32.totalorder %s88, %s89
    %p98 = scmp.eq.s32.totalorder %s15, 0
    %p99 = por %p97, %p98
    %p100 = scmp.ne.s32.totalorder %s88, %s89
    %p101 = scmp.eq.s32.totalorder %s16, 7
    %p102 = por %p100, %p101
    %p104 = scmp.ne.s32.totalorder %s89, %s103
    %p105 = scmp.eq.s32.totalorder %s16, 0
    %p106 = por %p104, %p105
    %s107 = ssub.s32 %s10, %s17
    %p108 = scmp.eq.s32.totalorder %s107, 0
    %s110 = sadd.s32 %s109, 1
    %s111 = scalar_select %p108, %s109, %s110
    %p114 = pneg %p108
    %p115 = scmp.eq.s32.totalorder %s10, 7
    %p116 = por %p114, %p115
    %p117 = scmp.ne.s32.totalorder %s109, %s112
    %p118 = scmp.eq.s32.totalorder %s10, 0
    %p119 = por %p117, %p118
    %p120 = scmp.ne.s32.totalorder %s109, %s112
    %p121 = scmp.eq.s32.totalorder %s15, 7
    %p122 = por %p120, %p121
    %p123 = scmp.ne.s32.totalorder %s112, %s113
    %p124 = scmp.eq.s32.totalorder %s15, 0
    %p125 = por %p123, %p124
    %p126 = scmp.ne.s32.totalorder %s112, %s113
    %p127 = scmp.eq.s32.totalorder %s16, 7
    %p128 = por %p126, %p127
    %p130 = scmp.ne.s32.totalorder %s113, %s129
    %p131 = scmp.eq.s32.totalorder %s16, 0
    %p132 = por %p130, %p131
    %p133 = scmp.le.s32.totalorder 1, %s10
    %p134 = scmp.lt.s32.totalorder %s10, 9
    %p135 = pnand %p133, %p134
    %p136 = pneg %p135
    // Predicated region
    $region9: #{generator_forward.11} parent=5 // pred_check
      _
    $region10: #{generator_forward.11} parent=5 // pred_check_branch
      %138 = sbr.rel (%p135) target = $region12
    $region11: #{generator_forward.11} parent=5 // pred_region
      %s139 = ssub.s32 %s10, 1
      // Predicated region
      $region13: #{generator_forward.11} parent=11 // pred_check
        %p140 = pneg %p57
      $region14: #{generator_forward.11} parent=11 // pred_check_branch
        %142 = sbr.rel (%p140) target = $region16
      $region15: #{generator_forward.11} parent=11 // pred_region
        _
      $region16: #{generator_forward.11} parent=11 // pred_fallthru
        _
      // Predicated region
      $region17: #{generator_forward.11} parent=11 // pred_check
        %p143 = pneg %p78
      $region18: #{generator_forward.11} parent=11 // pred_check_branch
        %145 = sbr.rel (%p143) target = $region20
      $region19: #{generator_forward.11} parent=11 // pred_region
        _
      $region20: #{generator_forward.11} parent=11 // pred_fallthru
        _
      // Predicated region
      $region21: #{generator_forward.11} parent=11 // pred_check
        %p146 = pneg %p99
      $region22: #{generator_forward.11} parent=11 // pred_check_branch
        %148 = sbr.rel (%p146) target = $region24
      $region23: #{generator_forward.11} parent=11 // pred_region
        _
      $region24: #{generator_forward.11} parent=11 // pred_fallthru
        _
    $region12: #{generator_forward.11} parent=5 // pred_fallthru
      _
    %p149 = scmp.lt.s32.totalorder %s10, 8
    // Predicated region
    $region25: #{generator_forward.11} parent=5 // pred_check
      %p150 = pneg %p149
    $region26: #{generator_forward.11} parent=5 // pred_check_branch
      %152 = sbr.rel (%p150) target = $region28
    $region27: #{generator_forward.11} parent=5 // pred_region
      // Predicated region
      $region29: #{generator_forward.11} parent=27 // pred_check
        %p153 = pneg %p30
      $region30: #{generator_forward.11} parent=27 // pred_check_branch
        %155 = sbr.rel (%p153) target = $region32
      $region31: #{generator_forward.11} parent=27 // pred_region
        %s156 = smul.u32 128, %s10
        %p157 = scmp.lt.s32.totalorder %s156, 1023
        %s158 = scalar_select %p157, %s156, 1023
        %s159 = smul.addr %s158, 4
        %s160 = scalar_lea.vmem %s0, %s159
        %s161 = smul.u32 128, %s10
      $region32: #{generator_forward.11} parent=27 // pred_fallthru
        _
    $region28: #{generator_forward.11} parent=5 // pred_fallthru
      _
    %p162 = scmp.le.s32.totalorder 1, %s10
    %p163 = scmp.lt.s32.totalorder %s10, 9
    %p164 = pnand %p162, %p163
    %p165 = pneg %p164
    // Predicated region
    $region33: #{generator_forward.11} parent=5 // pred_check
      _
    $region34: #{generator_forward.11} parent=5 // pred_check_branch
      %167 = sbr.rel (%p164) target = $region36
    $region35: #{generator_forward.11} parent=5 // pred_region
      %s168 = ssub.s32 %s10, 1
      %s169 = smul.u32 128, %s15
      %p170 = scmp.lt.s32.totalorder %s169, 1023
      %s171 = scalar_select %p170, %s169, 1023
      %s172 = smul.addr %s171, 4
      %s173 = scalar_lea.vmem %s0, %s172
      %p174 = pneg %p36
      %p175 = pneg %p33
      %p176 = pneg %p57
      %p177 = pneg %p54
      %p178 = pneg %p78
      %p179 = pneg %p75
      %p180 = pneg %p99
      %p181 = pneg %p96
      %p182 = pneg %p125
      %p183 = pneg %p122
      %s184 = smul.u32 128, %s15
      %p185 = scmp.lt.s32.totalorder %s184, 1023
      %s186 = scalar_select %p185, %s184, 1023
      %s187 = smul.addr %s186, 8
      %s188 = scalar_lea.vmem %s4, %s187
      %s189 = smul.u32 128, %s15
      %p190 = scmp.lt.s32.totalorder %s189, 1023
      %s191 = scalar_select %p190, %s189, 1023
      %s192 = smul.addr %s191, 4
      %s193 = scalar_lea.vmem %s0, %s192
      %s194 = smul.u32 128, %s15
      %s195 = smul.u32 128, %s15
      %p196 = scmp.lt.s32.totalorder %s195, 1023
      %s197 = scalar_select %p196, %s195, 1023
      %s198 = smul.addr %s197, 8
      %s199 = scalar_lea.vmem %s4, %s198
      %s200 = smul.u32 128, %s15
      %v202 = vld [vmem:[%s193] sm:$0xf]
      %v203 = vld [vmem:[%s193 + $0x4] sm:$0xf]
      %v204 = vld [vmem:[%s193 + $0x8] sm:$0xf]
      %v205 = vld [vmem:[%s193 + $0xc] sm:$0xf]
      %v206 = vld [vmem:[%s193 + $0x10] sm:$0xf]
      %v207 = vld [vmem:[%s193 + $0x14] sm:$0xf]
      %v208 = vld [vmem:[%s193 + $0x18] sm:$0xf]
      %v209 = vld [vmem:[%s193 + $0x1c] sm:$0xf]
      %v210 = vld [vmem:[%s193 + $0x20] sm:$0xf]
      %v211 = vld [vmem:[%s193 + $0x24] sm:$0xf]
      %v212 = vld [vmem:[%s193 + $0x28] sm:$0xf]
      %v213 = vld [vmem:[%s193 + $0x2c] sm:$0xf]
      %v214 = vld [vmem:[%s193 + $0x30] sm:$0xf]
      %v215 = vld [vmem:[%s193 + $0x34] sm:$0xf]
      %v216 = vld [vmem:[%s193 + $0x38] sm:$0xf]
      %v217 = vld [vmem:[%s193 + $0x3c] sm:$0xf]
      %v218 = vld [vmem:[%s193 + $0x40] sm:$0xf]
      %v219 = vld [vmem:[%s193 + $0x44] sm:$0xf]
      %v220 = vld [vmem:[%s193 + $0x48] sm:$0xf]
      %v221 = vld [vmem:[%s193 + $0x4c] sm:$0xf]
      %v222 = vld [vmem:[%s193 + $0x50] sm:$0xf]
      %v223 = vld [vmem:[%s193 + $0x54] sm:$0xf]
      %v224 = vld [vmem:[%s193 + $0x58] sm:$0xf]
      %v225 = vld [vmem:[%s193 + $0x5c] sm:$0xf]
      %v226 = vld [vmem:[%s193 + $0x60] sm:$0xf]
      %v227 = vld [vmem:[%s193 + $0x64] sm:$0xf]
      %v228 = vld [vmem:[%s193 + $0x68] sm:$0xf]
      %v229 = vld [vmem:[%s193 + $0x6c] sm:$0xf]
      %v230 = vld [vmem:[%s193 + $0x70] sm:$0xf]
      %v231 = vld [vmem:[%s193 + $0x74] sm:$0xf]
      %v232 = vld [vmem:[%s193 + $0x78] sm:$0xf]
      %v233 = vld [vmem:[%s193 + $0x7c] sm:$0xf]
      %v234 = vld [vmem:[%s193 + $0x80] sm:$0xf]
      %v235 = vld [vmem:[%s193 + $0x84] sm:$0xf]
      %v236 = vld [vmem:[%s193 + $0x88] sm:$0xf]
      %v237 = vld [vmem:[%s193 + $0x8c] sm:$0xf]
      %v238 = vld [vmem:[%s193 + $0x90] sm:$0xf]
      %v239 = vld [vmem:[%s193 + $0x94] sm:$0xf]
      %v240 = vld [vmem:[%s193 + $0x98] sm:$0xf]
      %v241 = vld [vmem:[%s193 + $0x9c] sm:$0xf]
      %v242 = vld [vmem:[%s193 + $0xa0] sm:$0xf]
      %v243 = vld [vmem:[%s193 + $0xa4] sm:$0xf]
      %v244 = vld [vmem:[%s193 + $0xa8] sm:$0xf]
      %v245 = vld [vmem:[%s193 + $0xac] sm:$0xf]
      %v246 = vld [vmem:[%s193 + $0xb0] sm:$0xf]
      %v247 = vld [vmem:[%s193 + $0xb4] sm:$0xf]
      %v248 = vld [vmem:[%s193 + $0xb8] sm:$0xf]
      %v249 = vld [vmem:[%s193 + $0xbc] sm:$0xf]
      %v250 = vld [vmem:[%s193 + $0xc0] sm:$0xf]
      %v251 = vld [vmem:[%s193 + $0xc4] sm:$0xf]
      %v252 = vld [vmem:[%s193 + $0xc8] sm:$0xf]
      %v253 = vld [vmem:[%s193 + $0xcc] sm:$0xf]
      %v254 = vld [vmem:[%s193 + $0xd0] sm:$0xf]
      %v255 = vld [vmem:[%s193 + $0xd4] sm:$0xf]
      %v256 = vld [vmem:[%s193 + $0xd8] sm:$0xf]
      %v257 = vld [vmem:[%s193 + $0xdc] sm:$0xf]
      %v258 = vld [vmem:[%s193 + $0xe0] sm:$0xf]
      %v259 = vld [vmem:[%s193 + $0xe4] sm:$0xf]
      %v260 = vld [vmem:[%s193 + $0xe8] sm:$0xf]
      %v261 = vld [vmem:[%s193 + $0xec] sm:$0xf]
      %v262 = vld [vmem:[%s193 + $0xf0] sm:$0xf]
      %v263 = vld [vmem:[%s193 + $0xf4] sm:$0xf]
      %v264 = vld [vmem:[%s193 + $0xf8] sm:$0xf]
      %v265 = vld [vmem:[%s193 + $0xfc] sm:$0xf]
      %v266 = vld [vmem:[%s193 + $0x100] sm:$0xf]
      %v267 = vld [vmem:[%s193 + $0x104] sm:$0xf]
      %v268 = vld [vmem:[%s193 + $0x108] sm:$0xf]
      %v269 = vld [vmem:[%s193 + $0x10c] sm:$0xf]
      %v270 = vld [vmem:[%s193 + $0x110] sm:$0xf]
      %v271 = vld [vmem:[%s193 + $0x114] sm:$0xf]
      %v272 = vld [vmem:[%s193 + $0x118] sm:$0xf]
      %v273 = vld [vmem:[%s193 + $0x11c] sm:$0xf]
      %v274 = vld [vmem:[%s193 + $0x120] sm:$0xf]
      %v275 = vld [vmem:[%s193 + $0x124] sm:$0xf]
      %v276 = vld [vmem:[%s193 + $0x128] sm:$0xf]
      %v277 = vld [vmem:[%s193 + $0x12c] sm:$0xf]
      %v278 = vld [vmem:[%s193 + $0x130] sm:$0xf]
      %v279 = vld [vmem:[%s193 + $0x134] sm:$0xf]
      %v280 = vld [vmem:[%s193 + $0x138] sm:$0xf]
      %v281 = vld [vmem:[%s193 + $0x13c] sm:$0xf]
      %v282 = vld [vmem:[%s193 + $0x140] sm:$0xf]
      %v283 = vld [vmem:[%s193 + $0x144] sm:$0xf]
      %v284 = vld [vmem:[%s193 + $0x148] sm:$0xf]
      %v285 = vld [vmem:[%s193 + $0x14c] sm:$0xf]
      %v286 = vld [vmem:[%s193 + $0x150] sm:$0xf]
      %v287 = vld [vmem:[%s193 + $0x154] sm:$0xf]
      %v288 = vld [vmem:[%s193 + $0x158] sm:$0xf]
      %v289 = vld [vmem:[%s193 + $0x15c] sm:$0xf]
      %v290 = vld [vmem:[%s193 + $0x160] sm:$0xf]
      %v291 = vld [vmem:[%s193 + $0x164] sm:$0xf]
      %v292 = vld [vmem:[%s193 + $0x168] sm:$0xf]
      %v293 = vld [vmem:[%s193 + $0x16c] sm:$0xf]
      %v294 = vld [vmem:[%s193 + $0x170] sm:$0xf]
      %v295 = vld [vmem:[%s193 + $0x174] sm:$0xf]
      %v296 = vld [vmem:[%s193 + $0x178] sm:$0xf]
      %v297 = vld [vmem:[%s193 + $0x17c] sm:$0xf]
      %v298 = vld [vmem:[%s193 + $0x180] sm:$0xf]
      %v299 = vld [vmem:[%s193 + $0x184] sm:$0xf]
      %v300 = vld [vmem:[%s193 + $0x188] sm:$0xf]
      %v301 = vld [vmem:[%s193 + $0x18c] sm:$0xf]
      %v302 = vld [vmem:[%s193 + $0x190] sm:$0xf]
      %v303 = vld [vmem:[%s193 + $0x194] sm:$0xf]
      %v304 = vld [vmem:[%s193 + $0x198] sm:$0xf]
      %v305 = vld [vmem:[%s193 + $0x19c] sm:$0xf]
      %v306 = vld [vmem:[%s193 + $0x1a0] sm:$0xf]
      %v307 = vld [vmem:[%s193 + $0x1a4] sm:$0xf]
      %v308 = vld [vmem:[%s193 + $0x1a8] sm:$0xf]
      %v309 = vld [vmem:[%s193 + $0x1ac] sm:$0xf]
      %v310 = vld [vmem:[%s193 + $0x1b0] sm:$0xf]
      %v311 = vld [vmem:[%s193 + $0x1b4] sm:$0xf]
      %v312 = vld [vmem:[%s193 + $0x1b8] sm:$0xf]
      %v313 = vld [vmem:[%s193 + $0x1bc] sm:$0xf]
      %v314 = vld [vmem:[%s193 + $0x1c0] sm:$0xf]
      %v315 = vld [vmem:[%s193 + $0x1c4] sm:$0xf]
      %v316 = vld [vmem:[%s193 + $0x1c8] sm:$0xf]
      %v317 = vld [vmem:[%s193 + $0x1cc] sm:$0xf]
      %v318 = vld [vmem:[%s193 + $0x1d0] sm:$0xf]
      %v319 = vld [vmem:[%s193 + $0x1d4] sm:$0xf]
      %v320 = vld [vmem:[%s193 + $0x1d8] sm:$0xf]
      %v321 = vld [vmem:[%s193 + $0x1dc] sm:$0xf]
      %v322 = vld [vmem:[%s193 + $0x1e0] sm:$0xf]
      %v323 = vld [vmem:[%s193 + $0x1e4] sm:$0xf]
      %v324 = vld [vmem:[%s193 + $0x1e8] sm:$0xf]
      %v325 = vld [vmem:[%s193 + $0x1ec] sm:$0xf]
      %v326 = vld [vmem:[%s193 + $0x1f0] sm:$0xf]
      %v327 = vld [vmem:[%s193 + $0x1f4] sm:$0xf]
      %v328 = vld [vmem:[%s193 + $0x1f8] sm:$0xf]
      %v329 = vld [vmem:[%s193 + $0x1fc] sm:$0xf]
      %v330 = vld [vmem:[%s1] sm:$0xf]
      %v331 = vld [vmem:[%s1 + $0x4] sm:$0xf]
      %v332 = vld [vmem:[%s1 + $0x8] sm:$0xf]
      %v333 = vld [vmem:[%s1 + $0xc] sm:$0xf]
      %v334 = vld [vmem:[%s1 + $0x10] sm:$0xf]
      %v335 = vld [vmem:[%s1 + $0x14] sm:$0xf]
      %v336 = vld [vmem:[%s1 + $0x18] sm:$0xf]
      %v337 = vld [vmem:[%s1 + $0x1c] sm:$0xf]
      %v338 = vld [vmem:[%s1 + $0x20] sm:$0xf]
      %v339 = vld [vmem:[%s2] sm:$0x1]
      %v341 = vlaneseq
      %v342 = vshrl.u32 %v341, 7
      %v343 = vsub.s32 0, %v342
      %v344 = vrot.slane %v339, %v343
      %v474 = vunpack.c.l.b16 %v202
      %v475 = vunpack.c.l.b16 %v203
      %v476 = vunpack.c.l.b16 %v204
      %v477 = vunpack.c.l.b16 %v205
      %v478 = vunpack.c.l.b16 %v206
      %v479 = vunpack.c.l.b16 %v207
      %v480 = vunpack.c.l.b16 %v208
      %v481 = vunpack.c.l.b16 %v209
      %v482 = vunpack.c.l.b16 %v210
      %v483 = vunpack.c.l.b16 %v211
      %v484 = vunpack.c.l.b16 %v212
      %v485 = vunpack.c.l.b16 %v213
      %v486 = vunpack.c.l.b16 %v214
      %v487 = vunpack.c.l.b16 %v215
      %v488 = vunpack.c.l.b16 %v216
      %v489 = vunpack.c.l.b16 %v217
      %v490 = vunpack.c.l.b16 %v218
      %v491 = vunpack.c.l.b16 %v219
      %v492 = vunpack.c.l.b16 %v220
      %v493 = vunpack.c.l.b16 %v221
      %v494 = vunpack.c.l.b16 %v222
      %v495 = vunpack.c.l.b16 %v223
      %v496 = vunpack.c.l.b16 %v224
      %v497 = vunpack.c.l.b16 %v225
      %v498 = vunpack.c.l.b16 %v226
      %v499 = vunpack.c.l.b16 %v227
      %v500 = vunpack.c.l.b16 %v228
      %v501 = vunpack.c.l.b16 %v229
      %v502 = vunpack.c.l.b16 %v230
      %v503 = vunpack.c.l.b16 %v231
      %v504 = vunpack.c.l.b16 %v232
      %v505 = vunpack.c.l.b16 %v233
      %v506 = vunpack.c.l.b16 %v234
      %v507 = vunpack.c.l.b16 %v235
      %v508 = vunpack.c.l.b16 %v236
      %v509 = vunpack.c.l.b16 %v237
      %v510 = vunpack.c.l.b16 %v238
      %v511 = vunpack.c.l.b16 %v239
      %v512 = vunpack.c.l.b16 %v240
      %v513 = vunpack.c.l.b16 %v241
      %v514 = vunpack.c.l.b16 %v242
      %v515 = vunpack.c.l.b16 %v243
      %v516 = vunpack.c.l.b16 %v244
      %v517 = vunpack.c.l.b16 %v245
      %v518 = vunpack.c.l.b16 %v246
      %v519 = vunpack.c.l.b16 %v247
      %v520 = vunpack.c.l.b16 %v248
      %v521 = vunpack.c.l.b16 %v249
      %v522 = vunpack.c.l.b16 %v250
      %v523 = vunpack.c.l.b16 %v251
      %v524 = vunpack.c.l.b16 %v252
      %v525 = vunpack.c.l.b16 %v253
      %v526 = vunpack.c.l.b16 %v254
      %v527 = vunpack.c.l.b16 %v255
      %v528 = vunpack.c.l.b16 %v256
      %v529 = vunpack.c.l.b16 %v257
      %v530 = vunpack.c.l.b16 %v258
      %v531 = vunpack.c.l.b16 %v259
      %v532 = vunpack.c.l.b16 %v260
      %v533 = vunpack.c.l.b16 %v261
      %v534 = vunpack.c.l.b16 %v262
      %v535 = vunpack.c.l.b16 %v263
      %v536 = vunpack.c.l.b16 %v264
      %v537 = vunpack.c.l.b16 %v265
      %v538 = vunpack.c.l.b16 %v266
      %v539 = vunpack.c.l.b16 %v267
      %v540 = vunpack.c.l.b16 %v268
      %v541 = vunpack.c.l.b16 %v269
      %v542 = vunpack.c.l.b16 %v270
      %v543 = vunpack.c.l.b16 %v271
      %v544 = vunpack.c.l.b16 %v272
      %v545 = vunpack.c.l.b16 %v273
      %v546 = vunpack.c.l.b16 %v274
      %v547 = vunpack.c.l.b16 %v275
      %v548 = vunpack.c.l.b16 %v276
      %v549 = vunpack.c.l.b16 %v277
      %v550 = vunpack.c.l.b16 %v278
      %v551 = vunpack.c.l.b16 %v279
      %v552 = vunpack.c.l.b16 %v280
      %v553 = vunpack.c.l.b16 %v281
      %v554 = vunpack.c.l.b16 %v282
      %v555 = vunpack.c.l.b16 %v283
      %v556 = vunpack.c.l.b16 %v284
      %v557 = vunpack.c.l.b16 %v285
      %v558 = vunpack.c.l.b16 %v286
      %v559 = vunpack.c.l.b16 %v287
      %v560 = vunpack.c.l.b16 %v288
      %v561 = vunpack.c.l.b16 %v289
      %v562 = vunpack.c.l.b16 %v290
      %v563 = vunpack.c.l.b16 %v291
      %v564 = vunpack.c.l.b16 %v292
      %v565 = vunpack.c.l.b16 %v293
      %v566 = vunpack.c.l.b16 %v294
      %v567 = vunpack.c.l.b16 %v295
      %v568 = vunpack.c.l.b16 %v296
      %v569 = vunpack.c.l.b16 %v297
      %v570 = vunpack.c.l.b16 %v298
      %v571 = vunpack.c.l.b16 %v299
      %v572 = vunpack.c.l.b16 %v300
      %v573 = vunpack.c.l.b16 %v301
      %v574 = vunpack.c.l.b16 %v302
      %v575 = vunpack.c.l.b16 %v303
      %v576 = vunpack.c.l.b16 %v304
      %v577 = vunpack.c.l.b16 %v305
      %v578 = vunpack.c.l.b16 %v306
      %v579 = vunpack.c.l.b16 %v307
      %v580 = vunpack.c.l.b16 %v308
      %v581 = vunpack.c.l.b16 %v309
      %v582 = vunpack.c.l.b16 %v310
      %v583 = vunpack.c.l.b16 %v311
      %v584 = vunpack.c.l.b16 %v312
      %v585 = vunpack.c.l.b16 %v313
      %v586 = vunpack.c.l.b16 %v314
      %v587 = vunpack.c.l.b16 %v315
      %v588 = vunpack.c.l.b16 %v316
      %v589 = vunpack.c.l.b16 %v317
      %v590 = vunpack.c.l.b16 %v318
      %v591 = vunpack.c.l.b16 %v319
      %v592 = vunpack.c.l.b16 %v320
      %v593 = vunpack.c.l.b16 %v321
      %v594 = vunpack.c.l.b16 %v322
      %v595 = vunpack.c.l.b16 %v323
      %v596 = vunpack.c.l.b16 %v324
      %v597 = vunpack.c.l.b16 %v325
      %v598 = vunpack.c.l.b16 %v326
      %v599 = vunpack.c.l.b16 %v327
      %v600 = vunpack.c.l.b16 %v328
      %v601 = vunpack.c.l.b16 %v329
      %v602 = vpack.c.b16 %v475, %v474
      %v603 = vpack.c.b16 %v477, %v476
      %v604 = vpack.c.b16 %v479, %v478
      %v605 = vpack.c.b16 %v481, %v480
      %v606 = vpack.c.b16 %v483, %v482
      %v607 = vpack.c.b16 %v485, %v484
      %v608 = vpack.c.b16 %v487, %v486
      %v609 = vpack.c.b16 %v489, %v488
      %v610 = vpack.c.b16 %v491, %v490
      %v611 = vpack.c.b16 %v493, %v492
      %v612 = vpack.c.b16 %v495, %v494
      %v613 = vpack.c.b16 %v497, %v496
      %v614 = vpack.c.b16 %v499, %v498
      %v615 = vpack.c.b16 %v501, %v500
      %v616 = vpack.c.b16 %v503, %v502
      %v617 = vpack.c.b16 %v505, %v504
      %v618 = vpack.c.b16 %v507, %v506
      %v619 = vpack.c.b16 %v509, %v508
      %v620 = vpack.c.b16 %v511, %v510
      %v621 = vpack.c.b16 %v513, %v512
      %v622 = vpack.c.b16 %v515, %v514
      %v623 = vpack.c.b16 %v517, %v516
      %v624 = vpack.c.b16 %v519, %v518
      %v625 = vpack.c.b16 %v521, %v520
      %v626 = vpack.c.b16 %v523, %v522
      %v627 = vpack.c.b16 %v525, %v524
      %v628 = vpack.c.b16 %v527, %v526
      %v629 = vpack.c.b16 %v529, %v528
      %v630 = vpack.c.b16 %v531, %v530
      %v631 = vpack.c.b16 %v533, %v532
      %v632 = vpack.c.b16 %v535, %v534
      %v633 = vpack.c.b16 %v537, %v536
      %v634 = vpack.c.b16 %v539, %v538
      %v635 = vpack.c.b16 %v541, %v540
      %v636 = vpack.c.b16 %v543, %v542
      %v637 = vpack.c.b16 %v545, %v544
      %v638 = vpack.c.b16 %v547, %v546
      %v639 = vpack.c.b16 %v549, %v548
      %v640 = vpack.c.b16 %v551, %v550
      %v641 = vpack.c.b16 %v553, %v552
      %v642 = vpack.c.b16 %v555, %v554
      %v643 = vpack.c.b16 %v557, %v556
      %v644 = vpack.c.b16 %v559, %v558
      %v645 = vpack.c.b16 %v561, %v560
      %v646 = vpack.c.b16 %v563, %v562
      %v647 = vpack.c.b16 %v565, %v564
      %v648 = vpack.c.b16 %v567, %v566
      %v649 = vpack.c.b16 %v569, %v568
      %v650 = vpack.c.b16 %v571, %v570
      %v651 = vpack.c.b16 %v573, %v572
      %v652 = vpack.c.b16 %v575, %v574
      %v653 = vpack.c.b16 %v577, %v576
      %v654 = vpack.c.b16 %v579, %v578
      %v655 = vpack.c.b16 %v581, %v580
      %v656 = vpack.c.b16 %v583, %v582
      %v657 = vpack.c.b16 %v585, %v584
      %v658 = vpack.c.b16 %v587, %v586
      %v659 = vpack.c.b16 %v589, %v588
      %v660 = vpack.c.b16 %v591, %v590
      %v661 = vpack.c.b16 %v593, %v592
      %v662 = vpack.c.b16 %v595, %v594
      %v663 = vpack.c.b16 %v597, %v596
      %v664 = vpack.c.b16 %v599, %v598
      %v665 = vpack.c.b16 %v601, %v600
      %v675 = vunpack.c.l.b16 %v330
      %v676 = vunpack.c.l.b16 %v331
      %v677 = vunpack.c.l.b16 %v332
      %v678 = vunpack.c.l.b16 %v333
      %v679 = vunpack.c.l.b16 %v334
      %v680 = vunpack.c.l.b16 %v335
      %v681 = vunpack.c.l.b16 %v336
      %v682 = vunpack.c.l.b16 %v337
      %v683 = vunpack.c.l.b16 %v338
      %v684 = vpack.c.b16 %v676, %v675
      %v685 = vpack.c.b16 %v678, %v677
      %v686 = vpack.c.b16 %v680, %v679
      %v687 = vpack.c.b16 %v682, %v681
      %v688 = vpack.c.b16 %v683, %v683
      %vm693 = vcmask 588800
      %v695 = vsel %vm693, %v602, 0
      %v698 = vsel %vm693, %v603, 0
      %v701 = vsel %vm693, %v604, 0
      %v704 = vsel %vm693, %v605, 0
      %v707 = vsel %vm693, %v606, 0
      %v710 = vsel %vm693, %v607, 0
      %v713 = vsel %vm693, %v608, 0
      %v716 = vsel %vm693, %v609, 0
      %v719 = vsel %vm693, %v610, 0
      %v722 = vsel %vm693, %v611, 0
      %v725 = vsel %vm693, %v612, 0
      %v728 = vsel %vm693, %v613, 0
      %v731 = vsel %vm693, %v614, 0
      %v734 = vsel %vm693, %v615, 0
      %v737 = vsel %vm693, %v616, 0
      %v740 = vsel %vm693, %v617, 0
      %v743 = vsel %vm693, %v618, 0
      %v746 = vsel %vm693, %v619, 0
      %v749 = vsel %vm693, %v620, 0
      %v752 = vsel %vm693, %v621, 0
      %v755 = vsel %vm693, %v622, 0
      %v758 = vsel %vm693, %v623, 0
      %v761 = vsel %vm693, %v624, 0
      %v764 = vsel %vm693, %v625, 0
      %v767 = vsel %vm693, %v626, 0
      %v770 = vsel %vm693, %v627, 0
      %v773 = vsel %vm693, %v628, 0
      %v776 = vsel %vm693, %v629, 0
      %v779 = vsel %vm693, %v630, 0
      %v782 = vsel %vm693, %v631, 0
      %v785 = vsel %vm693, %v632, 0
      %v788 = vsel %vm693, %v633, 0
      %v791 = vsel %vm693, %v634, 0
      %v794 = vsel %vm693, %v635, 0
      %v797 = vsel %vm693, %v636, 0
      %v800 = vsel %vm693, %v637, 0
      %v803 = vsel %vm693, %v638, 0
      %v806 = vsel %vm693, %v639, 0
      %v809 = vsel %vm693, %v640, 0
      %v812 = vsel %vm693, %v641, 0
      %v815 = vsel %vm693, %v642, 0
      %v818 = vsel %vm693, %v643, 0
      %v821 = vsel %vm693, %v644, 0
      %v824 = vsel %vm693, %v645, 0
      %v827 = vsel %vm693, %v646, 0
      %v830 = vsel %vm693, %v647, 0
      %v833 = vsel %vm693, %v648, 0
      %v836 = vsel %vm693, %v649, 0
      %v839 = vsel %vm693, %v650, 0
      %v842 = vsel %vm693, %v651, 0
      %v845 = vsel %vm693, %v652, 0
      %v848 = vsel %vm693, %v653, 0
      %v851 = vsel %vm693, %v654, 0
      %v854 = vsel %vm693, %v655, 0
      %v857 = vsel %vm693, %v656, 0
      %v860 = vsel %vm693, %v657, 0
      %v863 = vsel %vm693, %v658, 0
      %v866 = vsel %vm693, %v659, 0
      %v869 = vsel %vm693, %v660, 0
      %v872 = vsel %vm693, %v661, 0
      %v875 = vsel %vm693, %v662, 0
      %v878 = vsel %vm693, %v663, 0
      %v881 = vsel %vm693, %v664, 0
      %v884 = vsel %vm693, %v665, 0
      %vm886 = vcmask 1043456
      %v888 = vsel %vm886, %v688, 0
      %890 = vmatprep.subr.bf16.mxu0 0
      %891 = vmatpush1.bf16.msra.mxu0 %v684
      %892 = vmatprep.subr.bf16.mxu0 0
      %893 = vmatpush1.bf16.msra.mxu0 %v685
      %894 = vmatprep.subr.bf16.mxu0 0
      %895 = vmatpush1.bf16.msra.mxu0 %v686
      %896 = vmatprep.subr.bf16.mxu0 0
      %897 = vmatpush1.bf16.msra.mxu0 %v687
      %898 = vmatprep.subr.bf16.mxu0 0
      %899 = vmatpush1.bf16.msra.mxu0 %v888
      %900 = vmatprep.subr.bf16.mxu0 0
      %901 = vmatpush1.bf16.msra.mxu0 0
      %902 = vmatprep.subr.bf16.mxu0 0
      %903 = vmatpush1.bf16.msra.mxu0 0
      %904 = vmatprep.subr.bf16.mxu0 0
      %905 = vmatpush1.bf16.msra.mxu0 0
      %906 = vmatprep.subr.bf16.mxu0 0
      %907 = vmatpush1.bf16.msra.mxu0 0
      %908 = vmatprep.subr.bf16.mxu0 0
      %909 = vmatpush1.bf16.msra.mxu0 0
      %910 = vmatprep.subr.bf16.mxu0 0
      %911 = vmatpush1.bf16.msra.mxu0 0
      %912 = vmatprep.subr.bf16.mxu0 0
      %913 = vmatpush1.bf16.msra.mxu0 0
      %914 = vmatprep.subr.bf16.mxu0 0
      %915 = vmatpush1.bf16.msra.mxu0 0
      %916 = vmatprep.subr.bf16.mxu0 0
      %917 = vmatpush1.bf16.msra.mxu0 0
      %918 = vmatprep.subr.bf16.mxu0 0
      %919 = vmatpush1.bf16.msra.mxu0 0
      %920 = vmatprep.subr.bf16.mxu0 0
      %921 = vmatpush1.bf16.msra.mxu0 0
      %922 = vmatprep.mubr.bf16.mxu0 0
      %923 = vmatmul.mubr.bf16.gmra.mrb[0].mxu0 %v695
      %v924 = vpop.f32.mrb[0].mxu0
      %v925 = vadd.f32 %v344, %v924
      %v926 = vpop.f32.mrb[0].mxu0
      %v927 = vpop.f32.mrb[0].mxu0
      %v928 = vadd.f32 %v344, %v927
      %v929 = vpop.f32.mrb[0].mxu0
      %930 = vmatprep.mubr.bf16.mxu0 0
      %931 = vmatmul.mubr.bf16.gmra.mrb[0].mxu0 %v698
      %v932 = vpop.f32.mrb[0].mxu0
      %v933 = vadd.f32 %v344, %v932
      %v934 = vpop.f32.mrb[0].mxu0
      %v935 = vpop.f32.mrb[0].mxu0
      %v936 = vadd.f32 %v344, %v935
      %v937 = vpop.f32.mrb[0].mxu0
      %938 = vmatprep.mubr.bf16.mxu0 0
      %939 = vmatmul.mubr.bf16.gmra.mrb[0].mxu0 %v701
      %v940 = vpop.f32.mrb[0].mxu0
      %v941 = vadd.f32 %v344, %v940
      %v942 = vpop.f32.mrb[0].mxu0
      %v943 = vpop.f32.mrb[0].mxu0
      %v944 = vadd.f32 %v344, %v943
      %v945 = vpop.f32.mrb[0].mxu0
      %946 = vmatprep.mubr.bf16.mxu0 0
      %947 = vmatmul.mubr.bf16.gmra.mrb[0].mxu0 %v704
      %v948 = vpop.f32.mrb[0].mxu0
      %v949 = vadd.f32 %v344, %v948
      %v950 = vpop.f32.mrb[0].mxu0
      %v951 = vpop.f32.mrb[0].mxu0
      %v952 = vadd.f32 %v344, %v951
      %v953 = vpop.f32.mrb[0].mxu0
      %954 = vmatprep.mubr.bf16.mxu0 0
      %955 = vmatmul.mubr.bf16.gmra.mrb[0].mxu0 %v707
      %v956 = vpop.f32.mrb[0].mxu0
      %v957 = vadd.f32 %v344, %v956
      %v958 = vpop.f32.mrb[0].mxu0
      %v959 = vpop.f32.mrb[0].mxu0
      %v960 = vadd.f32 %v344, %v959
      %v961 = vpop.f32.mrb[0].mxu0
      %962 = vmatprep.mubr.bf16.mxu0 0
      %963 = vmatmul.mubr.bf16.gmra.mrb[0].mxu0 %v710
      %v964 = vpop.f32.mrb[0].mxu0
      %v965 = vadd.f32 %v344, %v964
      %v966 = vpop.f32.mrb[0].mxu0
      %v967 = vpop.f32.mrb[0].mxu0
      %v968 = vadd.f32 %v344, %v967
      %v969 = vpop.f32.mrb[0].mxu0
      %970 = vmatprep.mubr.bf16.mxu0 0
      %971 = vmatmul.mubr.bf16.gmra.mrb[0].mxu0 %v713
      %v972 = vpop.f32.mrb[0].mxu0
      %v973 = vadd.f32 %v344, %v972
      %v974 = vpop.f32.mrb[0].mxu0
      %v975 = vpop.f32.mrb[0].mxu0
      %v976 = vadd.f32 %v344, %v975
      %v977 = vpop.f32.mrb[0].mxu0
      %978 = vmatprep.mubr.bf16.mxu0 0
      %979 = vmatmul.mubr.bf16.gmra.mrb[0].mxu0 %v716
      %v980 = vpop.f32.mrb[0].mxu0
      %v981 = vadd.f32 %v344, %v980
      %v982 = vpop.f32.mrb[0].mxu0
      %v983 = vpop.f32.mrb[0].mxu0
      %v984 = vadd.f32 %v344, %v983
      %v985 = vpop.f32.mrb[0].mxu0
      %986 = vmatprep.mubr.bf16.mxu0 0
      %987 = vmatmul.mubr.bf16.gmra.mrb[0].mxu0 %v719
      %v988 = vpop.f32.mrb[0].mxu0
      %v989 = vadd.f32 %v344, %v988
      %v990 = vpop.f32.mrb[0].mxu0
      %v991 = vpop.f32.mrb[0].mxu0
      %v992 = vadd.f32 %v344, %v991
      %v993 = vpop.f32.mrb[0].mxu0
      %994 = vmatprep.mubr.bf16.mxu0 0
      %995 = vmatmul.mubr.bf16.gmra.mrb[0].mxu0 %v722
      %v996 = vpop.f32.mrb[0].mxu0
      %v997 = vadd.f32 %v344, %v996
      %v998 = vpop.f32.mrb[0].mxu0
      %v999 = vpop.f32.mrb[0].mxu0
      %v1000 = vadd.f32 %v344, %v999
      %v1001 = vpop.f32.mrb[0].mxu0
      %1002 = vmatprep.mubr.bf16.mxu0 0
      %1003 = vmatmul.mubr.bf16.gmra.mrb[0].mxu0 %v725
      %v1004 = vpop.f32.mrb[0].mxu0
      %v1005 = vadd.f32 %v344, %v1004
      %v1006 = vpop.f32.mrb[0].mxu0
      %v1007 = vpop.f32.mrb[0].mxu0
      %v1008 = vadd.f32 %v344, %v1007
      %v1009 = vpop.f32.mrb[0].mxu0
      %1010 = vmatprep.mubr.bf16.mxu0 0
      %1011 = vmatmul.mubr.bf16.gmra.mrb[0].mxu0 %v728
      %v1012 = vpop.f32.mrb[0].mxu0
      %v1013 = vadd.f32 %v344, %v1012
      %v1014 = vpop.f32.mrb[0].mxu0
      %v1015 = vpop.f32.mrb[0].mxu0
      %v1016 = vadd.f32 %v344, %v1015
      %v1017 = vpop.f32.mrb[0].mxu0
      %1018 = vmatprep.mubr.bf16.mxu0 0
      %1019 = vmatmul.mubr.bf16.gmra.mrb[0].mxu0 %v731
      %v1020 = vpop.f32.mrb[0].mxu0
      %v1021 = vadd.f32 %v344, %v1020
      %v1022 = vpop.f32.mrb[0].mxu0
      %v1023 = vpop.f32.mrb[0].mxu0
      %v1024 = vadd.f32 %v344, %v1023
      %v1025 = vpop.f32.mrb[0].mxu0
      %1026 = vmatprep.mubr.bf16.mxu0 0
      %1027 = vmatmul.mubr.bf16.gmra.mrb[0].mxu0 %v734
      %v1028 = vpop.f32.mrb[0].mxu0
      %v1029 = vadd.f32 %v344, %v1028
      %v1030 = vpop.f32.mrb[0].mxu0
      %v1031 = vpop.f32.mrb[0].mxu0
      %v1032 = vadd.f32 %v344, %v1031
      %v1033 = vpop.f32.mrb[0].mxu0
      %1034 = vmatprep.mubr.bf16.mxu0 0
      %1035 = vmatmul.mubr.bf16.gmra.mrb[0].mxu0 %v737
      %v1036 = vpop.f32.mrb[0].mxu0
      %v1037 = vadd.f32 %v344, %v1036
      %v1038 = vpop.f32.mrb[0].mxu0
      %v1039 = vpop.f32.mrb[0].mxu0
      %v1040 = vadd.f32 %v344, %v1039
      %v1041 = vpop.f32.mrb[0].mxu0
      %1042 = vmatprep.mubr.bf16.mxu0 0
      %1043 = vmatmul.mubr.bf16.gmra.mrb[0].mxu0 %v740
      %v1044 = vpop.f32.mrb[0].mxu0
      %v1045 = vadd.f32 %v344, %v1044
      %v1046 = vpop.f32.mrb[0].mxu0
      %v1047 = vpop.f32.mrb[0].mxu0
      %v1048 = vadd.f32 %v344, %v1047
      %v1049 = vpop.f32.mrb[0].mxu0
      %1050 = vmatprep.mubr.bf16.mxu0 0
      %1051 = vmatmul.mubr.bf16.gmra.mrb[0].mxu0 %v743
      %v1052 = vpop.f32.mrb[0].mxu0
      %v1053 = vadd.f32 %v344, %v1052
      %v1054 = vpop.f32.mrb[0].mxu0
      %v1055 = vpop.f32.mrb[0].mxu0
      %v1056 = vadd.f32 %v344, %v1055
      %v1057 = vpop.f32.mrb[0].mxu0
      %1058 = vmatprep.mubr.bf16.mxu0 0
      %1059 = vmatmul.mubr.bf16.gmra.mrb[0].mxu0 %v746
      %v1060 = vpop.f32.mrb[0].mxu0
      %v1061 = vadd.f32 %v344, %v1060
      %v1062 = vpop.f32.mrb[0].mxu0
      %v1063 = vpop.f32.mrb[0].mxu0
      %v1064 = vadd.f32 %v344, %v1063
      %v1065 = vpop.f32.mrb[0].mxu0
      %1066 = vmatprep.mubr.bf16.mxu0 0
      %1067 = vmatmul.mubr.bf16.gmra.mrb[0].mxu0 %v749
      %v1068 = vpop.f32.mrb[0].mxu0
      %v1069 = vadd.f32 %v344, %v1068
      %v1070 = vpop.f32.mrb[0].mxu0
      %v1071 = vpop.f32.mrb[0].mxu0
      %v1072 = vadd.f32 %v344, %v1071
      %v1073 = vpop.f32.mrb[0].mxu0
      %1074 = vmatprep.mubr.bf16.mxu0 0
      %1075 = vmatmul.mubr.bf16.gmra.mrb[0].mxu0 %v752
      %v1076 = vpop.f32.mrb[0].mxu0
      %v1077 = vadd.f32 %v344, %v1076
      %v1078 = vpop.f32.mrb[0].mxu0
      %v1079 = vpop.f32.mrb[0].mxu0
      %v1080 = vadd.f32 %v344, %v1079
      %v1081 = vpop.f32.mrb[0].mxu0
      %1082 = vmatprep.mubr.bf16.mxu0 0
      %1083 = vmatmul.mubr.bf16.gmra.mrb[0].mxu0 %v755
      %v1084 = vpop.f32.mrb[0].mxu0
      %v1085 = vadd.f32 %v344, %v1084
      %v1086 = vpop.f32.mrb[0].mxu0
      %v1087 = vpop.f32.mrb[0].mxu0
      %v1088 = vadd.f32 %v344, %v1087
      %v1089 = vpop.f32.mrb[0].mxu0
      %1090 = vmatprep.mubr.bf16.mxu0 0
      %1091 = vmatmul.mubr.bf16.gmra.mrb[0].mxu0 %v758
      %v1092 = vpop.f32.mrb[0].mxu0
      %v1093 = vadd.f32 %v344, %v1092
      %v1094 = vpop.f32.mrb[0].mxu0
      %v1095 = vpop.f32.mrb[0].mxu0
      %v1096 = vadd.f32 %v344, %v1095
      %v1097 = vpop.f32.mrb[0].mxu0
      %1098 = vmatprep.mubr.bf16.mxu0 0
      %1099 = vmatmul.mubr.bf16.gmra.mrb[0].mxu0 %v761
      %v1100 = vpop.f32.mrb[0].mxu0
      %v1101 = vadd.f32 %v344, %v1100
      %v1102 = vpop.f32.mrb[0].mxu0
      %v1103 = vpop.f32.mrb[0].mxu0
      %v1104 = vadd.f32 %v344, %v1103
      %v1105 = vpop.f32.mrb[0].mxu0
      %1106 = vmatprep.mubr.bf16.mxu0 0
      %1107 = vmatmul.mubr.bf16.gmra.mrb[0].mxu0 %v764
      %v1108 = vpop.f32.mrb[0].mxu0
      %v1109 = vadd.f32 %v344, %v1108
      %v1110 = vpop.f32.mrb[0].mxu0
      %v1111 = vpop.f32.mrb[0].mxu0
      %v1112 = vadd.f32 %v344, %v1111
      %v1113 = vpop.f32.mrb[0].mxu0
      %1114 = vmatprep.mubr.bf16.mxu0 0
      %1115 = vmatmul.mubr.bf16.gmra.mrb[0].mxu0 %v767
      %v1116 = vpop.f32.mrb[0].mxu0
      %v1117 = vadd.f32 %v344, %v1116
      %v1118 = vpop.f32.mrb[0].mxu0
      %v1119 = vpop.f32.mrb[0].mxu0
      %v1120 = vadd.f32 %v344, %v1119
      %v1121 = vpop.f32.mrb[0].mxu0
      %1122 = vmatprep.mubr.bf16.mxu0 0
      %1123 = vmatmul.mubr.bf16.gmra.mrb[0].mxu0 %v770
      %v1124 = vpop.f32.mrb[0].mxu0
      %v1125 = vadd.f32 %v344, %v1124
      %v1126 = vpop.f32.mrb[0].mxu0
      %v1127 = vpop.f32.mrb[0].mxu0
      %v1128 = vadd.f32 %v344, %v1127
      %v1129 = vpop.f32.mrb[0].mxu0
      %1130 = vmatprep.mubr.bf16.mxu0 0
      %1131 = vmatmul.mubr.bf16.gmra.mrb[0].mxu0 %v773
      %v1132 = vpop.f32.mrb[0].mxu0
      %v1133 = vadd.f32 %v344, %v1132
      %v1134 = vpop.f32.mrb[0].mxu0
      %v1135 = vpop.f32.mrb[0].mxu0
      %v1136 = vadd.f32 %v344, %v1135
      %v1137 = vpop.f32.mrb[0].mxu0
      %1138 = vmatprep.mubr.bf16.mxu0 0
      %1139 = vmatmul.mubr.bf16.gmra.mrb[0].mxu0 %v776
      %v1140 = vpop.f32.mrb[0].mxu0
      %v1141 = vadd.f32 %v344, %v1140
      %v1142 = vpop.f32.mrb[0].mxu0
      %v1143 = vpop.f32.mrb[0].mxu0
      %v1144 = vadd.f32 %v344, %v1143
      %v1145 = vpop.f32.mrb[0].mxu0
      %1146 = vmatprep.mubr.bf16.mxu0 0
      %1147 = vmatmul.mubr.bf16.gmra.mrb[0].mxu0 %v779
      %v1148 = vpop.f32.mrb[0].mxu0
      %v1149 = vadd.f32 %v344, %v1148
      %v1150 = vpop.f32.mrb[0].mxu0
      %v1151 = vpop.f32.mrb[0].mxu0
      %v1152 = vadd.f32 %v344, %v1151
      %v1153 = vpop.f32.mrb[0].mxu0
      %1154 = vmatprep.mubr.bf16.mxu0 0
      %1155 = vmatmul.mubr.bf16.gmra.mrb[0].mxu0 %v782
      %v1156 = vpop.f32.mrb[0].mxu0
      %v1157 = vadd.f32 %v344, %v1156
      %v1158 = vpop.f32.mrb[0].mxu0
      %v1159 = vpop.f32.mrb[0].mxu0
      %v1160 = vadd.f32 %v344, %v1159
      %v1161 = vpop.f32.mrb[0].mxu0
      %1162 = vmatprep.mubr.bf16.mxu0 0
      %1163 = vmatmul.mubr.bf16.gmra.mrb[0].mxu0 %v785
      %v1164 = vpop.f32.mrb[0].mxu0
      %v1165 = vadd.f32 %v344, %v1164
      %v1166 = vpop.f32.mrb[0].mxu0
      %v1167 = vpop.f32.mrb[0].mxu0
      %v1168 = vadd.f32 %v344, %v1167
      %v1169 = vpop.f32.mrb[0].mxu0
      %1170 = vmatprep.mubr.bf16.mxu0 0
      %1171 = vmatmul.mubr.bf16.gmra.mrb[0].mxu0 %v788
      %v1172 = vpop.f32.mrb[0].mxu0
      %v1173 = vadd.f32 %v344, %v1172
      %v1174 = vpop.f32.mrb[0].mxu0
      %v1175 = vpop.f32.mrb[0].mxu0
      %v1176 = vadd.f32 %v344, %v1175
      %v1177 = vpop.f32.mrb[0].mxu0
      %1178 = vmatprep.mubr.bf16.mxu0 0
      %1179 = vmatmul.mubr.bf16.gmra.mrb[0].mxu0 %v791
      %v1180 = vpop.f32.mrb[0].mxu0
      %v1181 = vadd.f32 %v344, %v1180
      %v1182 = vpop.f32.mrb[0].mxu0
      %v1183 = vpop.f32.mrb[0].mxu0
      %v1184 = vadd.f32 %v344, %v1183
      %v1185 = vpop.f32.mrb[0].mxu0
      %1186 = vmatprep.mubr.bf16.mxu0 0
      %1187 = vmatmul.mubr.bf16.gmra.mrb[0].mxu0 %v794
      %v1188 = vpop.f32.mrb[0].mxu0
      %v1189 = vadd.f32 %v344, %v1188
      %v1190 = vpop.f32.mrb[0].mxu0
      %v1191 = vpop.f32.mrb[0].mxu0
      %v1192 = vadd.f32 %v344, %v1191
      %v1193 = vpop.f32.mrb[0].mxu0
      %1194 = vmatprep.mubr.bf16.mxu0 0
      %1195 = vmatmul.mubr.bf16.gmra.mrb[0].mxu0 %v797
      %v1196 = vpop.f32.mrb[0].mxu0
      %v1197 = vadd.f32 %v344, %v1196
      %v1198 = vpop.f32.mrb[0].mxu0
      %v1199 = vpop.f32.mrb[0].mxu0
      %v1200 = vadd.f32 %v344, %v1199
      %v1201 = vpop.f32.mrb[0].mxu0
      %1202 = vmatprep.mubr.bf16.mxu0 0
      %1203 = vmatmul.mubr.bf16.gmra.mrb[0].mxu0 %v800
      %v1204 = vpop.f32.mrb[0].mxu0
      %v1205 = vadd.f32 %v344, %v1204
      %v1206 = vpop.f32.mrb[0].mxu0
      %v1207 = vpop.f32.mrb[0].mxu0
      %v1208 = vadd.f32 %v344, %v1207
      %v1209 = vpop.f32.mrb[0].mxu0
      %1210 = vmatprep.mubr.bf16.mxu0 0
      %1211 = vmatmul.mubr.bf16.gmra.mrb[0].mxu0 %v803
      %v1212 = vpop.f32.mrb[0].mxu0
      %v1213 = vadd.f32 %v344, %v1212
      %v1214 = vpop.f32.mrb[0].mxu0
      %v1215 = vpop.f32.mrb[0].mxu0
      %v1216 = vadd.f32 %v344, %v1215
      %v1217 = vpop.f32.mrb[0].mxu0
      %1218 = vmatprep.mubr.bf16.mxu0 0
      %1219 = vmatmul.mubr.bf16.gmra.mrb[0].mxu0 %v806
      %v1220 = vpop.f32.mrb[0].mxu0
      %v1221 = vadd.f32 %v344, %v1220
      %v1222 = vpop.f32.mrb[0].mxu0
      %v1223 = vpop.f32.mrb[0].mxu0
      %v1224 = vadd.f32 %v344, %v1223
      %v1225 = vpop.f32.mrb[0].mxu0
      %1226 = vmatprep.mubr.bf16.mxu0 0
      %1227 = vmatmul.mubr.bf16.gmra.mrb[0].mxu0 %v809
      %v1228 = vpop.f32.mrb[0].mxu0
      %v1229 = vadd.f32 %v344, %v1228
      %v1230 = vpop.f32.mrb[0].mxu0
      %v1231 = vpop.f32.mrb[0].mxu0
      %v1232 = vadd.f32 %v344, %v1231
      %v1233 = vpop.f32.mrb[0].mxu0
      %1234 = vmatprep.mubr.bf16.mxu0 0
      %1235 = vmatmul.mubr.bf16.gmra.mrb[0].mxu0 %v812
      %v1236 = vpop.f32.mrb[0].mxu0
      %v1237 = vadd.f32 %v344, %v1236
      %v1238 = vpop.f32.mrb[0].mxu0
      %v1239 = vpop.f32.mrb[0].mxu0
      %v1240 = vadd.f32 %v344, %v1239
      %v1241 = vpop.f32.mrb[0].mxu0
      %1242 = vmatprep.mubr.bf16.mxu0 0
      %1243 = vmatmul.mubr.bf16.gmra.mrb[0].mxu0 %v815
      %v1244 = vpop.f32.mrb[0].mxu0
      %v1245 = vadd.f32 %v344, %v1244
      %v1246 = vpop.f32.mrb[0].mxu0
      %v1247 = vpop.f32.mrb[0].mxu0
      %v1248 = vadd.f32 %v344, %v1247
      %v1249 = vpop.f32.mrb[0].mxu0
      %1250 = vmatprep.mubr.bf16.mxu0 0
      %1251 = vmatmul.mubr.bf16.gmra.mrb[0].mxu0 %v818
      %v1252 = vpop.f32.mrb[0].mxu0
      %v1253 = vadd.f32 %v344, %v1252
      %v1254 = vpop.f32.mrb[0].mxu0
      %v1255 = vpop.f32.mrb[0].mxu0
      %v1256 = vadd.f32 %v344, %v1255
      %v1257 = vpop.f32.mrb[0].mxu0
      %1258 = vmatprep.mubr.bf16.mxu0 0
      %1259 = vmatmul.mubr.bf16.gmra.mrb[0].mxu0 %v821
      %v1260 = vpop.f32.mrb[0].mxu0
      %v1261 = vadd.f32 %v344, %v1260
      %v1262 = vpop.f32.mrb[0].mxu0
      %v1263 = vpop.f32.mrb[0].mxu0
      %v1264 = vadd.f32 %v344, %v1263
      %v1265 = vpop.f32.mrb[0].mxu0
      %1266 = vmatprep.mubr.bf16.mxu0 0
      %1267 = vmatmul.mubr.bf16.gmra.mrb[0].mxu0 %v824
      %v1268 = vpop.f32.mrb[0].mxu0
      %v1269 = vadd.f32 %v344, %v1268
      %v1270 = vpop.f32.mrb[0].mxu0
      %v1271 = vpop.f32.mrb[0].mxu0
      %v1272 = vadd.f32 %v344, %v1271
      %v1273 = vpop.f32.mrb[0].mxu0
      %1274 = vmatprep.mubr.bf16.mxu0 0
      %1275 = vmatmul.mubr.bf16.gmra.mrb[0].mxu0 %v827
      %v1276 = vpop.f32.mrb[0].mxu0
      %v1277 = vadd.f32 %v344, %v1276
      %v1278 = vpop.f32.mrb[0].mxu0
      %v1279 = vpop.f32.mrb[0].mxu0
      %v1280 = vadd.f32 %v344, %v1279
      %v1281 = vpop.f32.mrb[0].mxu0
      %1282 = vmatprep.mubr.bf16.mxu0 0
      %1283 = vmatmul.mubr.bf16.gmra.mrb[0].mxu0 %v830
      %v1284 = vpop.f32.mrb[0].mxu0
      %v1285 = vadd.f32 %v344, %v1284
      %v1286 = vpop.f32.mrb[0].mxu0
      %v1287 = vpop.f32.mrb[0].mxu0
      %v1288 = vadd.f32 %v344, %v1287
      %v1289 = vpop.f32.mrb[0].mxu0
      %1290 = vmatprep.mubr.bf16.mxu0 0
      %1291 = vmatmul.mubr.bf16.gmra.mrb[0].mxu0 %v833
      %v1292 = vpop.f32.mrb[0].mxu0
      %v1293 = vadd.f32 %v344, %v1292
      %v1294 = vpop.f32.mrb[0].mxu0
      %v1295 = vpop.f32.mrb[0].mxu0
      %v1296 = vadd.f32 %v344, %v1295
      %v1297 = vpop.f32.mrb[0].mxu0
      %1298 = vmatprep.mubr.bf16.mxu0 0
      %1299 = vmatmul.mubr.bf16.gmra.mrb[0].mxu0 %v836
      %v1300 = vpop.f32.mrb[0].mxu0
      %v1301 = vadd.f32 %v344, %v1300
      %v1302 = vpop.f32.mrb[0].mxu0
      %v1303 = vpop.f32.mrb[0].mxu0
      %v1304 = vadd.f32 %v344, %v1303
      %v1305 = vpop.f32.mrb[0].mxu0
      %1306 = vmatprep.mubr.bf16.mxu0 0
      %1307 = vmatmul.mubr.bf16.gmra.mrb[0].mxu0 %v839
      %v1308 = vpop.f32.mrb[0].mxu0
      %v1309 = vadd.f32 %v344, %v1308
      %v1310 = vpop.f32.mrb[0].mxu0
      %v1311 = vpop.f32.mrb[0].mxu0
      %v1312 = vadd.f32 %v344, %v1311
      %v1313 = vpop.f32.mrb[0].mxu0
      %1314 = vmatprep.mubr.bf16.mxu0 0
      %1315 = vmatmul.mubr.bf16.gmra.mrb[0].mxu0 %v842
      %v1316 = vpop.f32.mrb[0].mxu0
      %v1317 = vadd.f32 %v344, %v1316
      %v1318 = vpop.f32.mrb[0].mxu0
      %v1319 = vpop.f32.mrb[0].mxu0
      %v1320 = vadd.f32 %v344, %v1319
      %v1321 = vpop.f32.mrb[0].mxu0
      %1322 = vmatprep.mubr.bf16.mxu0 0
      %1323 = vmatmul.mubr.bf16.gmra.mrb[0].mxu0 %v845
      %v1324 = vpop.f32.mrb[0].mxu0
      %v1325 = vadd.f32 %v344, %v1324
      %v1326 = vpop.f32.mrb[0].mxu0
      %v1327 = vpop.f32.mrb[0].mxu0
      %v1328 = vadd.f32 %v344, %v1327
      %v1329 = vpop.f32.mrb[0].mxu0
      %1330 = vmatprep.mubr.bf16.mxu0 0
      %1331 = vmatmul.mubr.bf16.gmra.mrb[0].mxu0 %v848
      %v1332 = vpop.f32.mrb[0].mxu0
      %v1333 = vadd.f32 %v344, %v1332
      %v1334 = vpop.f32.mrb[0].mxu0
      %v1335 = vpop.f32.mrb[0].mxu0
      %v1336 = vadd.f32 %v344, %v1335
      %v1337 = vpop.f32.mrb[0].mxu0
      %1338 = vmatprep.mubr.bf16.mxu0 0
      %1339 = vmatmul.mubr.bf16.gmra.mrb[0].mxu0 %v851
      %v1340 = vpop.f32.mrb[0].mxu0
      %v1341 = vadd.f32 %v344, %v1340
      %v1342 = vpop.f32.mrb[0].mxu0
      %v1343 = vpop.f32.mrb[0].mxu0
      %v1344 = vadd.f32 %v344, %v1343
      %v1345 = vpop.f32.mrb[0].mxu0
      %1346 = vmatprep.mubr.bf16.mxu0 0
      %1347 = vmatmul.mubr.bf16.gmra.mrb[0].mxu0 %v854
      %v1348 = vpop.f32.mrb[0].mxu0
      %v1349 = vadd.f32 %v344, %v1348
      %v1350 = vpop.f32.mrb[0].mxu0
      %v1351 = vpop.f32.mrb[0].mxu0
      %v1352 = vadd.f32 %v344, %v1351
      %v1353 = vpop.f32.mrb[0].mxu0
      %1354 = vmatprep.mubr.bf16.mxu0 0
      %1355 = vmatmul.mubr.bf16.gmra.mrb[0].mxu0 %v857
      %v1356 = vpop.f32.mrb[0].mxu0
      %v1357 = vadd.f32 %v344, %v1356
      %v1358 = vpop.f32.mrb[0].mxu0
      %v1359 = vpop.f32.mrb[0].mxu0
      %v1360 = vadd.f32 %v344, %v1359
      %v1361 = vpop.f32.mrb[0].mxu0
      %1362 = vmatprep.mubr.bf16.mxu0 0
      %1363 = vmatmul.mubr.bf16.gmra.mrb[0].mxu0 %v860
      %v1364 = vpop.f32.mrb[0].mxu0
      %v1365 = vadd.f32 %v344, %v1364
      %v1366 = vpop.f32.mrb[0].mxu0
      %v1367 = vpop.f32.mrb[0].mxu0
      %v1368 = vadd.f32 %v344, %v1367
      %v1369 = vpop.f32.mrb[0].mxu0
      %1370 = vmatprep.mubr.bf16.mxu0 0
      %1371 = vmatmul.mubr.bf16.gmra.mrb[0].mxu0 %v863
      %v1372 = vpop.f32.mrb[0].mxu0
      %v1373 = vadd.f32 %v344, %v1372
      %v1374 = vpop.f32.mrb[0].mxu0
      %v1375 = vpop.f32.mrb[0].mxu0
      %v1376 = vadd.f32 %v344, %v1375
      %v1377 = vpop.f32.mrb[0].mxu0
      %1378 = vmatprep.mubr.bf16.mxu0 0
      %1379 = vmatmul.mubr.bf16.gmra.mrb[0].mxu0 %v866
      %v1380 = vpop.f32.mrb[0].mxu0
      %v1381 = vadd.f32 %v344, %v1380
      %v1382 = vpop.f32.mrb[0].mxu0
      %v1383 = vpop.f32.mrb[0].mxu0
      %v1384 = vadd.f32 %v344, %v1383
      %v1385 = vpop.f32.mrb[0].mxu0
      %1386 = vmatprep.mubr.bf16.mxu0 0
      %1387 = vmatmul.mubr.bf16.gmra.mrb[0].mxu0 %v869
      %v1388 = vpop.f32.mrb[0].mxu0
      %v1389 = vadd.f32 %v344, %v1388
      %v1390 = vpop.f32.mrb[0].mxu0
      %v1391 = vpop.f32.mrb[0].mxu0
      %v1392 = vadd.f32 %v344, %v1391
      %v1393 = vpop.f32.mrb[0].mxu0
      %1394 = vmatprep.mubr.bf16.mxu0 0
      %1395 = vmatmul.mubr.bf16.gmra.mrb[0].mxu0 %v872
      %v1396 = vpop.f32.mrb[0].mxu0
      %v1397 = vadd.f32 %v344, %v1396
      %v1398 = vpop.f32.mrb[0].mxu0
      %v1399 = vpop.f32.mrb[0].mxu0
      %v1400 = vadd.f32 %v344, %v1399
      %v1401 = vpop.f32.mrb[0].mxu0
      %1402 = vmatprep.mubr.bf16.mxu0 0
      %1403 = vmatmul.mubr.bf16.gmra.mrb[0].mxu0 %v875
      %v1404 = vpop.f32.mrb[0].mxu0
      %v1405 = vadd.f32 %v344, %v1404
      %v1406 = vpop.f32.mrb[0].mxu0
      %v1407 = vpop.f32.mrb[0].mxu0
      %v1408 = vadd.f32 %v344, %v1407
      %v1409 = vpop.f32.mrb[0].mxu0
      %1410 = vmatprep.mubr.bf16.mxu0 0
      %1411 = vmatmul.mubr.bf16.gmra.mrb[0].mxu0 %v878
      %v1412 = vpop.f32.mrb[0].mxu0
      %v1413 = vadd.f32 %v344, %v1412
      %v1414 = vpop.f32.mrb[0].mxu0
      %v1415 = vpop.f32.mrb[0].mxu0
      %v1416 = vadd.f32 %v344, %v1415
      %v1417 = vpop.f32.mrb[0].mxu0
      %1418 = vmatprep.mubr.bf16.mxu0 0
      %1419 = vmatmul.mubr.bf16.gmra.mrb[0].mxu0 %v881
      %v1420 = vpop.f32.mrb[0].mxu0
      %v1421 = vadd.f32 %v344, %v1420
      %v1422 = vpop.f32.mrb[0].mxu0
      %v1423 = vpop.f32.mrb[0].mxu0
      %v1424 = vadd.f32 %v344, %v1423
      %v1425 = vpop.f32.mrb[0].mxu0
      %1426 = vmatprep.mubr.bf16.mxu0 0
      %1427 = vmatmul.mubr.bf16.gmra.mrb[0].mxu0 %v884
      %v1428 = vpop.f32.mrb[0].mxu0
      %v1429 = vadd.f32 %v344, %v1428
      %v1430 = vpop.f32.mrb[0].mxu0
      %v1431 = vpop.f32.mrb[0].mxu0
      %v1432 = vadd.f32 %v344, %v1431
      %v1433 = vpop.f32.mrb[0].mxu0
      %1434 = vdwg.mxu0
      %v1435 = vtanh.pop %v925
      %v1436 = vtanh.pop %v928
      %v1437 = vtanh.pop %v933
      %v1438 = vtanh.pop %v936
      %v1439 = vtanh.pop %v941
      %v1440 = vtanh.pop %v944
      %v1441 = vtanh.pop %v949
      %v1442 = vtanh.pop %v952
      %v1443 = vtanh.pop %v957
      %v1444 = vtanh.pop %v960
      %v1445 = vtanh.pop %v965
      %v1446 = vtanh.pop %v968
      %v1447 = vtanh.pop %v973
      %v1448 = vtanh.pop %v976
      %v1449 = vtanh.pop %v981
      %v1450 = vtanh.pop %v984
      %v1451 = vtanh.pop %v989
      %v1452 = vtanh.pop %v992
      %v1453 = vtanh.pop %v997
      %v1454 = vtanh.pop %v1000
      %v1455 = vtanh.pop %v1005
      %v1456 = vtanh.pop %v1008
      %v1457 = vtanh.pop %v1013
      %v1458 = vtanh.pop %v1016
      %v1459 = vtanh.pop %v1021
      %v1460 = vtanh.pop %v1024
      %v1461 = vtanh.pop %v1029
      %v1462 = vtanh.pop %v1032
      %v1463 = vtanh.pop %v1037
      %v1464 = vtanh.pop %v1040
      %v1465 = vtanh.pop %v1045
      %v1466 = vtanh.pop %v1048
      %v1467 = vtanh.pop %v1053
      %v1468 = vtanh.pop %v1056
      %v1469 = vtanh.pop %v1061
      %v1470 = vtanh.pop %v1064
      %v1471 = vtanh.pop %v1069
      %v1472 = vtanh.pop %v1072
      %v1473 = vtanh.pop %v1077
      %v1474 = vtanh.pop %v1080
      %v1475 = vtanh.pop %v1085
      %v1476 = vtanh.pop %v1088
      %v1477 = vtanh.pop %v1093
      %v1478 = vtanh.pop %v1096
      %v1479 = vtanh.pop %v1101
      %v1480 = vtanh.pop %v1104
      %v1481 = vtanh.pop %v1109
      %v1482 = vtanh.pop %v1112
      %v1483 = vtanh.pop %v1117
      %v1484 = vtanh.pop %v1120
      %v1485 = vtanh.pop %v1125
      %v1486 = vtanh.pop %v1128
      %v1487 = vtanh.pop %v1133
      %v1488 = vtanh.pop %v1136
      %v1489 = vtanh.pop %v1141
      %v1490 = vtanh.pop %v1144
      %v1491 = vtanh.pop %v1149
      %v1492 = vtanh.pop %v1152
      %v1493 = vtanh.pop %v1157
      %v1494 = vtanh.pop %v1160
      %v1495 = vtanh.pop %v1165
      %v1496 = vtanh.pop %v1168
      %v1497 = vtanh.pop %v1173
      %v1498 = vtanh.pop %v1176
      %v1499 = vtanh.pop %v1181
      %v1500 = vtanh.pop %v1184
      %v1501 = vtanh.pop %v1189
      %v1502 = vtanh.pop %v1192
      %v1503 = vtanh.pop %v1197
      %v1504 = vtanh.pop %v1200
      %v1505 = vtanh.pop %v1205
      %v1506 = vtanh.pop %v1208
      %v1507 = vtanh.pop %v1213
      %v1508 = vtanh.pop %v1216
      %v1509 = vtanh.pop %v1221
      %v1510 = vtanh.pop %v1224
      %v1511 = vtanh.pop %v1229
      %v1512 = vtanh.pop %v1232
      %v1513 = vtanh.pop %v1237
      %v1514 = vtanh.pop %v1240
      %v1515 = vtanh.pop %v1245
      %v1516 = vtanh.pop %v1248
      %v1517 = vtanh.pop %v1253
      %v1518 = vtanh.pop %v1256
      %v1519 = vtanh.pop %v1261
      %v1520 = vtanh.pop %v1264
      %v1521 = vtanh.pop %v1269
      %v1522 = vtanh.pop %v1272
      %v1523 = vtanh.pop %v1277
      %v1524 = vtanh.pop %v1280
      %v1525 = vtanh.pop %v1285
      %v1526 = vtanh.pop %v1288
      %v1527 = vtanh.pop %v1293
      %v1528 = vtanh.pop %v1296
      %v1529 = vtanh.pop %v1301
      %v1530 = vtanh.pop %v1304
      %v1531 = vtanh.pop %v1309
      %v1532 = vtanh.pop %v1312
      %v1533 = vtanh.pop %v1317
      %v1534 = vtanh.pop %v1320
      %v1535 = vtanh.pop %v1325
      %v1536 = vtanh.pop %v1328
      %v1537 = vtanh.pop %v1333
      %v1538 = vtanh.pop %v1336
      %v1539 = vtanh.pop %v1341
      %v1540 = vtanh.pop %v1344
      %v1541 = vtanh.pop %v1349
      %v1542 = vtanh.pop %v1352
      %v1543 = vtanh.pop %v1357
      %v1544 = vtanh.pop %v1360
      %v1545 = vtanh.pop %v1365
      %v1546 = vtanh.pop %v1368
      %v1547 = vtanh.pop %v1373
      %v1548 = vtanh.pop %v1376
      %v1549 = vtanh.pop %v1381
      %v1550 = vtanh.pop %v1384
      %v1551 = vtanh.pop %v1389
      %v1552 = vtanh.pop %v1392
      %v1553 = vtanh.pop %v1397
      %v1554 = vtanh.pop %v1400
      %v1555 = vtanh.pop %v1405
      %v1556 = vtanh.pop %v1408
      %v1557 = vtanh.pop %v1413
      %v1558 = vtanh.pop %v1416
      %v1559 = vtanh.pop %v1421
      %v1560 = vtanh.pop %v1424
      %v1561 = vtanh.pop %v1429
      %v1562 = vtanh.pop %v1432
      %vm1563 = vcmask 97280
      %1564 = vst.msk [vmem:[%s199] sm:$0xff] %vm1563, %v1435
      %1565 = vst.msk [vmem:[%s199 + $0x8] sm:$0xff] %vm1563, %v1436
      %1566 = vst.msk [vmem:[%s199 + $0x10] sm:$0xff] %vm1563, %v1437
      %1567 = vst.msk [vmem:[%s199 + $0x18] sm:$0xff] %vm1563, %v1438
      %1568 = vst.msk [vmem:[%s199 + $0x20] sm:$0xff] %vm1563, %v1439
      %1569 = vst.msk [vmem:[%s199 + $0x28] sm:$0xff] %vm1563, %v1440
      %1570 = vst.msk [vmem:[%s199 + $0x30] sm:$0xff] %vm1563, %v1441
      %1571 = vst.msk [vmem:[%s199 + $0x38] sm:$0xff] %vm1563, %v1442
      %1572 = vst.msk [vmem:[%s199 + $0x40] sm:$0xff] %vm1563, %v1443
      %1573 = vst.msk [vmem:[%s199 + $0x48] sm:$0xff] %vm1563, %v1444
      %1574 = vst.msk [vmem:[%s199 + $0x50] sm:$0xff] %vm1563, %v1445
      %1575 = vst.msk [vmem:[%s199 + $0x58] sm:$0xff] %vm1563, %v1446
      %1576 = vst.msk [vmem:[%s199 + $0x60] sm:$0xff] %vm1563, %v1447
      %1577 = vst.msk [vmem:[%s199 + $0x68] sm:$0xff] %vm1563, %v1448
      %1578 = vst.msk [vmem:[%s199 + $0x70] sm:$0xff] %vm1563, %v1449
      %1579 = vst.msk [vmem:[%s199 + $0x78] sm:$0xff] %vm1563, %v1450
      %1580 = vst.msk [vmem:[%s199 + $0x80] sm:$0xff] %vm1563, %v1451
      %1581 = vst.msk [vmem:[%s199 + $0x88] sm:$0xff] %vm1563, %v1452
      %1582 = vst.msk [vmem:[%s199 + $0x90] sm:$0xff] %vm1563, %v1453
      %1583 = vst.msk [vmem:[%s199 + $0x98] sm:$0xff] %vm1563, %v1454
      %1584 = vst.msk [vmem:[%s199 + $0xa0] sm:$0xff] %vm1563, %v1455
      %1585 = vst.msk [vmem:[%s199 + $0xa8] sm:$0xff] %vm1563, %v1456
      %1586 = vst.msk [vmem:[%s199 + $0xb0] sm:$0xff] %vm1563, %v1457
      %1587 = vst.msk [vmem:[%s199 + $0xb8] sm:$0xff] %vm1563, %v1458
      %1588 = vst.msk [vmem:[%s199 + $0xc0] sm:$0xff] %vm1563, %v1459
      %1589 = vst.msk [vmem:[%s199 + $0xc8] sm:$0xff] %vm1563, %v1460
      %1590 = vst.msk [vmem:[%s199 + $0xd0] sm:$0xff] %vm1563, %v1461
      %1591 = vst.msk [vmem:[%s199 + $0xd8] sm:$0xff] %vm1563, %v1462
      %1592 = vst.msk [vmem:[%s199 + $0xe0] sm:$0xff] %vm1563, %v1463
      %1593 = vst.msk [vmem:[%s199 + $0xe8] sm:$0xff] %vm1563, %v1464
      %1594 = vst.msk [vmem:[%s199 + $0xf0] sm:$0xff] %vm1563, %v1465
      %1595 = vst.msk [vmem:[%s199 + $0xf8] sm:$0xff] %vm1563, %v1466
      %1596 = vst.msk [vmem:[%s199 + $0x100] sm:$0xff] %vm1563, %v1467
      %1597 = vst.msk [vmem:[%s199 + $0x108] sm:$0xff] %vm1563, %v1468
      %1598 = vst.msk [vmem:[%s199 + $0x110] sm:$0xff] %vm1563, %v1469
      %1599 = vst.msk [vmem:[%s199 + $0x118] sm:$0xff] %vm1563, %v1470
      %1600 = vst.msk [vmem:[%s199 + $0x120] sm:$0xff] %vm1563, %v1471
      %1601 = vst.msk [vmem:[%s199 + $0x128] sm:$0xff] %vm1563, %v1472
      %1602 = vst.msk [vmem:[%s199 + $0x130] sm:$0xff] %vm1563, %v1473
      %1603 = vst.msk [vmem:[%s199 + $0x138] sm:$0xff] %vm1563, %v1474
      %1604 = vst.msk [vmem:[%s199 + $0x140] sm:$0xff] %vm1563, %v1475
      %1605 = vst.msk [vmem:[%s199 + $0x148] sm:$0xff] %vm1563, %v1476
      %1606 = vst.msk [vmem:[%s199 + $0x150] sm:$0xff] %vm1563, %v1477
      %1607 = vst.msk [vmem:[%s199 + $0x158] sm:$0xff] %vm1563, %v1478
      %1608 = vst.msk [vmem:[%s199 + $0x160] sm:$0xff] %vm1563, %v1479
      %1609 = vst.msk [vmem:[%s199 + $0x168] sm:$0xff] %vm1563, %v1480
      %1610 = vst.msk [vmem:[%s199 + $0x170] sm:$0xff] %vm1563, %v1481
      %1611 = vst.msk [vmem:[%s199 + $0x178] sm:$0xff] %vm1563, %v1482
      %1612 = vst.msk [vmem:[%s199 + $0x180] sm:$0xff] %vm1563, %v1483
      %1613 = vst.msk [vmem:[%s199 + $0x188] sm:$0xff] %vm1563, %v1484
      %1614 = vst.msk [vmem:[%s199 + $0x190] sm:$0xff] %vm1563, %v1485
      %1615 = vst.msk [vmem:[%s199 + $0x198] sm:$0xff] %vm1563, %v1486
      %1616 = vst.msk [vmem:[%s199 + $0x1a0] sm:$0xff] %vm1563, %v1487
      %1617 = vst.msk [vmem:[%s199 + $0x1a8] sm:$0xff] %vm1563, %v1488
      %1618 = vst.msk [vmem:[%s199 + $0x1b0] sm:$0xff] %vm1563, %v1489
      %1619 = vst.msk [vmem:[%s199 + $0x1b8] sm:$0xff] %vm1563, %v1490
      %1620 = vst.msk [vmem:[%s199 + $0x1c0] sm:$0xff] %vm1563, %v1491
      %1621 = vst.msk [vmem:[%s199 + $0x1c8] sm:$0xff] %vm1563, %v1492
      %1622 = vst.msk [vmem:[%s199 + $0x1d0] sm:$0xff] %vm1563, %v1493
      %1623 = vst.msk [vmem:[%s199 + $0x1d8] sm:$0xff] %vm1563, %v1494
      %1624 = vst.msk [vmem:[%s199 + $0x1e0] sm:$0xff] %vm1563, %v1495
      %1625 = vst.msk [vmem:[%s199 + $0x1e8] sm:$0xff] %vm1563, %v1496
      %1626 = vst.msk [vmem:[%s199 + $0x1f0] sm:$0xff] %vm1563, %v1497
      %1627 = vst.msk [vmem:[%s199 + $0x1f8] sm:$0xff] %vm1563, %v1498
      %1628 = vst.msk [vmem:[%s199 + $0x200] sm:$0xff] %vm1563, %v1499
      %1629 = vst.msk [vmem:[%s199 + $0x208] sm:$0xff] %vm1563, %v1500
      %1630 = vst.msk [vmem:[%s199 + $0x210] sm:$0xff] %vm1563, %v1501
      %1631 = vst.msk [vmem:[%s199 + $0x218] sm:$0xff] %vm1563, %v1502
      %1632 = vst.msk [vmem:[%s199 + $0x220] sm:$0xff] %vm1563, %v1503
      %1633 = vst.msk [vmem:[%s199 + $0x228] sm:$0xff] %vm1563, %v1504
      %1634 = vst.msk [vmem:[%s199 + $0x230] sm:$0xff] %vm1563, %v1505
      %1635 = vst.msk [vmem:[%s199 + $0x238] sm:$0xff] %vm1563, %v1506
      %1636 = vst.msk [vmem:[%s199 + $0x240] sm:$0xff] %vm1563, %v1507
      %1637 = vst.msk [vmem:[%s199 + $0x248] sm:$0xff] %vm1563, %v1508
      %1638 = vst.msk [vmem:[%s199 + $0x250] sm:$0xff] %vm1563, %v1509
      %1639 = vst.msk [vmem:[%s199 + $0x258] sm:$0xff] %vm1563, %v1510
      %1640 = vst.msk [vmem:[%s199 + $0x260] sm:$0xff] %vm1563, %v1511
      %1641 = vst.msk [vmem:[%s199 + $0x268] sm:$0xff] %vm1563, %v1512
      %1642 = vst.msk [vmem:[%s199 + $0x270] sm:$0xff] %vm1563, %v1513
      %1643 = vst.msk [vmem:[%s199 + $0x278] sm:$0xff] %vm1563, %v1514
      %1644 = vst.msk [vmem:[%s199 + $0x280] sm:$0xff] %vm1563, %v1515
      %1645 = vst.msk [vmem:[%s199 + $0x288] sm:$0xff] %vm1563, %v1516
      %1646 = vst.msk [vmem:[%s199 + $0x290] sm:$0xff] %vm1563, %v1517
      %1647 = vst.msk [vmem:[%s199 + $0x298] sm:$0xff] %vm1563, %v1518
      %1648 = vst.msk [vmem:[%s199 + $0x2a0] sm:$0xff] %vm1563, %v1519
      %1649 = vst.msk [vmem:[%s199 + $0x2a8] sm:$0xff] %vm1563, %v1520
      %1650 = vst.msk [vmem:[%s199 + $0x2b0] sm:$0xff] %vm1563, %v1521
      %1651 = vst.msk [vmem:[%s199 + $0x2b8] sm:$0xff] %vm1563, %v1522
      %1652 = vst.msk [vmem:[%s199 + $0x2c0] sm:$0xff] %vm1563, %v1523
      %1653 = vst.msk [vmem:[%s199 + $0x2c8] sm:$0xff] %vm1563, %v1524
      %1654 = vst.msk [vmem:[%s199 + $0x2d0] sm:$0xff] %vm1563, %v1525
      %1655 = vst.msk [vmem:[%s199 + $0x2d8] sm:$0xff] %vm1563, %v1526
      %1656 = vst.msk [vmem:[%s199 + $0x2e0] sm:$0xff] %vm1563, %v1527
      %1657 = vst.msk [vmem:[%s199 + $0x2e8] sm:$0xff] %vm1563, %v1528
      %1658 = vst.msk [vmem:[%s199 + $0x2f0] sm:$0xff] %vm1563, %v1529
      %1659 = vst.msk [vmem:[%s199 + $0x2f8] sm:$0xff] %vm1563, %v1530
      %1660 = vst.msk [vmem:[%s199 + $0x300] sm:$0xff] %vm1563, %v1531
      %1661 = vst.msk [vmem:[%s199 + $0x308] sm:$0xff] %vm1563, %v1532
      %1662 = vst.msk [vmem:[%s199 + $0x310] sm:$0xff] %vm1563, %v1533
      %1663 = vst.msk [vmem:[%s199 + $0x318] sm:$0xff] %vm1563, %v1534
      %1664 = vst.msk [vmem:[%s199 + $0x320] sm:$0xff] %vm1563, %v1535
      %1665 = vst.msk [vmem:[%s199 + $0x328] sm:$0xff] %vm1563, %v1536
      %1666 = vst.msk [vmem:[%s199 + $0x330] sm:$0xff] %vm1563, %v1537
      %1667 = vst.msk [vmem:[%s199 + $0x338] sm:$0xff] %vm1563, %v1538
      %1668 = vst.msk [vmem:[%s199 + $0x340] sm:$0xff] %vm1563, %v1539
      %1669 = vst.msk [vmem:[%s199 + $0x348] sm:$0xff] %vm1563, %v1540
      %1670 = vst.msk [vmem:[%s199 + $0x350] sm:$0xff] %vm1563, %v1541
      %1671 = vst.msk [vmem:[%s199 + $0x358] sm:$0xff] %vm1563, %v1542
      %1672 = vst.msk [vmem:[%s199 + $0x360] sm:$0xff] %vm1563, %v1543
      %1673 = vst.msk [vmem:[%s199 + $0x368] sm:$0xff] %vm1563, %v1544
      %1674 = vst.msk [vmem:[%s199 + $0x370] sm:$0xff] %vm1563, %v1545
      %1675 = vst.msk [vmem:[%s199 + $0x378] sm:$0xff] %vm1563, %v1546
      %1676 = vst.msk [vmem:[%s199 + $0x380] sm:$0xff] %vm1563, %v1547
      %1677 = vst.msk [vmem:[%s199 + $0x388] sm:$0xff] %vm1563, %v1548
      %1678 = vst.msk [vmem:[%s199 + $0x390] sm:$0xff] %vm1563, %v1549
      %1679 = vst.msk [vmem:[%s199 + $0x398] sm:$0xff] %vm1563, %v1550
      %1680 = vst.msk [vmem:[%s199 + $0x3a0] sm:$0xff] %vm1563, %v1551
      %1681 = vst.msk [vmem:[%s199 + $0x3a8] sm:$0xff] %vm1563, %v1552
      %1682 = vst.msk [vmem:[%s199 + $0x3b0] sm:$0xff] %vm1563, %v1553
      %1683 = vst.msk [vmem:[%s199 + $0x3b8] sm:$0xff] %vm1563, %v1554
      %1684 = vst.msk [vmem:[%s199 + $0x3c0] sm:$0xff] %vm1563, %v1555
      %1685 = vst.msk [vmem:[%s199 + $0x3c8] sm:$0xff] %vm1563, %v1556
      %1686 = vst.msk [vmem:[%s199 + $0x3d0] sm:$0xff] %vm1563, %v1557
      %1687 = vst.msk [vmem:[%s199 + $0x3d8] sm:$0xff] %vm1563, %v1558
      %1688 = vst.msk [vmem:[%s199 + $0x3e0] sm:$0xff] %vm1563, %v1559
      %1689 = vst.msk [vmem:[%s199 + $0x3e8] sm:$0xff] %vm1563, %v1560
      %1690 = vst.msk [vmem:[%s199 + $0x3f0] sm:$0xff] %vm1563, %v1561
      %1691 = vst.msk [vmem:[%s199 + $0x3f8] sm:$0xff] %vm1563, %v1562
      %s1692 = smul.u32 128, %s15
      %p1693 = scmp.lt.s32.totalorder %s1692, 1023
      %s1694 = scalar_select %p1693, %s1692, 1023
      %s1695 = smul.addr %s1694, 8
      %s1696 = scalar_lea.vmem %s4, %s1695
      // Predicated region
      $region37: #{generator_forward.11} parent=35 // pred_check
        %p1697 = pneg %p122
      $region38: #{generator_forward.11} parent=35 // pred_check_branch
        %1699 = sbr.rel (%p1697) target = $region40
      $region39: #{generator_forward.11} parent=35 // pred_region
        %s1700 = smul.u32 128, %s15
      $region40: #{generator_forward.11} parent=35 // pred_fallthru
        _
    $region36: #{generator_forward.11} parent=5 // pred_fallthru
      _
    %p1701 = scmp.le.s32.totalorder 2, %s10
    // Predicated region
    $region41: #{generator_forward.11} parent=5 // pred_check
      %p1702 = pneg %p1701
    $region42: #{generator_forward.11} parent=5 // pred_check_branch
      %1704 = sbr.rel (%p1702) target = $region44
    $region43: #{generator_forward.11} parent=5 // pred_region
      %s1705 = ssub.s32 %s10, 2
      // Predicated region
      $region45: #{generator_forward.11} parent=43 // pred_check
        %p1706 = pneg %p128
      $region46: #{generator_forward.11} parent=43 // pred_check_branch
        %1708 = sbr.rel (%p1706) target = $region48
      $region47: #{generator_forward.11} parent=43 // pred_region
        %s1709 = smul.u32 128, %s16
        %p1710 = scmp.lt.s32.totalorder %s1709, 1023
        %s1711 = scalar_select %p1710, %s1709, 1023
        %s1712 = smul.addr %s1711, 8
        %s1713 = scalar_lea.vmem %s4, %s1712
      $region48: #{generator_forward.11} parent=43 // pred_fallthru
        _
    $region44: #{generator_forward.11} parent=5 // pred_fallthru
      _
  $region6: #{generator_forward.11} parent=0 // loop_footer
    %s14 = sadd.s32 1, %s10
  $region7: #{generator_forward.11} parent=0 // loop_footer_branch
    %9 = sbr.rel target = $region3
  $region8: #{generator_forward.11} parent=0 // loop_exit
    _

</llo_original>
